<compile_context>
chip_gen: v7x
topology: tpu7x:2x2x1
jax: 0.10.0
libtpu: 0.0.40
codegen_flags: <defaults>
</compile_context>

<pallas_src>
import functools
import numpy as np
import jax
import jax.numpy as jnp
from jax.experimental import pallas as pl
from jax.experimental.pallas import tpu as pltpu

K = 4        # kernel_size
STRIDE = 2
PAD = 1
OUT_PAD = 2  # output_padding


def deconv_silu_kernel(x_ref, w_ref, b_ref, o_ref, *, cin):
    """x_ref: [M, 9*cin]        bf16 im2col rows (3x3 shifted windows stacked along lanes)
       w_ref: [4, 2, 2*cin, Co] bf16 (per output parity: two row-groups of 2 taps each)
       b_ref: [1, Co]           f32
       o_ref: [4, M, Co]        bf16 parity-blocked SiLU(deconv) output."""
    m, cout = o_ref.shape[1], o_ref.shape[2]
    bias = jnp.broadcast_to(b_ref[...], (m, cout))          # hoisted: ONE broadcast, not 4
    for ph in range(2):
        for pw in range(2):
            par = 2 * ph + pw
            g = 3 * ph + pw      # row-major index of window (a=ph, b=pw) in the 3x3 stack
            # Two accumulating MXU matmuls against lane-aligned window pairs
            # (windows g,g+1 and g+3,g+4) -- no lane-concat VMEM temporary.
            v1 = jnp.dot(x_ref[:, g * cin:(g + 2) * cin], w_ref[par, 0],
                         preferred_element_type=jnp.float32)
            v1 = v1 + jnp.dot(x_ref[:, (g + 3) * cin:(g + 5) * cin], w_ref[par, 1],
                              preferred_element_type=jnp.float32)
            v1 = v1 + bias                                           # [M, Cout] f32
            sig = 0.5 * jnp.tanh(0.5 * v1) + 0.5   # single EUP transcendental sigmoid
            o_ref[par] = (v1 * sig).astype(o_ref.dtype)     # one dense store per parity


def _build_pallas_call(N, Nb, Sp, Cin, Cout, single_buffer_weights):
    kern = functools.partial(deconv_silu_kernel, cin=Cin)
    M_blk = Nb * Sp

    w_spec_kwargs = {}
    if single_buffer_weights:
        # Constant-index weight block never changes: a single VMEM buffer suffices.
        w_spec_kwargs["pipeline_mode"] = pl.Buffered(1)

    # VMEM sizing from actual usage (worst-case double-buffered weights) + headroom.
    vmem_need = (
        2 * 4 * 2 * (2 * Cin) * Cout * 2      # weights, bf16 (worst case 2 buffers)
        + 2 * M_blk * 9 * Cin * 2             # im2col input, bf16, double-buffered
        + 2 * 4 * M_blk * Cout * 2            # parity output, bf16, double-buffered
        + 2 * Cout * 4                        # bias
    )
    vmem_limit = min(max(int(vmem_need * 1.5) + (2 << 20), 16 << 20), 64 << 20)

    return pl.pallas_call(
        kern,
        out_shape=jax.ShapeDtypeStruct((4, N * Sp, Cout), jnp.bfloat16),
        grid_spec=pltpu.PrefetchScalarGridSpec(
            num_scalar_prefetch=0,
            grid=(N // Nb,),
            in_specs=[
                pl.BlockSpec((M_blk, 9 * Cin), lambda i: (i, 0)),
                pl.BlockSpec((4, 2, 2 * Cin, Cout), lambda i: (0, 0, 0, 0),
                             **w_spec_kwargs),
                pl.BlockSpec((1, Cout), lambda i: (0, 0)),
            ],
            out_specs=pl.BlockSpec((4, M_blk, Cout), lambda i: (0, i, 0)),
        ),
        compiler_params=pltpu.CompilerParams(
            dimension_semantics=("parallel",),        # batch blocks are independent
            vmem_limit_bytes=vmem_limit,
        ),
    )


def conv_transpose_silu(x_nchw, weight, bias, *, batch_block=2, out_dtype=jnp.float32):
    """x_nchw: [N, Cin, H, W]; weight: [Cin, Cout, 4, 4] (PyTorch ConvTranspose2d layout);
    bias: [Cout]. Returns SiLU(ConvTranspose2d(x)) in NCHW: [N, Cout, 2H+2, 2W+2].
    Contract: matmul operands are bf16 (f32 accumulation); kernel/epilogue run in bf16."""
    N, Cin, H, W = x_nchw.shape
    Cout = weight.shape[1]
    Hp, Wp = H + 1, W + 1
    S = Hp * Wp
    Sp = ((S + 15) // 16) * 16               # round rows to 16: packed bf16 sublane tiles
    Nb = batch_block
    assert N % Nb == 0, "batch_block must divide N"

    # --- input prep: NHWC, cast to bf16 FIRST, pad (1 top, 2 bottom) per spatial dim so
    #     every 3x3-shifted (Hp, Wp) window exists, stack the 9 windows along lanes ---
    x = jnp.transpose(x_nchw, (0, 2, 3, 1)).astype(jnp.bfloat16)     # [N, H, W, Cin]
    xpad = jnp.pad(x, ((0, 0), (1, 2), (1, 2), (0, 0)))              # [N, H+3, W+3, Cin]
    wins = [xpad[:, a:a + Hp, b:b + Wp, :] for a in range(3) for b in range(3)]
    x9 = jnp.concatenate(wins, axis=-1).reshape(N, S, 9 * Cin)       # [N, S, 9*Cin]
    x9 = jnp.pad(x9, ((0, 0), (0, Sp - S), (0, 0)))                  # [N, Sp, 9*Cin]
    x9 = x9.reshape(N * Sp, 9 * Cin)                                 # batch flattened into M

    # --- weight repack: window (a, b) of parity (ph, pw) uses tap (ph+3-2a, pw+3-2b).
    #     Per parity: half0 = windows (ph,pw),(ph,pw+1); half1 = (ph+1,pw),(ph+1,pw+1) ---
    w_par = []
    for ph in range(2):
        for pw in range(2):
            half0 = jnp.concatenate([weight[:, :, 3 - ph, 3 - pw],
                                     weight[:, :, 3 - ph, 1 - pw]], axis=0)   # [2*Cin, Cout]
            half1 = jnp.concatenate([weight[:, :, 1 - ph, 3 - pw],
                                     weight[:, :, 1 - ph, 1 - pw]], axis=0)   # [2*Cin, Cout]
            w_par.append(jnp.stack([half0, half1], axis=0))                   # [2, 2*Cin, Cout]
    w_all = jnp.stack(w_par, axis=0).astype(jnp.bfloat16)            # [4, 2, 2*Cin, Cout]
    b2 = bias.reshape(1, Cout).astype(jnp.float32)

    out = None
    for single_buf in (True, False):
        try:
            call = _build_pallas_call(N, Nb, Sp, Cin, Cout, single_buf)
            out = call(x9, w_all, b2)
            break
        except Exception:
            if not single_buf:
                raise                          # both attempts failed -> real error

    # --- un-parity (bf16): y[n, 2m+ph, 2l+pw, c] = out[2*ph+pw, n*Sp + m*Wp + l, c] ---
    out = out.reshape(2, 2, N, Sp, Cout)[:, :, :, :S, :].reshape(2, 2, N, Hp, Wp, Cout)
    y = jnp.transpose(out, (2, 3, 0, 4, 1, 5)).reshape(N, 2 * Hp, 2 * Wp, Cout)
    return jnp.transpose(y, (0, 3, 1, 2)).astype(out_dtype)          # NCHW


def reference_numpy(x_nchw, weight, bias):
    """Direct ConvTranspose2d(+SiLU) per the defining formula, in float64."""
    x = np.asarray(x_nchw, np.float64)
    w = np.asarray(weight, np.float64)
    b = np.asarray(bias, np.float64)
    N, Cin, H, W = x.shape
    Cout = w.shape[1]
    Hout = (H - 1) * STRIDE - 2 * PAD + K + OUT_PAD
    Wout = (W - 1) * STRIDE - 2 * PAD + K + OUT_PAD
    y = np.zeros((N, Cout, Hout, Wout), np.float64)
    for kh in range(K):
        for kw in range(K):
            for ih in range(H):
                oh = ih * STRIDE - PAD + kh
                if not (0 <= oh < Hout):
                    continue
                for iw in range(W):
                    ow = iw * STRIDE - PAD + kw
                    if not (0 <= ow < Wout):
                        continue
                    y[:, :, oh, ow] += x[:, :, ih, iw] @ w[:, :, kh, kw]
    y += b[None, :, None, None]
    return y * (1.0 / (1.0 + np.exp(-y)))


if __name__ == "__main__":
    # Small shapes consistent with the module's forward (channels reduced 512 -> 128 for the
    # demo, batch raised to 4 so the parallel grid axis has >= 2 steps; spatial 8x8 as spec).
    N, Cin, Cout, H, W = 4, 128, 128, 8, 8
    key = jax.random.PRNGKey(0)
    kx, kw, kb = jax.random.split(key, 3)
    x = jax.random.normal(kx, (N, Cin, H, W), jnp.float32)
    weight = jax.random.normal(kw, (Cin, Cout, K, K), jnp.float32) * 0.05
    bias = jax.random.normal(kb, (Cout,), jnp.float32) * 0.1

    out = jax.block_until_ready(conv_transpose_silu(x, weight, bias, batch_block=2))
    assert out.shape == (N, Cout, 2 * H + 2, 2 * W + 2), out.shape

    # Compare against the formula reference evaluated on the same bf16-rounded operands the
    # kernel sees (kernel accumulates in f32; kernel output/epilogue are bf16).
    x_q = np.asarray(x.astype(jnp.bfloat16).astype(jnp.float32))
    w_q = np.asarray(weight.astype(jnp.bfloat16).astype(jnp.float32))
    ref = reference_numpy(x_q, w_q, np.asarray(bias))
    np.testing.assert_allclose(np.asarray(out, np.float64), ref, rtol=2e-2, atol=2e-2)
    print("KERNEL_OK")
</pallas_src>

<mosaic_0001>
module attributes {stable_mosaic.version = 11 : i64} {
  func.func @deconv_silu_kernel(%arg0: i32, %arg1: memref<192x1152xbf16, #tpu.memory_space<vmem>>, %arg2: memref<4x2x256x128xbf16, #tpu.memory_space<vmem>>, %arg3: memref<1x128xf32, #tpu.memory_space<vmem>>, %arg4: memref<4x192x128xbf16, #tpu.memory_space<vmem>>) attributes {dimension_semantics = [#tpu.dimension_semantics<parallel>], iteration_bounds = array<i64: 2>, scalar_prefetch = 0 : i64, scratch_operands = 0 : i64, tpu.core_type = #tpu.core_type<tc>, window_params = [{transform_indices = @transform_0, window_bounds = array<i64: 192, 1152>}, {pipeline_mode = #tpu.pipeline_mode<synchronous>, transform_indices = @transform_1, window_bounds = array<i64: 4, 2, 256, 128>}, {pipeline_mode = #tpu.pipeline_mode<synchronous>, transform_indices = @transform_2, window_bounds = array<i64: 1, 128>}, {transform_indices = @transform_3, window_bounds = array<i64: 4, 192, 128>}]} {
    %c0 = arith.constant 0 : index
    %c0_0 = arith.constant 0 : index
    %0 = vector.load %arg3[%c0, %c0_0] : memref<1x128xf32, #tpu.memory_space<vmem>>, vector<1x128xf32>
    %1 = vector.shape_cast %0 : vector<1x128xf32> to vector<1x128xf32>
    %2 = vector.broadcast %1 : vector<1x128xf32> to vector<192x128xf32>
    %c0_1 = arith.constant 0 : index
    %c0_2 = arith.constant 0 : index
    %3 = vector.load %arg1[%c0_1, %c0_2] : memref<192x1152xbf16, #tpu.memory_space<vmem>>, vector<192x256xbf16>
    %c0_3 = arith.constant 0 : index
    %c0_4 = arith.constant 0 : index
    %c0_5 = arith.constant 0 : index
    %c0_6 = arith.constant 0 : index
    %4 = vector.load %arg2[%c0_3, %c0_4, %c0_5, %c0_6] : memref<4x2x256x128xbf16, #tpu.memory_space<vmem>>, vector<1x1x256x128xbf16>
    %5 = vector.shape_cast %4 : vector<1x1x256x128xbf16> to vector<256x128xbf16>
    %cst = arith.constant dense<0.000000e+00> : vector<192x128xf32>
    %6 = tpu.matmul %3, %5, %cst {dimension_numbers = #tpu.dot_dimension_numbers<[1], [0], [0], [1], [0, 0, 1, 1], [], []>} : vector<192x256xbf16>, vector<256x128xbf16>, vector<192x128xf32> -> vector<192x128xf32>
    %c0_7 = arith.constant 0 : index
    %c384 = arith.constant 384 : index
    %7 = vector.load %arg1[%c0_7, %c384] : memref<192x1152xbf16, #tpu.memory_space<vmem>>, vector<192x256xbf16>
    %c0_8 = arith.constant 0 : index
    %c1 = arith.constant 1 : index
    %c0_9 = arith.constant 0 : index
    %c0_10 = arith.constant 0 : index
    %8 = vector.load %arg2[%c0_8, %c1, %c0_9, %c0_10] : memref<4x2x256x128xbf16, #tpu.memory_space<vmem>>, vector<1x1x256x128xbf16>
    %9 = vector.shape_cast %8 : vector<1x1x256x128xbf16> to vector<256x128xbf16>
    %cst_11 = arith.constant dense<0.000000e+00> : vector<192x128xf32>
    %10 = tpu.matmul %7, %9, %cst_11 {dimension_numbers = #tpu.dot_dimension_numbers<[1], [0], [0], [1], [0, 0, 1, 1], [], []>} : vector<192x256xbf16>, vector<256x128xbf16>, vector<192x128xf32> -> vector<192x128xf32>
    %11 = arith.addf %6, %10 : vector<192x128xf32>
    %12 = arith.addf %11, %2 : vector<192x128xf32>
    %cst_12 = arith.constant 5.000000e-01 : f32
    %13 = vector.broadcast %cst_12 : f32 to vector<192x128xf32>
    %14 = arith.mulf %13, %12 : vector<192x128xf32>
    %15 = math.tanh %14 : vector<192x128xf32>
    %cst_13 = arith.constant 5.000000e-01 : f32
    %16 = vector.broadcast %cst_13 : f32 to vector<192x128xf32>
    %17 = arith.mulf %16, %15 : vector<192x128xf32>
    %cst_14 = arith.constant 5.000000e-01 : f32
    %18 = vector.broadcast %cst_14 : f32 to vector<192x128xf32>
    %19 = arith.addf %17, %18 : vector<192x128xf32>
    %20 = arith.mulf %12, %19 : vector<192x128xf32>
    %21 = arith.truncf %20 : vector<192x128xf32> to vector<192x128xbf16>
    %c0_15 = arith.constant 0 : index
    %c0_16 = arith.constant 0 : index
    %c0_17 = arith.constant 0 : index
    %22 = vector.load %arg4[%c0_15, %c0_16, %c0_17] : memref<4x192x128xbf16, #tpu.memory_space<vmem>>, vector<1x192x128xbf16>
    %23 = vector.shape_cast %22 : vector<1x192x128xbf16> to vector<192x128xbf16>
    %24 = vector.shape_cast %21 : vector<192x128xbf16> to vector<1x192x128xbf16>
    tpu.vector_store %arg4[%c0_15, %c0_16, %c0_17], %24 {strides = array<i32>} : memref<4x192x128xbf16, #tpu.memory_space<vmem>>, vector<1x192x128xbf16>,
    %c0_18 = arith.constant 0 : index
    %c128 = arith.constant 128 : index
    %25 = vector.load %arg1[%c0_18, %c128] : memref<192x1152xbf16, #tpu.memory_space<vmem>>, vector<192x256xbf16>
    %c1_19 = arith.constant 1 : index
    %c0_20 = arith.constant 0 : index
    %c0_21 = arith.constant 0 : index
    %c0_22 = arith.constant 0 : index
    %26 = vector.load %arg2[%c1_19, %c0_20, %c0_21, %c0_22] : memref<4x2x256x128xbf16, #tpu.memory_space<vmem>>, vector<1x1x256x128xbf16>
    %27 = vector.shape_cast %26 : vector<1x1x256x128xbf16> to vector<256x128xbf16>
    %cst_23 = arith.constant dense<0.000000e+00> : vector<192x128xf32>
    %28 = tpu.matmul %25, %27, %cst_23 {dimension_numbers = #tpu.dot_dimension_numbers<[1], [0], [0], [1], [0, 0, 1, 1], [], []>} : vector<192x256xbf16>, vector<256x128xbf16>, vector<192x128xf32> -> vector<192x128xf32>
    %c0_24 = arith.constant 0 : index
    %c512 = arith.constant 512 : index
    %29 = vector.load %arg1[%c0_24, %c512] : memref<192x1152xbf16, #tpu.memory_space<vmem>>, vector<192x256xbf16>
    %c1_25 = arith.constant 1 : index
    %c1_26 = arith.constant 1 : index
    %c0_27 = arith.constant 0 : index
    %c0_28 = arith.constant 0 : index
    %30 = vector.load %arg2[%c1_25, %c1_26, %c0_27, %c0_28] : memref<4x2x256x128xbf16, #tpu.memory_space<vmem>>, vector<1x1x256x128xbf16>
    %31 = vector.shape_cast %30 : vector<1x1x256x128xbf16> to vector<256x128xbf16>
    %cst_29 = arith.constant dense<0.000000e+00> : vector<192x128xf32>
    %32 = tpu.matmul %29, %31, %cst_29 {dimension_numbers = #tpu.dot_dimension_numbers<[1], [0], [0], [1], [0, 0, 1, 1], [], []>} : vector<192x256xbf16>, vector<256x128xbf16>, vector<192x128xf32> -> vector<192x128xf32>
    %33 = arith.addf %28, %32 : vector<192x128xf32>
    %34 = arith.addf %33, %2 : vector<192x128xf32>
    %cst_30 = arith.constant 5.000000e-01 : f32
    %35 = vector.broadcast %cst_30 : f32 to vector<192x128xf32>
    %36 = arith.mulf %35, %34 : vector<192x128xf32>
    %37 = math.tanh %36 : vector<192x128xf32>
    %cst_31 = arith.constant 5.000000e-01 : f32
    %38 = vector.broadcast %cst_31 : f32 to vector<192x128xf32>
    %39 = arith.mulf %38, %37 : vector<192x128xf32>
    %cst_32 = arith.constant 5.000000e-01 : f32
    %40 = vector.broadcast %cst_32 : f32 to vector<192x128xf32>
    %41 = arith.addf %39, %40 : vector<192x128xf32>
    %42 = arith.mulf %34, %41 : vector<192x128xf32>
    %43 = arith.truncf %42 : vector<192x128xf32> to vector<192x128xbf16>
    %c1_33 = arith.constant 1 : index
    %c0_34 = arith.constant 0 : index
    %c0_35 = arith.constant 0 : index
    %44 = vector.load %arg4[%c1_33, %c0_34, %c0_35] : memref<4x192x128xbf16, #tpu.memory_space<vmem>>, vector<1x192x128xbf16>
    %45 = vector.shape_cast %44 : vector<1x192x128xbf16> to vector<192x128xbf16>
    %46 = vector.shape_cast %43 : vector<192x128xbf16> to vector<1x192x128xbf16>
    tpu.vector_store %arg4[%c1_33, %c0_34, %c0_35], %46 {strides = array<i32>} : memref<4x192x128xbf16, #tpu.memory_space<vmem>>, vector<1x192x128xbf16>,
    %c0_36 = arith.constant 0 : index
    %c384_37 = arith.constant 384 : index
    %47 = vector.load %arg1[%c0_36, %c384_37] : memref<192x1152xbf16, #tpu.memory_space<vmem>>, vector<192x256xbf16>
    %c2 = arith.constant 2 : index
    %c0_38 = arith.constant 0 : index
    %c0_39 = arith.constant 0 : index
    %c0_40 = arith.constant 0 : index
    %48 = vector.load %arg2[%c2, %c0_38, %c0_39, %c0_40] : memref<4x2x256x128xbf16, #tpu.memory_space<vmem>>, vector<1x1x256x128xbf16>
    %49 = vector.shape_cast %48 : vector<1x1x256x128xbf16> to vector<256x128xbf16>
    %cst_41 = arith.constant dense<0.000000e+00> : vector<192x128xf32>
    %50 = tpu.matmul %47, %49, %cst_41 {dimension_numbers = #tpu.dot_dimension_numbers<[1], [0], [0], [1], [0, 0, 1, 1], [], []>} : vector<192x256xbf16>, vector<256x128xbf16>, vector<192x128xf32> -> vector<192x128xf32>
    %c0_42 = arith.constant 0 : index
    %c768 = arith.constant 768 : index
    %51 = vector.load %arg1[%c0_42, %c768] : memref<192x1152xbf16, #tpu.memory_space<vmem>>, vector<192x256xbf16>
    %c2_43 = arith.constant 2 : index
    %c1_44 = arith.constant 1 : index
    %c0_45 = arith.constant 0 : index
    %c0_46 = arith.constant 0 : index
    %52 = vector.load %arg2[%c2_43, %c1_44, %c0_45, %c0_46] : memref<4x2x256x128xbf16, #tpu.memory_space<vmem>>, vector<1x1x256x128xbf16>
    %53 = vector.shape_cast %52 : vector<1x1x256x128xbf16> to vector<256x128xbf16>
    %cst_47 = arith.constant dense<0.000000e+00> : vector<192x128xf32>
    %54 = tpu.matmul %51, %53, %cst_47 {dimension_numbers = #tpu.dot_dimension_numbers<[1], [0], [0], [1], [0, 0, 1, 1], [], []>} : vector<192x256xbf16>, vector<256x128xbf16>, vector<192x128xf32> -> vector<192x128xf32>
    %55 = arith.addf %50, %54 : vector<192x128xf32>
    %56 = arith.addf %55, %2 : vector<192x128xf32>
    %cst_48 = arith.constant 5.000000e-01 : f32
    %57 = vector.broadcast %cst_48 : f32 to vector<192x128xf32>
    %58 = arith.mulf %57, %56 : vector<192x128xf32>
    %59 = math.tanh %58 : vector<192x128xf32>
    %cst_49 = arith.constant 5.000000e-01 : f32
    %60 = vector.broadcast %cst_49 : f32 to vector<192x128xf32>
    %61 = arith.mulf %60, %59 : vector<192x128xf32>
    %cst_50 = arith.constant 5.000000e-01 : f32
    %62 = vector.broadcast %cst_50 : f32 to vector<192x128xf32>
    %63 = arith.addf %61, %62 : vector<192x128xf32>
    %64 = arith.mulf %56, %63 : vector<192x128xf32>
    %65 = arith.truncf %64 : vector<192x128xf32> to vector<192x128xbf16>
    %c2_51 = arith.constant 2 : index
    %c0_52 = arith.constant 0 : index
    %c0_53 = arith.constant 0 : index
    %66 = vector.load %arg4[%c2_51, %c0_52, %c0_53] : memref<4x192x128xbf16, #tpu.memory_space<vmem>>, vector<1x192x128xbf16>
    %67 = vector.shape_cast %66 : vector<1x192x128xbf16> to vector<192x128xbf16>
    %68 = vector.shape_cast %65 : vector<192x128xbf16> to vector<1x192x128xbf16>
    tpu.vector_store %arg4[%c2_51, %c0_52, %c0_53], %68 {strides = array<i32>} : memref<4x192x128xbf16, #tpu.memory_space<vmem>>, vector<1x192x128xbf16>,
    %c0_54 = arith.constant 0 : index
    %c512_55 = arith.constant 512 : index
    %69 = vector.load %arg1[%c0_54, %c512_55] : memref<192x1152xbf16, #tpu.memory_space<vmem>>, vector<192x256xbf16>
    %c3 = arith.constant 3 : index
    %c0_56 = arith.constant 0 : index
    %c0_57 = arith.constant 0 : index
    %c0_58 = arith.constant 0 : index
    %70 = vector.load %arg2[%c3, %c0_56, %c0_57, %c0_58] : memref<4x2x256x128xbf16, #tpu.memory_space<vmem>>, vector<1x1x256x128xbf16>
    %71 = vector.shape_cast %70 : vector<1x1x256x128xbf16> to vector<256x128xbf16>
    %cst_59 = arith.constant dense<0.000000e+00> : vector<192x128xf32>
    %72 = tpu.matmul %69, %71, %cst_59 {dimension_numbers = #tpu.dot_dimension_numbers<[1], [0], [0], [1], [0, 0, 1, 1], [], []>} : vector<192x256xbf16>, vector<256x128xbf16>, vector<192x128xf32> -> vector<192x128xf32>
    %c0_60 = arith.constant 0 : index
    %c896 = arith.constant 896 : index
    %73 = vector.load %arg1[%c0_60, %c896] : memref<192x1152xbf16, #tpu.memory_space<vmem>>, vector<192x256xbf16>
    %c3_61 = arith.constant 3 : index
    %c1_62 = arith.constant 1 : index
    %c0_63 = arith.constant 0 : index
    %c0_64 = arith.constant 0 : index
    %74 = vector.load %arg2[%c3_61, %c1_62, %c0_63, %c0_64] : memref<4x2x256x128xbf16, #tpu.memory_space<vmem>>, vector<1x1x256x128xbf16>
    %75 = vector.shape_cast %74 : vector<1x1x256x128xbf16> to vector<256x128xbf16>
    %cst_65 = arith.constant dense<0.000000e+00> : vector<192x128xf32>
    %76 = tpu.matmul %73, %75, %cst_65 {dimension_numbers = #tpu.dot_dimension_numbers<[1], [0], [0], [1], [0, 0, 1, 1], [], []>} : vector<192x256xbf16>, vector<256x128xbf16>, vector<192x128xf32> -> vector<192x128xf32>
    %77 = arith.addf %72, %76 : vector<192x128xf32>
    %78 = arith.addf %77, %2 : vector<192x128xf32>
    %cst_66 = arith.constant 5.000000e-01 : f32
    %79 = vector.broadcast %cst_66 : f32 to vector<192x128xf32>
    %80 = arith.mulf %79, %78 : vector<192x128xf32>
    %81 = math.tanh %80 : vector<192x128xf32>
    %cst_67 = arith.constant 5.000000e-01 : f32
    %82 = vector.broadcast %cst_67 : f32 to vector<192x128xf32>
    %83 = arith.mulf %82, %81 : vector<192x128xf32>
    %cst_68 = arith.constant 5.000000e-01 : f32
    %84 = vector.broadcast %cst_68 : f32 to vector<192x128xf32>
    %85 = arith.addf %83, %84 : vector<192x128xf32>
    %86 = arith.mulf %78, %85 : vector<192x128xf32>
    %87 = arith.truncf %86 : vector<192x128xf32> to vector<192x128xbf16>
    %c3_69 = arith.constant 3 : index
    %c0_70 = arith.constant 0 : index
    %c0_71 = arith.constant 0 : index
    %88 = vector.load %arg4[%c3_69, %c0_70, %c0_71] : memref<4x192x128xbf16, #tpu.memory_space<vmem>>, vector<1x192x128xbf16>
    %89 = vector.shape_cast %88 : vector<1x192x128xbf16> to vector<192x128xbf16>
    %90 = vector.shape_cast %87 : vector<192x128xbf16> to vector<1x192x128xbf16>
    tpu.vector_store %arg4[%c3_69, %c0_70, %c0_71], %90 {strides = array<i32>} : memref<4x192x128xbf16, #tpu.memory_space<vmem>>, vector<1x192x128xbf16>,
    return
  }
  func.func @transform_0(%arg0: i32) -> (i32, i32) {
    %c0_i32 = arith.constant 0 : i32
    %c0_i32_0 = arith.constant 0 : i32
    return %arg0, %c0_i32 : i32, i32
  }
  func.func @transform_1(%arg0: i32) -> (i32, i32, i32, i32) {
    %c0_i32 = arith.constant 0 : i32
    %c0_i32_0 = arith.constant 0 : i32
    %c0_i32_1 = arith.constant 0 : i32
    %c0_i32_2 = arith.constant 0 : i32
    %c0_i32_3 = arith.constant 0 : i32
    return %c0_i32, %c0_i32_0, %c0_i32_1, %c0_i32_2 : i32, i32, i32, i32
  }
  func.func @transform_2(%arg0: i32) -> (i32, i32) {
    %c0_i32 = arith.constant 0 : i32
    %c0_i32_0 = arith.constant 0 : i32
    %c0_i32_1 = arith.constant 0 : i32
    return %c0_i32, %c0_i32_0 : i32, i32
  }
  func.func @transform_3(%arg0: i32) -> (i32, i32, i32) {
    %c0_i32 = arith.constant 0 : i32
    %c0_i32_0 = arith.constant 0 : i32
    %c0_i32_1 = arith.constant 0 : i32
    return %c0_i32, %arg0, %c0_i32_0 : i32, i32, i32
  }
}

module attributes {stable_mosaic.version = 11 : i64} {
  func.func @deconv_silu_kernel(%arg0: i32, %arg1: memref<192x1152xbf16, #tpu.memory_space<vmem>>, %arg2: memref<4x2x256x128xbf16, #tpu.memory_space<vmem>>, %arg3: memref<1x128xf32, #tpu.memory_space<vmem>>, %arg4: memref<4x192x128xbf16, #tpu.memory_space<vmem>>) attributes {dimension_semantics = [#tpu.dimension_semantics<parallel>], iteration_bounds = array<i64: 2>, scalar_prefetch = 0 : i64, scratch_operands = 0 : i64, tpu.core_type = #tpu.core_type<tc>, window_params = [{transform_indices = @transform_0, window_bounds = array<i64: 192, 1152>}, {pipeline_mode = #tpu.pipeline_mode<synchronous>, transform_indices = @transform_1, window_bounds = array<i64: 4, 2, 256, 128>}, {pipeline_mode = #tpu.pipeline_mode<synchronous>, transform_indices = @transform_2, window_bounds = array<i64: 1, 128>}, {transform_indices = @transform_3, window_bounds = array<i64: 4, 192, 128>}]} {
    %c0 = arith.constant 0 : index
    %c0_0 = arith.constant 0 : index
    %0 = vector.load %arg3[%c0, %c0_0] : memref<1x128xf32, #tpu.memory_space<vmem>>, vector<1x128xf32>
    %1 = vector.shape_cast %0 : vector<1x128xf32> to vector<1x128xf32>
    %2 = vector.broadcast %1 : vector<1x128xf32> to vector<192x128xf32>
    %c0_1 = arith.constant 0 : index
    %c0_2 = arith.constant 0 : index
    %3 = vector.load %arg1[%c0_1, %c0_2] : memref<192x1152xbf16, #tpu.memory_space<vmem>>, vector<192x256xbf16>
    %c0_3 = arith.constant 0 : index
    %c0_4 = arith.constant 0 : index
    %c0_5 = arith.constant 0 : index
    %c0_6 = arith.constant 0 : index
    %4 = vector.load %arg2[%c0_3, %c0_4, %c0_5, %c0_6] : memref<4x2x256x128xbf16, #tpu.memory_space<vmem>>, vector<1x1x256x128xbf16>
    %5 = vector.shape_cast %4 : vector<1x1x256x128xbf16> to vector<256x128xbf16>
    %cst = arith.constant dense<0.000000e+00> : vector<192x128xf32>
    %6 = tpu.matmul %3, %5, %cst {dimension_numbers = #tpu.dot_dimension_numbers<[1], [0], [0], [1], [0, 0, 1, 1], [], []>} : vector<192x256xbf16>, vector<256x128xbf16>, vector<192x128xf32> -> vector<192x128xf32>
    %c0_7 = arith.constant 0 : index
    %c384 = arith.constant 384 : index
    %7 = vector.load %arg1[%c0_7, %c384] : memref<192x1152xbf16, #tpu.memory_space<vmem>>, vector<192x256xbf16>
    %c0_8 = arith.constant 0 : index
    %c1 = arith.constant 1 : index
    %c0_9 = arith.constant 0 : index
    %c0_10 = arith.constant 0 : index
    %8 = vector.load %arg2[%c0_8, %c1, %c0_9, %c0_10] : memref<4x2x256x128xbf16, #tpu.memory_space<vmem>>, vector<1x1x256x128xbf16>
    %9 = vector.shape_cast %8 : vector<1x1x256x128xbf16> to vector<256x128xbf16>
    %cst_11 = arith.constant dense<0.000000e+00> : vector<192x128xf32>
    %10 = tpu.matmul %7, %9, %cst_11 {dimension_numbers = #tpu.dot_dimension_numbers<[1], [0], [0], [1], [0, 0, 1, 1], [], []>} : vector<192x256xbf16>, vector<256x128xbf16>, vector<192x128xf32> -> vector<192x128xf32>
    %11 = arith.addf %6, %10 : vector<192x128xf32>
    %12 = arith.addf %11, %2 : vector<192x128xf32>
    %cst_12 = arith.constant 5.000000e-01 : f32
    %13 = vector.broadcast %cst_12 : f32 to vector<192x128xf32>
    %14 = arith.mulf %13, %12 : vector<192x128xf32>
    %15 = math.tanh %14 : vector<192x128xf32>
    %cst_13 = arith.constant 5.000000e-01 : f32
    %16 = vector.broadcast %cst_13 : f32 to vector<192x128xf32>
    %17 = arith.mulf %16, %15 : vector<192x128xf32>
    %cst_14 = arith.constant 5.000000e-01 : f32
    %18 = vector.broadcast %cst_14 : f32 to vector<192x128xf32>
    %19 = arith.addf %17, %18 : vector<192x128xf32>
    %20 = arith.mulf %12, %19 : vector<192x128xf32>
    %21 = arith.truncf %20 : vector<192x128xf32> to vector<192x128xbf16>
    %c0_15 = arith.constant 0 : index
    %c0_16 = arith.constant 0 : index
    %c0_17 = arith.constant 0 : index
    %22 = vector.load %arg4[%c0_15, %c0_16, %c0_17] : memref<4x192x128xbf16, #tpu.memory_space<vmem>>, vector<1x192x128xbf16>
    %23 = vector.shape_cast %22 : vector<1x192x128xbf16> to vector<192x128xbf16>
    %24 = vector.shape_cast %21 : vector<192x128xbf16> to vector<1x192x128xbf16>
    tpu.vector_store %arg4[%c0_15, %c0_16, %c0_17], %24 {strides = array<i32>} : memref<4x192x128xbf16, #tpu.memory_space<vmem>>, vector<1x192x128xbf16>,
    %c0_18 = arith.constant 0 : index
    %c128 = arith.constant 128 : index
    %25 = vector.load %arg1[%c0_18, %c128] : memref<192x1152xbf16, #tpu.memory_space<vmem>>, vector<192x256xbf16>
    %c1_19 = arith.constant 1 : index
    %c0_20 = arith.constant 0 : index
    %c0_21 = arith.constant 0 : index
    %c0_22 = arith.constant 0 : index
    %26 = vector.load %arg2[%c1_19, %c0_20, %c0_21, %c0_22] : memref<4x2x256x128xbf16, #tpu.memory_space<vmem>>, vector<1x1x256x128xbf16>
    %27 = vector.shape_cast %26 : vector<1x1x256x128xbf16> to vector<256x128xbf16>
    %cst_23 = arith.constant dense<0.000000e+00> : vector<192x128xf32>
    %28 = tpu.matmul %25, %27, %cst_23 {dimension_numbers = #tpu.dot_dimension_numbers<[1], [0], [0], [1], [0, 0, 1, 1], [], []>} : vector<192x256xbf16>, vector<256x128xbf16>, vector<192x128xf32> -> vector<192x128xf32>
    %c0_24 = arith.constant 0 : index
    %c512 = arith.constant 512 : index
    %29 = vector.load %arg1[%c0_24, %c512] : memref<192x1152xbf16, #tpu.memory_space<vmem>>, vector<192x256xbf16>
    %c1_25 = arith.constant 1 : index
    %c1_26 = arith.constant 1 : index
    %c0_27 = arith.constant 0 : index
    %c0_28 = arith.constant 0 : index
    %30 = vector.load %arg2[%c1_25, %c1_26, %c0_27, %c0_28] : memref<4x2x256x128xbf16, #tpu.memory_space<vmem>>, vector<1x1x256x128xbf16>
    %31 = vector.shape_cast %30 : vector<1x1x256x128xbf16> to vector<256x128xbf16>
    %cst_29 = arith.constant dense<0.000000e+00> : vector<192x128xf32>
    %32 = tpu.matmul %29, %31, %cst_29 {dimension_numbers = #tpu.dot_dimension_numbers<[1], [0], [0], [1], [0, 0, 1, 1], [], []>} : vector<192x256xbf16>, vector<256x128xbf16>, vector<192x128xf32> -> vector<192x128xf32>
    %33 = arith.addf %28, %32 : vector<192x128xf32>
    %34 = arith.addf %33, %2 : vector<192x128xf32>
    %cst_30 = arith.constant 5.000000e-01 : f32
    %35 = vector.broadcast %cst_30 : f32 to vector<192x128xf32>
    %36 = arith.mulf %35, %34 : vector<192x128xf32>
    %37 = math.tanh %36 : vector<192x128xf32>
    %cst_31 = arith.constant 5.000000e-01 : f32
    %38 = vector.broadcast %cst_31 : f32 to vector<192x128xf32>
    %39 = arith.mulf %38, %37 : vector<192x128xf32>
    %cst_32 = arith.constant 5.000000e-01 : f32
    %40 = vector.broadcast %cst_32 : f32 to vector<192x128xf32>
    %41 = arith.addf %39, %40 : vector<192x128xf32>
    %42 = arith.mulf %34, %41 : vector<192x128xf32>
    %43 = arith.truncf %42 : vector<192x128xf32> to vector<192x128xbf16>
    %c1_33 = arith.constant 1 : index
    %c0_34 = arith.constant 0 : index
    %c0_35 = arith.constant 0 : index
    %44 = vector.load %arg4[%c1_33, %c0_34, %c0_35] : memref<4x192x128xbf16, #tpu.memory_space<vmem>>, vector<1x192x128xbf16>
    %45 = vector.shape_cast %44 : vector<1x192x128xbf16> to vector<192x128xbf16>
    %46 = vector.shape_cast %43 : vector<192x128xbf16> to vector<1x192x128xbf16>
    tpu.vector_store %arg4[%c1_33, %c0_34, %c0_35], %46 {strides = array<i32>} : memref<4x192x128xbf16, #tpu.memory_space<vmem>>, vector<1x192x128xbf16>,
    %c0_36 = arith.constant 0 : index
    %c384_37 = arith.constant 384 : index
    %47 = vector.load %arg1[%c0_36, %c384_37] : memref<192x1152xbf16, #tpu.memory_space<vmem>>, vector<192x256xbf16>
    %c2 = arith.constant 2 : index
    %c0_38 = arith.constant 0 : index
    %c0_39 = arith.constant 0 : index
    %c0_40 = arith.constant 0 : index
    %48 = vector.load %arg2[%c2, %c0_38, %c0_39, %c0_40] : memref<4x2x256x128xbf16, #tpu.memory_space<vmem>>, vector<1x1x256x128xbf16>
    %49 = vector.shape_cast %48 : vector<1x1x256x128xbf16> to vector<256x128xbf16>
    %cst_41 = arith.constant dense<0.000000e+00> : vector<192x128xf32>
    %50 = tpu.matmul %47, %49, %cst_41 {dimension_numbers = #tpu.dot_dimension_numbers<[1], [0], [0], [1], [0, 0, 1, 1], [], []>} : vector<192x256xbf16>, vector<256x128xbf16>, vector<192x128xf32> -> vector<192x128xf32>
    %c0_42 = arith.constant 0 : index
    %c768 = arith.constant 768 : index
    %51 = vector.load %arg1[%c0_42, %c768] : memref<192x1152xbf16, #tpu.memory_space<vmem>>, vector<192x256xbf16>
    %c2_43 = arith.constant 2 : index
    %c1_44 = arith.constant 1 : index
    %c0_45 = arith.constant 0 : index
    %c0_46 = arith.constant 0 : index
    %52 = vector.load %arg2[%c2_43, %c1_44, %c0_45, %c0_46] : memref<4x2x256x128xbf16, #tpu.memory_space<vmem>>, vector<1x1x256x128xbf16>
    %53 = vector.shape_cast %52 : vector<1x1x256x128xbf16> to vector<256x128xbf16>
    %cst_47 = arith.constant dense<0.000000e+00> : vector<192x128xf32>
    %54 = tpu.matmul %51, %53, %cst_47 {dimension_numbers = #tpu.dot_dimension_numbers<[1], [0], [0], [1], [0, 0, 1, 1], [], []>} : vector<192x256xbf16>, vector<256x128xbf16>, vector<192x128xf32> -> vector<192x128xf32>
    %55 = arith.addf %50, %54 : vector<192x128xf32>
    %56 = arith.addf %55, %2 : vector<192x128xf32>
    %cst_48 = arith.constant 5.000000e-01 : f32
    %57 = vector.broadcast %cst_48 : f32 to vector<192x128xf32>
    %58 = arith.mulf %57, %56 : vector<192x128xf32>
    %59 = math.tanh %58 : vector<192x128xf32>
    %cst_49 = arith.constant 5.000000e-01 : f32
    %60 = vector.broadcast %cst_49 : f32 to vector<192x128xf32>
    %61 = arith.mulf %60, %59 : vector<192x128xf32>
    %cst_50 = arith.constant 5.000000e-01 : f32
    %62 = vector.broadcast %cst_50 : f32 to vector<192x128xf32>
    %63 = arith.addf %61, %62 : vector<192x128xf32>
    %64 = arith.mulf %56, %63 : vector<192x128xf32>
    %65 = arith.truncf %64 : vector<192x128xf32> to vector<192x128xbf16>
    %c2_51 = arith.constant 2 : index
    %c0_52 = arith.constant 0 : index
    %c0_53 = arith.constant 0 : index
    %66 = vector.load %arg4[%c2_51, %c0_52, %c0_53] : memref<4x192x128xbf16, #tpu.memory_space<vmem>>, vector<1x192x128xbf16>
    %67 = vector.shape_cast %66 : vector<1x192x128xbf16> to vector<192x128xbf16>
    %68 = vector.shape_cast %65 : vector<192x128xbf16> to vector<1x192x128xbf16>
    tpu.vector_store %arg4[%c2_51, %c0_52, %c0_53], %68 {strides = array<i32>} : memref<4x192x128xbf16, #tpu.memory_space<vmem>>, vector<1x192x128xbf16>,
    %c0_54 = arith.constant 0 : index
    %c512_55 = arith.constant 512 : index
    %69 = vector.load %arg1[%c0_54, %c512_55] : memref<192x1152xbf16, #tpu.memory_space<vmem>>, vector<192x256xbf16>
    %c3 = arith.constant 3 : index
    %c0_56 = arith.constant 0 : index
    %c0_57 = arith.constant 0 : index
    %c0_58 = arith.constant 0 : index
    %70 = vector.load %arg2[%c3, %c0_56, %c0_57, %c0_58] : memref<4x2x256x128xbf16, #tpu.memory_space<vmem>>, vector<1x1x256x128xbf16>
    %71 = vector.shape_cast %70 : vector<1x1x256x128xbf16> to vector<256x128xbf16>
    %cst_59 = arith.constant dense<0.000000e+00> : vector<192x128xf32>
    %72 = tpu.matmul %69, %71, %cst_59 {dimension_numbers = #tpu.dot_dimension_numbers<[1], [0], [0], [1], [0, 0, 1, 1], [], []>} : vector<192x256xbf16>, vector<256x128xbf16>, vector<192x128xf32> -> vector<192x128xf32>
    %c0_60 = arith.constant 0 : index
    %c896 = arith.constant 896 : index
    %73 = vector.load %arg1[%c0_60, %c896] : memref<192x1152xbf16, #tpu.memory_space<vmem>>, vector<192x256xbf16>
    %c3_61 = arith.constant 3 : index
    %c1_62 = arith.constant 1 : index
    %c0_63 = arith.constant 0 : index
    %c0_64 = arith.constant 0 : index
    %74 = vector.load %arg2[%c3_61, %c1_62, %c0_63, %c0_64] : memref<4x2x256x128xbf16, #tpu.memory_space<vmem>>, vector<1x1x256x128xbf16>
    %75 = vector.shape_cast %74 : vector<1x1x256x128xbf16> to vector<256x128xbf16>
    %cst_65 = arith.constant dense<0.000000e+00> : vector<192x128xf32>
    %76 = tpu.matmul %73, %75, %cst_65 {dimension_numbers = #tpu.dot_dimension_numbers<[1], [0], [0], [1], [0, 0, 1, 1], [], []>} : vector<192x256xbf16>, vector<256x128xbf16>, vector<192x128xf32> -> vector<192x128xf32>
    %77 = arith.addf %72, %76 : vector<192x128xf32>
    %78 = arith.addf %77, %2 : vector<192x128xf32>
    %cst_66 = arith.constant 5.000000e-01 : f32
    %79 = vector.broadcast %cst_66 : f32 to vector<192x128xf32>
    %80 = arith.mulf %79, %78 : vector<192x128xf32>
    %81 = math.tanh %80 : vector<192x128xf32>
    %cst_67 = arith.constant 5.000000e-01 : f32
    %82 = vector.broadcast %cst_67 : f32 to vector<192x128xf32>
    %83 = arith.mulf %82, %81 : vector<192x128xf32>
    %cst_68 = arith.constant 5.000000e-01 : f32
    %84 = vector.broadcast %cst_68 : f32 to vector<192x128xf32>
    %85 = arith.addf %83, %84 : vector<192x128xf32>
    %86 = arith.mulf %78, %85 : vector<192x128xf32>
    %87 = arith.truncf %86 : vector<192x128xf32> to vector<192x128xbf16>
    %c3_69 = arith.constant 3 : index
    %c0_70 = arith.constant 0 : index
    %c0_71 = arith.constant 0 : index
    %88 = vector.load %arg4[%c3_69, %c0_70, %c0_71] : memref<4x192x128xbf16, #tpu.memory_space<vmem>>, vector<1x192x128xbf16>
    %89 = vector.shape_cast %88 : vector<1x192x128xbf16> to vector<192x128xbf16>
    %90 = vector.shape_cast %87 : vector<192x128xbf16> to vector<1x192x128xbf16>
    tpu.vector_store %arg4[%c3_69, %c0_70, %c0_71], %90 {strides = array<i32>} : memref<4x192x128xbf16, #tpu.memory_space<vmem>>, vector<1x192x128xbf16>,
    return
  }
  func.func @transform_0(%arg0: i32) -> (i32, i32) {
    %c0_i32 = arith.constant 0 : i32
    %c0_i32_0 = arith.constant 0 : i32
    return %arg0, %c0_i32 : i32, i32
  }
  func.func @transform_1(%arg0: i32) -> (i32, i32, i32, i32) {
    %c0_i32 = arith.constant 0 : i32
    %c0_i32_0 = arith.constant 0 : i32
    %c0_i32_1 = arith.constant 0 : i32
    %c0_i32_2 = arith.constant 0 : i32
    %c0_i32_3 = arith.constant 0 : i32
    return %c0_i32, %c0_i32_0, %c0_i32_1, %c0_i32_2 : i32, i32, i32, i32
  }
  func.func @transform_2(%arg0: i32) -> (i32, i32) {
    %c0_i32 = arith.constant 0 : i32
    %c0_i32_0 = arith.constant 0 : i32
    %c0_i32_1 = arith.constant 0 : i32
    return %c0_i32, %c0_i32_0 : i32, i32
  }
  func.func @transform_3(%arg0: i32) -> (i32, i32, i32) {
    %c0_i32 = arith.constant 0 : i32
    %c0_i32_0 = arith.constant 0 : i32
    %c0_i32_1 = arith.constant 0 : i32
    return %c0_i32, %arg0, %c0_i32_0 : i32, i32, i32
  }
}

</mosaic_0001>

<llo_original>
// kernel: tpu_custom_call.1
$region0: #{tpu_custom_call.1}
  #allocation0 [shape = 'u32[]', space=smem, size = 0x4, offset = 0x4, fixed_abs, tag = 'smem constant byte address 0x4 - core index']
  #allocation1 [shape = 'u32[144,128]{1,0:T(1,128)}', space=vmem, size = 0x12000, scoped, tag = 'internal scratch']
  #allocation8 [shape = 's32[]', space=sflag, size = 0x4, offset = 0, fixed_abs, tag = 'sflag constant byte address 0x0 - dummy sync flag']
  %s0 = inlined_call_operand.hbm [shape: bf16[384,1152], index: 0, kind: input, shape index: {}]
  %s1 = inlined_call_operand.hbm [shape: bf16[4,2,256,128], index: 1, kind: input, shape index: {}]
  %s2 = inlined_call_operand.vmem [shape: f32[1,128], index: 2, kind: input, shape index: {}]
  %s3 = inlined_call_operand.hbm [shape: bf16[4,384,128], index: 3, kind: output, shape index: {}]
  %s4 = sld [smem:[#allocation0]]
  $region53: #{tpu_custom_call.1} parent=0
    _
  %s6 = ssub.s32 1, %s4
  %s7 = scalar_select 0, %s6, %s4
  $region1: #{tpu_custom_call.1} parent=0
    #allocation2 [shape = 'u8[884736]{0}', space=vmem, size = 0xd8000, scoped, tag = 'input window, operand 0']
    #allocation3 [shape = 's32[2]{0}', space=sflag, size = 0x8, scoped, tag = 'scoped memory for tpu_custom_call.1']
    #allocation4 [shape = 's32[2]{0}', space=sflag, size = 0x8, scoped, tag = 'scoped memory for tpu_custom_call.1']
    #allocation5 [shape = 'u8[524288]{0}', space=vmem, size = 0x80000, scoped, tag = 'input window, operand 1, single buffered']
    #allocation6 [shape = 's32[1]{0}', space=sflag, size = 0x4, scoped, tag = 'scoped memory for tpu_custom_call.1']
    #allocation7 [shape = 'u8[393216]{0}', space=vmem, size = 0x60000, scoped, tag = 'output window, operand 0']
    %8 = vsyncpa [#allocation3], 0
    %s9 = scalar_lea.sflag [#allocation3], 1
    %10 = vsyncpa %s9, 0
    %11 = vsyncpa [#allocation6], 0
    %12 = vsyncpa [#allocation4], 0
    %s13 = scalar_lea.sflag [#allocation4], 1
    %14 = vsyncpa %s13, 0
    loop: start=0, step=1, limit=4
    $region2: #{tpu_custom_call.1} parent=1 // loop_pre_header
      _
    $region3: #{tpu_custom_call.1} parent=1 // loop_header
      %s16 = sphi 0, %s20
      %p17 = scmp.ge.s32.totalorder %s16, 4
      %s26 = sphi 0, %s28
      %s29 = sphi 0, %s26
      %s30 = sphi 0, %s29
      %s46 = sphi 0, %s30
      %s50 = sphi 0, %s50
      %s52 = sphi 0, %s50
      %s53 = sphi 0, %s52
      %s67 = sphi 0, %s53
      %s71 = sphi 0, %s71
      %s73 = sphi 0, %s71
      %s74 = sphi 0, %s73
      %s88 = sphi 0, %s74
      %s94 = sphi 0, %s96
      %s97 = sphi 0, %s94
      %s98 = sphi 0, %s97
      %s114 = sphi 0, %s98
    $region4: #{tpu_custom_call.1} parent=1 // loop_header_branch
      %19 = sbr.rel (%p17) target = $region8
    $region5: #{tpu_custom_call.1} parent=1 // loop_body
      %s21 = ssub.s32 %s16, 1
      %s22 = ssub.s32 %s16, 2
      %s23 = sadd.s32 %s16, 1
      %s24 = ssub.s32 %s16, %s23
      %p25 = scmp.eq.s32.totalorder %s24, 0
      %s27 = sadd.s32 %s26, 1
      %s28 = scalar_select %p25, %s26, %s27
      %p31 = pneg %p25
      %p32 = scmp.eq.s32.totalorder %s16, 1
      %p33 = por %p31, %p32
      %p34 = scmp.ne.s32.totalorder %s26, %s29
      %p35 = scmp.eq.s32.totalorder %s16, 0
      %p36 = por %p34, %p35
      %p37 = scmp.ne.s32.totalorder %s26, %s29
      %p38 = scmp.eq.s32.totalorder %s21, 1
      %p39 = por %p37, %p38
      %p40 = scmp.ne.s32.totalorder %s29, %s30
      %p41 = scmp.eq.s32.totalorder %s21, 0
      %p42 = por %p40, %p41
      %p43 = scmp.ne.s32.totalorder %s29, %s30
      %p44 = scmp.eq.s32.totalorder %s22, 1
      %p45 = por %p43, %p44
      %p47 = scmp.ne.s32.totalorder %s30, %s46
      %p48 = scmp.eq.s32.totalorder %s22, 0
      %p49 = por %p47, %p48
      %s51 = sadd.s32 %s50, 1
      %p54 = scmp.eq.s32.totalorder %s16, 1
      %p55 = scmp.ne.s32.totalorder %s50, %s52
      %p56 = scmp.eq.s32.totalorder %s16, 0
      %p57 = por %p55, %p56
      %p58 = scmp.ne.s32.totalorder %s50, %s52
      %p59 = scmp.eq.s32.totalorder %s21, 1
      %p60 = por %p58, %p59
      %p61 = scmp.ne.s32.totalorder %s52, %s53
      %p62 = scmp.eq.s32.totalorder %s21, 0
      %p63 = por %p61, %p62
      %p64 = scmp.ne.s32.totalorder %s52, %s53
      %p65 = scmp.eq.s32.totalorder %s22, 1
      %p66 = por %p64, %p65
      %p68 = scmp.ne.s32.totalorder %s53, %s67
      %p69 = scmp.eq.s32.totalorder %s22, 0
      %p70 = por %p68, %p69
      %s72 = sadd.s32 %s71, 1
      %p75 = scmp.eq.s32.totalorder %s16, 1
      %p76 = scmp.ne.s32.totalorder %s71, %s73
      %p77 = scmp.eq.s32.totalorder %s16, 0
      %p78 = por %p76, %p77
      %p79 = scmp.ne.s32.totalorder %s71, %s73
      %p80 = scmp.eq.s32.totalorder %s21, 1
      %p81 = por %p79, %p80
      %p82 = scmp.ne.s32.totalorder %s73, %s74
      %p83 = scmp.eq.s32.totalorder %s21, 0
      %p84 = por %p82, %p83
      %p85 = scmp.ne.s32.totalorder %s73, %s74
      %p86 = scmp.eq.s32.totalorder %s22, 1
      %p87 = por %p85, %p86
      %p89 = scmp.ne.s32.totalorder %s74, %s88
      %p90 = scmp.eq.s32.totalorder %s22, 0
      %p91 = por %p89, %p90
      %s92 = ssub.s32 %s16, %s23
      %p93 = scmp.eq.s32.totalorder %s92, 0
      %s95 = sadd.s32 %s94, 1
      %s96 = scalar_select %p93, %s94, %s95
      %p99 = pneg %p93
      %p100 = scmp.eq.s32.totalorder %s16, 1
      %p101 = por %p99, %p100
      %p102 = scmp.ne.s32.totalorder %s94, %s97
      %p103 = scmp.eq.s32.totalorder %s16, 0
      %p104 = por %p102, %p103
      %p105 = scmp.ne.s32.totalorder %s94, %s97
      %p106 = scmp.eq.s32.totalorder %s21, 1
      %p107 = por %p105, %p106
      %p108 = scmp.ne.s32.totalorder %s97, %s98
      %p109 = scmp.eq.s32.totalorder %s21, 0
      %p110 = por %p108, %p109
      %p111 = scmp.ne.s32.totalorder %s97, %s98
      %p112 = scmp.eq.s32.totalorder %s22, 1
      %p113 = por %p111, %p112
      %p115 = scmp.ne.s32.totalorder %s98, %s114
      %p116 = scmp.eq.s32.totalorder %s22, 0
      %p117 = por %p115, %p116
      %p118 = scmp.le.s32.totalorder 1, %s16
      %p119 = scmp.lt.s32.totalorder %s16, 3
      %p120 = pnand %p118, %p119
      %p121 = pneg %p120
      // Predicated region
      $region9: #{tpu_custom_call.1} parent=5 // pred_check
        _
      $region10: #{tpu_custom_call.1} parent=5 // pred_check_branch
        %123 = sbr.rel (%p120) target = $region12
      $region11: #{tpu_custom_call.1} parent=5 // pred_region
        %s124 = ssub.s32 %s16, 1
        // Predicated region
        $region13: #{tpu_custom_call.1} parent=11 // pred_check
          %p125 = pneg %p63
        $region14: #{tpu_custom_call.1} parent=11 // pred_check_branch
          %127 = sbr.rel (%p125) target = $region16
        $region15: #{tpu_custom_call.1} parent=11 // pred_region
          %s129 = ssub.s32 16384, 16384
          %130 = vsyncadd [#allocation6], %s129
          %s131 = sshll.u32 [#allocation5], 4
          %s132 = int_to_ptr.vmem [resolvable:$true] %s131
          %137 = dma.hbm_to_vmem [thread:$0]  %s1, 16384, %s132, [#allocation6], 64, 64, 4
        $region16: #{tpu_custom_call.1} parent=11 // pred_fallthru
          _
        // Predicated region
        $region17: #{tpu_custom_call.1} parent=11 // pred_check
          %p138 = pneg %p84
        $region18: #{tpu_custom_call.1} parent=11 // pred_check_branch
          %140 = sbr.rel (%p138) target = $region20
        $region19: #{tpu_custom_call.1} parent=11 // pred_region
          _
        $region20: #{tpu_custom_call.1} parent=11 // pred_fallthru
          _
      $region12: #{tpu_custom_call.1} parent=5 // pred_fallthru
        _
      %p141 = scmp.lt.s32.totalorder %s16, 2
      // Predicated region
      $region21: #{tpu_custom_call.1} parent=5 // pred_check
        %p142 = pneg %p141
      $region22: #{tpu_custom_call.1} parent=5 // pred_check_branch
        %144 = sbr.rel (%p142) target = $region24
      $region23: #{tpu_custom_call.1} parent=5 // pred_region
        // Predicated region
        $region25: #{tpu_custom_call.1} parent=23 // pred_check
          %p145 = pneg %p36
        $region26: #{tpu_custom_call.1} parent=23 // pred_check_branch
          %147 = sbr.rel (%p145) target = $region28
        $region27: #{tpu_custom_call.1} parent=23 // pred_region
          %s148 = sand.u32 %s26, 1
          %s149 = scalar_lea.sflag [#allocation3], %s148
          %s150 = sand.u32 %s26, 1
          %s151 = smul.addr %s150, 864
          %s152 = scalar_lea.vmem [#allocation2], %s151
          %s153 = smul.u32 24, %s16
          %s155 = ssub.s32 13824, 13824
          %156 = vsyncadd %s149, %s155
          %s157 = smul.addr %s153, 9
          %s158 = smul.addr %s157, 64
          %s159 = scalar_lea.hbm %s0, %s158
          %s160 = sshll.u32 %s152, 4
          %s161 = int_to_ptr.vmem [resolvable:$true] %s160
          %166 = dma.hbm_to_vmem [thread:$0]  %s159, 13824, %s161, %s149, 576, 576, 36
        $region28: #{tpu_custom_call.1} parent=23 // pred_fallthru
          _
      $region24: #{tpu_custom_call.1} parent=5 // pred_fallthru
        _
      %p167 = scmp.le.s32.totalorder 1, %s16
      %p168 = scmp.lt.s32.totalorder %s16, 3
      %p169 = pnand %p167, %p168
      %p170 = pneg %p169
      // Predicated region
      $region29: #{tpu_custom_call.1} parent=5 // pred_check
        _
      $region30: #{tpu_custom_call.1} parent=5 // pred_check_branch
        %172 = sbr.rel (%p169) target = $region32
      $region31: #{tpu_custom_call.1} parent=5 // pred_region
        %s173 = ssub.s32 %s16, 1
        %s174 = sand.u32 %s29, 1
        %s175 = scalar_lea.sflag [#allocation3], %s174
        %s176 = sand.u32 %s29, 1
        %s177 = smul.addr %s176, 864
        %s178 = scalar_lea.vmem [#allocation2], %s177
        // Predicated region
        $region33: #{tpu_custom_call.1} parent=31 // pred_check
          %p179 = pneg %p42
        $region34: #{tpu_custom_call.1} parent=31 // pred_check_branch
          %181 = sbr.rel (%p179) target = $region36
        $region35: #{tpu_custom_call.1} parent=31 // pred_region
          %182 = dma.done %s175, 13824
        $region36: #{tpu_custom_call.1} parent=31 // pred_fallthru
          _
        // Predicated region
        $region37: #{tpu_custom_call.1} parent=31 // pred_check
          %p183 = pneg %p63
        $region38: #{tpu_custom_call.1} parent=31 // pred_check_branch
          %185 = sbr.rel (%p183) target = $region40
        $region39: #{tpu_custom_call.1} parent=31 // pred_region
          %186 = dma.done [#allocation6], 16384
        $region40: #{tpu_custom_call.1} parent=31 // pred_fallthru
          _
        %s187 = sand.u32 %s29, 1
        %s188 = scalar_lea.sflag [#allocation3], %s187
        %s189 = sand.u32 %s29, 1
        %s190 = smul.addr %s189, 864
        %s191 = scalar_lea.vmem [#allocation2], %s190
        %p192 = pneg %p42
        %p193 = pneg %p39
        %p194 = pneg %p63
        %p195 = pneg %p60
        %p196 = pneg %p84
        %p197 = pneg %p81
        %p198 = pneg %p110
        %p199 = pneg %p107
        %s200 = sand.u32 %s97, 1
        %s201 = scalar_lea.sflag [#allocation4], %s200
        %s202 = sand.u32 %s97, 1
        %s203 = smul.addr %s202, 384
        %s204 = scalar_lea.vmem [#allocation7], %s203
        %s205 = smul.u32 24, %s21
        %s206 = smul.u32 24, %s21
        %v208 = vld [vmem:[%s2] sm:$0x1]
        %v210 = vlaneseq
        %v211 = vshrl.u32 %v210, 7
        %v212 = vsub.s32 0, %v211
        %v213 = vrot.slane %v208, %v212
        %v215 = vld [vmem:[%s178] sm:$0xff]
        %v216 = vld [vmem:[%s178 + $0x24] sm:$0xff]
        %v217 = vld [vmem:[%s178 + $0x48] sm:$0xff]
        %v218 = vld [vmem:[%s178 + $0x6c] sm:$0xff]
        %v219 = vld [vmem:[%s178 + $0x90] sm:$0xff]
        %v220 = vld [vmem:[%s178 + $0xb4] sm:$0xff]
        %v221 = vld [vmem:[%s178 + $0xd8] sm:$0xff]
        %v222 = vld [vmem:[%s178 + $0xfc] sm:$0xff]
        %v223 = vld [vmem:[%s178 + $0x120] sm:$0xff]
        %v224 = vld [vmem:[%s178 + $0x144] sm:$0xff]
        %v225 = vld [vmem:[%s178 + $0x168] sm:$0xff]
        %v226 = vld [vmem:[%s178 + $0x18c] sm:$0xff]
        %v227 = vld [vmem:[%s178 + $0x1b0] sm:$0xff]
        %v228 = vld [vmem:[%s178 + $0x1d4] sm:$0xff]
        %v229 = vld [vmem:[%s178 + $0x1f8] sm:$0xff]
        %v230 = vld [vmem:[%s178 + $0x21c] sm:$0xff]
        %v231 = vld [vmem:[%s178 + $0x240] sm:$0xff]
        %v232 = vld [vmem:[%s178 + $0x264] sm:$0xff]
        %v233 = vld [vmem:[%s178 + $0x288] sm:$0xff]
        %v234 = vld [vmem:[%s178 + $0x2ac] sm:$0xff]
        %v235 = vld [vmem:[%s178 + $0x2d0] sm:$0xff]
        %v236 = vld [vmem:[%s178 + $0x2f4] sm:$0xff]
        %v237 = vld [vmem:[%s178 + $0x318] sm:$0xff]
        %v238 = vld [vmem:[%s178 + $0x33c] sm:$0xff]
        %v239 = vld [vmem:[#allocation5] sm:$0xf]
        %v240 = vld [vmem:[#allocation5 + $0x4] sm:$0xf]
        %v241 = vld [vmem:[#allocation5 + $0x8] sm:$0xf]
        %v242 = vld [vmem:[#allocation5 + $0xc] sm:$0xf]
        %v243 = vld [vmem:[#allocation5 + $0x10] sm:$0xf]
        %v244 = vld [vmem:[#allocation5 + $0x14] sm:$0xf]
        %v245 = vld [vmem:[#allocation5 + $0x18] sm:$0xf]
        %v246 = vld [vmem:[#allocation5 + $0x1c] sm:$0xf]
        %v247 = vld [vmem:[#allocation5 + $0x20] sm:$0xf]
        %v248 = vld [vmem:[#allocation5 + $0x24] sm:$0xf]
        %v249 = vld [vmem:[#allocation5 + $0x28] sm:$0xf]
        %v250 = vld [vmem:[#allocation5 + $0x2c] sm:$0xf]
        %v251 = vld [vmem:[#allocation5 + $0x30] sm:$0xf]
        %v252 = vld [vmem:[#allocation5 + $0x34] sm:$0xf]
        %v253 = vld [vmem:[#allocation5 + $0x38] sm:$0xf]
        %v254 = vld [vmem:[#allocation5 + $0x3c] sm:$0xf]
        %v255 = vld [vmem:[#allocation5 + $0x40] sm:$0xf]
        %v256 = vld [vmem:[#allocation5 + $0x44] sm:$0xf]
        %v257 = vld [vmem:[#allocation5 + $0x48] sm:$0xf]
        %v258 = vld [vmem:[#allocation5 + $0x4c] sm:$0xf]
        %v259 = vld [vmem:[#allocation5 + $0x50] sm:$0xf]
        %v260 = vld [vmem:[#allocation5 + $0x54] sm:$0xf]
        %v261 = vld [vmem:[#allocation5 + $0x58] sm:$0xf]
        %v262 = vld [vmem:[#allocation5 + $0x5c] sm:$0xf]
        %v263 = vld [vmem:[#allocation5 + $0x60] sm:$0xf]
        %v264 = vld [vmem:[#allocation5 + $0x64] sm:$0xf]
        %v265 = vld [vmem:[#allocation5 + $0x68] sm:$0xf]
        %v266 = vld [vmem:[#allocation5 + $0x6c] sm:$0xf]
        %v267 = vld [vmem:[#allocation5 + $0x70] sm:$0xf]
        %v268 = vld [vmem:[#allocation5 + $0x74] sm:$0xf]
        %v269 = vld [vmem:[#allocation5 + $0x78] sm:$0xf]
        %v270 = vld [vmem:[#allocation5 + $0x7c] sm:$0xf]
        %v271 = vld [vmem:[%s178 + $0xc] sm:$0xff]
        %v272 = vld [vmem:[%s178 + $0x30] sm:$0xff]
        %v273 = vld [vmem:[%s178 + $0x54] sm:$0xff]
        %v274 = vld [vmem:[%s178 + $0x78] sm:$0xff]
        %v275 = vld [vmem:[%s178 + $0x9c] sm:$0xff]
        %v276 = vld [vmem:[%s178 + $0xc0] sm:$0xff]
        %v277 = vld [vmem:[%s178 + $0xe4] sm:$0xff]
        %v278 = vld [vmem:[%s178 + $0x108] sm:$0xff]
        %v279 = vld [vmem:[%s178 + $0x12c] sm:$0xff]
        %v280 = vld [vmem:[%s178 + $0x150] sm:$0xff]
        %v281 = vld [vmem:[%s178 + $0x174] sm:$0xff]
        %v282 = vld [vmem:[%s178 + $0x198] sm:$0xff]
        %v283 = vld [vmem:[%s178 + $0x1bc] sm:$0xff]
        %v284 = vld [vmem:[%s178 + $0x1e0] sm:$0xff]
        %v285 = vld [vmem:[%s178 + $0x204] sm:$0xff]
        %v286 = vld [vmem:[%s178 + $0x228] sm:$0xff]
        %v287 = vld [vmem:[%s178 + $0x24c] sm:$0xff]
        %v288 = vld [vmem:[%s178 + $0x270] sm:$0xff]
        %v289 = vld [vmem:[%s178 + $0x294] sm:$0xff]
        %v290 = vld [vmem:[%s178 + $0x2b8] sm:$0xff]
        %v291 = vld [vmem:[%s178 + $0x2dc] sm:$0xff]
        %v292 = vld [vmem:[%s178 + $0x300] sm:$0xff]
        %v293 = vld [vmem:[%s178 + $0x324] sm:$0xff]
        %v294 = vld [vmem:[%s178 + $0x348] sm:$0xff]
        %s295 = scalar_lea.vmem [#allocation5], 128
        %v296 = vld [vmem:[%s295] sm:$0xf]
        %v297 = vld [vmem:[%s295 + $0x4] sm:$0xf]
        %v298 = vld [vmem:[%s295 + $0x8] sm:$0xf]
        %v299 = vld [vmem:[%s295 + $0xc] sm:$0xf]
        %v300 = vld [vmem:[%s295 + $0x10] sm:$0xf]
        %v301 = vld [vmem:[%s295 + $0x14] sm:$0xf]
        %v302 = vld [vmem:[%s295 + $0x18] sm:$0xf]
        %v303 = vld [vmem:[%s295 + $0x1c] sm:$0xf]
        %v304 = vld [vmem:[%s295 + $0x20] sm:$0xf]
        %v305 = vld [vmem:[%s295 + $0x24] sm:$0xf]
        %v306 = vld [vmem:[%s295 + $0x28] sm:$0xf]
        %v307 = vld [vmem:[%s295 + $0x2c] sm:$0xf]
        %v308 = vld [vmem:[%s295 + $0x30] sm:$0xf]
        %v309 = vld [vmem:[%s295 + $0x34] sm:$0xf]
        %v310 = vld [vmem:[%s295 + $0x38] sm:$0xf]
        %v311 = vld [vmem:[%s295 + $0x3c] sm:$0xf]
        %v312 = vld [vmem:[%s295 + $0x40] sm:$0xf]
        %v313 = vld [vmem:[%s295 + $0x44] sm:$0xf]
        %v314 = vld [vmem:[%s295 + $0x48] sm:$0xf]
        %v315 = vld [vmem:[%s295 + $0x4c] sm:$0xf]
        %v316 = vld [vmem:[%s295 + $0x50] sm:$0xf]
        %v317 = vld [vmem:[%s295 + $0x54] sm:$0xf]
        %v318 = vld [vmem:[%s295 + $0x58] sm:$0xf]
        %v319 = vld [vmem:[%s295 + $0x5c] sm:$0xf]
        %v320 = vld [vmem:[%s295 + $0x60] sm:$0xf]
        %v321 = vld [vmem:[%s295 + $0x64] sm:$0xf]
        %v322 = vld [vmem:[%s295 + $0x68] sm:$0xf]
        %v323 = vld [vmem:[%s295 + $0x6c] sm:$0xf]
        %v324 = vld [vmem:[%s295 + $0x70] sm:$0xf]
        %v325 = vld [vmem:[%s295 + $0x74] sm:$0xf]
        %v326 = vld [vmem:[%s295 + $0x78] sm:$0xf]
        %v327 = vld [vmem:[%s295 + $0x7c] sm:$0xf]
        %v352 = vunpack.c.l.b16 %v271
        %v353 = vunpack.c.h.b16 %v271
        %v354 = vunpack.c.l.b16 %v272
        %v355 = vunpack.c.h.b16 %v272
        %v356 = vunpack.c.l.b16 %v273
        %v357 = vunpack.c.h.b16 %v273
        %v358 = vunpack.c.l.b16 %v274
        %v359 = vunpack.c.h.b16 %v274
        %v360 = vunpack.c.l.b16 %v275
        %v361 = vunpack.c.h.b16 %v275
        %v362 = vunpack.c.l.b16 %v276
        %v363 = vunpack.c.h.b16 %v276
        %v364 = vunpack.c.l.b16 %v277
        %v365 = vunpack.c.h.b16 %v277
        %v366 = vunpack.c.l.b16 %v278
        %v367 = vunpack.c.h.b16 %v278
        %v368 = vunpack.c.l.b16 %v279
        %v369 = vunpack.c.h.b16 %v279
        %v370 = vunpack.c.l.b16 %v280
        %v371 = vunpack.c.h.b16 %v280
        %v372 = vunpack.c.l.b16 %v281
        %v373 = vunpack.c.h.b16 %v281
        %v374 = vunpack.c.l.b16 %v282
        %v375 = vunpack.c.h.b16 %v282
        %v376 = vunpack.c.l.b16 %v283
        %v377 = vunpack.c.h.b16 %v283
        %v378 = vunpack.c.l.b16 %v284
        %v379 = vunpack.c.h.b16 %v284
        %v380 = vunpack.c.l.b16 %v285
        %v381 = vunpack.c.h.b16 %v285
        %v382 = vunpack.c.l.b16 %v286
        %v383 = vunpack.c.h.b16 %v286
        %v384 = vunpack.c.l.b16 %v287
        %v385 = vunpack.c.h.b16 %v287
        %v386 = vunpack.c.l.b16 %v288
        %v387 = vunpack.c.h.b16 %v288
        %v388 = vunpack.c.l.b16 %v289
        %v389 = vunpack.c.h.b16 %v289
        %v390 = vunpack.c.l.b16 %v290
        %v391 = vunpack.c.h.b16 %v290
        %v392 = vunpack.c.l.b16 %v291
        %v393 = vunpack.c.h.b16 %v291
        %v394 = vunpack.c.l.b16 %v292
        %v395 = vunpack.c.h.b16 %v292
        %v396 = vunpack.c.l.b16 %v293
        %v397 = vunpack.c.h.b16 %v293
        %v398 = vunpack.c.l.b16 %v294
        %v399 = vunpack.c.h.b16 %v294
        %v400 = vpack.c.b16 %v354, %v352
        %v401 = vpack.c.b16 %v355, %v353
        %v402 = vpack.c.b16 %v358, %v356
        %v403 = vpack.c.b16 %v359, %v357
        %v404 = vpack.c.b16 %v362, %v360
        %v405 = vpack.c.b16 %v363, %v361
        %v406 = vpack.c.b16 %v366, %v364
        %v407 = vpack.c.b16 %v367, %v365
        %v408 = vpack.c.b16 %v370, %v368
        %v409 = vpack.c.b16 %v371, %v369
        %v410 = vpack.c.b16 %v374, %v372
        %v411 = vpack.c.b16 %v375, %v373
        %v412 = vpack.c.b16 %v378, %v376
        %v413 = vpack.c.b16 %v379, %v377
        %v414 = vpack.c.b16 %v382, %v380
        %v415 = vpack.c.b16 %v383, %v381
        %v416 = vpack.c.b16 %v386, %v384
        %v417 = vpack.c.b16 %v387, %v385
        %v418 = vpack.c.b16 %v390, %v388
        %v419 = vpack.c.b16 %v391, %v389
        %v420 = vpack.c.b16 %v394, %v392
        %v421 = vpack.c.b16 %v395, %v393
        %v422 = vpack.c.b16 %v398, %v396
        %v423 = vpack.c.b16 %v399, %v397
        %v480 = vunpack.c.l.b16 %v296
        %v481 = vunpack.c.l.b16 %v297
        %v482 = vunpack.c.l.b16 %v298
        %v483 = vunpack.c.l.b16 %v299
        %v484 = vunpack.c.l.b16 %v300
        %v485 = vunpack.c.l.b16 %v301
        %v486 = vunpack.c.l.b16 %v302
        %v487 = vunpack.c.l.b16 %v303
        %v488 = vunpack.c.l.b16 %v304
        %v489 = vunpack.c.l.b16 %v305
        %v490 = vunpack.c.l.b16 %v306
        %v491 = vunpack.c.l.b16 %v307
        %v492 = vunpack.c.l.b16 %v308
        %v493 = vunpack.c.l.b16 %v309
        %v494 = vunpack.c.l.b16 %v310
        %v495 = vunpack.c.l.b16 %v311
        %v496 = vunpack.c.l.b16 %v312
        %v497 = vunpack.c.l.b16 %v313
        %v498 = vunpack.c.l.b16 %v314
        %v499 = vunpack.c.l.b16 %v315
        %v500 = vunpack.c.l.b16 %v316
        %v501 = vunpack.c.l.b16 %v317
        %v502 = vunpack.c.l.b16 %v318
        %v503 = vunpack.c.l.b16 %v319
        %v504 = vunpack.c.l.b16 %v320
        %v505 = vunpack.c.l.b16 %v321
        %v506 = vunpack.c.l.b16 %v322
        %v507 = vunpack.c.l.b16 %v323
        %v508 = vunpack.c.l.b16 %v324
        %v509 = vunpack.c.l.b16 %v325
        %v510 = vunpack.c.l.b16 %v326
        %v511 = vunpack.c.l.b16 %v327
        %v512 = vpack.c.b16 %v481, %v480
        %v513 = vpack.c.b16 %v483, %v482
        %v514 = vpack.c.b16 %v485, %v484
        %v515 = vpack.c.b16 %v487, %v486
        %v516 = vpack.c.b16 %v489, %v488
        %v517 = vpack.c.b16 %v491, %v490
        %v518 = vpack.c.b16 %v493, %v492
        %v519 = vpack.c.b16 %v495, %v494
        %v520 = vpack.c.b16 %v497, %v496
        %v521 = vpack.c.b16 %v499, %v498
        %v522 = vpack.c.b16 %v501, %v500
        %v523 = vpack.c.b16 %v503, %v502
        %v524 = vpack.c.b16 %v505, %v504
        %v525 = vpack.c.b16 %v507, %v506
        %v526 = vpack.c.b16 %v509, %v508
        %v527 = vpack.c.b16 %v511, %v510
        %544 = vmatprep.subr.bf16.mxu0 0
        %545 = vmatpush1.bf16.msra.mxu0 %v512
        %546 = vmatprep.subr.bf16.mxu0 0
        %547 = vmatpush1.bf16.msra.mxu0 %v513
        %548 = vmatprep.subr.bf16.mxu0 0
        %549 = vmatpush1.bf16.msra.mxu0 %v514
        %550 = vmatprep.subr.bf16.mxu0 0
        %551 = vmatpush1.bf16.msra.mxu0 %v515
        %552 = vmatprep.subr.bf16.mxu0 0
        %553 = vmatpush1.bf16.msra.mxu0 %v516
        %554 = vmatprep.subr.bf16.mxu0 0
        %555 = vmatpush1.bf16.msra.mxu0 %v517
        %556 = vmatprep.subr.bf16.mxu0 0
        %557 = vmatpush1.bf16.msra.mxu0 %v518
        %558 = vmatprep.subr.bf16.mxu0 0
        %559 = vmatpush1.bf16.msra.mxu0 %v519
        %560 = vmatprep.subr.bf16.mxu0 0
        %561 = vmatpush1.bf16.msra.mxu0 %v520
        %562 = vmatprep.subr.bf16.mxu0 0
        %563 = vmatpush1.bf16.msra.mxu0 %v521
        %564 = vmatprep.subr.bf16.mxu0 0
        %565 = vmatpush1.bf16.msra.mxu0 %v522
        %566 = vmatprep.subr.bf16.mxu0 0
        %567 = vmatpush1.bf16.msra.mxu0 %v523
        %568 = vmatprep.subr.bf16.mxu0 0
        %569 = vmatpush1.bf16.msra.mxu0 %v524
        %570 = vmatprep.subr.bf16.mxu0 0
        %571 = vmatpush1.bf16.msra.mxu0 %v525
        %572 = vmatprep.subr.bf16.mxu0 0
        %573 = vmatpush1.bf16.msra.mxu0 %v526
        %574 = vmatprep.subr.bf16.mxu0 0
        %575 = vmatpush1.bf16.msra.mxu0 %v527
        %576 = vmatprep.mubr.bf16.mxu0 %v401
        %577 = vmatmul.mubr.bf16.gmra.mrb[0].mxu0 %v400
        %v578 = vpop.f32.mrb[0].mxu0
        %v579 = vadd.f32 0.0, %v578
        %v580 = vpop.f32.mrb[0].mxu0
        %v581 = vpop.f32.mrb[0].mxu0
        %v582 = vadd.f32 0.0, %v581
        %v583 = vpop.f32.mrb[0].mxu0
        %584 = vmatprep.mubr.bf16.mxu0 %v403
        %585 = vmatmul.mubr.bf16.gmra.mrb[0].mxu0 %v402
        %v586 = vpop.f32.mrb[0].mxu0
        %v587 = vadd.f32 0.0, %v586
        %v588 = vpop.f32.mrb[0].mxu0
        %v589 = vpop.f32.mrb[0].mxu0
        %v590 = vadd.f32 0.0, %v589
        %v591 = vpop.f32.mrb[0].mxu0
        %592 = vmatprep.mubr.bf16.mxu0 %v405
        %593 = vmatmul.mubr.bf16.gmra.mrb[0].mxu0 %v404
        %v594 = vpop.f32.mrb[0].mxu0
        %v595 = vadd.f32 0.0, %v594
        %v596 = vpop.f32.mrb[0].mxu0
        %v597 = vpop.f32.mrb[0].mxu0
        %v598 = vadd.f32 0.0, %v597
        %v599 = vpop.f32.mrb[0].mxu0
        %600 = vmatprep.mubr.bf16.mxu0 %v407
        %601 = vmatmul.mubr.bf16.gmra.mrb[0].mxu0 %v406
        %v602 = vpop.f32.mrb[0].mxu0
        %v603 = vadd.f32 0.0, %v602
        %v604 = vpop.f32.mrb[0].mxu0
        %v605 = vpop.f32.mrb[0].mxu0
        %v606 = vadd.f32 0.0, %v605
        %v607 = vpop.f32.mrb[0].mxu0
        %608 = vmatprep.mubr.bf16.mxu0 %v409
        %609 = vmatmul.mubr.bf16.gmra.mrb[0].mxu0 %v408
        %v610 = vpop.f32.mrb[0].mxu0
        %v611 = vadd.f32 0.0, %v610
        %v612 = vpop.f32.mrb[0].mxu0
        %v613 = vpop.f32.mrb[0].mxu0
        %v614 = vadd.f32 0.0, %v613
        %v615 = vpop.f32.mrb[0].mxu0
        %616 = vmatprep.mubr.bf16.mxu0 %v411
        %617 = vmatmul.mubr.bf16.gmra.mrb[0].mxu0 %v410
        %v618 = vpop.f32.mrb[0].mxu0
        %v619 = vadd.f32 0.0, %v618
        %v620 = vpop.f32.mrb[0].mxu0
        %v621 = vpop.f32.mrb[0].mxu0
        %v622 = vadd.f32 0.0, %v621
        %v623 = vpop.f32.mrb[0].mxu0
        %624 = vmatprep.mubr.bf16.mxu0 %v413
        %625 = vmatmul.mubr.bf16.gmra.mrb[0].mxu0 %v412
        %v626 = vpop.f32.mrb[0].mxu0
        %v627 = vadd.f32 0.0, %v626
        %v628 = vpop.f32.mrb[0].mxu0
        %v629 = vpop.f32.mrb[0].mxu0
        %v630 = vadd.f32 0.0, %v629
        %v631 = vpop.f32.mrb[0].mxu0
        %632 = vmatprep.mubr.bf16.mxu0 %v415
        %633 = vmatmul.mubr.bf16.gmra.mrb[0].mxu0 %v414
        %v634 = vpop.f32.mrb[0].mxu0
        %v635 = vadd.f32 0.0, %v634
        %v636 = vpop.f32.mrb[0].mxu0
        %v637 = vpop.f32.mrb[0].mxu0
        %v638 = vadd.f32 0.0, %v637
        %v639 = vpop.f32.mrb[0].mxu0
        %640 = vmatprep.mubr.bf16.mxu0 %v417
        %641 = vmatmul.mubr.bf16.gmra.mrb[0].mxu0 %v416
        %v642 = vpop.f32.mrb[0].mxu0
        %v643 = vadd.f32 0.0, %v642
        %v644 = vpop.f32.mrb[0].mxu0
        %v645 = vpop.f32.mrb[0].mxu0
        %v646 = vadd.f32 0.0, %v645
        %v647 = vpop.f32.mrb[0].mxu0
        %648 = vmatprep.mubr.bf16.mxu0 %v419
        %649 = vmatmul.mubr.bf16.gmra.mrb[0].mxu0 %v418
        %v650 = vpop.f32.mrb[0].mxu0
        %v651 = vadd.f32 0.0, %v650
        %v652 = vpop.f32.mrb[0].mxu0
        %v653 = vpop.f32.mrb[0].mxu0
        %v654 = vadd.f32 0.0, %v653
        %v655 = vpop.f32.mrb[0].mxu0
        %656 = vmatprep.mubr.bf16.mxu0 %v421
        %657 = vmatmul.mubr.bf16.gmra.mrb[0].mxu0 %v420
        %v658 = vpop.f32.mrb[0].mxu0
        %v659 = vadd.f32 0.0, %v658
        %v660 = vpop.f32.mrb[0].mxu0
        %v661 = vpop.f32.mrb[0].mxu0
        %v662 = vadd.f32 0.0, %v661
        %v663 = vpop.f32.mrb[0].mxu0
        %664 = vmatprep.mubr.bf16.mxu0 %v423
        %665 = vmatmul.mubr.bf16.gmra.mrb[0].mxu0 %v422
        %v666 = vpop.f32.mrb[0].mxu0
        %v667 = vadd.f32 0.0, %v666
        %v668 = vpop.f32.mrb[0].mxu0
        %v669 = vpop.f32.mrb[0].mxu0
        %v670 = vadd.f32 0.0, %v669
        %v671 = vpop.f32.mrb[0].mxu0
        %672 = vdwg.mxu0
        %v697 = vunpack.c.l.b16 %v215
        %v698 = vunpack.c.h.b16 %v215
        %v699 = vunpack.c.l.b16 %v216
        %v700 = vunpack.c.h.b16 %v216
        %v701 = vunpack.c.l.b16 %v217
        %v702 = vunpack.c.h.b16 %v217
        %v703 = vunpack.c.l.b16 %v218
        %v704 = vunpack.c.h.b16 %v218
        %v705 = vunpack.c.l.b16 %v219
        %v706 = vunpack.c.h.b16 %v219
        %v707 = vunpack.c.l.b16 %v220
        %v708 = vunpack.c.h.b16 %v220
        %v709 = vunpack.c.l.b16 %v221
        %v710 = vunpack.c.h.b16 %v221
        %v711 = vunpack.c.l.b16 %v222
        %v712 = vunpack.c.h.b16 %v222
        %v713 = vunpack.c.l.b16 %v223
        %v714 = vunpack.c.h.b16 %v223
        %v715 = vunpack.c.l.b16 %v224
        %v716 = vunpack.c.h.b16 %v224
        %v717 = vunpack.c.l.b16 %v225
        %v718 = vunpack.c.h.b16 %v225
        %v719 = vunpack.c.l.b16 %v226
        %v720 = vunpack.c.h.b16 %v226
        %v721 = vunpack.c.l.b16 %v227
        %v722 = vunpack.c.h.b16 %v227
        %v723 = vunpack.c.l.b16 %v228
        %v724 = vunpack.c.h.b16 %v228
        %v725 = vunpack.c.l.b16 %v229
        %v726 = vunpack.c.h.b16 %v229
        %v727 = vunpack.c.l.b16 %v230
        %v728 = vunpack.c.h.b16 %v230
        %v729 = vunpack.c.l.b16 %v231
        %v730 = vunpack.c.h.b16 %v231
        %v731 = vunpack.c.l.b16 %v232
        %v732 = vunpack.c.h.b16 %v232
        %v733 = vunpack.c.l.b16 %v233
        %v734 = vunpack.c.h.b16 %v233
        %v735 = vunpack.c.l.b16 %v234
        %v736 = vunpack.c.h.b16 %v234
        %v737 = vunpack.c.l.b16 %v235
        %v738 = vunpack.c.h.b16 %v235
        %v739 = vunpack.c.l.b16 %v236
        %v740 = vunpack.c.h.b16 %v236
        %v741 = vunpack.c.l.b16 %v237
        %v742 = vunpack.c.h.b16 %v237
        %v743 = vunpack.c.l.b16 %v238
        %v744 = vunpack.c.h.b16 %v238
        %v745 = vpack.c.b16 %v699, %v697
        %v746 = vpack.c.b16 %v700, %v698
        %v747 = vpack.c.b16 %v703, %v701
        %v748 = vpack.c.b16 %v704, %v702
        %v749 = vpack.c.b16 %v707, %v705
        %v750 = vpack.c.b16 %v708, %v706
        %v751 = vpack.c.b16 %v711, %v709
        %v752 = vpack.c.b16 %v712, %v710
        %v753 = vpack.c.b16 %v715, %v713
        %v754 = vpack.c.b16 %v716, %v714
        %v755 = vpack.c.b16 %v719, %v717
        %v756 = vpack.c.b16 %v720, %v718
        %v757 = vpack.c.b16 %v723, %v721
        %v758 = vpack.c.b16 %v724, %v722
        %v759 = vpack.c.b16 %v727, %v725
        %v760 = vpack.c.b16 %v728, %v726
        %v761 = vpack.c.b16 %v731, %v729
        %v762 = vpack.c.b16 %v732, %v730
        %v763 = vpack.c.b16 %v735, %v733
        %v764 = vpack.c.b16 %v736, %v734
        %v765 = vpack.c.b16 %v739, %v737
        %v766 = vpack.c.b16 %v740, %v738
        %v767 = vpack.c.b16 %v743, %v741
        %v768 = vpack.c.b16 %v744, %v742
        %v825 = vunpack.c.l.b16 %v239
        %v826 = vunpack.c.l.b16 %v240
        %v827 = vunpack.c.l.b16 %v241
        %v828 = vunpack.c.l.b16 %v242
        %v829 = vunpack.c.l.b16 %v243
        %v830 = vunpack.c.l.b16 %v244
        %v831 = vunpack.c.l.b16 %v245
        %v832 = vunpack.c.l.b16 %v246
        %v833 = vunpack.c.l.b16 %v247
        %v834 = vunpack.c.l.b16 %v248
        %v835 = vunpack.c.l.b16 %v249
        %v836 = vunpack.c.l.b16 %v250
        %v837 = vunpack.c.l.b16 %v251
        %v838 = vunpack.c.l.b16 %v252
        %v839 = vunpack.c.l.b16 %v253
        %v840 = vunpack.c.l.b16 %v254
        %v841 = vunpack.c.l.b16 %v255
        %v842 = vunpack.c.l.b16 %v256
        %v843 = vunpack.c.l.b16 %v257
        %v844 = vunpack.c.l.b16 %v258
        %v845 = vunpack.c.l.b16 %v259
        %v846 = vunpack.c.l.b16 %v260
        %v847 = vunpack.c.l.b16 %v261
        %v848 = vunpack.c.l.b16 %v262
        %v849 = vunpack.c.l.b16 %v263
        %v850 = vunpack.c.l.b16 %v264
        %v851 = vunpack.c.l.b16 %v265
        %v852 = vunpack.c.l.b16 %v266
        %v853 = vunpack.c.l.b16 %v267
        %v854 = vunpack.c.l.b16 %v268
        %v855 = vunpack.c.l.b16 %v269
        %v856 = vunpack.c.l.b16 %v270
        %v857 = vpack.c.b16 %v826, %v825
        %v858 = vpack.c.b16 %v828, %v827
        %v859 = vpack.c.b16 %v830, %v829
        %v860 = vpack.c.b16 %v832, %v831
        %v861 = vpack.c.b16 %v834, %v833
        %v862 = vpack.c.b16 %v836, %v835
        %v863 = vpack.c.b16 %v838, %v837
        %v864 = vpack.c.b16 %v840, %v839
        %v865 = vpack.c.b16 %v842, %v841
        %v866 = vpack.c.b16 %v844, %v843
        %v867 = vpack.c.b16 %v846, %v845
        %v868 = vpack.c.b16 %v848, %v847
        %v869 = vpack.c.b16 %v850, %v849
        %v870 = vpack.c.b16 %v852, %v851
        %v871 = vpack.c.b16 %v854, %v853
        %v872 = vpack.c.b16 %v856, %v855
        %889 = vmatprep.subr.bf16.mxu0 0
        %890 = vmatpush1.bf16.msra.mxu0 %v857
        %891 = vmatprep.subr.bf16.mxu0 0
        %892 = vmatpush1.bf16.msra.mxu0 %v858
        %893 = vmatprep.subr.bf16.mxu0 0
        %894 = vmatpush1.bf16.msra.mxu0 %v859
        %895 = vmatprep.subr.bf16.mxu0 0
        %896 = vmatpush1.bf16.msra.mxu0 %v860
        %897 = vmatprep.subr.bf16.mxu0 0
        %898 = vmatpush1.bf16.msra.mxu0 %v861
        %899 = vmatprep.subr.bf16.mxu0 0
        %900 = vmatpush1.bf16.msra.mxu0 %v862
        %901 = vmatprep.subr.bf16.mxu0 0
        %902 = vmatpush1.bf16.msra.mxu0 %v863
        %903 = vmatprep.subr.bf16.mxu0 0
        %904 = vmatpush1.bf16.msra.mxu0 %v864
        %905 = vmatprep.subr.bf16.mxu0 0
        %906 = vmatpush1.bf16.msra.mxu0 %v865
        %907 = vmatprep.subr.bf16.mxu0 0
        %908 = vmatpush1.bf16.msra.mxu0 %v866
        %909 = vmatprep.subr.bf16.mxu0 0
        %910 = vmatpush1.bf16.msra.mxu0 %v867
        %911 = vmatprep.subr.bf16.mxu0 0
        %912 = vmatpush1.bf16.msra.mxu0 %v868
        %913 = vmatprep.subr.bf16.mxu0 0
        %914 = vmatpush1.bf16.msra.mxu0 %v869
        %915 = vmatprep.subr.bf16.mxu0 0
        %916 = vmatpush1.bf16.msra.mxu0 %v870
        %917 = vmatprep.subr.bf16.mxu0 0
        %918 = vmatpush1.bf16.msra.mxu0 %v871
        %919 = vmatprep.subr.bf16.mxu0 0
        %920 = vmatpush1.bf16.msra.mxu0 %v872
        %921 = vmatprep.mubr.bf16.mxu0 %v746
        %922 = vmatmul.mubr.bf16.gmra.mrb[0].mxu0 %v745
        %v923 = vpop.f32.mrb[0].mxu0
        %v924 = vadd.f32 %v579, %v923
        %v925 = vpop.f32.mrb[0].mxu0
        %v926 = vpop.f32.mrb[0].mxu0
        %v927 = vadd.f32 %v582, %v926
        %v928 = vpop.f32.mrb[0].mxu0
        %929 = vmatprep.mubr.bf16.mxu0 %v748
        %930 = vmatmul.mubr.bf16.gmra.mrb[0].mxu0 %v747
        %v931 = vpop.f32.mrb[0].mxu0
        %v932 = vadd.f32 %v587, %v931
        %v933 = vpop.f32.mrb[0].mxu0
        %v934 = vpop.f32.mrb[0].mxu0
        %v935 = vadd.f32 %v590, %v934
        %v936 = vpop.f32.mrb[0].mxu0
        %937 = vmatprep.mubr.bf16.mxu0 %v750
        %938 = vmatmul.mubr.bf16.gmra.mrb[0].mxu0 %v749
        %v939 = vpop.f32.mrb[0].mxu0
        %v940 = vadd.f32 %v595, %v939
        %v941 = vpop.f32.mrb[0].mxu0
        %v942 = vpop.f32.mrb[0].mxu0
        %v943 = vadd.f32 %v598, %v942
        %v944 = vpop.f32.mrb[0].mxu0
        %945 = vmatprep.mubr.bf16.mxu0 %v752
        %946 = vmatmul.mubr.bf16.gmra.mrb[0].mxu0 %v751
        %v947 = vpop.f32.mrb[0].mxu0
        %v948 = vadd.f32 %v603, %v947
        %v949 = vpop.f32.mrb[0].mxu0
        %v950 = vpop.f32.mrb[0].mxu0
        %v951 = vadd.f32 %v606, %v950
        %v952 = vpop.f32.mrb[0].mxu0
        %953 = vmatprep.mubr.bf16.mxu0 %v754
        %954 = vmatmul.mubr.bf16.gmra.mrb[0].mxu0 %v753
        %v955 = vpop.f32.mrb[0].mxu0
        %v956 = vadd.f32 %v611, %v955
        %v957 = vpop.f32.mrb[0].mxu0
        %v958 = vpop.f32.mrb[0].mxu0
        %v959 = vadd.f32 %v614, %v958
        %v960 = vpop.f32.mrb[0].mxu0
        %961 = vmatprep.mubr.bf16.mxu0 %v756
        %962 = vmatmul.mubr.bf16.gmra.mrb[0].mxu0 %v755
        %v963 = vpop.f32.mrb[0].mxu0
        %v964 = vadd.f32 %v619, %v963
        %v965 = vpop.f32.mrb[0].mxu0
        %v966 = vpop.f32.mrb[0].mxu0
        %v967 = vadd.f32 %v622, %v966
        %v968 = vpop.f32.mrb[0].mxu0
        %969 = vmatprep.mubr.bf16.mxu0 %v758
        %970 = vmatmul.mubr.bf16.gmra.mrb[0].mxu0 %v757
        %v971 = vpop.f32.mrb[0].mxu0
        %v972 = vadd.f32 %v627, %v971
        %v973 = vpop.f32.mrb[0].mxu0
        %v974 = vpop.f32.mrb[0].mxu0
        %v975 = vadd.f32 %v630, %v974
        %v976 = vpop.f32.mrb[0].mxu0
        %977 = vmatprep.mubr.bf16.mxu0 %v760
        %978 = vmatmul.mubr.bf16.gmra.mrb[0].mxu0 %v759
        %v979 = vpop.f32.mrb[0].mxu0
        %v980 = vadd.f32 %v635, %v979
        %v981 = vpop.f32.mrb[0].mxu0
        %v982 = vpop.f32.mrb[0].mxu0
        %v983 = vadd.f32 %v638, %v982
        %v984 = vpop.f32.mrb[0].mxu0
        %985 = vmatprep.mubr.bf16.mxu0 %v762
        %986 = vmatmul.mubr.bf16.gmra.mrb[0].mxu0 %v761
        %v987 = vpop.f32.mrb[0].mxu0
        %v988 = vadd.f32 %v643, %v987
        %v989 = vpop.f32.mrb[0].mxu0
        %v990 = vpop.f32.mrb[0].mxu0
        %v991 = vadd.f32 %v646, %v990
        %v992 = vpop.f32.mrb[0].mxu0
        %993 = vmatprep.mubr.bf16.mxu0 %v764
        %994 = vmatmul.mubr.bf16.gmra.mrb[0].mxu0 %v763
        %v995 = vpop.f32.mrb[0].mxu0
        %v996 = vadd.f32 %v651, %v995
        %v997 = vpop.f32.mrb[0].mxu0
        %v998 = vpop.f32.mrb[0].mxu0
        %v999 = vadd.f32 %v654, %v998
        %v1000 = vpop.f32.mrb[0].mxu0
        %1001 = vmatprep.mubr.bf16.mxu0 %v766
        %1002 = vmatmul.mubr.bf16.gmra.mrb[0].mxu0 %v765
        %v1003 = vpop.f32.mrb[0].mxu0
        %v1004 = vadd.f32 %v659, %v1003
        %v1005 = vpop.f32.mrb[0].mxu0
        %v1006 = vpop.f32.mrb[0].mxu0
        %v1007 = vadd.f32 %v662, %v1006
        %v1008 = vpop.f32.mrb[0].mxu0
        %1009 = vmatprep.mubr.bf16.mxu0 %v768
        %1010 = vmatmul.mubr.bf16.gmra.mrb[0].mxu0 %v767
        %v1011 = vpop.f32.mrb[0].mxu0
        %v1012 = vadd.f32 %v667, %v1011
        %v1013 = vpop.f32.mrb[0].mxu0
        %v1014 = vpop.f32.mrb[0].mxu0
        %v1015 = vadd.f32 %v670, %v1014
        %v1016 = vpop.f32.mrb[0].mxu0
        %1017 = vdwg.mxu0
        %v1018 = vadd.f32 %v924, %v213
        %v1019 = vadd.f32 %v927, %v213
        %v1020 = vadd.f32 %v932, %v213
        %v1021 = vadd.f32 %v935, %v213
        %v1022 = vadd.f32 %v940, %v213
        %v1023 = vadd.f32 %v943, %v213
        %v1024 = vadd.f32 %v948, %v213
        %v1025 = vadd.f32 %v951, %v213
        %v1026 = vadd.f32 %v956, %v213
        %v1027 = vadd.f32 %v959, %v213
        %v1028 = vadd.f32 %v964, %v213
        %v1029 = vadd.f32 %v967, %v213
        %v1030 = vadd.f32 %v972, %v213
        %v1031 = vadd.f32 %v975, %v213
        %v1032 = vadd.f32 %v980, %v213
        %v1033 = vadd.f32 %v983, %v213
        %v1034 = vadd.f32 %v988, %v213
        %v1035 = vadd.f32 %v991, %v213
        %v1036 = vadd.f32 %v996, %v213
        %v1037 = vadd.f32 %v999, %v213
        %v1038 = vadd.f32 %v1004, %v213
        %v1039 = vadd.f32 %v1007, %v213
        %v1040 = vadd.f32 %v1012, %v213
        %v1041 = vadd.f32 %v1015, %v213
        %v1042 = vmul.f32 %v1018, 0.5
        %v1043 = vmul.f32 %v1019, 0.5
        %v1044 = vmul.f32 %v1020, 0.5
        %v1045 = vmul.f32 %v1021, 0.5
        %v1046 = vmul.f32 %v1022, 0.5
        %v1047 = vmul.f32 %v1023, 0.5
        %v1048 = vmul.f32 %v1024, 0.5
        %v1049 = vmul.f32 %v1025, 0.5
        %v1050 = vmul.f32 %v1026, 0.5
        %v1051 = vmul.f32 %v1027, 0.5
        %v1052 = vmul.f32 %v1028, 0.5
        %v1053 = vmul.f32 %v1029, 0.5
        %v1054 = vmul.f32 %v1030, 0.5
        %v1055 = vmul.f32 %v1031, 0.5
        %v1056 = vmul.f32 %v1032, 0.5
        %v1057 = vmul.f32 %v1033, 0.5
        %v1058 = vmul.f32 %v1034, 0.5
        %v1059 = vmul.f32 %v1035, 0.5
        %v1060 = vmul.f32 %v1036, 0.5
        %v1061 = vmul.f32 %v1037, 0.5
        %v1062 = vmul.f32 %v1038, 0.5
        %v1063 = vmul.f32 %v1039, 0.5
        %v1064 = vmul.f32 %v1040, 0.5
        %v1065 = vmul.f32 %v1041, 0.5
        %v1066 = vtanh.pop %v1042
        %v1067 = vtanh.pop %v1043
        %v1068 = vtanh.pop %v1044
        %v1069 = vtanh.pop %v1045
        %v1070 = vtanh.pop %v1046
        %v1071 = vtanh.pop %v1047
        %v1072 = vtanh.pop %v1048
        %v1073 = vtanh.pop %v1049
        %v1074 = vtanh.pop %v1050
        %v1075 = vtanh.pop %v1051
        %v1076 = vtanh.pop %v1052
        %v1077 = vtanh.pop %v1053
        %v1078 = vtanh.pop %v1054
        %v1079 = vtanh.pop %v1055
        %v1080 = vtanh.pop %v1056
        %v1081 = vtanh.pop %v1057
        %v1082 = vtanh.pop %v1058
        %v1083 = vtanh.pop %v1059
        %v1084 = vtanh.pop %v1060
        %v1085 = vtanh.pop %v1061
        %v1086 = vtanh.pop %v1062
        %v1087 = vtanh.pop %v1063
        %v1088 = vtanh.pop %v1064
        %v1089 = vtanh.pop %v1065
        %v1090 = vmul.f32 %v1066, 0.5
        %v1091 = vmul.f32 %v1067, 0.5
        %v1092 = vmul.f32 %v1068, 0.5
        %v1093 = vmul.f32 %v1069, 0.5
        %v1094 = vmul.f32 %v1070, 0.5
        %v1095 = vmul.f32 %v1071, 0.5
        %v1096 = vmul.f32 %v1072, 0.5
        %v1097 = vmul.f32 %v1073, 0.5
        %v1098 = vmul.f32 %v1074, 0.5
        %v1099 = vmul.f32 %v1075, 0.5
        %v1100 = vmul.f32 %v1076, 0.5
        %v1101 = vmul.f32 %v1077, 0.5
        %v1102 = vmul.f32 %v1078, 0.5
        %v1103 = vmul.f32 %v1079, 0.5
        %v1104 = vmul.f32 %v1080, 0.5
        %v1105 = vmul.f32 %v1081, 0.5
        %v1106 = vmul.f32 %v1082, 0.5
        %v1107 = vmul.f32 %v1083, 0.5
        %v1108 = vmul.f32 %v1084, 0.5
        %v1109 = vmul.f32 %v1085, 0.5
        %v1110 = vmul.f32 %v1086, 0.5
        %v1111 = vmul.f32 %v1087, 0.5
        %v1112 = vmul.f32 %v1088, 0.5
        %v1113 = vmul.f32 %v1089, 0.5
        %v1114 = vadd.f32 %v1090, 0.5
        %v1115 = vadd.f32 %v1091, 0.5
        %v1116 = vadd.f32 %v1092, 0.5
        %v1117 = vadd.f32 %v1093, 0.5
        %v1118 = vadd.f32 %v1094, 0.5
        %v1119 = vadd.f32 %v1095, 0.5
        %v1120 = vadd.f32 %v1096, 0.5
        %v1121 = vadd.f32 %v1097, 0.5
        %v1122 = vadd.f32 %v1098, 0.5
        %v1123 = vadd.f32 %v1099, 0.5
        %v1124 = vadd.f32 %v1100, 0.5
        %v1125 = vadd.f32 %v1101, 0.5
        %v1126 = vadd.f32 %v1102, 0.5
        %v1127 = vadd.f32 %v1103, 0.5
        %v1128 = vadd.f32 %v1104, 0.5
        %v1129 = vadd.f32 %v1105, 0.5
        %v1130 = vadd.f32 %v1106, 0.5
        %v1131 = vadd.f32 %v1107, 0.5
        %v1132 = vadd.f32 %v1108, 0.5
        %v1133 = vadd.f32 %v1109, 0.5
        %v1134 = vadd.f32 %v1110, 0.5
        %v1135 = vadd.f32 %v1111, 0.5
        %v1136 = vadd.f32 %v1112, 0.5
        %v1137 = vadd.f32 %v1113, 0.5
        %v1138 = vmul.f32 %v1018, %v1114
        %v1139 = vmul.f32 %v1019, %v1115
        %v1140 = vmul.f32 %v1020, %v1116
        %v1141 = vmul.f32 %v1021, %v1117
        %v1142 = vmul.f32 %v1022, %v1118
        %v1143 = vmul.f32 %v1023, %v1119
        %v1144 = vmul.f32 %v1024, %v1120
        %v1145 = vmul.f32 %v1025, %v1121
        %v1146 = vmul.f32 %v1026, %v1122
        %v1147 = vmul.f32 %v1027, %v1123
        %v1148 = vmul.f32 %v1028, %v1124
        %v1149 = vmul.f32 %v1029, %v1125
        %v1150 = vmul.f32 %v1030, %v1126
        %v1151 = vmul.f32 %v1031, %v1127
        %v1152 = vmul.f32 %v1032, %v1128
        %v1153 = vmul.f32 %v1033, %v1129
        %v1154 = vmul.f32 %v1034, %v1130
        %v1155 = vmul.f32 %v1035, %v1131
        %v1156 = vmul.f32 %v1036, %v1132
        %v1157 = vmul.f32 %v1037, %v1133
        %v1158 = vmul.f32 %v1038, %v1134
        %v1159 = vmul.f32 %v1039, %v1135
        %v1160 = vmul.f32 %v1040, %v1136
        %v1161 = vmul.f32 %v1041, %v1137
        %v1162 = vpack.c.bf16 %v1139, %v1138
        %v1163 = vpack.c.bf16 %v1141, %v1140
        %v1164 = vpack.c.bf16 %v1143, %v1142
        %v1165 = vpack.c.bf16 %v1145, %v1144
        %v1166 = vpack.c.bf16 %v1147, %v1146
        %v1167 = vpack.c.bf16 %v1149, %v1148
        %v1168 = vpack.c.bf16 %v1151, %v1150
        %v1169 = vpack.c.bf16 %v1153, %v1152
        %v1170 = vpack.c.bf16 %v1155, %v1154
        %v1171 = vpack.c.bf16 %v1157, %v1156
        %v1172 = vpack.c.bf16 %v1159, %v1158
        %v1173 = vpack.c.bf16 %v1161, %v1160
        %v1186 = vunpack.c.l.b16 %v1162
        %v1187 = vunpack.c.h.b16 %v1162
        %v1188 = vunpack.c.l.b16 %v1163
        %v1189 = vunpack.c.h.b16 %v1163
        %v1190 = vunpack.c.l.b16 %v1164
        %v1191 = vunpack.c.h.b16 %v1164
        %v1192 = vunpack.c.l.b16 %v1165
        %v1193 = vunpack.c.h.b16 %v1165
        %v1194 = vunpack.c.l.b16 %v1166
        %v1195 = vunpack.c.h.b16 %v1166
        %v1196 = vunpack.c.l.b16 %v1167
        %v1197 = vunpack.c.h.b16 %v1167
        %v1198 = vunpack.c.l.b16 %v1168
        %v1199 = vunpack.c.h.b16 %v1168
        %v1200 = vunpack.c.l.b16 %v1169
        %v1201 = vunpack.c.h.b16 %v1169
        %v1202 = vunpack.c.l.b16 %v1170
        %v1203 = vunpack.c.h.b16 %v1170
        %v1204 = vunpack.c.l.b16 %v1171
        %v1205 = vunpack.c.h.b16 %v1171
        %v1206 = vunpack.c.l.b16 %v1172
        %v1207 = vunpack.c.h.b16 %v1172
        %v1208 = vunpack.c.l.b16 %v1173
        %v1209 = vunpack.c.h.b16 %v1173
        %v1210 = vpack.c.b16 %v1186, %v1186
        %v1211 = vpack.c.b16 %v1187, %v1187
        %v1212 = vpack.c.b16 %v1188, %v1188
        %v1213 = vpack.c.b16 %v1189, %v1189
        %v1214 = vpack.c.b16 %v1190, %v1190
        %v1215 = vpack.c.b16 %v1191, %v1191
        %v1216 = vpack.c.b16 %v1192, %v1192
        %v1217 = vpack.c.b16 %v1193, %v1193
        %v1218 = vpack.c.b16 %v1194, %v1194
        %v1219 = vpack.c.b16 %v1195, %v1195
        %v1220 = vpack.c.b16 %v1196, %v1196
        %v1221 = vpack.c.b16 %v1197, %v1197
        %v1222 = vpack.c.b16 %v1198, %v1198
        %v1223 = vpack.c.b16 %v1199, %v1199
        %v1224 = vpack.c.b16 %v1200, %v1200
        %v1225 = vpack.c.b16 %v1201, %v1201
        %v1226 = vpack.c.b16 %v1202, %v1202
        %v1227 = vpack.c.b16 %v1203, %v1203
        %v1228 = vpack.c.b16 %v1204, %v1204
        %v1229 = vpack.c.b16 %v1205, %v1205
        %v1230 = vpack.c.b16 %v1206, %v1206
        %v1231 = vpack.c.b16 %v1207, %v1207
        %v1232 = vpack.c.b16 %v1208, %v1208
        %v1233 = vpack.c.b16 %v1209, %v1209
        %1258 = vst [vmem:[%s204] sm:$0xf] %v1210
        %1259 = vst [vmem:[%s204 + $0x4] sm:$0xf] %v1211
        %1260 = vst [vmem:[%s204 + $0x8] sm:$0xf] %v1212
        %1261 = vst [vmem:[%s204 + $0xc] sm:$0xf] %v1213
        %1262 = vst [vmem:[%s204 + $0x10] sm:$0xf] %v1214
        %1263 = vst [vmem:[%s204 + $0x14] sm:$0xf] %v1215
        %1264 = vst [vmem:[%s204 + $0x18] sm:$0xf] %v1216
        %1265 = vst [vmem:[%s204 + $0x1c] sm:$0xf] %v1217
        %1266 = vst [vmem:[%s204 + $0x20] sm:$0xf] %v1218
        %1267 = vst [vmem:[%s204 + $0x24] sm:$0xf] %v1219
        %1268 = vst [vmem:[%s204 + $0x28] sm:$0xf] %v1220
        %1269 = vst [vmem:[%s204 + $0x2c] sm:$0xf] %v1221
        %1270 = vst [vmem:[%s204 + $0x30] sm:$0xf] %v1222
        %1271 = vst [vmem:[%s204 + $0x34] sm:$0xf] %v1223
        %1272 = vst [vmem:[%s204 + $0x38] sm:$0xf] %v1224
        %1273 = vst [vmem:[%s204 + $0x3c] sm:$0xf] %v1225
        %1274 = vst [vmem:[%s204 + $0x40] sm:$0xf] %v1226
        %1275 = vst [vmem:[%s204 + $0x44] sm:$0xf] %v1227
        %1276 = vst [vmem:[%s204 + $0x48] sm:$0xf] %v1228
        %1277 = vst [vmem:[%s204 + $0x4c] sm:$0xf] %v1229
        %1278 = vst [vmem:[%s204 + $0x50] sm:$0xf] %v1230
        %1279 = vst [vmem:[%s204 + $0x54] sm:$0xf] %v1231
        %1280 = vst [vmem:[%s204 + $0x58] sm:$0xf] %v1232
        %1281 = vst [vmem:[%s204 + $0x5c] sm:$0xf] %v1233
        %v1282 = vld [vmem:[%s178 + $0x4] sm:$0xff]
        %v1283 = vld [vmem:[%s178 + $0x28] sm:$0xff]
        %v1284 = vld [vmem:[%s178 + $0x4c] sm:$0xff]
        %v1285 = vld [vmem:[%s178 + $0x70] sm:$0xff]
        %v1286 = vld [vmem:[%s178 + $0x94] sm:$0xff]
        %v1287 = vld [vmem:[%s178 + $0xb8] sm:$0xff]
        %v1288 = vld [vmem:[%s178 + $0xdc] sm:$0xff]
        %v1289 = vld [vmem:[%s178 + $0x100] sm:$0xff]
        %v1290 = vld [vmem:[%s178 + $0x124] sm:$0xff]
        %v1291 = vld [vmem:[%s178 + $0x148] sm:$0xff]
        %v1292 = vld [vmem:[%s178 + $0x16c] sm:$0xff]
        %v1293 = vld [vmem:[%s178 + $0x190] sm:$0xff]
        %v1294 = vld [vmem:[%s178 + $0x1b4] sm:$0xff]
        %v1295 = vld [vmem:[%s178 + $0x1d8] sm:$0xff]
        %v1296 = vld [vmem:[%s178 + $0x1fc] sm:$0xff]
        %v1297 = vld [vmem:[%s178 + $0x220] sm:$0xff]
        %v1298 = vld [vmem:[%s178 + $0x244] sm:$0xff]
        %v1299 = vld [vmem:[%s178 + $0x268] sm:$0xff]
        %v1300 = vld [vmem:[%s178 + $0x28c] sm:$0xff]
        %v1301 = vld [vmem:[%s178 + $0x2b0] sm:$0xff]
        %v1302 = vld [vmem:[%s178 + $0x2d4] sm:$0xff]
        %v1303 = vld [vmem:[%s178 + $0x2f8] sm:$0xff]
        %v1304 = vld [vmem:[%s178 + $0x31c] sm:$0xff]
        %v1305 = vld [vmem:[%s178 + $0x340] sm:$0xff]
        %s1306 = scalar_lea.vmem [#allocation5], 256
        %v1307 = vld [vmem:[%s1306] sm:$0xf]
        %v1308 = vld [vmem:[%s1306 + $0x4] sm:$0xf]
        %v1309 = vld [vmem:[%s1306 + $0x8] sm:$0xf]
        %v1310 = vld [vmem:[%s1306 + $0xc] sm:$0xf]
        %v1311 = vld [vmem:[%s1306 + $0x10] sm:$0xf]
        %v1312 = vld [vmem:[%s1306 + $0x14] sm:$0xf]
        %v1313 = vld [vmem:[%s1306 + $0x18] sm:$0xf]
        %v1314 = vld [vmem:[%s1306 + $0x1c] sm:$0xf]
        %v1315 = vld [vmem:[%s1306 + $0x20] sm:$0xf]
        %v1316 = vld [vmem:[%s1306 + $0x24] sm:$0xf]
        %v1317 = vld [vmem:[%s1306 + $0x28] sm:$0xf]
        %v1318 = vld [vmem:[%s1306 + $0x2c] sm:$0xf]
        %v1319 = vld [vmem:[%s1306 + $0x30] sm:$0xf]
        %v1320 = vld [vmem:[%s1306 + $0x34] sm:$0xf]
        %v1321 = vld [vmem:[%s1306 + $0x38] sm:$0xf]
        %v1322 = vld [vmem:[%s1306 + $0x3c] sm:$0xf]
        %v1323 = vld [vmem:[%s1306 + $0x40] sm:$0xf]
        %v1324 = vld [vmem:[%s1306 + $0x44] sm:$0xf]
        %v1325 = vld [vmem:[%s1306 + $0x48] sm:$0xf]
        %v1326 = vld [vmem:[%s1306 + $0x4c] sm:$0xf]
        %v1327 = vld [vmem:[%s1306 + $0x50] sm:$0xf]
        %v1328 = vld [vmem:[%s1306 + $0x54] sm:$0xf]
        %v1329 = vld [vmem:[%s1306 + $0x58] sm:$0xf]
        %v1330 = vld [vmem:[%s1306 + $0x5c] sm:$0xf]
        %v1331 = vld [vmem:[%s1306 + $0x60] sm:$0xf]
        %v1332 = vld [vmem:[%s1306 + $0x64] sm:$0xf]
        %v1333 = vld [vmem:[%s1306 + $0x68] sm:$0xf]
        %v1334 = vld [vmem:[%s1306 + $0x6c] sm:$0xf]
        %v1335 = vld [vmem:[%s1306 + $0x70] sm:$0xf]
        %v1336 = vld [vmem:[%s1306 + $0x74] sm:$0xf]
        %v1337 = vld [vmem:[%s1306 + $0x78] sm:$0xf]
        %v1338 = vld [vmem:[%s1306 + $0x7c] sm:$0xf]
        %v1339 = vld [vmem:[%s178 + $0x10] sm:$0xff]
        %v1340 = vld [vmem:[%s178 + $0x34] sm:$0xff]
        %v1341 = vld [vmem:[%s178 + $0x58] sm:$0xff]
        %v1342 = vld [vmem:[%s178 + $0x7c] sm:$0xff]
        %v1343 = vld [vmem:[%s178 + $0xa0] sm:$0xff]
        %v1344 = vld [vmem:[%s178 + $0xc4] sm:$0xff]
        %v1345 = vld [vmem:[%s178 + $0xe8] sm:$0xff]
        %v1346 = vld [vmem:[%s178 + $0x10c] sm:$0xff]
        %v1347 = vld [vmem:[%s178 + $0x130] sm:$0xff]
        %v1348 = vld [vmem:[%s178 + $0x154] sm:$0xff]
        %v1349 = vld [vmem:[%s178 + $0x178] sm:$0xff]
        %v1350 = vld [vmem:[%s178 + $0x19c] sm:$0xff]
        %v1351 = vld [vmem:[%s178 + $0x1c0] sm:$0xff]
        %v1352 = vld [vmem:[%s178 + $0x1e4] sm:$0xff]
        %v1353 = vld [vmem:[%s178 + $0x208] sm:$0xff]
        %v1354 = vld [vmem:[%s178 + $0x22c] sm:$0xff]
        %v1355 = vld [vmem:[%s178 + $0x250] sm:$0xff]
        %v1356 = vld [vmem:[%s178 + $0x274] sm:$0xff]
        %v1357 = vld [vmem:[%s178 + $0x298] sm:$0xff]
        %v1358 = vld [vmem:[%s178 + $0x2bc] sm:$0xff]
        %v1359 = vld [vmem:[%s178 + $0x2e0] sm:$0xff]
        %v1360 = vld [vmem:[%s178 + $0x304] sm:$0xff]
        %v1361 = vld [vmem:[%s178 + $0x328] sm:$0xff]
        %v1362 = vld [vmem:[%s178 + $0x34c] sm:$0xff]
        %s1363 = scalar_lea.vmem [#allocation5], 384
        %v1364 = vld [vmem:[%s1363] sm:$0xf]
        %v1365 = vld [vmem:[%s1363 + $0x4] sm:$0xf]
        %v1366 = vld [vmem:[%s1363 + $0x8] sm:$0xf]
        %v1367 = vld [vmem:[%s1363 + $0xc] sm:$0xf]
        %v1368 = vld [vmem:[%s1363 + $0x10] sm:$0xf]
        %v1369 = vld [vmem:[%s1363 + $0x14] sm:$0xf]
        %v1370 = vld [vmem:[%s1363 + $0x18] sm:$0xf]
        %v1371 = vld [vmem:[%s1363 + $0x1c] sm:$0xf]
        %v1372 = vld [vmem:[%s1363 + $0x20] sm:$0xf]
        %v1373 = vld [vmem:[%s1363 + $0x24] sm:$0xf]
        %v1374 = vld [vmem:[%s1363 + $0x28] sm:$0xf]
        %v1375 = vld [vmem:[%s1363 + $0x2c] sm:$0xf]
        %v1376 = vld [vmem:[%s1363 + $0x30] sm:$0xf]
        %v1377 = vld [vmem:[%s1363 + $0x34] sm:$0xf]
        %v1378 = vld [vmem:[%s1363 + $0x38] sm:$0xf]
        %v1379 = vld [vmem:[%s1363 + $0x3c] sm:$0xf]
        %v1380 = vld [vmem:[%s1363 + $0x40] sm:$0xf]
        %v1381 = vld [vmem:[%s1363 + $0x44] sm:$0xf]
        %v1382 = vld [vmem:[%s1363 + $0x48] sm:$0xf]
        %v1383 = vld [vmem:[%s1363 + $0x4c] sm:$0xf]
        %v1384 = vld [vmem:[%s1363 + $0x50] sm:$0xf]
        %v1385 = vld [vmem:[%s1363 + $0x54] sm:$0xf]
        %v1386 = vld [vmem:[%s1363 + $0x58] sm:$0xf]
        %v1387 = vld [vmem:[%s1363 + $0x5c] sm:$0xf]
        %v1388 = vld [vmem:[%s1363 + $0x60] sm:$0xf]
        %v1389 = vld [vmem:[%s1363 + $0x64] sm:$0xf]
        %v1390 = vld [vmem:[%s1363 + $0x68] sm:$0xf]
        %v1391 = vld [vmem:[%s1363 + $0x6c] sm:$0xf]
        %v1392 = vld [vmem:[%s1363 + $0x70] sm:$0xf]
        %v1393 = vld [vmem:[%s1363 + $0x74] sm:$0xf]
        %v1394 = vld [vmem:[%s1363 + $0x78] sm:$0xf]
        %v1395 = vld [vmem:[%s1363 + $0x7c] sm:$0xf]
        %v1420 = vunpack.c.l.b16 %v1339
        %v1421 = vunpack.c.h.b16 %v1339
        %v1422 = vunpack.c.l.b16 %v1340
        %v1423 = vunpack.c.h.b16 %v1340
        %v1424 = vunpack.c.l.b16 %v1341
        %v1425 = vunpack.c.h.b16 %v1341
        %v1426 = vunpack.c.l.b16 %v1342
        %v1427 = vunpack.c.h.b16 %v1342
        %v1428 = vunpack.c.l.b16 %v1343
        %v1429 = vunpack.c.h.b16 %v1343
        %v1430 = vunpack.c.l.b16 %v1344
        %v1431 = vunpack.c.h.b16 %v1344
        %v1432 = vunpack.c.l.b16 %v1345
        %v1433 = vunpack.c.h.b16 %v1345
        %v1434 = vunpack.c.l.b16 %v1346
        %v1435 = vunpack.c.h.b16 %v1346
        %v1436 = vunpack.c.l.b16 %v1347
        %v1437 = vunpack.c.h.b16 %v1347
        %v1438 = vunpack.c.l.b16 %v1348
        %v1439 = vunpack.c.h.b16 %v1348
        %v1440 = vunpack.c.l.b16 %v1349
        %v1441 = vunpack.c.h.b16 %v1349
        %v1442 = vunpack.c.l.b16 %v1350
        %v1443 = vunpack.c.h.b16 %v1350
        %v1444 = vunpack.c.l.b16 %v1351
        %v1445 = vunpack.c.h.b16 %v1351
        %v1446 = vunpack.c.l.b16 %v1352
        %v1447 = vunpack.c.h.b16 %v1352
        %v1448 = vunpack.c.l.b16 %v1353
        %v1449 = vunpack.c.h.b16 %v1353
        %v1450 = vunpack.c.l.b16 %v1354
        %v1451 = vunpack.c.h.b16 %v1354
        %v1452 = vunpack.c.l.b16 %v1355
        %v1453 = vunpack.c.h.b16 %v1355
        %v1454 = vunpack.c.l.b16 %v1356
        %v1455 = vunpack.c.h.b16 %v1356
        %v1456 = vunpack.c.l.b16 %v1357
        %v1457 = vunpack.c.h.b16 %v1357
        %v1458 = vunpack.c.l.b16 %v1358
        %v1459 = vunpack.c.h.b16 %v1358
        %v1460 = vunpack.c.l.b16 %v1359
        %v1461 = vunpack.c.h.b16 %v1359
        %v1462 = vunpack.c.l.b16 %v1360
        %v1463 = vunpack.c.h.b16 %v1360
        %v1464 = vunpack.c.l.b16 %v1361
        %v1465 = vunpack.c.h.b16 %v1361
        %v1466 = vunpack.c.l.b16 %v1362
        %v1467 = vunpack.c.h.b16 %v1362
        %v1468 = vpack.c.b16 %v1422, %v1420
        %v1469 = vpack.c.b16 %v1423, %v1421
        %v1470 = vpack.c.b16 %v1426, %v1424
        %v1471 = vpack.c.b16 %v1427, %v1425
        %v1472 = vpack.c.b16 %v1430, %v1428
        %v1473 = vpack.c.b16 %v1431, %v1429
        %v1474 = vpack.c.b16 %v1434, %v1432
        %v1475 = vpack.c.b16 %v1435, %v1433
        %v1476 = vpack.c.b16 %v1438, %v1436
        %v1477 = vpack.c.b16 %v1439, %v1437
        %v1478 = vpack.c.b16 %v1442, %v1440
        %v1479 = vpack.c.b16 %v1443, %v1441
        %v1480 = vpack.c.b16 %v1446, %v1444
        %v1481 = vpack.c.b16 %v1447, %v1445
        %v1482 = vpack.c.b16 %v1450, %v1448
        %v1483 = vpack.c.b16 %v1451, %v1449
        %v1484 = vpack.c.b16 %v1454, %v1452
        %v1485 = vpack.c.b16 %v1455, %v1453
        %v1486 = vpack.c.b16 %v1458, %v1456
        %v1487 = vpack.c.b16 %v1459, %v1457
        %v1488 = vpack.c.b16 %v1462, %v1460
        %v1489 = vpack.c.b16 %v1463, %v1461
        %v1490 = vpack.c.b16 %v1466, %v1464
        %v1491 = vpack.c.b16 %v1467, %v1465
        %v1548 = vunpack.c.l.b16 %v1364
        %v1549 = vunpack.c.l.b16 %v1365
        %v1550 = vunpack.c.l.b16 %v1366
        %v1551 = vunpack.c.l.b16 %v1367
        %v1552 = vunpack.c.l.b16 %v1368
        %v1553 = vunpack.c.l.b16 %v1369
        %v1554 = vunpack.c.l.b16 %v1370
        %v1555 = vunpack.c.l.b16 %v1371
        %v1556 = vunpack.c.l.b16 %v1372
        %v1557 = vunpack.c.l.b16 %v1373
        %v1558 = vunpack.c.l.b16 %v1374
        %v1559 = vunpack.c.l.b16 %v1375
        %v1560 = vunpack.c.l.b16 %v1376
        %v1561 = vunpack.c.l.b16 %v1377
        %v1562 = vunpack.c.l.b16 %v1378
        %v1563 = vunpack.c.l.b16 %v1379
        %v1564 = vunpack.c.l.b16 %v1380
        %v1565 = vunpack.c.l.b16 %v1381
        %v1566 = vunpack.c.l.b16 %v1382
        %v1567 = vunpack.c.l.b16 %v1383
        %v1568 = vunpack.c.l.b16 %v1384
        %v1569 = vunpack.c.l.b16 %v1385
        %v1570 = vunpack.c.l.b16 %v1386
        %v1571 = vunpack.c.l.b16 %v1387
        %v1572 = vunpack.c.l.b16 %v1388
        %v1573 = vunpack.c.l.b16 %v1389
        %v1574 = vunpack.c.l.b16 %v1390
        %v1575 = vunpack.c.l.b16 %v1391
        %v1576 = vunpack.c.l.b16 %v1392
        %v1577 = vunpack.c.l.b16 %v1393
        %v1578 = vunpack.c.l.b16 %v1394
        %v1579 = vunpack.c.l.b16 %v1395
        %v1580 = vpack.c.b16 %v1549, %v1548
        %v1581 = vpack.c.b16 %v1551, %v1550
        %v1582 = vpack.c.b16 %v1553, %v1552
        %v1583 = vpack.c.b16 %v1555, %v1554
        %v1584 = vpack.c.b16 %v1557, %v1556
        %v1585 = vpack.c.b16 %v1559, %v1558
        %v1586 = vpack.c.b16 %v1561, %v1560
        %v1587 = vpack.c.b16 %v1563, %v1562
        %v1588 = vpack.c.b16 %v1565, %v1564
        %v1589 = vpack.c.b16 %v1567, %v1566
        %v1590 = vpack.c.b16 %v1569, %v1568
        %v1591 = vpack.c.b16 %v1571, %v1570
        %v1592 = vpack.c.b16 %v1573, %v1572
        %v1593 = vpack.c.b16 %v1575, %v1574
        %v1594 = vpack.c.b16 %v1577, %v1576
        %v1595 = vpack.c.b16 %v1579, %v1578
        %1612 = vmatprep.subr.bf16.mxu0 0
        %1613 = vmatpush1.bf16.msra.mxu0 %v1580
        %1614 = vmatprep.subr.bf16.mxu0 0
        %1615 = vmatpush1.bf16.msra.mxu0 %v1581
        %1616 = vmatprep.subr.bf16.mxu0 0
        %1617 = vmatpush1.bf16.msra.mxu0 %v1582
        %1618 = vmatprep.subr.bf16.mxu0 0
        %1619 = vmatpush1.bf16.msra.mxu0 %v1583
        %1620 = vmatprep.subr.bf16.mxu0 0
        %1621 = vmatpush1.bf16.msra.mxu0 %v1584
        %1622 = vmatprep.subr.bf16.mxu0 0
        %1623 = vmatpush1.bf16.msra.mxu0 %v1585
        %1624 = vmatprep.subr.bf16.mxu0 0
        %1625 = vmatpush1.bf16.msra.mxu0 %v1586
        %1626 = vmatprep.subr.bf16.mxu0 0
        %1627 = vmatpush1.bf16.msra.mxu0 %v1587
        %1628 = vmatprep.subr.bf16.mxu0 0
        %1629 = vmatpush1.bf16.msra.mxu0 %v1588
        %1630 = vmatprep.subr.bf16.mxu0 0
        %1631 = vmatpush1.bf16.msra.mxu0 %v1589
        %1632 = vmatprep.subr.bf16.mxu0 0
        %1633 = vmatpush1.bf16.msra.mxu0 %v1590
        %1634 = vmatprep.subr.bf16.mxu0 0
        %1635 = vmatpush1.bf16.msra.mxu0 %v1591
        %1636 = vmatprep.subr.bf16.mxu0 0
        %1637 = vmatpush1.bf16.msra.mxu0 %v1592
        %1638 = vmatprep.subr.bf16.mxu0 0
        %1639 = vmatpush1.bf16.msra.mxu0 %v1593
        %1640 = vmatprep.subr.bf16.mxu0 0
        %1641 = vmatpush1.bf16.msra.mxu0 %v1594
        %1642 = vmatprep.subr.bf16.mxu0 0
        %1643 = vmatpush1.bf16.msra.mxu0 %v1595
        %1644 = vmatprep.mubr.bf16.mxu0 %v1469
        %1645 = vmatmul.mubr.bf16.gmra.mrb[0].mxu0 %v1468
        %v1646 = vpop.f32.mrb[0].mxu0
        %v1647 = vadd.f32 0.0, %v1646
        %v1648 = vpop.f32.mrb[0].mxu0
        %v1649 = vpop.f32.mrb[0].mxu0
        %v1650 = vadd.f32 0.0, %v1649
        %v1651 = vpop.f32.mrb[0].mxu0
        %1652 = vmatprep.mubr.bf16.mxu0 %v1471
        %1653 = vmatmul.mubr.bf16.gmra.mrb[0].mxu0 %v1470
        %v1654 = vpop.f32.mrb[0].mxu0
        %v1655 = vadd.f32 0.0, %v1654
        %v1656 = vpop.f32.mrb[0].mxu0
        %v1657 = vpop.f32.mrb[0].mxu0
        %v1658 = vadd.f32 0.0, %v1657
        %v1659 = vpop.f32.mrb[0].mxu0
        %1660 = vmatprep.mubr.bf16.mxu0 %v1473
        %1661 = vmatmul.mubr.bf16.gmra.mrb[0].mxu0 %v1472
        %v1662 = vpop.f32.mrb[0].mxu0
        %v1663 = vadd.f32 0.0, %v1662
        %v1664 = vpop.f32.mrb[0].mxu0
        %v1665 = vpop.f32.mrb[0].mxu0
        %v1666 = vadd.f32 0.0, %v1665
        %v1667 = vpop.f32.mrb[0].mxu0
        %1668 = vmatprep.mubr.bf16.mxu0 %v1475
        %1669 = vmatmul.mubr.bf16.gmra.mrb[0].mxu0 %v1474
        %v1670 = vpop.f32.mrb[0].mxu0
        %v1671 = vadd.f32 0.0, %v1670
        %v1672 = vpop.f32.mrb[0].mxu0
        %v1673 = vpop.f32.mrb[0].mxu0
        %v1674 = vadd.f32 0.0, %v1673
        %v1675 = vpop.f32.mrb[0].mxu0
        %1676 = vmatprep.mubr.bf16.mxu0 %v1477
        %1677 = vmatmul.mubr.bf16.gmra.mrb[0].mxu0 %v1476
        %v1678 = vpop.f32.mrb[0].mxu0
        %v1679 = vadd.f32 0.0, %v1678
        %v1680 = vpop.f32.mrb[0].mxu0
        %v1681 = vpop.f32.mrb[0].mxu0
        %v1682 = vadd.f32 0.0, %v1681
        %v1683 = vpop.f32.mrb[0].mxu0
        %1684 = vmatprep.mubr.bf16.mxu0 %v1479
        %1685 = vmatmul.mubr.bf16.gmra.mrb[0].mxu0 %v1478
        %v1686 = vpop.f32.mrb[0].mxu0
        %v1687 = vadd.f32 0.0, %v1686
        %v1688 = vpop.f32.mrb[0].mxu0
        %v1689 = vpop.f32.mrb[0].mxu0
        %v1690 = vadd.f32 0.0, %v1689
        %v1691 = vpop.f32.mrb[0].mxu0
        %1692 = vmatprep.mubr.bf16.mxu0 %v1481
        %1693 = vmatmul.mubr.bf16.gmra.mrb[0].mxu0 %v1480
        %v1694 = vpop.f32.mrb[0].mxu0
        %v1695 = vadd.f32 0.0, %v1694
        %v1696 = vpop.f32.mrb[0].mxu0
        %v1697 = vpop.f32.mrb[0].mxu0
        %v1698 = vadd.f32 0.0, %v1697
        %v1699 = vpop.f32.mrb[0].mxu0
        %1700 = vmatprep.mubr.bf16.mxu0 %v1483
        %1701 = vmatmul.mubr.bf16.gmra.mrb[0].mxu0 %v1482
        %v1702 = vpop.f32.mrb[0].mxu0
        %v1703 = vadd.f32 0.0, %v1702
        %v1704 = vpop.f32.mrb[0].mxu0
        %v1705 = vpop.f32.mrb[0].mxu0
        %v1706 = vadd.f32 0.0, %v1705
        %v1707 = vpop.f32.mrb[0].mxu0
        %1708 = vmatprep.mubr.bf16.mxu0 %v1485
        %1709 = vmatmul.mubr.bf16.gmra.mrb[0].mxu0 %v1484
        %v1710 = vpop.f32.mrb[0].mxu0
        %v1711 = vadd.f32 0.0, %v1710
        %v1712 = vpop.f32.mrb[0].mxu0
        %v1713 = vpop.f32.mrb[0].mxu0
        %v1714 = vadd.f32 0.0, %v1713
        %v1715 = vpop.f32.mrb[0].mxu0
        %1716 = vmatprep.mubr.bf16.mxu0 %v1487
        %1717 = vmatmul.mubr.bf16.gmra.mrb[0].mxu0 %v1486
        %v1718 = vpop.f32.mrb[0].mxu0
        %v1719 = vadd.f32 0.0, %v1718
        %v1720 = vpop.f32.mrb[0].mxu0
        %v1721 = vpop.f32.mrb[0].mxu0
        %v1722 = vadd.f32 0.0, %v1721
        %v1723 = vpop.f32.mrb[0].mxu0
        %1724 = vmatprep.mubr.bf16.mxu0 %v1489
        %1725 = vmatmul.mubr.bf16.gmra.mrb[0].mxu0 %v1488
        %v1726 = vpop.f32.mrb[0].mxu0
        %v1727 = vadd.f32 0.0, %v1726
        %v1728 = vpop.f32.mrb[0].mxu0
        %v1729 = vpop.f32.mrb[0].mxu0
        %v1730 = vadd.f32 0.0, %v1729
        %v1731 = vpop.f32.mrb[0].mxu0
        %1732 = vmatprep.mubr.bf16.mxu0 %v1491
        %1733 = vmatmul.mubr.bf16.gmra.mrb[0].mxu0 %v1490
        %v1734 = vpop.f32.mrb[0].mxu0
        %v1735 = vadd.f32 0.0, %v1734
        %v1736 = vpop.f32.mrb[0].mxu0
        %v1737 = vpop.f32.mrb[0].mxu0
        %v1738 = vadd.f32 0.0, %v1737
        %v1739 = vpop.f32.mrb[0].mxu0
        %1740 = vdwg.mxu0
        %v1765 = vunpack.c.l.b16 %v1282
        %v1766 = vunpack.c.h.b16 %v1282
        %v1767 = vunpack.c.l.b16 %v1283
        %v1768 = vunpack.c.h.b16 %v1283
        %v1769 = vunpack.c.l.b16 %v1284
        %v1770 = vunpack.c.h.b16 %v1284
        %v1771 = vunpack.c.l.b16 %v1285
        %v1772 = vunpack.c.h.b16 %v1285
        %v1773 = vunpack.c.l.b16 %v1286
        %v1774 = vunpack.c.h.b16 %v1286
        %v1775 = vunpack.c.l.b16 %v1287
        %v1776 = vunpack.c.h.b16 %v1287
        %v1777 = vunpack.c.l.b16 %v1288
        %v1778 = vunpack.c.h.b16 %v1288
        %v1779 = vunpack.c.l.b16 %v1289
        %v1780 = vunpack.c.h.b16 %v1289
        %v1781 = vunpack.c.l.b16 %v1290
        %v1782 = vunpack.c.h.b16 %v1290
        %v1783 = vunpack.c.l.b16 %v1291
        %v1784 = vunpack.c.h.b16 %v1291
        %v1785 = vunpack.c.l.b16 %v1292
        %v1786 = vunpack.c.h.b16 %v1292
        %v1787 = vunpack.c.l.b16 %v1293
        %v1788 = vunpack.c.h.b16 %v1293
        %v1789 = vunpack.c.l.b16 %v1294
        %v1790 = vunpack.c.h.b16 %v1294
        %v1791 = vunpack.c.l.b16 %v1295
        %v1792 = vunpack.c.h.b16 %v1295
        %v1793 = vunpack.c.l.b16 %v1296
        %v1794 = vunpack.c.h.b16 %v1296
        %v1795 = vunpack.c.l.b16 %v1297
        %v1796 = vunpack.c.h.b16 %v1297
        %v1797 = vunpack.c.l.b16 %v1298
        %v1798 = vunpack.c.h.b16 %v1298
        %v1799 = vunpack.c.l.b16 %v1299
        %v1800 = vunpack.c.h.b16 %v1299
        %v1801 = vunpack.c.l.b16 %v1300
        %v1802 = vunpack.c.h.b16 %v1300
        %v1803 = vunpack.c.l.b16 %v1301
        %v1804 = vunpack.c.h.b16 %v1301
        %v1805 = vunpack.c.l.b16 %v1302
        %v1806 = vunpack.c.h.b16 %v1302
        %v1807 = vunpack.c.l.b16 %v1303
        %v1808 = vunpack.c.h.b16 %v1303
        %v1809 = vunpack.c.l.b16 %v1304
        %v1810 = vunpack.c.h.b16 %v1304
        %v1811 = vunpack.c.l.b16 %v1305
        %v1812 = vunpack.c.h.b16 %v1305
        %v1813 = vpack.c.b16 %v1767, %v1765
        %v1814 = vpack.c.b16 %v1768, %v1766
        %v1815 = vpack.c.b16 %v1771, %v1769
        %v1816 = vpack.c.b16 %v1772, %v1770
        %v1817 = vpack.c.b16 %v1775, %v1773
        %v1818 = vpack.c.b16 %v1776, %v1774
        %v1819 = vpack.c.b16 %v1779, %v1777
        %v1820 = vpack.c.b16 %v1780, %v1778
        %v1821 = vpack.c.b16 %v1783, %v1781
        %v1822 = vpack.c.b16 %v1784, %v1782
        %v1823 = vpack.c.b16 %v1787, %v1785
        %v1824 = vpack.c.b16 %v1788, %v1786
        %v1825 = vpack.c.b16 %v1791, %v1789
        %v1826 = vpack.c.b16 %v1792, %v1790
        %v1827 = vpack.c.b16 %v1795, %v1793
        %v1828 = vpack.c.b16 %v1796, %v1794
        %v1829 = vpack.c.b16 %v1799, %v1797
        %v1830 = vpack.c.b16 %v1800, %v1798
        %v1831 = vpack.c.b16 %v1803, %v1801
        %v1832 = vpack.c.b16 %v1804, %v1802
        %v1833 = vpack.c.b16 %v1807, %v1805
        %v1834 = vpack.c.b16 %v1808, %v1806
        %v1835 = vpack.c.b16 %v1811, %v1809
        %v1836 = vpack.c.b16 %v1812, %v1810
        %v1893 = vunpack.c.l.b16 %v1307
        %v1894 = vunpack.c.l.b16 %v1308
        %v1895 = vunpack.c.l.b16 %v1309
        %v1896 = vunpack.c.l.b16 %v1310
        %v1897 = vunpack.c.l.b16 %v1311
        %v1898 = vunpack.c.l.b16 %v1312
        %v1899 = vunpack.c.l.b16 %v1313
        %v1900 = vunpack.c.l.b16 %v1314
        %v1901 = vunpack.c.l.b16 %v1315
        %v1902 = vunpack.c.l.b16 %v1316
        %v1903 = vunpack.c.l.b16 %v1317
        %v1904 = vunpack.c.l.b16 %v1318
        %v1905 = vunpack.c.l.b16 %v1319
        %v1906 = vunpack.c.l.b16 %v1320
        %v1907 = vunpack.c.l.b16 %v1321
        %v1908 = vunpack.c.l.b16 %v1322
        %v1909 = vunpack.c.l.b16 %v1323
        %v1910 = vunpack.c.l.b16 %v1324
        %v1911 = vunpack.c.l.b16 %v1325
        %v1912 = vunpack.c.l.b16 %v1326
        %v1913 = vunpack.c.l.b16 %v1327
        %v1914 = vunpack.c.l.b16 %v1328
        %v1915 = vunpack.c.l.b16 %v1329
        %v1916 = vunpack.c.l.b16 %v1330
        %v1917 = vunpack.c.l.b16 %v1331
        %v1918 = vunpack.c.l.b16 %v1332
        %v1919 = vunpack.c.l.b16 %v1333
        %v1920 = vunpack.c.l.b16 %v1334
        %v1921 = vunpack.c.l.b16 %v1335
        %v1922 = vunpack.c.l.b16 %v1336
        %v1923 = vunpack.c.l.b16 %v1337
        %v1924 = vunpack.c.l.b16 %v1338
        %v1925 = vpack.c.b16 %v1894, %v1893
        %v1926 = vpack.c.b16 %v1896, %v1895
        %v1927 = vpack.c.b16 %v1898, %v1897
        %v1928 = vpack.c.b16 %v1900, %v1899
        %v1929 = vpack.c.b16 %v1902, %v1901
        %v1930 = vpack.c.b16 %v1904, %v1903
        %v1931 = vpack.c.b16 %v1906, %v1905
        %v1932 = vpack.c.b16 %v1908, %v1907
        %v1933 = vpack.c.b16 %v1910, %v1909
        %v1934 = vpack.c.b16 %v1912, %v1911
        %v1935 = vpack.c.b16 %v1914, %v1913
        %v1936 = vpack.c.b16 %v1916, %v1915
        %v1937 = vpack.c.b16 %v1918, %v1917
        %v1938 = vpack.c.b16 %v1920, %v1919
        %v1939 = vpack.c.b16 %v1922, %v1921
        %v1940 = vpack.c.b16 %v1924, %v1923
        %1957 = vmatprep.subr.bf16.mxu0 0
        %1958 = vmatpush1.bf16.msra.mxu0 %v1925
        %1959 = vmatprep.subr.bf16.mxu0 0
        %1960 = vmatpush1.bf16.msra.mxu0 %v1926
        %1961 = vmatprep.subr.bf16.mxu0 0
        %1962 = vmatpush1.bf16.msra.mxu0 %v1927
        %1963 = vmatprep.subr.bf16.mxu0 0
        %1964 = vmatpush1.bf16.msra.mxu0 %v1928
        %1965 = vmatprep.subr.bf16.mxu0 0
        %1966 = vmatpush1.bf16.msra.mxu0 %v1929
        %1967 = vmatprep.subr.bf16.mxu0 0
        %1968 = vmatpush1.bf16.msra.mxu0 %v1930
        %1969 = vmatprep.subr.bf16.mxu0 0
        %1970 = vmatpush1.bf16.msra.mxu0 %v1931
        %1971 = vmatprep.subr.bf16.mxu0 0
        %1972 = vmatpush1.bf16.msra.mxu0 %v1932
        %1973 = vmatprep.subr.bf16.mxu0 0
        %1974 = vmatpush1.bf16.msra.mxu0 %v1933
        %1975 = vmatprep.subr.bf16.mxu0 0
        %1976 = vmatpush1.bf16.msra.mxu0 %v1934
        %1977 = vmatprep.subr.bf16.mxu0 0
        %1978 = vmatpush1.bf16.msra.mxu0 %v1935
        %1979 = vmatprep.subr.bf16.mxu0 0
        %1980 = vmatpush1.bf16.msra.mxu0 %v1936
        %1981 = vmatprep.subr.bf16.mxu0 0
        %1982 = vmatpush1.bf16.msra.mxu0 %v1937
        %1983 = vmatprep.subr.bf16.mxu0 0
        %1984 = vmatpush1.bf16.msra.mxu0 %v1938
        %1985 = vmatprep.subr.bf16.mxu0 0
        %1986 = vmatpush1.bf16.msra.mxu0 %v1939
        %1987 = vmatprep.subr.bf16.mxu0 0
        %1988 = vmatpush1.bf16.msra.mxu0 %v1940
        %1989 = vmatprep.mubr.bf16.mxu0 %v1814
        %1990 = vmatmul.mubr.bf16.gmra.mrb[0].mxu0 %v1813
        %v1991 = vpop.f32.mrb[0].mxu0
        %v1992 = vadd.f32 %v1647, %v1991
        %v1993 = vpop.f32.mrb[0].mxu0
        %v1994 = vpop.f32.mrb[0].mxu0
        %v1995 = vadd.f32 %v1650, %v1994
        %v1996 = vpop.f32.mrb[0].mxu0
        %1997 = vmatprep.mubr.bf16.mxu0 %v1816
        %1998 = vmatmul.mubr.bf16.gmra.mrb[0].mxu0 %v1815
        %v1999 = vpop.f32.mrb[0].mxu0
        %v2000 = vadd.f32 %v1655, %v1999
        %v2001 = vpop.f32.mrb[0].mxu0
        %v2002 = vpop.f32.mrb[0].mxu0
        %v2003 = vadd.f32 %v1658, %v2002
        %v2004 = vpop.f32.mrb[0].mxu0
        %2005 = vmatprep.mubr.bf16.mxu0 %v1818
        %2006 = vmatmul.mubr.bf16.gmra.mrb[0].mxu0 %v1817
        %v2007 = vpop.f32.mrb[0].mxu0
        %v2008 = vadd.f32 %v1663, %v2007
        %v2009 = vpop.f32.mrb[0].mxu0
        %v2010 = vpop.f32.mrb[0].mxu0
        %v2011 = vadd.f32 %v1666, %v2010
        %v2012 = vpop.f32.mrb[0].mxu0
        %2013 = vmatprep.mubr.bf16.mxu0 %v1820
        %2014 = vmatmul.mubr.bf16.gmra.mrb[0].mxu0 %v1819
        %v2015 = vpop.f32.mrb[0].mxu0
        %v2016 = vadd.f32 %v1671, %v2015
        %v2017 = vpop.f32.mrb[0].mxu0
        %v2018 = vpop.f32.mrb[0].mxu0
        %v2019 = vadd.f32 %v1674, %v2018
        %v2020 = vpop.f32.mrb[0].mxu0
        %2021 = vmatprep.mubr.bf16.mxu0 %v1822
        %2022 = vmatmul.mubr.bf16.gmra.mrb[0].mxu0 %v1821
        %v2023 = vpop.f32.mrb[0].mxu0
        %v2024 = vadd.f32 %v1679, %v2023
        %v2025 = vpop.f32.mrb[0].mxu0
        %v2026 = vpop.f32.mrb[0].mxu0
        %v2027 = vadd.f32 %v1682, %v2026
        %v2028 = vpop.f32.mrb[0].mxu0
        %2029 = vmatprep.mubr.bf16.mxu0 %v1824
        %2030 = vmatmul.mubr.bf16.gmra.mrb[0].mxu0 %v1823
        %v2031 = vpop.f32.mrb[0].mxu0
        %v2032 = vadd.f32 %v1687, %v2031
        %v2033 = vpop.f32.mrb[0].mxu0
        %v2034 = vpop.f32.mrb[0].mxu0
        %v2035 = vadd.f32 %v1690, %v2034
        %v2036 = vpop.f32.mrb[0].mxu0
        %2037 = vmatprep.mubr.bf16.mxu0 %v1826
        %2038 = vmatmul.mubr.bf16.gmra.mrb[0].mxu0 %v1825
        %v2039 = vpop.f32.mrb[0].mxu0
        %v2040 = vadd.f32 %v1695, %v2039
        %v2041 = vpop.f32.mrb[0].mxu0
        %v2042 = vpop.f32.mrb[0].mxu0
        %v2043 = vadd.f32 %v1698, %v2042
        %v2044 = vpop.f32.mrb[0].mxu0
        %2045 = vmatprep.mubr.bf16.mxu0 %v1828
        %2046 = vmatmul.mubr.bf16.gmra.mrb[0].mxu0 %v1827
        %v2047 = vpop.f32.mrb[0].mxu0
        %v2048 = vadd.f32 %v1703, %v2047
        %v2049 = vpop.f32.mrb[0].mxu0
        %v2050 = vpop.f32.mrb[0].mxu0
        %v2051 = vadd.f32 %v1706, %v2050
        %v2052 = vpop.f32.mrb[0].mxu0
        %2053 = vmatprep.mubr.bf16.mxu0 %v1830
        %2054 = vmatmul.mubr.bf16.gmra.mrb[0].mxu0 %v1829
        %v2055 = vpop.f32.mrb[0].mxu0
        %v2056 = vadd.f32 %v1711, %v2055
        %v2057 = vpop.f32.mrb[0].mxu0
        %v2058 = vpop.f32.mrb[0].mxu0
        %v2059 = vadd.f32 %v1714, %v2058
        %v2060 = vpop.f32.mrb[0].mxu0
        %2061 = vmatprep.mubr.bf16.mxu0 %v1832
        %2062 = vmatmul.mubr.bf16.gmra.mrb[0].mxu0 %v1831
        %v2063 = vpop.f32.mrb[0].mxu0
        %v2064 = vadd.f32 %v1719, %v2063
        %v2065 = vpop.f32.mrb[0].mxu0
        %v2066 = vpop.f32.mrb[0].mxu0
        %v2067 = vadd.f32 %v1722, %v2066
        %v2068 = vpop.f32.mrb[0].mxu0
        %2069 = vmatprep.mubr.bf16.mxu0 %v1834
        %2070 = vmatmul.mubr.bf16.gmra.mrb[0].mxu0 %v1833
        %v2071 = vpop.f32.mrb[0].mxu0
        %v2072 = vadd.f32 %v1727, %v2071
        %v2073 = vpop.f32.mrb[0].mxu0
        %v2074 = vpop.f32.mrb[0].mxu0
        %v2075 = vadd.f32 %v1730, %v2074
        %v2076 = vpop.f32.mrb[0].mxu0
        %2077 = vmatprep.mubr.bf16.mxu0 %v1836
        %2078 = vmatmul.mubr.bf16.gmra.mrb[0].mxu0 %v1835
        %v2079 = vpop.f32.mrb[0].mxu0
        %v2080 = vadd.f32 %v1735, %v2079
        %v2081 = vpop.f32.mrb[0].mxu0
        %v2082 = vpop.f32.mrb[0].mxu0
        %v2083 = vadd.f32 %v1738, %v2082
        %v2084 = vpop.f32.mrb[0].mxu0
        %2085 = vdwg.mxu0
        %v2086 = vadd.f32 %v1992, %v213
        %v2087 = vadd.f32 %v1995, %v213
        %v2088 = vadd.f32 %v2000, %v213
        %v2089 = vadd.f32 %v2003, %v213
        %v2090 = vadd.f32 %v2008, %v213
        %v2091 = vadd.f32 %v2011, %v213
        %v2092 = vadd.f32 %v2016, %v213
        %v2093 = vadd.f32 %v2019, %v213
        %v2094 = vadd.f32 %v2024, %v213
        %v2095 = vadd.f32 %v2027, %v213
        %v2096 = vadd.f32 %v2032, %v213
        %v2097 = vadd.f32 %v2035, %v213
        %v2098 = vadd.f32 %v2040, %v213
        %v2099 = vadd.f32 %v2043, %v213
        %v2100 = vadd.f32 %v2048, %v213
        %v2101 = vadd.f32 %v2051, %v213
        %v2102 = vadd.f32 %v2056, %v213
        %v2103 = vadd.f32 %v2059, %v213
        %v2104 = vadd.f32 %v2064, %v213
        %v2105 = vadd.f32 %v2067, %v213
        %v2106 = vadd.f32 %v2072, %v213
        %v2107 = vadd.f32 %v2075, %v213
        %v2108 = vadd.f32 %v2080, %v213
        %v2109 = vadd.f32 %v2083, %v213
        %v2110 = vmul.f32 %v2086, 0.5
        %v2111 = vmul.f32 %v2087, 0.5
        %v2112 = vmul.f32 %v2088, 0.5
        %v2113 = vmul.f32 %v2089, 0.5
        %v2114 = vmul.f32 %v2090, 0.5
        %v2115 = vmul.f32 %v2091, 0.5
        %v2116 = vmul.f32 %v2092, 0.5
        %v2117 = vmul.f32 %v2093, 0.5
        %v2118 = vmul.f32 %v2094, 0.5
        %v2119 = vmul.f32 %v2095, 0.5
        %v2120 = vmul.f32 %v2096, 0.5
        %v2121 = vmul.f32 %v2097, 0.5
        %v2122 = vmul.f32 %v2098, 0.5
        %v2123 = vmul.f32 %v2099, 0.5
        %v2124 = vmul.f32 %v2100, 0.5
        %v2125 = vmul.f32 %v2101, 0.5
        %v2126 = vmul.f32 %v2102, 0.5
        %v2127 = vmul.f32 %v2103, 0.5
        %v2128 = vmul.f32 %v2104, 0.5
        %v2129 = vmul.f32 %v2105, 0.5
        %v2130 = vmul.f32 %v2106, 0.5
        %v2131 = vmul.f32 %v2107, 0.5
        %v2132 = vmul.f32 %v2108, 0.5
        %v2133 = vmul.f32 %v2109, 0.5
        %v2134 = vtanh.pop %v2110
        %v2135 = vtanh.pop %v2111
        %v2136 = vtanh.pop %v2112
        %v2137 = vtanh.pop %v2113
        %v2138 = vtanh.pop %v2114
        %v2139 = vtanh.pop %v2115
        %v2140 = vtanh.pop %v2116
        %v2141 = vtanh.pop %v2117
        %v2142 = vtanh.pop %v2118
        %v2143 = vtanh.pop %v2119
        %v2144 = vtanh.pop %v2120
        %v2145 = vtanh.pop %v2121
        %v2146 = vtanh.pop %v2122
        %v2147 = vtanh.pop %v2123
        %v2148 = vtanh.pop %v2124
        %v2149 = vtanh.pop %v2125
        %v2150 = vtanh.pop %v2126
        %v2151 = vtanh.pop %v2127
        %v2152 = vtanh.pop %v2128
        %v2153 = vtanh.pop %v2129
        %v2154 = vtanh.pop %v2130
        %v2155 = vtanh.pop %v2131
        %v2156 = vtanh.pop %v2132
        %v2157 = vtanh.pop %v2133
        %v2158 = vmul.f32 %v2134, 0.5
        %v2159 = vmul.f32 %v2135, 0.5
        %v2160 = vmul.f32 %v2136, 0.5
        %v2161 = vmul.f32 %v2137, 0.5
        %v2162 = vmul.f32 %v2138, 0.5
        %v2163 = vmul.f32 %v2139, 0.5
        %v2164 = vmul.f32 %v2140, 0.5
        %v2165 = vmul.f32 %v2141, 0.5
        %v2166 = vmul.f32 %v2142, 0.5
        %v2167 = vmul.f32 %v2143, 0.5
        %v2168 = vmul.f32 %v2144, 0.5
        %v2169 = vmul.f32 %v2145, 0.5
        %v2170 = vmul.f32 %v2146, 0.5
        %v2171 = vmul.f32 %v2147, 0.5
        %v2172 = vmul.f32 %v2148, 0.5
        %v2173 = vmul.f32 %v2149, 0.5
        %v2174 = vmul.f32 %v2150, 0.5
        %v2175 = vmul.f32 %v2151, 0.5
        %v2176 = vmul.f32 %v2152, 0.5
        %v2177 = vmul.f32 %v2153, 0.5
        %v2178 = vmul.f32 %v2154, 0.5
        %v2179 = vmul.f32 %v2155, 0.5
        %v2180 = vmul.f32 %v2156, 0.5
        %v2181 = vmul.f32 %v2157, 0.5
        %v2182 = vadd.f32 %v2158, 0.5
        %v2183 = vadd.f32 %v2159, 0.5
        %v2184 = vadd.f32 %v2160, 0.5
        %v2185 = vadd.f32 %v2161, 0.5
        %v2186 = vadd.f32 %v2162, 0.5
        %v2187 = vadd.f32 %v2163, 0.5
        %v2188 = vadd.f32 %v2164, 0.5
        %v2189 = vadd.f32 %v2165, 0.5
        %v2190 = vadd.f32 %v2166, 0.5
        %v2191 = vadd.f32 %v2167, 0.5
        %v2192 = vadd.f32 %v2168, 0.5
        %v2193 = vadd.f32 %v2169, 0.5
        %v2194 = vadd.f32 %v2170, 0.5
        %v2195 = vadd.f32 %v2171, 0.5
        %v2196 = vadd.f32 %v2172, 0.5
        %v2197 = vadd.f32 %v2173, 0.5
        %v2198 = vadd.f32 %v2174, 0.5
        %v2199 = vadd.f32 %v2175, 0.5
        %v2200 = vadd.f32 %v2176, 0.5
        %v2201 = vadd.f32 %v2177, 0.5
        %v2202 = vadd.f32 %v2178, 0.5
        %v2203 = vadd.f32 %v2179, 0.5
        %v2204 = vadd.f32 %v2180, 0.5
        %v2205 = vadd.f32 %v2181, 0.5
        %v2206 = vmul.f32 %v2086, %v2182
        %v2207 = vmul.f32 %v2087, %v2183
        %v2208 = vmul.f32 %v2088, %v2184
        %v2209 = vmul.f32 %v2089, %v2185
        %v2210 = vmul.f32 %v2090, %v2186
        %v2211 = vmul.f32 %v2091, %v2187
        %v2212 = vmul.f32 %v2092, %v2188
        %v2213 = vmul.f32 %v2093, %v2189
        %v2214 = vmul.f32 %v2094, %v2190
        %v2215 = vmul.f32 %v2095, %v2191
        %v2216 = vmul.f32 %v2096, %v2192
        %v2217 = vmul.f32 %v2097, %v2193
        %v2218 = vmul.f32 %v2098, %v2194
        %v2219 = vmul.f32 %v2099, %v2195
        %v2220 = vmul.f32 %v2100, %v2196
        %v2221 = vmul.f32 %v2101, %v2197
        %v2222 = vmul.f32 %v2102, %v2198
        %v2223 = vmul.f32 %v2103, %v2199
        %v2224 = vmul.f32 %v2104, %v2200
        %v2225 = vmul.f32 %v2105, %v2201
        %v2226 = vmul.f32 %v2106, %v2202
        %v2227 = vmul.f32 %v2107, %v2203
        %v2228 = vmul.f32 %v2108, %v2204
        %v2229 = vmul.f32 %v2109, %v2205
        %v2230 = vpack.c.bf16 %v2207, %v2206
        %v2231 = vpack.c.bf16 %v2209, %v2208
        %v2232 = vpack.c.bf16 %v2211, %v2210
        %v2233 = vpack.c.bf16 %v2213, %v2212
        %v2234 = vpack.c.bf16 %v2215, %v2214
        %v2235 = vpack.c.bf16 %v2217, %v2216
        %v2236 = vpack.c.bf16 %v2219, %v2218
        %v2237 = vpack.c.bf16 %v2221, %v2220
        %v2238 = vpack.c.bf16 %v2223, %v2222
        %v2239 = vpack.c.bf16 %v2225, %v2224
        %v2240 = vpack.c.bf16 %v2227, %v2226
        %v2241 = vpack.c.bf16 %v2229, %v2228
        %v2254 = vunpack.c.l.b16 %v2230
        %v2255 = vunpack.c.h.b16 %v2230
        %v2256 = vunpack.c.l.b16 %v2231
        %v2257 = vunpack.c.h.b16 %v2231
        %v2258 = vunpack.c.l.b16 %v2232
        %v2259 = vunpack.c.h.b16 %v2232
        %v2260 = vunpack.c.l.b16 %v2233
        %v2261 = vunpack.c.h.b16 %v2233
        %v2262 = vunpack.c.l.b16 %v2234
        %v2263 = vunpack.c.h.b16 %v2234
        %v2264 = vunpack.c.l.b16 %v2235
        %v2265 = vunpack.c.h.b16 %v2235
        %v2266 = vunpack.c.l.b16 %v2236
        %v2267 = vunpack.c.h.b16 %v2236
        %v2268 = vunpack.c.l.b16 %v2237
        %v2269 = vunpack.c.h.b16 %v2237
        %v2270 = vunpack.c.l.b16 %v2238
        %v2271 = vunpack.c.h.b16 %v2238
        %v2272 = vunpack.c.l.b16 %v2239
        %v2273 = vunpack.c.h.b16 %v2239
        %v2274 = vunpack.c.l.b16 %v2240
        %v2275 = vunpack.c.h.b16 %v2240
        %v2276 = vunpack.c.l.b16 %v2241
        %v2277 = vunpack.c.h.b16 %v2241
        %v2278 = vpack.c.b16 %v2254, %v2254
        %v2279 = vpack.c.b16 %v2255, %v2255
        %v2280 = vpack.c.b16 %v2256, %v2256
        %v2281 = vpack.c.b16 %v2257, %v2257
        %v2282 = vpack.c.b16 %v2258, %v2258
        %v2283 = vpack.c.b16 %v2259, %v2259
        %v2284 = vpack.c.b16 %v2260, %v2260
        %v2285 = vpack.c.b16 %v2261, %v2261
        %v2286 = vpack.c.b16 %v2262, %v2262
        %v2287 = vpack.c.b16 %v2263, %v2263
        %v2288 = vpack.c.b16 %v2264, %v2264
        %v2289 = vpack.c.b16 %v2265, %v2265
        %v2290 = vpack.c.b16 %v2266, %v2266
        %v2291 = vpack.c.b16 %v2267, %v2267
        %v2292 = vpack.c.b16 %v2268, %v2268
        %v2293 = vpack.c.b16 %v2269, %v2269
        %v2294 = vpack.c.b16 %v2270, %v2270
        %v2295 = vpack.c.b16 %v2271, %v2271
        %v2296 = vpack.c.b16 %v2272, %v2272
        %v2297 = vpack.c.b16 %v2273, %v2273
        %v2298 = vpack.c.b16 %v2274, %v2274
        %v2299 = vpack.c.b16 %v2275, %v2275
        %v2300 = vpack.c.b16 %v2276, %v2276
        %v2301 = vpack.c.b16 %v2277, %v2277
        %s2326 = scalar_lea.vmem %s204, 96 [#allocation7]
        %2327 = vst [vmem:[%s2326] sm:$0xf] %v2278
        %2328 = vst [vmem:[%s2326 + $0x4] sm:$0xf] %v2279
        %2329 = vst [vmem:[%s2326 + $0x8] sm:$0xf] %v2280
        %2330 = vst [vmem:[%s2326 + $0xc] sm:$0xf] %v2281
        %2331 = vst [vmem:[%s2326 + $0x10] sm:$0xf] %v2282
        %2332 = vst [vmem:[%s2326 + $0x14] sm:$0xf] %v2283
        %2333 = vst [vmem:[%s2326 + $0x18] sm:$0xf] %v2284
        %2334 = vst [vmem:[%s2326 + $0x1c] sm:$0xf] %v2285
        %2335 = vst [vmem:[%s2326 + $0x20] sm:$0xf] %v2286
        %2336 = vst [vmem:[%s2326 + $0x24] sm:$0xf] %v2287
        %2337 = vst [vmem:[%s2326 + $0x28] sm:$0xf] %v2288
        %2338 = vst [vmem:[%s2326 + $0x2c] sm:$0xf] %v2289
        %2339 = vst [vmem:[%s2326 + $0x30] sm:$0xf] %v2290
        %2340 = vst [vmem:[%s2326 + $0x34] sm:$0xf] %v2291
        %2341 = vst [vmem:[%s2326 + $0x38] sm:$0xf] %v2292
        %2342 = vst [vmem:[%s2326 + $0x3c] sm:$0xf] %v2293
        %2343 = vst [vmem:[%s2326 + $0x40] sm:$0xf] %v2294
        %2344 = vst [vmem:[%s2326 + $0x44] sm:$0xf] %v2295
        %2345 = vst [vmem:[%s2326 + $0x48] sm:$0xf] %v2296
        %2346 = vst [vmem:[%s2326 + $0x4c] sm:$0xf] %v2297
        %2347 = vst [vmem:[%s2326 + $0x50] sm:$0xf] %v2298
        %2348 = vst [vmem:[%s2326 + $0x54] sm:$0xf] %v2299
        %2349 = vst [vmem:[%s2326 + $0x58] sm:$0xf] %v2300
        %2350 = vst [vmem:[%s2326 + $0x5c] sm:$0xf] %v2301
        %v2351 = vld [vmem:[%s178 + $0xc] sm:$0xff]
        %v2352 = vld [vmem:[%s178 + $0x30] sm:$0xff]
        %v2353 = vld [vmem:[%s178 + $0x54] sm:$0xff]
        %v2354 = vld [vmem:[%s178 + $0x78] sm:$0xff]
        %v2355 = vld [vmem:[%s178 + $0x9c] sm:$0xff]
        %v2356 = vld [vmem:[%s178 + $0xc0] sm:$0xff]
        %v2357 = vld [vmem:[%s178 + $0xe4] sm:$0xff]
        %v2358 = vld [vmem:[%s178 + $0x108] sm:$0xff]
        %v2359 = vld [vmem:[%s178 + $0x12c] sm:$0xff]
        %v2360 = vld [vmem:[%s178 + $0x150] sm:$0xff]
        %v2361 = vld [vmem:[%s178 + $0x174] sm:$0xff]
        %v2362 = vld [vmem:[%s178 + $0x198] sm:$0xff]
        %v2363 = vld [vmem:[%s178 + $0x1bc] sm:$0xff]
        %v2364 = vld [vmem:[%s178 + $0x1e0] sm:$0xff]
        %v2365 = vld [vmem:[%s178 + $0x204] sm:$0xff]
        %v2366 = vld [vmem:[%s178 + $0x228] sm:$0xff]
        %v2367 = vld [vmem:[%s178 + $0x24c] sm:$0xff]
        %v2368 = vld [vmem:[%s178 + $0x270] sm:$0xff]
        %v2369 = vld [vmem:[%s178 + $0x294] sm:$0xff]
        %v2370 = vld [vmem:[%s178 + $0x2b8] sm:$0xff]
        %v2371 = vld [vmem:[%s178 + $0x2dc] sm:$0xff]
        %v2372 = vld [vmem:[%s178 + $0x300] sm:$0xff]
        %v2373 = vld [vmem:[%s178 + $0x324] sm:$0xff]
        %v2374 = vld [vmem:[%s178 + $0x348] sm:$0xff]
        %s2375 = scalar_lea.vmem [#allocation5], 512
        %v2376 = vld [vmem:[%s2375] sm:$0xf]
        %v2377 = vld [vmem:[%s2375 + $0x4] sm:$0xf]
        %v2378 = vld [vmem:[%s2375 + $0x8] sm:$0xf]
        %v2379 = vld [vmem:[%s2375 + $0xc] sm:$0xf]
        %v2380 = vld [vmem:[%s2375 + $0x10] sm:$0xf]
        %v2381 = vld [vmem:[%s2375 + $0x14] sm:$0xf]
        %v2382 = vld [vmem:[%s2375 + $0x18] sm:$0xf]
        %v2383 = vld [vmem:[%s2375 + $0x1c] sm:$0xf]
        %v2384 = vld [vmem:[%s2375 + $0x20] sm:$0xf]
        %v2385 = vld [vmem:[%s2375 + $0x24] sm:$0xf]
        %v2386 = vld [vmem:[%s2375 + $0x28] sm:$0xf]
        %v2387 = vld [vmem:[%s2375 + $0x2c] sm:$0xf]
        %v2388 = vld [vmem:[%s2375 + $0x30] sm:$0xf]
        %v2389 = vld [vmem:[%s2375 + $0x34] sm:$0xf]
        %v2390 = vld [vmem:[%s2375 + $0x38] sm:$0xf]
        %v2391 = vld [vmem:[%s2375 + $0x3c] sm:$0xf]
        %v2392 = vld [vmem:[%s2375 + $0x40] sm:$0xf]
        %v2393 = vld [vmem:[%s2375 + $0x44] sm:$0xf]
        %v2394 = vld [vmem:[%s2375 + $0x48] sm:$0xf]
        %v2395 = vld [vmem:[%s2375 + $0x4c] sm:$0xf]
        %v2396 = vld [vmem:[%s2375 + $0x50] sm:$0xf]
        %v2397 = vld [vmem:[%s2375 + $0x54] sm:$0xf]
        %v2398 = vld [vmem:[%s2375 + $0x58] sm:$0xf]
        %v2399 = vld [vmem:[%s2375 + $0x5c] sm:$0xf]
        %v2400 = vld [vmem:[%s2375 + $0x60] sm:$0xf]
        %v2401 = vld [vmem:[%s2375 + $0x64] sm:$0xf]
        %v2402 = vld [vmem:[%s2375 + $0x68] sm:$0xf]
        %v2403 = vld [vmem:[%s2375 + $0x6c] sm:$0xf]
        %v2404 = vld [vmem:[%s2375 + $0x70] sm:$0xf]
        %v2405 = vld [vmem:[%s2375 + $0x74] sm:$0xf]
        %v2406 = vld [vmem:[%s2375 + $0x78] sm:$0xf]
        %v2407 = vld [vmem:[%s2375 + $0x7c] sm:$0xf]
        %v2408 = vld [vmem:[%s178 + $0x18] sm:$0xff]
        %v2409 = vld [vmem:[%s178 + $0x3c] sm:$0xff]
        %v2410 = vld [vmem:[%s178 + $0x60] sm:$0xff]
        %v2411 = vld [vmem:[%s178 + $0x84] sm:$0xff]
        %v2412 = vld [vmem:[%s178 + $0xa8] sm:$0xff]
        %v2413 = vld [vmem:[%s178 + $0xcc] sm:$0xff]
        %v2414 = vld [vmem:[%s178 + $0xf0] sm:$0xff]
        %v2415 = vld [vmem:[%s178 + $0x114] sm:$0xff]
        %v2416 = vld [vmem:[%s178 + $0x138] sm:$0xff]
        %v2417 = vld [vmem:[%s178 + $0x15c] sm:$0xff]
        %v2418 = vld [vmem:[%s178 + $0x180] sm:$0xff]
        %v2419 = vld [vmem:[%s178 + $0x1a4] sm:$0xff]
        %v2420 = vld [vmem:[%s178 + $0x1c8] sm:$0xff]
        %v2421 = vld [vmem:[%s178 + $0x1ec] sm:$0xff]
        %v2422 = vld [vmem:[%s178 + $0x210] sm:$0xff]
        %v2423 = vld [vmem:[%s178 + $0x234] sm:$0xff]
        %v2424 = vld [vmem:[%s178 + $0x258] sm:$0xff]
        %v2425 = vld [vmem:[%s178 + $0x27c] sm:$0xff]
        %v2426 = vld [vmem:[%s178 + $0x2a0] sm:$0xff]
        %v2427 = vld [vmem:[%s178 + $0x2c4] sm:$0xff]
        %v2428 = vld [vmem:[%s178 + $0x2e8] sm:$0xff]
        %v2429 = vld [vmem:[%s178 + $0x30c] sm:$0xff]
        %v2430 = vld [vmem:[%s178 + $0x330] sm:$0xff]
        %v2431 = vld [vmem:[%s178 + $0x354] sm:$0xff]
        %s2432 = scalar_lea.vmem [#allocation5], 640
        %v2433 = vld [vmem:[%s2432] sm:$0xf]
        %v2434 = vld [vmem:[%s2432 + $0x4] sm:$0xf]
        %v2435 = vld [vmem:[%s2432 + $0x8] sm:$0xf]
        %v2436 = vld [vmem:[%s2432 + $0xc] sm:$0xf]
        %v2437 = vld [vmem:[%s2432 + $0x10] sm:$0xf]
        %v2438 = vld [vmem:[%s2432 + $0x14] sm:$0xf]
        %v2439 = vld [vmem:[%s2432 + $0x18] sm:$0xf]
        %v2440 = vld [vmem:[%s2432 + $0x1c] sm:$0xf]
        %v2441 = vld [vmem:[%s2432 + $0x20] sm:$0xf]
        %v2442 = vld [vmem:[%s2432 + $0x24] sm:$0xf]
        %v2443 = vld [vmem:[%s2432 + $0x28] sm:$0xf]
        %v2444 = vld [vmem:[%s2432 + $0x2c] sm:$0xf]
        %v2445 = vld [vmem:[%s2432 + $0x30] sm:$0xf]
        %v2446 = vld [vmem:[%s2432 + $0x34] sm:$0xf]
        %v2447 = vld [vmem:[%s2432 + $0x38] sm:$0xf]
        %v2448 = vld [vmem:[%s2432 + $0x3c] sm:$0xf]
        %v2449 = vld [vmem:[%s2432 + $0x40] sm:$0xf]
        %v2450 = vld [vmem:[%s2432 + $0x44] sm:$0xf]
        %v2451 = vld [vmem:[%s2432 + $0x48] sm:$0xf]
        %v2452 = vld [vmem:[%s2432 + $0x4c] sm:$0xf]
        %v2453 = vld [vmem:[%s2432 + $0x50] sm:$0xf]
        %v2454 = vld [vmem:[%s2432 + $0x54] sm:$0xf]
        %v2455 = vld [vmem:[%s2432 + $0x58] sm:$0xf]
        %v2456 = vld [vmem:[%s2432 + $0x5c] sm:$0xf]
        %v2457 = vld [vmem:[%s2432 + $0x60] sm:$0xf]
        %v2458 = vld [vmem:[%s2432 + $0x64] sm:$0xf]
        %v2459 = vld [vmem:[%s2432 + $0x68] sm:$0xf]
        %v2460 = vld [vmem:[%s2432 + $0x6c] sm:$0xf]
        %v2461 = vld [vmem:[%s2432 + $0x70] sm:$0xf]
        %v2462 = vld [vmem:[%s2432 + $0x74] sm:$0xf]
        %v2463 = vld [vmem:[%s2432 + $0x78] sm:$0xf]
        %v2464 = vld [vmem:[%s2432 + $0x7c] sm:$0xf]
        %v2489 = vunpack.c.l.b16 %v2408
        %v2490 = vunpack.c.h.b16 %v2408
        %v2491 = vunpack.c.l.b16 %v2409
        %v2492 = vunpack.c.h.b16 %v2409
        %v2493 = vunpack.c.l.b16 %v2410
        %v2494 = vunpack.c.h.b16 %v2410
        %v2495 = vunpack.c.l.b16 %v2411
        %v2496 = vunpack.c.h.b16 %v2411
        %v2497 = vunpack.c.l.b16 %v2412
        %v2498 = vunpack.c.h.b16 %v2412
        %v2499 = vunpack.c.l.b16 %v2413
        %v2500 = vunpack.c.h.b16 %v2413
        %v2501 = vunpack.c.l.b16 %v2414
        %v2502 = vunpack.c.h.b16 %v2414
        %v2503 = vunpack.c.l.b16 %v2415
        %v2504 = vunpack.c.h.b16 %v2415
        %v2505 = vunpack.c.l.b16 %v2416
        %v2506 = vunpack.c.h.b16 %v2416
        %v2507 = vunpack.c.l.b16 %v2417
        %v2508 = vunpack.c.h.b16 %v2417
        %v2509 = vunpack.c.l.b16 %v2418
        %v2510 = vunpack.c.h.b16 %v2418
        %v2511 = vunpack.c.l.b16 %v2419
        %v2512 = vunpack.c.h.b16 %v2419
        %v2513 = vunpack.c.l.b16 %v2420
        %v2514 = vunpack.c.h.b16 %v2420
        %v2515 = vunpack.c.l.b16 %v2421
        %v2516 = vunpack.c.h.b16 %v2421
        %v2517 = vunpack.c.l.b16 %v2422
        %v2518 = vunpack.c.h.b16 %v2422
        %v2519 = vunpack.c.l.b16 %v2423
        %v2520 = vunpack.c.h.b16 %v2423
        %v2521 = vunpack.c.l.b16 %v2424
        %v2522 = vunpack.c.h.b16 %v2424
        %v2523 = vunpack.c.l.b16 %v2425
        %v2524 = vunpack.c.h.b16 %v2425
        %v2525 = vunpack.c.l.b16 %v2426
        %v2526 = vunpack.c.h.b16 %v2426
        %v2527 = vunpack.c.l.b16 %v2427
        %v2528 = vunpack.c.h.b16 %v2427
        %v2529 = vunpack.c.l.b16 %v2428
        %v2530 = vunpack.c.h.b16 %v2428
        %v2531 = vunpack.c.l.b16 %v2429
        %v2532 = vunpack.c.h.b16 %v2429
        %v2533 = vunpack.c.l.b16 %v2430
        %v2534 = vunpack.c.h.b16 %v2430
        %v2535 = vunpack.c.l.b16 %v2431
        %v2536 = vunpack.c.h.b16 %v2431
        %v2537 = vpack.c.b16 %v2491, %v2489
        %v2538 = vpack.c.b16 %v2492, %v2490
        %v2539 = vpack.c.b16 %v2495, %v2493
        %v2540 = vpack.c.b16 %v2496, %v2494
        %v2541 = vpack.c.b16 %v2499, %v2497
        %v2542 = vpack.c.b16 %v2500, %v2498
        %v2543 = vpack.c.b16 %v2503, %v2501
        %v2544 = vpack.c.b16 %v2504, %v2502
        %v2545 = vpack.c.b16 %v2507, %v2505
        %v2546 = vpack.c.b16 %v2508, %v2506
        %v2547 = vpack.c.b16 %v2511, %v2509
        %v2548 = vpack.c.b16 %v2512, %v2510
        %v2549 = vpack.c.b16 %v2515, %v2513
        %v2550 = vpack.c.b16 %v2516, %v2514
        %v2551 = vpack.c.b16 %v2519, %v2517
        %v2552 = vpack.c.b16 %v2520, %v2518
        %v2553 = vpack.c.b16 %v2523, %v2521
        %v2554 = vpack.c.b16 %v2524, %v2522
        %v2555 = vpack.c.b16 %v2527, %v2525
        %v2556 = vpack.c.b16 %v2528, %v2526
        %v2557 = vpack.c.b16 %v2531, %v2529
        %v2558 = vpack.c.b16 %v2532, %v2530
        %v2559 = vpack.c.b16 %v2535, %v2533
        %v2560 = vpack.c.b16 %v2536, %v2534
        %v2617 = vunpack.c.l.b16 %v2433
        %v2618 = vunpack.c.l.b16 %v2434
        %v2619 = vunpack.c.l.b16 %v2435
        %v2620 = vunpack.c.l.b16 %v2436
        %v2621 = vunpack.c.l.b16 %v2437
        %v2622 = vunpack.c.l.b16 %v2438
        %v2623 = vunpack.c.l.b16 %v2439
        %v2624 = vunpack.c.l.b16 %v2440
        %v2625 = vunpack.c.l.b16 %v2441
        %v2626 = vunpack.c.l.b16 %v2442
        %v2627 = vunpack.c.l.b16 %v2443
        %v2628 = vunpack.c.l.b16 %v2444
        %v2629 = vunpack.c.l.b16 %v2445
        %v2630 = vunpack.c.l.b16 %v2446
        %v2631 = vunpack.c.l.b16 %v2447
        %v2632 = vunpack.c.l.b16 %v2448
        %v2633 = vunpack.c.l.b16 %v2449
        %v2634 = vunpack.c.l.b16 %v2450
        %v2635 = vunpack.c.l.b16 %v2451
        %v2636 = vunpack.c.l.b16 %v2452
        %v2637 = vunpack.c.l.b16 %v2453
        %v2638 = vunpack.c.l.b16 %v2454
        %v2639 = vunpack.c.l.b16 %v2455
        %v2640 = vunpack.c.l.b16 %v2456
        %v2641 = vunpack.c.l.b16 %v2457
        %v2642 = vunpack.c.l.b16 %v2458
        %v2643 = vunpack.c.l.b16 %v2459
        %v2644 = vunpack.c.l.b16 %v2460
        %v2645 = vunpack.c.l.b16 %v2461
        %v2646 = vunpack.c.l.b16 %v2462
        %v2647 = vunpack.c.l.b16 %v2463
        %v2648 = vunpack.c.l.b16 %v2464
        %v2649 = vpack.c.b16 %v2618, %v2617
        %v2650 = vpack.c.b16 %v2620, %v2619
        %v2651 = vpack.c.b16 %v2622, %v2621
        %v2652 = vpack.c.b16 %v2624, %v2623
        %v2653 = vpack.c.b16 %v2626, %v2625
        %v2654 = vpack.c.b16 %v2628, %v2627
        %v2655 = vpack.c.b16 %v2630, %v2629
        %v2656 = vpack.c.b16 %v2632, %v2631
        %v2657 = vpack.c.b16 %v2634, %v2633
        %v2658 = vpack.c.b16 %v2636, %v2635
        %v2659 = vpack.c.b16 %v2638, %v2637
        %v2660 = vpack.c.b16 %v2640, %v2639
        %v2661 = vpack.c.b16 %v2642, %v2641
        %v2662 = vpack.c.b16 %v2644, %v2643
        %v2663 = vpack.c.b16 %v2646, %v2645
        %v2664 = vpack.c.b16 %v2648, %v2647
        %2681 = vmatprep.subr.bf16.mxu0 0
        %2682 = vmatpush1.bf16.msra.mxu0 %v2649
        %2683 = vmatprep.subr.bf16.mxu0 0
        %2684 = vmatpush1.bf16.msra.mxu0 %v2650
        %2685 = vmatprep.subr.bf16.mxu0 0
        %2686 = vmatpush1.bf16.msra.mxu0 %v2651
        %2687 = vmatprep.subr.bf16.mxu0 0
        %2688 = vmatpush1.bf16.msra.mxu0 %v2652
        %2689 = vmatprep.subr.bf16.mxu0 0
        %2690 = vmatpush1.bf16.msra.mxu0 %v2653
        %2691 = vmatprep.subr.bf16.mxu0 0
        %2692 = vmatpush1.bf16.msra.mxu0 %v2654
        %2693 = vmatprep.subr.bf16.mxu0 0
        %2694 = vmatpush1.bf16.msra.mxu0 %v2655
        %2695 = vmatprep.subr.bf16.mxu0 0
        %2696 = vmatpush1.bf16.msra.mxu0 %v2656
        %2697 = vmatprep.subr.bf16.mxu0 0
        %2698 = vmatpush1.bf16.msra.mxu0 %v2657
        %2699 = vmatprep.subr.bf16.mxu0 0
        %2700 = vmatpush1.bf16.msra.mxu0 %v2658
        %2701 = vmatprep.subr.bf16.mxu0 0
        %2702 = vmatpush1.bf16.msra.mxu0 %v2659
        %2703 = vmatprep.subr.bf16.mxu0 0
        %2704 = vmatpush1.bf16.msra.mxu0 %v2660
        %2705 = vmatprep.subr.bf16.mxu0 0
        %2706 = vmatpush1.bf16.msra.mxu0 %v2661
        %2707 = vmatprep.subr.bf16.mxu0 0
        %2708 = vmatpush1.bf16.msra.mxu0 %v2662
        %2709 = vmatprep.subr.bf16.mxu0 0
        %2710 = vmatpush1.bf16.msra.mxu0 %v2663
        %2711 = vmatprep.subr.bf16.mxu0 0
        %2712 = vmatpush1.bf16.msra.mxu0 %v2664
        %2713 = vmatprep.mubr.bf16.mxu0 %v2538
        %2714 = vmatmul.mubr.bf16.gmra.mrb[0].mxu0 %v2537
        %v2715 = vpop.f32.mrb[0].mxu0
        %v2716 = vadd.f32 0.0, %v2715
        %v2717 = vpop.f32.mrb[0].mxu0
        %v2718 = vpop.f32.mrb[0].mxu0
        %v2719 = vadd.f32 0.0, %v2718
        %v2720 = vpop.f32.mrb[0].mxu0
        %2721 = vmatprep.mubr.bf16.mxu0 %v2540
        %2722 = vmatmul.mubr.bf16.gmra.mrb[0].mxu0 %v2539
        %v2723 = vpop.f32.mrb[0].mxu0
        %v2724 = vadd.f32 0.0, %v2723
        %v2725 = vpop.f32.mrb[0].mxu0
        %v2726 = vpop.f32.mrb[0].mxu0
        %v2727 = vadd.f32 0.0, %v2726
        %v2728 = vpop.f32.mrb[0].mxu0
        %2729 = vmatprep.mubr.bf16.mxu0 %v2542
        %2730 = vmatmul.mubr.bf16.gmra.mrb[0].mxu0 %v2541
        %v2731 = vpop.f32.mrb[0].mxu0
        %v2732 = vadd.f32 0.0, %v2731
        %v2733 = vpop.f32.mrb[0].mxu0
        %v2734 = vpop.f32.mrb[0].mxu0
        %v2735 = vadd.f32 0.0, %v2734
        %v2736 = vpop.f32.mrb[0].mxu0
        %2737 = vmatprep.mubr.bf16.mxu0 %v2544
        %2738 = vmatmul.mubr.bf16.gmra.mrb[0].mxu0 %v2543
        %v2739 = vpop.f32.mrb[0].mxu0
        %v2740 = vadd.f32 0.0, %v2739
        %v2741 = vpop.f32.mrb[0].mxu0
        %v2742 = vpop.f32.mrb[0].mxu0
        %v2743 = vadd.f32 0.0, %v2742
        %v2744 = vpop.f32.mrb[0].mxu0
        %2745 = vmatprep.mubr.bf16.mxu0 %v2546
        %2746 = vmatmul.mubr.bf16.gmra.mrb[0].mxu0 %v2545
        %v2747 = vpop.f32.mrb[0].mxu0
        %v2748 = vadd.f32 0.0, %v2747
        %v2749 = vpop.f32.mrb[0].mxu0
        %v2750 = vpop.f32.mrb[0].mxu0
        %v2751 = vadd.f32 0.0, %v2750
        %v2752 = vpop.f32.mrb[0].mxu0
        %2753 = vmatprep.mubr.bf16.mxu0 %v2548
        %2754 = vmatmul.mubr.bf16.gmra.mrb[0].mxu0 %v2547
        %v2755 = vpop.f32.mrb[0].mxu0
        %v2756 = vadd.f32 0.0, %v2755
        %v2757 = vpop.f32.mrb[0].mxu0
        %v2758 = vpop.f32.mrb[0].mxu0
        %v2759 = vadd.f32 0.0, %v2758
        %v2760 = vpop.f32.mrb[0].mxu0
        %2761 = vmatprep.mubr.bf16.mxu0 %v2550
        %2762 = vmatmul.mubr.bf16.gmra.mrb[0].mxu0 %v2549
        %v2763 = vpop.f32.mrb[0].mxu0
        %v2764 = vadd.f32 0.0, %v2763
        %v2765 = vpop.f32.mrb[0].mxu0
        %v2766 = vpop.f32.mrb[0].mxu0
        %v2767 = vadd.f32 0.0, %v2766
        %v2768 = vpop.f32.mrb[0].mxu0
        %2769 = vmatprep.mubr.bf16.mxu0 %v2552
        %2770 = vmatmul.mubr.bf16.gmra.mrb[0].mxu0 %v2551
        %v2771 = vpop.f32.mrb[0].mxu0
        %v2772 = vadd.f32 0.0, %v2771
        %v2773 = vpop.f32.mrb[0].mxu0
        %v2774 = vpop.f32.mrb[0].mxu0
        %v2775 = vadd.f32 0.0, %v2774
        %v2776 = vpop.f32.mrb[0].mxu0
        %2777 = vmatprep.mubr.bf16.mxu0 %v2554
        %2778 = vmatmul.mubr.bf16.gmra.mrb[0].mxu0 %v2553
        %v2779 = vpop.f32.mrb[0].mxu0
        %v2780 = vadd.f32 0.0, %v2779
        %v2781 = vpop.f32.mrb[0].mxu0
        %v2782 = vpop.f32.mrb[0].mxu0
        %v2783 = vadd.f32 0.0, %v2782
        %v2784 = vpop.f32.mrb[0].mxu0
        %2785 = vmatprep.mubr.bf16.mxu0 %v2556
        %2786 = vmatmul.mubr.bf16.gmra.mrb[0].mxu0 %v2555
        %v2787 = vpop.f32.mrb[0].mxu0
        %v2788 = vadd.f32 0.0, %v2787
        %v2789 = vpop.f32.mrb[0].mxu0
        %v2790 = vpop.f32.mrb[0].mxu0
        %v2791 = vadd.f32 0.0, %v2790
        %v2792 = vpop.f32.mrb[0].mxu0
        %2793 = vmatprep.mubr.bf16.mxu0 %v2558
        %2794 = vmatmul.mubr.bf16.gmra.mrb[0].mxu0 %v2557
        %v2795 = vpop.f32.mrb[0].mxu0
        %v2796 = vadd.f32 0.0, %v2795
        %v2797 = vpop.f32.mrb[0].mxu0
        %v2798 = vpop.f32.mrb[0].mxu0
        %v2799 = vadd.f32 0.0, %v2798
        %v2800 = vpop.f32.mrb[0].mxu0
        %2801 = vmatprep.mubr.bf16.mxu0 %v2560
        %2802 = vmatmul.mubr.bf16.gmra.mrb[0].mxu0 %v2559
        %v2803 = vpop.f32.mrb[0].mxu0
        %v2804 = vadd.f32 0.0, %v2803
        %v2805 = vpop.f32.mrb[0].mxu0
        %v2806 = vpop.f32.mrb[0].mxu0
        %v2807 = vadd.f32 0.0, %v2806
        %v2808 = vpop.f32.mrb[0].mxu0
        %2809 = vdwg.mxu0
        %v2834 = vunpack.c.l.b16 %v2351
        %v2835 = vunpack.c.h.b16 %v2351
        %v2836 = vunpack.c.l.b16 %v2352
        %v2837 = vunpack.c.h.b16 %v2352
        %v2838 = vunpack.c.l.b16 %v2353
        %v2839 = vunpack.c.h.b16 %v2353
        %v2840 = vunpack.c.l.b16 %v2354
        %v2841 = vunpack.c.h.b16 %v2354
        %v2842 = vunpack.c.l.b16 %v2355
        %v2843 = vunpack.c.h.b16 %v2355
        %v2844 = vunpack.c.l.b16 %v2356
        %v2845 = vunpack.c.h.b16 %v2356
        %v2846 = vunpack.c.l.b16 %v2357
        %v2847 = vunpack.c.h.b16 %v2357
        %v2848 = vunpack.c.l.b16 %v2358
        %v2849 = vunpack.c.h.b16 %v2358
        %v2850 = vunpack.c.l.b16 %v2359
        %v2851 = vunpack.c.h.b16 %v2359
        %v2852 = vunpack.c.l.b16 %v2360
        %v2853 = vunpack.c.h.b16 %v2360
        %v2854 = vunpack.c.l.b16 %v2361
        %v2855 = vunpack.c.h.b16 %v2361
        %v2856 = vunpack.c.l.b16 %v2362
        %v2857 = vunpack.c.h.b16 %v2362
        %v2858 = vunpack.c.l.b16 %v2363
        %v2859 = vunpack.c.h.b16 %v2363
        %v2860 = vunpack.c.l.b16 %v2364
        %v2861 = vunpack.c.h.b16 %v2364
        %v2862 = vunpack.c.l.b16 %v2365
        %v2863 = vunpack.c.h.b16 %v2365
        %v2864 = vunpack.c.l.b16 %v2366
        %v2865 = vunpack.c.h.b16 %v2366
        %v2866 = vunpack.c.l.b16 %v2367
        %v2867 = vunpack.c.h.b16 %v2367
        %v2868 = vunpack.c.l.b16 %v2368
        %v2869 = vunpack.c.h.b16 %v2368
        %v2870 = vunpack.c.l.b16 %v2369
        %v2871 = vunpack.c.h.b16 %v2369
        %v2872 = vunpack.c.l.b16 %v2370
        %v2873 = vunpack.c.h.b16 %v2370
        %v2874 = vunpack.c.l.b16 %v2371
        %v2875 = vunpack.c.h.b16 %v2371
        %v2876 = vunpack.c.l.b16 %v2372
        %v2877 = vunpack.c.h.b16 %v2372
        %v2878 = vunpack.c.l.b16 %v2373
        %v2879 = vunpack.c.h.b16 %v2373
        %v2880 = vunpack.c.l.b16 %v2374
        %v2881 = vunpack.c.h.b16 %v2374
        %v2882 = vpack.c.b16 %v2836, %v2834
        %v2883 = vpack.c.b16 %v2837, %v2835
        %v2884 = vpack.c.b16 %v2840, %v2838
        %v2885 = vpack.c.b16 %v2841, %v2839
        %v2886 = vpack.c.b16 %v2844, %v2842
        %v2887 = vpack.c.b16 %v2845, %v2843
        %v2888 = vpack.c.b16 %v2848, %v2846
        %v2889 = vpack.c.b16 %v2849, %v2847
        %v2890 = vpack.c.b16 %v2852, %v2850
        %v2891 = vpack.c.b16 %v2853, %v2851
        %v2892 = vpack.c.b16 %v2856, %v2854
        %v2893 = vpack.c.b16 %v2857, %v2855
        %v2894 = vpack.c.b16 %v2860, %v2858
        %v2895 = vpack.c.b16 %v2861, %v2859
        %v2896 = vpack.c.b16 %v2864, %v2862
        %v2897 = vpack.c.b16 %v2865, %v2863
        %v2898 = vpack.c.b16 %v2868, %v2866
        %v2899 = vpack.c.b16 %v2869, %v2867
        %v2900 = vpack.c.b16 %v2872, %v2870
        %v2901 = vpack.c.b16 %v2873, %v2871
        %v2902 = vpack.c.b16 %v2876, %v2874
        %v2903 = vpack.c.b16 %v2877, %v2875
        %v2904 = vpack.c.b16 %v2880, %v2878
        %v2905 = vpack.c.b16 %v2881, %v2879
        %v2962 = vunpack.c.l.b16 %v2376
        %v2963 = vunpack.c.l.b16 %v2377
        %v2964 = vunpack.c.l.b16 %v2378
        %v2965 = vunpack.c.l.b16 %v2379
        %v2966 = vunpack.c.l.b16 %v2380
        %v2967 = vunpack.c.l.b16 %v2381
        %v2968 = vunpack.c.l.b16 %v2382
        %v2969 = vunpack.c.l.b16 %v2383
        %v2970 = vunpack.c.l.b16 %v2384
        %v2971 = vunpack.c.l.b16 %v2385
        %v2972 = vunpack.c.l.b16 %v2386
        %v2973 = vunpack.c.l.b16 %v2387
        %v2974 = vunpack.c.l.b16 %v2388
        %v2975 = vunpack.c.l.b16 %v2389
        %v2976 = vunpack.c.l.b16 %v2390
        %v2977 = vunpack.c.l.b16 %v2391
        %v2978 = vunpack.c.l.b16 %v2392
        %v2979 = vunpack.c.l.b16 %v2393
        %v2980 = vunpack.c.l.b16 %v2394
        %v2981 = vunpack.c.l.b16 %v2395
        %v2982 = vunpack.c.l.b16 %v2396
        %v2983 = vunpack.c.l.b16 %v2397
        %v2984 = vunpack.c.l.b16 %v2398
        %v2985 = vunpack.c.l.b16 %v2399
        %v2986 = vunpack.c.l.b16 %v2400
        %v2987 = vunpack.c.l.b16 %v2401
        %v2988 = vunpack.c.l.b16 %v2402
        %v2989 = vunpack.c.l.b16 %v2403
        %v2990 = vunpack.c.l.b16 %v2404
        %v2991 = vunpack.c.l.b16 %v2405
        %v2992 = vunpack.c.l.b16 %v2406
        %v2993 = vunpack.c.l.b16 %v2407
        %v2994 = vpack.c.b16 %v2963, %v2962
        %v2995 = vpack.c.b16 %v2965, %v2964
        %v2996 = vpack.c.b16 %v2967, %v2966
        %v2997 = vpack.c.b16 %v2969, %v2968
        %v2998 = vpack.c.b16 %v2971, %v2970
        %v2999 = vpack.c.b16 %v2973, %v2972
        %v3000 = vpack.c.b16 %v2975, %v2974
        %v3001 = vpack.c.b16 %v2977, %v2976
        %v3002 = vpack.c.b16 %v2979, %v2978
        %v3003 = vpack.c.b16 %v2981, %v2980
        %v3004 = vpack.c.b16 %v2983, %v2982
        %v3005 = vpack.c.b16 %v2985, %v2984
        %v3006 = vpack.c.b16 %v2987, %v2986
        %v3007 = vpack.c.b16 %v2989, %v2988
        %v3008 = vpack.c.b16 %v2991, %v2990
        %v3009 = vpack.c.b16 %v2993, %v2992
        %3026 = vmatprep.subr.bf16.mxu0 0
        %3027 = vmatpush1.bf16.msra.mxu0 %v2994
        %3028 = vmatprep.subr.bf16.mxu0 0
        %3029 = vmatpush1.bf16.msra.mxu0 %v2995
        %3030 = vmatprep.subr.bf16.mxu0 0
        %3031 = vmatpush1.bf16.msra.mxu0 %v2996
        %3032 = vmatprep.subr.bf16.mxu0 0
        %3033 = vmatpush1.bf16.msra.mxu0 %v2997
        %3034 = vmatprep.subr.bf16.mxu0 0
        %3035 = vmatpush1.bf16.msra.mxu0 %v2998
        %3036 = vmatprep.subr.bf16.mxu0 0
        %3037 = vmatpush1.bf16.msra.mxu0 %v2999
        %3038 = vmatprep.subr.bf16.mxu0 0
        %3039 = vmatpush1.bf16.msra.mxu0 %v3000
        %3040 = vmatprep.subr.bf16.mxu0 0
        %3041 = vmatpush1.bf16.msra.mxu0 %v3001
        %3042 = vmatprep.subr.bf16.mxu0 0
        %3043 = vmatpush1.bf16.msra.mxu0 %v3002
        %3044 = vmatprep.subr.bf16.mxu0 0
        %3045 = vmatpush1.bf16.msra.mxu0 %v3003
        %3046 = vmatprep.subr.bf16.mxu0 0
        %3047 = vmatpush1.bf16.msra.mxu0 %v3004
        %3048 = vmatprep.subr.bf16.mxu0 0
        %3049 = vmatpush1.bf16.msra.mxu0 %v3005
        %3050 = vmatprep.subr.bf16.mxu0 0
        %3051 = vmatpush1.bf16.msra.mxu0 %v3006
        %3052 = vmatprep.subr.bf16.mxu0 0
        %3053 = vmatpush1.bf16.msra.mxu0 %v3007
        %3054 = vmatprep.subr.bf16.mxu0 0
        %3055 = vmatpush1.bf16.msra.mxu0 %v3008
        %3056 = vmatprep.subr.bf16.mxu0 0
        %3057 = vmatpush1.bf16.msra.mxu0 %v3009
        %3058 = vmatprep.mubr.bf16.mxu0 %v2883
        %3059 = vmatmul.mubr.bf16.gmra.mrb[0].mxu0 %v2882
        %v3060 = vpop.f32.mrb[0].mxu0
        %v3061 = vadd.f32 %v2716, %v3060
        %v3062 = vpop.f32.mrb[0].mxu0
        %v3063 = vpop.f32.mrb[0].mxu0
        %v3064 = vadd.f32 %v2719, %v3063
        %v3065 = vpop.f32.mrb[0].mxu0
        %3066 = vmatprep.mubr.bf16.mxu0 %v2885
        %3067 = vmatmul.mubr.bf16.gmra.mrb[0].mxu0 %v2884
        %v3068 = vpop.f32.mrb[0].mxu0
        %v3069 = vadd.f32 %v2724, %v3068
        %v3070 = vpop.f32.mrb[0].mxu0
        %v3071 = vpop.f32.mrb[0].mxu0
        %v3072 = vadd.f32 %v2727, %v3071
        %v3073 = vpop.f32.mrb[0].mxu0
        %3074 = vmatprep.mubr.bf16.mxu0 %v2887
        %3075 = vmatmul.mubr.bf16.gmra.mrb[0].mxu0 %v2886
        %v3076 = vpop.f32.mrb[0].mxu0
        %v3077 = vadd.f32 %v2732, %v3076
        %v3078 = vpop.f32.mrb[0].mxu0
        %v3079 = vpop.f32.mrb[0].mxu0
        %v3080 = vadd.f32 %v2735, %v3079
        %v3081 = vpop.f32.mrb[0].mxu0
        %3082 = vmatprep.mubr.bf16.mxu0 %v2889
        %3083 = vmatmul.mubr.bf16.gmra.mrb[0].mxu0 %v2888
        %v3084 = vpop.f32.mrb[0].mxu0
        %v3085 = vadd.f32 %v2740, %v3084
        %v3086 = vpop.f32.mrb[0].mxu0
        %v3087 = vpop.f32.mrb[0].mxu0
        %v3088 = vadd.f32 %v2743, %v3087
        %v3089 = vpop.f32.mrb[0].mxu0
        %3090 = vmatprep.mubr.bf16.mxu0 %v2891
        %3091 = vmatmul.mubr.bf16.gmra.mrb[0].mxu0 %v2890
        %v3092 = vpop.f32.mrb[0].mxu0
        %v3093 = vadd.f32 %v2748, %v3092
        %v3094 = vpop.f32.mrb[0].mxu0
        %v3095 = vpop.f32.mrb[0].mxu0
        %v3096 = vadd.f32 %v2751, %v3095
        %v3097 = vpop.f32.mrb[0].mxu0
        %3098 = vmatprep.mubr.bf16.mxu0 %v2893
        %3099 = vmatmul.mubr.bf16.gmra.mrb[0].mxu0 %v2892
        %v3100 = vpop.f32.mrb[0].mxu0
        %v3101 = vadd.f32 %v2756, %v3100
        %v3102 = vpop.f32.mrb[0].mxu0
        %v3103 = vpop.f32.mrb[0].mxu0
        %v3104 = vadd.f32 %v2759, %v3103
        %v3105 = vpop.f32.mrb[0].mxu0
        %3106 = vmatprep.mubr.bf16.mxu0 %v2895
        %3107 = vmatmul.mubr.bf16.gmra.mrb[0].mxu0 %v2894
        %v3108 = vpop.f32.mrb[0].mxu0
        %v3109 = vadd.f32 %v2764, %v3108
        %v3110 = vpop.f32.mrb[0].mxu0
        %v3111 = vpop.f32.mrb[0].mxu0
        %v3112 = vadd.f32 %v2767, %v3111
        %v3113 = vpop.f32.mrb[0].mxu0
        %3114 = vmatprep.mubr.bf16.mxu0 %v2897
        %3115 = vmatmul.mubr.bf16.gmra.mrb[0].mxu0 %v2896
        %v3116 = vpop.f32.mrb[0].mxu0
        %v3117 = vadd.f32 %v2772, %v3116
        %v3118 = vpop.f32.mrb[0].mxu0
        %v3119 = vpop.f32.mrb[0].mxu0
        %v3120 = vadd.f32 %v2775, %v3119
        %v3121 = vpop.f32.mrb[0].mxu0
        %3122 = vmatprep.mubr.bf16.mxu0 %v2899
        %3123 = vmatmul.mubr.bf16.gmra.mrb[0].mxu0 %v2898
        %v3124 = vpop.f32.mrb[0].mxu0
        %v3125 = vadd.f32 %v2780, %v3124
        %v3126 = vpop.f32.mrb[0].mxu0
        %v3127 = vpop.f32.mrb[0].mxu0
        %v3128 = vadd.f32 %v2783, %v3127
        %v3129 = vpop.f32.mrb[0].mxu0
        %3130 = vmatprep.mubr.bf16.mxu0 %v2901
        %3131 = vmatmul.mubr.bf16.gmra.mrb[0].mxu0 %v2900
        %v3132 = vpop.f32.mrb[0].mxu0
        %v3133 = vadd.f32 %v2788, %v3132
        %v3134 = vpop.f32.mrb[0].mxu0
        %v3135 = vpop.f32.mrb[0].mxu0
        %v3136 = vadd.f32 %v2791, %v3135
        %v3137 = vpop.f32.mrb[0].mxu0
        %3138 = vmatprep.mubr.bf16.mxu0 %v2903
        %3139 = vmatmul.mubr.bf16.gmra.mrb[0].mxu0 %v2902
        %v3140 = vpop.f32.mrb[0].mxu0
        %v3141 = vadd.f32 %v2796, %v3140
        %v3142 = vpop.f32.mrb[0].mxu0
        %v3143 = vpop.f32.mrb[0].mxu0
        %v3144 = vadd.f32 %v2799, %v3143
        %v3145 = vpop.f32.mrb[0].mxu0
        %3146 = vmatprep.mubr.bf16.mxu0 %v2905
        %3147 = vmatmul.mubr.bf16.gmra.mrb[0].mxu0 %v2904
        %v3148 = vpop.f32.mrb[0].mxu0
        %v3149 = vadd.f32 %v2804, %v3148
        %v3150 = vpop.f32.mrb[0].mxu0
        %v3151 = vpop.f32.mrb[0].mxu0
        %v3152 = vadd.f32 %v2807, %v3151
        %v3153 = vpop.f32.mrb[0].mxu0
        %3154 = vdwg.mxu0
        %v3155 = vadd.f32 %v3061, %v213
        %v3156 = vadd.f32 %v3064, %v213
        %v3157 = vadd.f32 %v3069, %v213
        %v3158 = vadd.f32 %v3072, %v213
        %v3159 = vadd.f32 %v3077, %v213
        %v3160 = vadd.f32 %v3080, %v213
        %v3161 = vadd.f32 %v3085, %v213
        %v3162 = vadd.f32 %v3088, %v213
        %v3163 = vadd.f32 %v3093, %v213
        %v3164 = vadd.f32 %v3096, %v213
        %v3165 = vadd.f32 %v3101, %v213
        %v3166 = vadd.f32 %v3104, %v213
        %v3167 = vadd.f32 %v3109, %v213
        %v3168 = vadd.f32 %v3112, %v213
        %v3169 = vadd.f32 %v3117, %v213
        %v3170 = vadd.f32 %v3120, %v213
        %v3171 = vadd.f32 %v3125, %v213
        %v3172 = vadd.f32 %v3128, %v213
        %v3173 = vadd.f32 %v3133, %v213
        %v3174 = vadd.f32 %v3136, %v213
        %v3175 = vadd.f32 %v3141, %v213
        %v3176 = vadd.f32 %v3144, %v213
        %v3177 = vadd.f32 %v3149, %v213
        %v3178 = vadd.f32 %v3152, %v213
        %v3179 = vmul.f32 %v3155, 0.5
        %v3180 = vmul.f32 %v3156, 0.5
        %v3181 = vmul.f32 %v3157, 0.5
        %v3182 = vmul.f32 %v3158, 0.5
        %v3183 = vmul.f32 %v3159, 0.5
        %v3184 = vmul.f32 %v3160, 0.5
        %v3185 = vmul.f32 %v3161, 0.5
        %v3186 = vmul.f32 %v3162, 0.5
        %v3187 = vmul.f32 %v3163, 0.5
        %v3188 = vmul.f32 %v3164, 0.5
        %v3189 = vmul.f32 %v3165, 0.5
        %v3190 = vmul.f32 %v3166, 0.5
        %v3191 = vmul.f32 %v3167, 0.5
        %v3192 = vmul.f32 %v3168, 0.5
        %v3193 = vmul.f32 %v3169, 0.5
        %v3194 = vmul.f32 %v3170, 0.5
        %v3195 = vmul.f32 %v3171, 0.5
        %v3196 = vmul.f32 %v3172, 0.5
        %v3197 = vmul.f32 %v3173, 0.5
        %v3198 = vmul.f32 %v3174, 0.5
        %v3199 = vmul.f32 %v3175, 0.5
        %v3200 = vmul.f32 %v3176, 0.5
        %v3201 = vmul.f32 %v3177, 0.5
        %v3202 = vmul.f32 %v3178, 0.5
        %v3203 = vtanh.pop %v3179
        %v3204 = vtanh.pop %v3180
        %v3205 = vtanh.pop %v3181
        %v3206 = vtanh.pop %v3182
        %v3207 = vtanh.pop %v3183
        %v3208 = vtanh.pop %v3184
        %v3209 = vtanh.pop %v3185
        %v3210 = vtanh.pop %v3186
        %v3211 = vtanh.pop %v3187
        %v3212 = vtanh.pop %v3188
        %v3213 = vtanh.pop %v3189
        %v3214 = vtanh.pop %v3190
        %v3215 = vtanh.pop %v3191
        %v3216 = vtanh.pop %v3192
        %v3217 = vtanh.pop %v3193
        %v3218 = vtanh.pop %v3194
        %v3219 = vtanh.pop %v3195
        %v3220 = vtanh.pop %v3196
        %v3221 = vtanh.pop %v3197
        %v3222 = vtanh.pop %v3198
        %v3223 = vtanh.pop %v3199
        %v3224 = vtanh.pop %v3200
        %v3225 = vtanh.pop %v3201
        %v3226 = vtanh.pop %v3202
        %v3227 = vmul.f32 %v3203, 0.5
        %v3228 = vmul.f32 %v3204, 0.5
        %v3229 = vmul.f32 %v3205, 0.5
        %v3230 = vmul.f32 %v3206, 0.5
        %v3231 = vmul.f32 %v3207, 0.5
        %v3232 = vmul.f32 %v3208, 0.5
        %v3233 = vmul.f32 %v3209, 0.5
        %v3234 = vmul.f32 %v3210, 0.5
        %v3235 = vmul.f32 %v3211, 0.5
        %v3236 = vmul.f32 %v3212, 0.5
        %v3237 = vmul.f32 %v3213, 0.5
        %v3238 = vmul.f32 %v3214, 0.5
        %v3239 = vmul.f32 %v3215, 0.5
        %v3240 = vmul.f32 %v3216, 0.5
        %v3241 = vmul.f32 %v3217, 0.5
        %v3242 = vmul.f32 %v3218, 0.5
        %v3243 = vmul.f32 %v3219, 0.5
        %v3244 = vmul.f32 %v3220, 0.5
        %v3245 = vmul.f32 %v3221, 0.5
        %v3246 = vmul.f32 %v3222, 0.5
        %v3247 = vmul.f32 %v3223, 0.5
        %v3248 = vmul.f32 %v3224, 0.5
        %v3249 = vmul.f32 %v3225, 0.5
        %v3250 = vmul.f32 %v3226, 0.5
        %v3251 = vadd.f32 %v3227, 0.5
        %v3252 = vadd.f32 %v3228, 0.5
        %v3253 = vadd.f32 %v3229, 0.5
        %v3254 = vadd.f32 %v3230, 0.5
        %v3255 = vadd.f32 %v3231, 0.5
        %v3256 = vadd.f32 %v3232, 0.5
        %v3257 = vadd.f32 %v3233, 0.5
        %v3258 = vadd.f32 %v3234, 0.5
        %v3259 = vadd.f32 %v3235, 0.5
        %v3260 = vadd.f32 %v3236, 0.5
        %v3261 = vadd.f32 %v3237, 0.5
        %v3262 = vadd.f32 %v3238, 0.5
        %v3263 = vadd.f32 %v3239, 0.5
        %v3264 = vadd.f32 %v3240, 0.5
        %v3265 = vadd.f32 %v3241, 0.5
        %v3266 = vadd.f32 %v3242, 0.5
        %v3267 = vadd.f32 %v3243, 0.5
        %v3268 = vadd.f32 %v3244, 0.5
        %v3269 = vadd.f32 %v3245, 0.5
        %v3270 = vadd.f32 %v3246, 0.5
        %v3271 = vadd.f32 %v3247, 0.5
        %v3272 = vadd.f32 %v3248, 0.5
        %v3273 = vadd.f32 %v3249, 0.5
        %v3274 = vadd.f32 %v3250, 0.5
        %v3275 = vmul.f32 %v3155, %v3251
        %v3276 = vmul.f32 %v3156, %v3252
        %v3277 = vmul.f32 %v3157, %v3253
        %v3278 = vmul.f32 %v3158, %v3254
        %v3279 = vmul.f32 %v3159, %v3255
        %v3280 = vmul.f32 %v3160, %v3256
        %v3281 = vmul.f32 %v3161, %v3257
        %v3282 = vmul.f32 %v3162, %v3258
        %v3283 = vmul.f32 %v3163, %v3259
        %v3284 = vmul.f32 %v3164, %v3260
        %v3285 = vmul.f32 %v3165, %v3261
        %v3286 = vmul.f32 %v3166, %v3262
        %v3287 = vmul.f32 %v3167, %v3263
        %v3288 = vmul.f32 %v3168, %v3264
        %v3289 = vmul.f32 %v3169, %v3265
        %v3290 = vmul.f32 %v3170, %v3266
        %v3291 = vmul.f32 %v3171, %v3267
        %v3292 = vmul.f32 %v3172, %v3268
        %v3293 = vmul.f32 %v3173, %v3269
        %v3294 = vmul.f32 %v3174, %v3270
        %v3295 = vmul.f32 %v3175, %v3271
        %v3296 = vmul.f32 %v3176, %v3272
        %v3297 = vmul.f32 %v3177, %v3273
        %v3298 = vmul.f32 %v3178, %v3274
        %v3299 = vpack.c.bf16 %v3276, %v3275
        %v3300 = vpack.c.bf16 %v3278, %v3277
        %v3301 = vpack.c.bf16 %v3280, %v3279
        %v3302 = vpack.c.bf16 %v3282, %v3281
        %v3303 = vpack.c.bf16 %v3284, %v3283
        %v3304 = vpack.c.bf16 %v3286, %v3285
        %v3305 = vpack.c.bf16 %v3288, %v3287
        %v3306 = vpack.c.bf16 %v3290, %v3289
        %v3307 = vpack.c.bf16 %v3292, %v3291
        %v3308 = vpack.c.bf16 %v3294, %v3293
        %v3309 = vpack.c.bf16 %v3296, %v3295
        %v3310 = vpack.c.bf16 %v3298, %v3297
        %v3323 = vunpack.c.l.b16 %v3299
        %v3324 = vunpack.c.h.b16 %v3299
        %v3325 = vunpack.c.l.b16 %v3300
        %v3326 = vunpack.c.h.b16 %v3300
        %v3327 = vunpack.c.l.b16 %v3301
        %v3328 = vunpack.c.h.b16 %v3301
        %v3329 = vunpack.c.l.b16 %v3302
        %v3330 = vunpack.c.h.b16 %v3302
        %v3331 = vunpack.c.l.b16 %v3303
        %v3332 = vunpack.c.h.b16 %v3303
        %v3333 = vunpack.c.l.b16 %v3304
        %v3334 = vunpack.c.h.b16 %v3304
        %v3335 = vunpack.c.l.b16 %v3305
        %v3336 = vunpack.c.h.b16 %v3305
        %v3337 = vunpack.c.l.b16 %v3306
        %v3338 = vunpack.c.h.b16 %v3306
        %v3339 = vunpack.c.l.b16 %v3307
        %v3340 = vunpack.c.h.b16 %v3307
        %v3341 = vunpack.c.l.b16 %v3308
        %v3342 = vunpack.c.h.b16 %v3308
        %v3343 = vunpack.c.l.b16 %v3309
        %v3344 = vunpack.c.h.b16 %v3309
        %v3345 = vunpack.c.l.b16 %v3310
        %v3346 = vunpack.c.h.b16 %v3310
        %v3347 = vpack.c.b16 %v3323, %v3323
        %v3348 = vpack.c.b16 %v3324, %v3324
        %v3349 = vpack.c.b16 %v3325, %v3325
        %v3350 = vpack.c.b16 %v3326, %v3326
        %v3351 = vpack.c.b16 %v3327, %v3327
        %v3352 = vpack.c.b16 %v3328, %v3328
        %v3353 = vpack.c.b16 %v3329, %v3329
        %v3354 = vpack.c.b16 %v3330, %v3330
        %v3355 = vpack.c.b16 %v3331, %v3331
        %v3356 = vpack.c.b16 %v3332, %v3332
        %v3357 = vpack.c.b16 %v3333, %v3333
        %v3358 = vpack.c.b16 %v3334, %v3334
        %v3359 = vpack.c.b16 %v3335, %v3335
        %v3360 = vpack.c.b16 %v3336, %v3336
        %v3361 = vpack.c.b16 %v3337, %v3337
        %v3362 = vpack.c.b16 %v3338, %v3338
        %v3363 = vpack.c.b16 %v3339, %v3339
        %v3364 = vpack.c.b16 %v3340, %v3340
        %v3365 = vpack.c.b16 %v3341, %v3341
        %v3366 = vpack.c.b16 %v3342, %v3342
        %v3367 = vpack.c.b16 %v3343, %v3343
        %v3368 = vpack.c.b16 %v3344, %v3344
        %v3369 = vpack.c.b16 %v3345, %v3345
        %v3370 = vpack.c.b16 %v3346, %v3346
        %s3395 = scalar_lea.vmem %s204, 192 [#allocation7]
        %3396 = vst [vmem:[%s3395] sm:$0xf] %v3347
        %3397 = vst [vmem:[%s3395 + $0x4] sm:$0xf] %v3348
        %3398 = vst [vmem:[%s3395 + $0x8] sm:$0xf] %v3349
        %3399 = vst [vmem:[%s3395 + $0xc] sm:$0xf] %v3350
        %3400 = vst [vmem:[%s3395 + $0x10] sm:$0xf] %v3351
        %3401 = vst [vmem:[%s3395 + $0x14] sm:$0xf] %v3352
        %3402 = vst [vmem:[%s3395 + $0x18] sm:$0xf] %v3353
        %3403 = vst [vmem:[%s3395 + $0x1c] sm:$0xf] %v3354
        %3404 = vst [vmem:[%s3395 + $0x20] sm:$0xf] %v3355
        %3405 = vst [vmem:[%s3395 + $0x24] sm:$0xf] %v3356
        %3406 = vst [vmem:[%s3395 + $0x28] sm:$0xf] %v3357
        %3407 = vst [vmem:[%s3395 + $0x2c] sm:$0xf] %v3358
        %3408 = vst [vmem:[%s3395 + $0x30] sm:$0xf] %v3359
        %3409 = vst [vmem:[%s3395 + $0x34] sm:$0xf] %v3360
        %3410 = vst [vmem:[%s3395 + $0x38] sm:$0xf] %v3361
        %3411 = vst [vmem:[%s3395 + $0x3c] sm:$0xf] %v3362
        %3412 = vst [vmem:[%s3395 + $0x40] sm:$0xf] %v3363
        %3413 = vst [vmem:[%s3395 + $0x44] sm:$0xf] %v3364
        %3414 = vst [vmem:[%s3395 + $0x48] sm:$0xf] %v3365
        %3415 = vst [vmem:[%s3395 + $0x4c] sm:$0xf] %v3366
        %3416 = vst [vmem:[%s3395 + $0x50] sm:$0xf] %v3367
        %3417 = vst [vmem:[%s3395 + $0x54] sm:$0xf] %v3368
        %3418 = vst [vmem:[%s3395 + $0x58] sm:$0xf] %v3369
        %3419 = vst [vmem:[%s3395 + $0x5c] sm:$0xf] %v3370
        %v3420 = vld [vmem:[%s178 + $0x10] sm:$0xff]
        %v3421 = vld [vmem:[%s178 + $0x34] sm:$0xff]
        %v3422 = vld [vmem:[%s178 + $0x58] sm:$0xff]
        %v3423 = vld [vmem:[%s178 + $0x7c] sm:$0xff]
        %v3424 = vld [vmem:[%s178 + $0xa0] sm:$0xff]
        %v3425 = vld [vmem:[%s178 + $0xc4] sm:$0xff]
        %v3426 = vld [vmem:[%s178 + $0xe8] sm:$0xff]
        %v3427 = vld [vmem:[%s178 + $0x10c] sm:$0xff]
        %v3428 = vld [vmem:[%s178 + $0x130] sm:$0xff]
        %v3429 = vld [vmem:[%s178 + $0x154] sm:$0xff]
        %v3430 = vld [vmem:[%s178 + $0x178] sm:$0xff]
        %v3431 = vld [vmem:[%s178 + $0x19c] sm:$0xff]
        %v3432 = vld [vmem:[%s178 + $0x1c0] sm:$0xff]
        %v3433 = vld [vmem:[%s178 + $0x1e4] sm:$0xff]
        %v3434 = vld [vmem:[%s178 + $0x208] sm:$0xff]
        %v3435 = vld [vmem:[%s178 + $0x22c] sm:$0xff]
        %v3436 = vld [vmem:[%s178 + $0x250] sm:$0xff]
        %v3437 = vld [vmem:[%s178 + $0x274] sm:$0xff]
        %v3438 = vld [vmem:[%s178 + $0x298] sm:$0xff]
        %v3439 = vld [vmem:[%s178 + $0x2bc] sm:$0xff]
        %v3440 = vld [vmem:[%s178 + $0x2e0] sm:$0xff]
        %v3441 = vld [vmem:[%s178 + $0x304] sm:$0xff]
        %v3442 = vld [vmem:[%s178 + $0x328] sm:$0xff]
        %v3443 = vld [vmem:[%s178 + $0x34c] sm:$0xff]
        %s3444 = scalar_lea.vmem [#allocation5], 768
        %v3445 = vld [vmem:[%s3444] sm:$0xf]
        %v3446 = vld [vmem:[%s3444 + $0x4] sm:$0xf]
        %v3447 = vld [vmem:[%s3444 + $0x8] sm:$0xf]
        %v3448 = vld [vmem:[%s3444 + $0xc] sm:$0xf]
        %v3449 = vld [vmem:[%s3444 + $0x10] sm:$0xf]
        %v3450 = vld [vmem:[%s3444 + $0x14] sm:$0xf]
        %v3451 = vld [vmem:[%s3444 + $0x18] sm:$0xf]
        %v3452 = vld [vmem:[%s3444 + $0x1c] sm:$0xf]
        %v3453 = vld [vmem:[%s3444 + $0x20] sm:$0xf]
        %v3454 = vld [vmem:[%s3444 + $0x24] sm:$0xf]
        %v3455 = vld [vmem:[%s3444 + $0x28] sm:$0xf]
        %v3456 = vld [vmem:[%s3444 + $0x2c] sm:$0xf]
        %v3457 = vld [vmem:[%s3444 + $0x30] sm:$0xf]
        %v3458 = vld [vmem:[%s3444 + $0x34] sm:$0xf]
        %v3459 = vld [vmem:[%s3444 + $0x38] sm:$0xf]
        %v3460 = vld [vmem:[%s3444 + $0x3c] sm:$0xf]
        %v3461 = vld [vmem:[%s3444 + $0x40] sm:$0xf]
        %v3462 = vld [vmem:[%s3444 + $0x44] sm:$0xf]
        %v3463 = vld [vmem:[%s3444 + $0x48] sm:$0xf]
        %v3464 = vld [vmem:[%s3444 + $0x4c] sm:$0xf]
        %v3465 = vld [vmem:[%s3444 + $0x50] sm:$0xf]
        %v3466 = vld [vmem:[%s3444 + $0x54] sm:$0xf]
        %v3467 = vld [vmem:[%s3444 + $0x58] sm:$0xf]
        %v3468 = vld [vmem:[%s3444 + $0x5c] sm:$0xf]
        %v3469 = vld [vmem:[%s3444 + $0x60] sm:$0xf]
        %v3470 = vld [vmem:[%s3444 + $0x64] sm:$0xf]
        %v3471 = vld [vmem:[%s3444 + $0x68] sm:$0xf]
        %v3472 = vld [vmem:[%s3444 + $0x6c] sm:$0xf]
        %v3473 = vld [vmem:[%s3444 + $0x70] sm:$0xf]
        %v3474 = vld [vmem:[%s3444 + $0x74] sm:$0xf]
        %v3475 = vld [vmem:[%s3444 + $0x78] sm:$0xf]
        %v3476 = vld [vmem:[%s3444 + $0x7c] sm:$0xf]
        %v3477 = vld [vmem:[%s178 + $0x1c] sm:$0xff]
        %v3478 = vld [vmem:[%s178 + $0x40] sm:$0xff]
        %v3479 = vld [vmem:[%s178 + $0x64] sm:$0xff]
        %v3480 = vld [vmem:[%s178 + $0x88] sm:$0xff]
        %v3481 = vld [vmem:[%s178 + $0xac] sm:$0xff]
        %v3482 = vld [vmem:[%s178 + $0xd0] sm:$0xff]
        %v3483 = vld [vmem:[%s178 + $0xf4] sm:$0xff]
        %v3484 = vld [vmem:[%s178 + $0x118] sm:$0xff]
        %v3485 = vld [vmem:[%s178 + $0x13c] sm:$0xff]
        %v3486 = vld [vmem:[%s178 + $0x160] sm:$0xff]
        %v3487 = vld [vmem:[%s178 + $0x184] sm:$0xff]
        %v3488 = vld [vmem:[%s178 + $0x1a8] sm:$0xff]
        %v3489 = vld [vmem:[%s178 + $0x1cc] sm:$0xff]
        %v3490 = vld [vmem:[%s178 + $0x1f0] sm:$0xff]
        %v3491 = vld [vmem:[%s178 + $0x214] sm:$0xff]
        %v3492 = vld [vmem:[%s178 + $0x238] sm:$0xff]
        %v3493 = vld [vmem:[%s178 + $0x25c] sm:$0xff]
        %v3494 = vld [vmem:[%s178 + $0x280] sm:$0xff]
        %v3495 = vld [vmem:[%s178 + $0x2a4] sm:$0xff]
        %v3496 = vld [vmem:[%s178 + $0x2c8] sm:$0xff]
        %v3497 = vld [vmem:[%s178 + $0x2ec] sm:$0xff]
        %v3498 = vld [vmem:[%s178 + $0x310] sm:$0xff]
        %v3499 = vld [vmem:[%s178 + $0x334] sm:$0xff]
        %v3500 = vld [vmem:[%s178 + $0x358] sm:$0xff]
        %s3501 = scalar_lea.vmem [#allocation5], 896
        %v3502 = vld [vmem:[%s3501] sm:$0xf]
        %v3503 = vld [vmem:[%s3501 + $0x4] sm:$0xf]
        %v3504 = vld [vmem:[%s3501 + $0x8] sm:$0xf]
        %v3505 = vld [vmem:[%s3501 + $0xc] sm:$0xf]
        %v3506 = vld [vmem:[%s3501 + $0x10] sm:$0xf]
        %v3507 = vld [vmem:[%s3501 + $0x14] sm:$0xf]
        %v3508 = vld [vmem:[%s3501 + $0x18] sm:$0xf]
        %v3509 = vld [vmem:[%s3501 + $0x1c] sm:$0xf]
        %v3510 = vld [vmem:[%s3501 + $0x20] sm:$0xf]
        %v3511 = vld [vmem:[%s3501 + $0x24] sm:$0xf]
        %v3512 = vld [vmem:[%s3501 + $0x28] sm:$0xf]
        %v3513 = vld [vmem:[%s3501 + $0x2c] sm:$0xf]
        %v3514 = vld [vmem:[%s3501 + $0x30] sm:$0xf]
        %v3515 = vld [vmem:[%s3501 + $0x34] sm:$0xf]
        %v3516 = vld [vmem:[%s3501 + $0x38] sm:$0xf]
        %v3517 = vld [vmem:[%s3501 + $0x3c] sm:$0xf]
        %v3518 = vld [vmem:[%s3501 + $0x40] sm:$0xf]
        %v3519 = vld [vmem:[%s3501 + $0x44] sm:$0xf]
        %v3520 = vld [vmem:[%s3501 + $0x48] sm:$0xf]
        %v3521 = vld [vmem:[%s3501 + $0x4c] sm:$0xf]
        %v3522 = vld [vmem:[%s3501 + $0x50] sm:$0xf]
        %v3523 = vld [vmem:[%s3501 + $0x54] sm:$0xf]
        %v3524 = vld [vmem:[%s3501 + $0x58] sm:$0xf]
        %v3525 = vld [vmem:[%s3501 + $0x5c] sm:$0xf]
        %v3526 = vld [vmem:[%s3501 + $0x60] sm:$0xf]
        %v3527 = vld [vmem:[%s3501 + $0x64] sm:$0xf]
        %v3528 = vld [vmem:[%s3501 + $0x68] sm:$0xf]
        %v3529 = vld [vmem:[%s3501 + $0x6c] sm:$0xf]
        %v3530 = vld [vmem:[%s3501 + $0x70] sm:$0xf]
        %v3531 = vld [vmem:[%s3501 + $0x74] sm:$0xf]
        %v3532 = vld [vmem:[%s3501 + $0x78] sm:$0xf]
        %v3533 = vld [vmem:[%s3501 + $0x7c] sm:$0xf]
        %v3558 = vunpack.c.l.b16 %v3477
        %v3559 = vunpack.c.h.b16 %v3477
        %v3560 = vunpack.c.l.b16 %v3478
        %v3561 = vunpack.c.h.b16 %v3478
        %v3562 = vunpack.c.l.b16 %v3479
        %v3563 = vunpack.c.h.b16 %v3479
        %v3564 = vunpack.c.l.b16 %v3480
        %v3565 = vunpack.c.h.b16 %v3480
        %v3566 = vunpack.c.l.b16 %v3481
        %v3567 = vunpack.c.h.b16 %v3481
        %v3568 = vunpack.c.l.b16 %v3482
        %v3569 = vunpack.c.h.b16 %v3482
        %v3570 = vunpack.c.l.b16 %v3483
        %v3571 = vunpack.c.h.b16 %v3483
        %v3572 = vunpack.c.l.b16 %v3484
        %v3573 = vunpack.c.h.b16 %v3484
        %v3574 = vunpack.c.l.b16 %v3485
        %v3575 = vunpack.c.h.b16 %v3485
        %v3576 = vunpack.c.l.b16 %v3486
        %v3577 = vunpack.c.h.b16 %v3486
        %v3578 = vunpack.c.l.b16 %v3487
        %v3579 = vunpack.c.h.b16 %v3487
        %v3580 = vunpack.c.l.b16 %v3488
        %v3581 = vunpack.c.h.b16 %v3488
        %v3582 = vunpack.c.l.b16 %v3489
        %v3583 = vunpack.c.h.b16 %v3489
        %v3584 = vunpack.c.l.b16 %v3490
        %v3585 = vunpack.c.h.b16 %v3490
        %v3586 = vunpack.c.l.b16 %v3491
        %v3587 = vunpack.c.h.b16 %v3491
        %v3588 = vunpack.c.l.b16 %v3492
        %v3589 = vunpack.c.h.b16 %v3492
        %v3590 = vunpack.c.l.b16 %v3493
        %v3591 = vunpack.c.h.b16 %v3493
        %v3592 = vunpack.c.l.b16 %v3494
        %v3593 = vunpack.c.h.b16 %v3494
        %v3594 = vunpack.c.l.b16 %v3495
        %v3595 = vunpack.c.h.b16 %v3495
        %v3596 = vunpack.c.l.b16 %v3496
        %v3597 = vunpack.c.h.b16 %v3496
        %v3598 = vunpack.c.l.b16 %v3497
        %v3599 = vunpack.c.h.b16 %v3497
        %v3600 = vunpack.c.l.b16 %v3498
        %v3601 = vunpack.c.h.b16 %v3498
        %v3602 = vunpack.c.l.b16 %v3499
        %v3603 = vunpack.c.h.b16 %v3499
        %v3604 = vunpack.c.l.b16 %v3500
        %v3605 = vunpack.c.h.b16 %v3500
        %v3606 = vpack.c.b16 %v3560, %v3558
        %v3607 = vpack.c.b16 %v3561, %v3559
        %v3608 = vpack.c.b16 %v3564, %v3562
        %v3609 = vpack.c.b16 %v3565, %v3563
        %v3610 = vpack.c.b16 %v3568, %v3566
        %v3611 = vpack.c.b16 %v3569, %v3567
        %v3612 = vpack.c.b16 %v3572, %v3570
        %v3613 = vpack.c.b16 %v3573, %v3571
        %v3614 = vpack.c.b16 %v3576, %v3574
        %v3615 = vpack.c.b16 %v3577, %v3575
        %v3616 = vpack.c.b16 %v3580, %v3578
        %v3617 = vpack.c.b16 %v3581, %v3579
        %v3618 = vpack.c.b16 %v3584, %v3582
        %v3619 = vpack.c.b16 %v3585, %v3583
        %v3620 = vpack.c.b16 %v3588, %v3586
        %v3621 = vpack.c.b16 %v3589, %v3587
        %v3622 = vpack.c.b16 %v3592, %v3590
        %v3623 = vpack.c.b16 %v3593, %v3591
        %v3624 = vpack.c.b16 %v3596, %v3594
        %v3625 = vpack.c.b16 %v3597, %v3595
        %v3626 = vpack.c.b16 %v3600, %v3598
        %v3627 = vpack.c.b16 %v3601, %v3599
        %v3628 = vpack.c.b16 %v3604, %v3602
        %v3629 = vpack.c.b16 %v3605, %v3603
        %v3686 = vunpack.c.l.b16 %v3502
        %v3687 = vunpack.c.l.b16 %v3503
        %v3688 = vunpack.c.l.b16 %v3504
        %v3689 = vunpack.c.l.b16 %v3505
        %v3690 = vunpack.c.l.b16 %v3506
        %v3691 = vunpack.c.l.b16 %v3507
        %v3692 = vunpack.c.l.b16 %v3508
        %v3693 = vunpack.c.l.b16 %v3509
        %v3694 = vunpack.c.l.b16 %v3510
        %v3695 = vunpack.c.l.b16 %v3511
        %v3696 = vunpack.c.l.b16 %v3512
        %v3697 = vunpack.c.l.b16 %v3513
        %v3698 = vunpack.c.l.b16 %v3514
        %v3699 = vunpack.c.l.b16 %v3515
        %v3700 = vunpack.c.l.b16 %v3516
        %v3701 = vunpack.c.l.b16 %v3517
        %v3702 = vunpack.c.l.b16 %v3518
        %v3703 = vunpack.c.l.b16 %v3519
        %v3704 = vunpack.c.l.b16 %v3520
        %v3705 = vunpack.c.l.b16 %v3521
        %v3706 = vunpack.c.l.b16 %v3522
        %v3707 = vunpack.c.l.b16 %v3523
        %v3708 = vunpack.c.l.b16 %v3524
        %v3709 = vunpack.c.l.b16 %v3525
        %v3710 = vunpack.c.l.b16 %v3526
        %v3711 = vunpack.c.l.b16 %v3527
        %v3712 = vunpack.c.l.b16 %v3528
        %v3713 = vunpack.c.l.b16 %v3529
        %v3714 = vunpack.c.l.b16 %v3530
        %v3715 = vunpack.c.l.b16 %v3531
        %v3716 = vunpack.c.l.b16 %v3532
        %v3717 = vunpack.c.l.b16 %v3533
        %v3718 = vpack.c.b16 %v3687, %v3686
        %v3719 = vpack.c.b16 %v3689, %v3688
        %v3720 = vpack.c.b16 %v3691, %v3690
        %v3721 = vpack.c.b16 %v3693, %v3692
        %v3722 = vpack.c.b16 %v3695, %v3694
        %v3723 = vpack.c.b16 %v3697, %v3696
        %v3724 = vpack.c.b16 %v3699, %v3698
        %v3725 = vpack.c.b16 %v3701, %v3700
        %v3726 = vpack.c.b16 %v3703, %v3702
        %v3727 = vpack.c.b16 %v3705, %v3704
        %v3728 = vpack.c.b16 %v3707, %v3706
        %v3729 = vpack.c.b16 %v3709, %v3708
        %v3730 = vpack.c.b16 %v3711, %v3710
        %v3731 = vpack.c.b16 %v3713, %v3712
        %v3732 = vpack.c.b16 %v3715, %v3714
        %v3733 = vpack.c.b16 %v3717, %v3716
        %3750 = vmatprep.subr.bf16.mxu0 0
        %3751 = vmatpush1.bf16.msra.mxu0 %v3718
        %3752 = vmatprep.subr.bf16.mxu0 0
        %3753 = vmatpush1.bf16.msra.mxu0 %v3719
        %3754 = vmatprep.subr.bf16.mxu0 0
        %3755 = vmatpush1.bf16.msra.mxu0 %v3720
        %3756 = vmatprep.subr.bf16.mxu0 0
        %3757 = vmatpush1.bf16.msra.mxu0 %v3721
        %3758 = vmatprep.subr.bf16.mxu0 0
        %3759 = vmatpush1.bf16.msra.mxu0 %v3722
        %3760 = vmatprep.subr.bf16.mxu0 0
        %3761 = vmatpush1.bf16.msra.mxu0 %v3723
        %3762 = vmatprep.subr.bf16.mxu0 0
        %3763 = vmatpush1.bf16.msra.mxu0 %v3724
        %3764 = vmatprep.subr.bf16.mxu0 0
        %3765 = vmatpush1.bf16.msra.mxu0 %v3725
        %3766 = vmatprep.subr.bf16.mxu0 0
        %3767 = vmatpush1.bf16.msra.mxu0 %v3726
        %3768 = vmatprep.subr.bf16.mxu0 0
        %3769 = vmatpush1.bf16.msra.mxu0 %v3727
        %3770 = vmatprep.subr.bf16.mxu0 0
        %3771 = vmatpush1.bf16.msra.mxu0 %v3728
        %3772 = vmatprep.subr.bf16.mxu0 0
        %3773 = vmatpush1.bf16.msra.mxu0 %v3729
        %3774 = vmatprep.subr.bf16.mxu0 0
        %3775 = vmatpush1.bf16.msra.mxu0 %v3730
        %3776 = vmatprep.subr.bf16.mxu0 0
        %3777 = vmatpush1.bf16.msra.mxu0 %v3731
        %3778 = vmatprep.subr.bf16.mxu0 0
        %3779 = vmatpush1.bf16.msra.mxu0 %v3732
        %3780 = vmatprep.subr.bf16.mxu0 0
        %3781 = vmatpush1.bf16.msra.mxu0 %v3733
        %3782 = vmatprep.mubr.bf16.mxu0 %v3607
        %3783 = vmatmul.mubr.bf16.gmra.mrb[0].mxu0 %v3606
        %v3784 = vpop.f32.mrb[0].mxu0
        %v3785 = vadd.f32 0.0, %v3784
        %v3786 = vpop.f32.mrb[0].mxu0
        %v3787 = vpop.f32.mrb[0].mxu0
        %v3788 = vadd.f32 0.0, %v3787
        %v3789 = vpop.f32.mrb[0].mxu0
        %3790 = vmatprep.mubr.bf16.mxu0 %v3609
        %3791 = vmatmul.mubr.bf16.gmra.mrb[0].mxu0 %v3608
        %v3792 = vpop.f32.mrb[0].mxu0
        %v3793 = vadd.f32 0.0, %v3792
        %v3794 = vpop.f32.mrb[0].mxu0
        %v3795 = vpop.f32.mrb[0].mxu0
        %v3796 = vadd.f32 0.0, %v3795
        %v3797 = vpop.f32.mrb[0].mxu0
        %3798 = vmatprep.mubr.bf16.mxu0 %v3611
        %3799 = vmatmul.mubr.bf16.gmra.mrb[0].mxu0 %v3610
        %v3800 = vpop.f32.mrb[0].mxu0
        %v3801 = vadd.f32 0.0, %v3800
        %v3802 = vpop.f32.mrb[0].mxu0
        %v3803 = vpop.f32.mrb[0].mxu0
        %v3804 = vadd.f32 0.0, %v3803
        %v3805 = vpop.f32.mrb[0].mxu0
        %3806 = vmatprep.mubr.bf16.mxu0 %v3613
        %3807 = vmatmul.mubr.bf16.gmra.mrb[0].mxu0 %v3612
        %v3808 = vpop.f32.mrb[0].mxu0
        %v3809 = vadd.f32 0.0, %v3808
        %v3810 = vpop.f32.mrb[0].mxu0
        %v3811 = vpop.f32.mrb[0].mxu0
        %v3812 = vadd.f32 0.0, %v3811
        %v3813 = vpop.f32.mrb[0].mxu0
        %3814 = vmatprep.mubr.bf16.mxu0 %v3615
        %3815 = vmatmul.mubr.bf16.gmra.mrb[0].mxu0 %v3614
        %v3816 = vpop.f32.mrb[0].mxu0
        %v3817 = vadd.f32 0.0, %v3816
        %v3818 = vpop.f32.mrb[0].mxu0
        %v3819 = vpop.f32.mrb[0].mxu0
        %v3820 = vadd.f32 0.0, %v3819
        %v3821 = vpop.f32.mrb[0].mxu0
        %3822 = vmatprep.mubr.bf16.mxu0 %v3617
        %3823 = vmatmul.mubr.bf16.gmra.mrb[0].mxu0 %v3616
        %v3824 = vpop.f32.mrb[0].mxu0
        %v3825 = vadd.f32 0.0, %v3824
        %v3826 = vpop.f32.mrb[0].mxu0
        %v3827 = vpop.f32.mrb[0].mxu0
        %v3828 = vadd.f32 0.0, %v3827
        %v3829 = vpop.f32.mrb[0].mxu0
        %3830 = vmatprep.mubr.bf16.mxu0 %v3619
        %3831 = vmatmul.mubr.bf16.gmra.mrb[0].mxu0 %v3618
        %v3832 = vpop.f32.mrb[0].mxu0
        %v3833 = vadd.f32 0.0, %v3832
        %v3834 = vpop.f32.mrb[0].mxu0
        %v3835 = vpop.f32.mrb[0].mxu0
        %v3836 = vadd.f32 0.0, %v3835
        %v3837 = vpop.f32.mrb[0].mxu0
        %3838 = vmatprep.mubr.bf16.mxu0 %v3621
        %3839 = vmatmul.mubr.bf16.gmra.mrb[0].mxu0 %v3620
        %v3840 = vpop.f32.mrb[0].mxu0
        %v3841 = vadd.f32 0.0, %v3840
        %v3842 = vpop.f32.mrb[0].mxu0
        %v3843 = vpop.f32.mrb[0].mxu0
        %v3844 = vadd.f32 0.0, %v3843
        %v3845 = vpop.f32.mrb[0].mxu0
        %3846 = vmatprep.mubr.bf16.mxu0 %v3623
        %3847 = vmatmul.mubr.bf16.gmra.mrb[0].mxu0 %v3622
        %v3848 = vpop.f32.mrb[0].mxu0
        %v3849 = vadd.f32 0.0, %v3848
        %v3850 = vpop.f32.mrb[0].mxu0
        %v3851 = vpop.f32.mrb[0].mxu0
        %v3852 = vadd.f32 0.0, %v3851
        %v3853 = vpop.f32.mrb[0].mxu0
        %3854 = vmatprep.mubr.bf16.mxu0 %v3625
        %3855 = vmatmul.mubr.bf16.gmra.mrb[0].mxu0 %v3624
        %v3856 = vpop.f32.mrb[0].mxu0
        %v3857 = vadd.f32 0.0, %v3856
        %v3858 = vpop.f32.mrb[0].mxu0
        %v3859 = vpop.f32.mrb[0].mxu0
        %v3860 = vadd.f32 0.0, %v3859
        %v3861 = vpop.f32.mrb[0].mxu0
        %3862 = vmatprep.mubr.bf16.mxu0 %v3627
        %3863 = vmatmul.mubr.bf16.gmra.mrb[0].mxu0 %v3626
        %v3864 = vpop.f32.mrb[0].mxu0
        %v3865 = vadd.f32 0.0, %v3864
        %v3866 = vpop.f32.mrb[0].mxu0
        %v3867 = vpop.f32.mrb[0].mxu0
        %v3868 = vadd.f32 0.0, %v3867
        %v3869 = vpop.f32.mrb[0].mxu0
        %3870 = vmatprep.mubr.bf16.mxu0 %v3629
        %3871 = vmatmul.mubr.bf16.gmra.mrb[0].mxu0 %v3628
        %v3872 = vpop.f32.mrb[0].mxu0
        %v3873 = vadd.f32 0.0, %v3872
        %v3874 = vpop.f32.mrb[0].mxu0
        %v3875 = vpop.f32.mrb[0].mxu0
        %v3876 = vadd.f32 0.0, %v3875
        %v3877 = vpop.f32.mrb[0].mxu0
        %3878 = vdwg.mxu0
        %v3903 = vunpack.c.l.b16 %v3420
        %v3904 = vunpack.c.h.b16 %v3420
        %v3905 = vunpack.c.l.b16 %v3421
        %v3906 = vunpack.c.h.b16 %v3421
        %v3907 = vunpack.c.l.b16 %v3422
        %v3908 = vunpack.c.h.b16 %v3422
        %v3909 = vunpack.c.l.b16 %v3423
        %v3910 = vunpack.c.h.b16 %v3423
        %v3911 = vunpack.c.l.b16 %v3424
        %v3912 = vunpack.c.h.b16 %v3424
        %v3913 = vunpack.c.l.b16 %v3425
        %v3914 = vunpack.c.h.b16 %v3425
        %v3915 = vunpack.c.l.b16 %v3426
        %v3916 = vunpack.c.h.b16 %v3426
        %v3917 = vunpack.c.l.b16 %v3427
        %v3918 = vunpack.c.h.b16 %v3427
        %v3919 = vunpack.c.l.b16 %v3428
        %v3920 = vunpack.c.h.b16 %v3428
        %v3921 = vunpack.c.l.b16 %v3429
        %v3922 = vunpack.c.h.b16 %v3429
        %v3923 = vunpack.c.l.b16 %v3430
        %v3924 = vunpack.c.h.b16 %v3430
        %v3925 = vunpack.c.l.b16 %v3431
        %v3926 = vunpack.c.h.b16 %v3431
        %v3927 = vunpack.c.l.b16 %v3432
        %v3928 = vunpack.c.h.b16 %v3432
        %v3929 = vunpack.c.l.b16 %v3433
        %v3930 = vunpack.c.h.b16 %v3433
        %v3931 = vunpack.c.l.b16 %v3434
        %v3932 = vunpack.c.h.b16 %v3434
        %v3933 = vunpack.c.l.b16 %v3435
        %v3934 = vunpack.c.h.b16 %v3435
        %v3935 = vunpack.c.l.b16 %v3436
        %v3936 = vunpack.c.h.b16 %v3436
        %v3937 = vunpack.c.l.b16 %v3437
        %v3938 = vunpack.c.h.b16 %v3437
        %v3939 = vunpack.c.l.b16 %v3438
        %v3940 = vunpack.c.h.b16 %v3438
        %v3941 = vunpack.c.l.b16 %v3439
        %v3942 = vunpack.c.h.b16 %v3439
        %v3943 = vunpack.c.l.b16 %v3440
        %v3944 = vunpack.c.h.b16 %v3440
        %v3945 = vunpack.c.l.b16 %v3441
        %v3946 = vunpack.c.h.b16 %v3441
        %v3947 = vunpack.c.l.b16 %v3442
        %v3948 = vunpack.c.h.b16 %v3442
        %v3949 = vunpack.c.l.b16 %v3443
        %v3950 = vunpack.c.h.b16 %v3443
        %v3951 = vpack.c.b16 %v3905, %v3903
        %v3952 = vpack.c.b16 %v3906, %v3904
        %v3953 = vpack.c.b16 %v3909, %v3907
        %v3954 = vpack.c.b16 %v3910, %v3908
        %v3955 = vpack.c.b16 %v3913, %v3911
        %v3956 = vpack.c.b16 %v3914, %v3912
        %v3957 = vpack.c.b16 %v3917, %v3915
        %v3958 = vpack.c.b16 %v3918, %v3916
        %v3959 = vpack.c.b16 %v3921, %v3919
        %v3960 = vpack.c.b16 %v3922, %v3920
        %v3961 = vpack.c.b16 %v3925, %v3923
        %v3962 = vpack.c.b16 %v3926, %v3924
        %v3963 = vpack.c.b16 %v3929, %v3927
        %v3964 = vpack.c.b16 %v3930, %v3928
        %v3965 = vpack.c.b16 %v3933, %v3931
        %v3966 = vpack.c.b16 %v3934, %v3932
        %v3967 = vpack.c.b16 %v3937, %v3935
        %v3968 = vpack.c.b16 %v3938, %v3936
        %v3969 = vpack.c.b16 %v3941, %v3939
        %v3970 = vpack.c.b16 %v3942, %v3940
        %v3971 = vpack.c.b16 %v3945, %v3943
        %v3972 = vpack.c.b16 %v3946, %v3944
        %v3973 = vpack.c.b16 %v3949, %v3947
        %v3974 = vpack.c.b16 %v3950, %v3948
        %v4031 = vunpack.c.l.b16 %v3445
        %v4032 = vunpack.c.l.b16 %v3446
        %v4033 = vunpack.c.l.b16 %v3447
        %v4034 = vunpack.c.l.b16 %v3448
        %v4035 = vunpack.c.l.b16 %v3449
        %v4036 = vunpack.c.l.b16 %v3450
        %v4037 = vunpack.c.l.b16 %v3451
        %v4038 = vunpack.c.l.b16 %v3452
        %v4039 = vunpack.c.l.b16 %v3453
        %v4040 = vunpack.c.l.b16 %v3454
        %v4041 = vunpack.c.l.b16 %v3455
        %v4042 = vunpack.c.l.b16 %v3456
        %v4043 = vunpack.c.l.b16 %v3457
        %v4044 = vunpack.c.l.b16 %v3458
        %v4045 = vunpack.c.l.b16 %v3459
        %v4046 = vunpack.c.l.b16 %v3460
        %v4047 = vunpack.c.l.b16 %v3461
        %v4048 = vunpack.c.l.b16 %v3462
        %v4049 = vunpack.c.l.b16 %v3463
        %v4050 = vunpack.c.l.b16 %v3464
        %v4051 = vunpack.c.l.b16 %v3465
        %v4052 = vunpack.c.l.b16 %v3466
        %v4053 = vunpack.c.l.b16 %v3467
        %v4054 = vunpack.c.l.b16 %v3468
        %v4055 = vunpack.c.l.b16 %v3469
        %v4056 = vunpack.c.l.b16 %v3470
        %v4057 = vunpack.c.l.b16 %v3471
        %v4058 = vunpack.c.l.b16 %v3472
        %v4059 = vunpack.c.l.b16 %v3473
        %v4060 = vunpack.c.l.b16 %v3474
        %v4061 = vunpack.c.l.b16 %v3475
        %v4062 = vunpack.c.l.b16 %v3476
        %v4063 = vpack.c.b16 %v4032, %v4031
        %v4064 = vpack.c.b16 %v4034, %v4033
        %v4065 = vpack.c.b16 %v4036, %v4035
        %v4066 = vpack.c.b16 %v4038, %v4037
        %v4067 = vpack.c.b16 %v4040, %v4039
        %v4068 = vpack.c.b16 %v4042, %v4041
        %v4069 = vpack.c.b16 %v4044, %v4043
        %v4070 = vpack.c.b16 %v4046, %v4045
        %v4071 = vpack.c.b16 %v4048, %v4047
        %v4072 = vpack.c.b16 %v4050, %v4049
        %v4073 = vpack.c.b16 %v4052, %v4051
        %v4074 = vpack.c.b16 %v4054, %v4053
        %v4075 = vpack.c.b16 %v4056, %v4055
        %v4076 = vpack.c.b16 %v4058, %v4057
        %v4077 = vpack.c.b16 %v4060, %v4059
        %v4078 = vpack.c.b16 %v4062, %v4061
        %4095 = vmatprep.subr.bf16.mxu0 0
        %4096 = vmatpush1.bf16.msra.mxu0 %v4063
        %4097 = vmatprep.subr.bf16.mxu0 0
        %4098 = vmatpush1.bf16.msra.mxu0 %v4064
        %4099 = vmatprep.subr.bf16.mxu0 0
        %4100 = vmatpush1.bf16.msra.mxu0 %v4065
        %4101 = vmatprep.subr.bf16.mxu0 0
        %4102 = vmatpush1.bf16.msra.mxu0 %v4066
        %4103 = vmatprep.subr.bf16.mxu0 0
        %4104 = vmatpush1.bf16.msra.mxu0 %v4067
        %4105 = vmatprep.subr.bf16.mxu0 0
        %4106 = vmatpush1.bf16.msra.mxu0 %v4068
        %4107 = vmatprep.subr.bf16.mxu0 0
        %4108 = vmatpush1.bf16.msra.mxu0 %v4069
        %4109 = vmatprep.subr.bf16.mxu0 0
        %4110 = vmatpush1.bf16.msra.mxu0 %v4070
        %4111 = vmatprep.subr.bf16.mxu0 0
        %4112 = vmatpush1.bf16.msra.mxu0 %v4071
        %4113 = vmatprep.subr.bf16.mxu0 0
        %4114 = vmatpush1.bf16.msra.mxu0 %v4072
        %4115 = vmatprep.subr.bf16.mxu0 0
        %4116 = vmatpush1.bf16.msra.mxu0 %v4073
        %4117 = vmatprep.subr.bf16.mxu0 0
        %4118 = vmatpush1.bf16.msra.mxu0 %v4074
        %4119 = vmatprep.subr.bf16.mxu0 0
        %4120 = vmatpush1.bf16.msra.mxu0 %v4075
        %4121 = vmatprep.subr.bf16.mxu0 0
        %4122 = vmatpush1.bf16.msra.mxu0 %v4076
        %4123 = vmatprep.subr.bf16.mxu0 0
        %4124 = vmatpush1.bf16.msra.mxu0 %v4077
        %4125 = vmatprep.subr.bf16.mxu0 0
        %4126 = vmatpush1.bf16.msra.mxu0 %v4078
        %4127 = vmatprep.mubr.bf16.mxu0 %v3952
        %4128 = vmatmul.mubr.bf16.gmra.mrb[0].mxu0 %v3951
        %v4129 = vpop.f32.mrb[0].mxu0
        %v4130 = vadd.f32 %v3785, %v4129
        %v4131 = vpop.f32.mrb[0].mxu0
        %v4132 = vpop.f32.mrb[0].mxu0
        %v4133 = vadd.f32 %v3788, %v4132
        %v4134 = vpop.f32.mrb[0].mxu0
        %4135 = vmatprep.mubr.bf16.mxu0 %v3954
        %4136 = vmatmul.mubr.bf16.gmra.mrb[0].mxu0 %v3953
        %v4137 = vpop.f32.mrb[0].mxu0
        %v4138 = vadd.f32 %v3793, %v4137
        %v4139 = vpop.f32.mrb[0].mxu0
        %v4140 = vpop.f32.mrb[0].mxu0
        %v4141 = vadd.f32 %v3796, %v4140
        %v4142 = vpop.f32.mrb[0].mxu0
        %4143 = vmatprep.mubr.bf16.mxu0 %v3956
        %4144 = vmatmul.mubr.bf16.gmra.mrb[0].mxu0 %v3955
        %v4145 = vpop.f32.mrb[0].mxu0
        %v4146 = vadd.f32 %v3801, %v4145
        %v4147 = vpop.f32.mrb[0].mxu0
        %v4148 = vpop.f32.mrb[0].mxu0
        %v4149 = vadd.f32 %v3804, %v4148
        %v4150 = vpop.f32.mrb[0].mxu0
        %4151 = vmatprep.mubr.bf16.mxu0 %v3958
        %4152 = vmatmul.mubr.bf16.gmra.mrb[0].mxu0 %v3957
        %v4153 = vpop.f32.mrb[0].mxu0
        %v4154 = vadd.f32 %v3809, %v4153
        %v4155 = vpop.f32.mrb[0].mxu0
        %v4156 = vpop.f32.mrb[0].mxu0
        %v4157 = vadd.f32 %v3812, %v4156
        %v4158 = vpop.f32.mrb[0].mxu0
        %4159 = vmatprep.mubr.bf16.mxu0 %v3960
        %4160 = vmatmul.mubr.bf16.gmra.mrb[0].mxu0 %v3959
        %v4161 = vpop.f32.mrb[0].mxu0
        %v4162 = vadd.f32 %v3817, %v4161
        %v4163 = vpop.f32.mrb[0].mxu0
        %v4164 = vpop.f32.mrb[0].mxu0
        %v4165 = vadd.f32 %v3820, %v4164
        %v4166 = vpop.f32.mrb[0].mxu0
        %4167 = vmatprep.mubr.bf16.mxu0 %v3962
        %4168 = vmatmul.mubr.bf16.gmra.mrb[0].mxu0 %v3961
        %v4169 = vpop.f32.mrb[0].mxu0
        %v4170 = vadd.f32 %v3825, %v4169
        %v4171 = vpop.f32.mrb[0].mxu0
        %v4172 = vpop.f32.mrb[0].mxu0
        %v4173 = vadd.f32 %v3828, %v4172
        %v4174 = vpop.f32.mrb[0].mxu0
        %4175 = vmatprep.mubr.bf16.mxu0 %v3964
        %4176 = vmatmul.mubr.bf16.gmra.mrb[0].mxu0 %v3963
        %v4177 = vpop.f32.mrb[0].mxu0
        %v4178 = vadd.f32 %v3833, %v4177
        %v4179 = vpop.f32.mrb[0].mxu0
        %v4180 = vpop.f32.mrb[0].mxu0
        %v4181 = vadd.f32 %v3836, %v4180
        %v4182 = vpop.f32.mrb[0].mxu0
        %4183 = vmatprep.mubr.bf16.mxu0 %v3966
        %4184 = vmatmul.mubr.bf16.gmra.mrb[0].mxu0 %v3965
        %v4185 = vpop.f32.mrb[0].mxu0
        %v4186 = vadd.f32 %v3841, %v4185
        %v4187 = vpop.f32.mrb[0].mxu0
        %v4188 = vpop.f32.mrb[0].mxu0
        %v4189 = vadd.f32 %v3844, %v4188
        %v4190 = vpop.f32.mrb[0].mxu0
        %4191 = vmatprep.mubr.bf16.mxu0 %v3968
        %4192 = vmatmul.mubr.bf16.gmra.mrb[0].mxu0 %v3967
        %v4193 = vpop.f32.mrb[0].mxu0
        %v4194 = vadd.f32 %v3849, %v4193
        %v4195 = vpop.f32.mrb[0].mxu0
        %v4196 = vpop.f32.mrb[0].mxu0
        %v4197 = vadd.f32 %v3852, %v4196
        %v4198 = vpop.f32.mrb[0].mxu0
        %4199 = vmatprep.mubr.bf16.mxu0 %v3970
        %4200 = vmatmul.mubr.bf16.gmra.mrb[0].mxu0 %v3969
        %v4201 = vpop.f32.mrb[0].mxu0
        %v4202 = vadd.f32 %v3857, %v4201
        %v4203 = vpop.f32.mrb[0].mxu0
        %v4204 = vpop.f32.mrb[0].mxu0
        %v4205 = vadd.f32 %v3860, %v4204
        %v4206 = vpop.f32.mrb[0].mxu0
        %4207 = vmatprep.mubr.bf16.mxu0 %v3972
        %4208 = vmatmul.mubr.bf16.gmra.mrb[0].mxu0 %v3971
        %v4209 = vpop.f32.mrb[0].mxu0
        %v4210 = vadd.f32 %v3865, %v4209
        %v4211 = vpop.f32.mrb[0].mxu0
        %v4212 = vpop.f32.mrb[0].mxu0
        %v4213 = vadd.f32 %v3868, %v4212
        %v4214 = vpop.f32.mrb[0].mxu0
        %4215 = vmatprep.mubr.bf16.mxu0 %v3974
        %4216 = vmatmul.mubr.bf16.gmra.mrb[0].mxu0 %v3973
        %v4217 = vpop.f32.mrb[0].mxu0
        %v4218 = vadd.f32 %v3873, %v4217
        %v4219 = vpop.f32.mrb[0].mxu0
        %v4220 = vpop.f32.mrb[0].mxu0
        %v4221 = vadd.f32 %v3876, %v4220
        %v4222 = vpop.f32.mrb[0].mxu0
        %4223 = vdwg.mxu0
        %v4224 = vadd.f32 %v4130, %v213
        %v4225 = vadd.f32 %v4133, %v213
        %v4226 = vadd.f32 %v4138, %v213
        %v4227 = vadd.f32 %v4141, %v213
        %v4228 = vadd.f32 %v4146, %v213
        %v4229 = vadd.f32 %v4149, %v213
        %v4230 = vadd.f32 %v4154, %v213
        %v4231 = vadd.f32 %v4157, %v213
        %v4232 = vadd.f32 %v4162, %v213
        %v4233 = vadd.f32 %v4165, %v213
        %v4234 = vadd.f32 %v4170, %v213
        %v4235 = vadd.f32 %v4173, %v213
        %v4236 = vadd.f32 %v4178, %v213
        %v4237 = vadd.f32 %v4181, %v213
        %v4238 = vadd.f32 %v4186, %v213
        %v4239 = vadd.f32 %v4189, %v213
        %v4240 = vadd.f32 %v4194, %v213
        %v4241 = vadd.f32 %v4197, %v213
        %v4242 = vadd.f32 %v4202, %v213
        %v4243 = vadd.f32 %v4205, %v213
        %v4244 = vadd.f32 %v4210, %v213
        %v4245 = vadd.f32 %v4213, %v213
        %v4246 = vadd.f32 %v4218, %v213
        %v4247 = vadd.f32 %v4221, %v213
        %v4248 = vmul.f32 %v4224, 0.5
        %v4249 = vmul.f32 %v4225, 0.5
        %v4250 = vmul.f32 %v4226, 0.5
        %v4251 = vmul.f32 %v4227, 0.5
        %v4252 = vmul.f32 %v4228, 0.5
        %v4253 = vmul.f32 %v4229, 0.5
        %v4254 = vmul.f32 %v4230, 0.5
        %v4255 = vmul.f32 %v4231, 0.5
        %v4256 = vmul.f32 %v4232, 0.5
        %v4257 = vmul.f32 %v4233, 0.5
        %v4258 = vmul.f32 %v4234, 0.5
        %v4259 = vmul.f32 %v4235, 0.5
        %v4260 = vmul.f32 %v4236, 0.5
        %v4261 = vmul.f32 %v4237, 0.5
        %v4262 = vmul.f32 %v4238, 0.5
        %v4263 = vmul.f32 %v4239, 0.5
        %v4264 = vmul.f32 %v4240, 0.5
        %v4265 = vmul.f32 %v4241, 0.5
        %v4266 = vmul.f32 %v4242, 0.5
        %v4267 = vmul.f32 %v4243, 0.5
        %v4268 = vmul.f32 %v4244, 0.5
        %v4269 = vmul.f32 %v4245, 0.5
        %v4270 = vmul.f32 %v4246, 0.5
        %v4271 = vmul.f32 %v4247, 0.5
        %v4272 = vtanh.pop %v4248
        %v4273 = vtanh.pop %v4249
        %v4274 = vtanh.pop %v4250
        %v4275 = vtanh.pop %v4251
        %v4276 = vtanh.pop %v4252
        %v4277 = vtanh.pop %v4253
        %v4278 = vtanh.pop %v4254
        %v4279 = vtanh.pop %v4255
        %v4280 = vtanh.pop %v4256
        %v4281 = vtanh.pop %v4257
        %v4282 = vtanh.pop %v4258
        %v4283 = vtanh.pop %v4259
        %v4284 = vtanh.pop %v4260
        %v4285 = vtanh.pop %v4261
        %v4286 = vtanh.pop %v4262
        %v4287 = vtanh.pop %v4263
        %v4288 = vtanh.pop %v4264
        %v4289 = vtanh.pop %v4265
        %v4290 = vtanh.pop %v4266
        %v4291 = vtanh.pop %v4267
        %v4292 = vtanh.pop %v4268
        %v4293 = vtanh.pop %v4269
        %v4294 = vtanh.pop %v4270
        %v4295 = vtanh.pop %v4271
        %v4296 = vmul.f32 %v4272, 0.5
        %v4297 = vmul.f32 %v4273, 0.5
        %v4298 = vmul.f32 %v4274, 0.5
        %v4299 = vmul.f32 %v4275, 0.5
        %v4300 = vmul.f32 %v4276, 0.5
        %v4301 = vmul.f32 %v4277, 0.5
        %v4302 = vmul.f32 %v4278, 0.5
        %v4303 = vmul.f32 %v4279, 0.5
        %v4304 = vmul.f32 %v4280, 0.5
        %v4305 = vmul.f32 %v4281, 0.5
        %v4306 = vmul.f32 %v4282, 0.5
        %v4307 = vmul.f32 %v4283, 0.5
        %v4308 = vmul.f32 %v4284, 0.5
        %v4309 = vmul.f32 %v4285, 0.5
        %v4310 = vmul.f32 %v4286, 0.5
        %v4311 = vmul.f32 %v4287, 0.5
        %v4312 = vmul.f32 %v4288, 0.5
        %v4313 = vmul.f32 %v4289, 0.5
        %v4314 = vmul.f32 %v4290, 0.5
        %v4315 = vmul.f32 %v4291, 0.5
        %v4316 = vmul.f32 %v4292, 0.5
        %v4317 = vmul.f32 %v4293, 0.5
        %v4318 = vmul.f32 %v4294, 0.5
        %v4319 = vmul.f32 %v4295, 0.5
        %v4320 = vadd.f32 %v4296, 0.5
        %v4321 = vadd.f32 %v4297, 0.5
        %v4322 = vadd.f32 %v4298, 0.5
        %v4323 = vadd.f32 %v4299, 0.5
        %v4324 = vadd.f32 %v4300, 0.5
        %v4325 = vadd.f32 %v4301, 0.5
        %v4326 = vadd.f32 %v4302, 0.5
        %v4327 = vadd.f32 %v4303, 0.5
        %v4328 = vadd.f32 %v4304, 0.5
        %v4329 = vadd.f32 %v4305, 0.5
        %v4330 = vadd.f32 %v4306, 0.5
        %v4331 = vadd.f32 %v4307, 0.5
        %v4332 = vadd.f32 %v4308, 0.5
        %v4333 = vadd.f32 %v4309, 0.5
        %v4334 = vadd.f32 %v4310, 0.5
        %v4335 = vadd.f32 %v4311, 0.5
        %v4336 = vadd.f32 %v4312, 0.5
        %v4337 = vadd.f32 %v4313, 0.5
        %v4338 = vadd.f32 %v4314, 0.5
        %v4339 = vadd.f32 %v4315, 0.5
        %v4340 = vadd.f32 %v4316, 0.5
        %v4341 = vadd.f32 %v4317, 0.5
        %v4342 = vadd.f32 %v4318, 0.5
        %v4343 = vadd.f32 %v4319, 0.5
        %v4344 = vmul.f32 %v4224, %v4320
        %v4345 = vmul.f32 %v4225, %v4321
        %v4346 = vmul.f32 %v4226, %v4322
        %v4347 = vmul.f32 %v4227, %v4323
        %v4348 = vmul.f32 %v4228, %v4324
        %v4349 = vmul.f32 %v4229, %v4325
        %v4350 = vmul.f32 %v4230, %v4326
        %v4351 = vmul.f32 %v4231, %v4327
        %v4352 = vmul.f32 %v4232, %v4328
        %v4353 = vmul.f32 %v4233, %v4329
        %v4354 = vmul.f32 %v4234, %v4330
        %v4355 = vmul.f32 %v4235, %v4331
        %v4356 = vmul.f32 %v4236, %v4332
        %v4357 = vmul.f32 %v4237, %v4333
        %v4358 = vmul.f32 %v4238, %v4334
        %v4359 = vmul.f32 %v4239, %v4335
        %v4360 = vmul.f32 %v4240, %v4336
        %v4361 = vmul.f32 %v4241, %v4337
        %v4362 = vmul.f32 %v4242, %v4338
        %v4363 = vmul.f32 %v4243, %v4339
        %v4364 = vmul.f32 %v4244, %v4340
        %v4365 = vmul.f32 %v4245, %v4341
        %v4366 = vmul.f32 %v4246, %v4342
        %v4367 = vmul.f32 %v4247, %v4343
        %v4368 = vpack.c.bf16 %v4345, %v4344
        %v4369 = vpack.c.bf16 %v4347, %v4346
        %v4370 = vpack.c.bf16 %v4349, %v4348
        %v4371 = vpack.c.bf16 %v4351, %v4350
        %v4372 = vpack.c.bf16 %v4353, %v4352
        %v4373 = vpack.c.bf16 %v4355, %v4354
        %v4374 = vpack.c.bf16 %v4357, %v4356
        %v4375 = vpack.c.bf16 %v4359, %v4358
        %v4376 = vpack.c.bf16 %v4361, %v4360
        %v4377 = vpack.c.bf16 %v4363, %v4362
        %v4378 = vpack.c.bf16 %v4365, %v4364
        %v4379 = vpack.c.bf16 %v4367, %v4366
        %v4392 = vunpack.c.l.b16 %v4368
        %v4393 = vunpack.c.h.b16 %v4368
        %v4394 = vunpack.c.l.b16 %v4369
        %v4395 = vunpack.c.h.b16 %v4369
        %v4396 = vunpack.c.l.b16 %v4370
        %v4397 = vunpack.c.h.b16 %v4370
        %v4398 = vunpack.c.l.b16 %v4371
        %v4399 = vunpack.c.h.b16 %v4371
        %v4400 = vunpack.c.l.b16 %v4372
        %v4401 = vunpack.c.h.b16 %v4372
        %v4402 = vunpack.c.l.b16 %v4373
        %v4403 = vunpack.c.h.b16 %v4373
        %v4404 = vunpack.c.l.b16 %v4374
        %v4405 = vunpack.c.h.b16 %v4374
        %v4406 = vunpack.c.l.b16 %v4375
        %v4407 = vunpack.c.h.b16 %v4375
        %v4408 = vunpack.c.l.b16 %v4376
        %v4409 = vunpack.c.h.b16 %v4376
        %v4410 = vunpack.c.l.b16 %v4377
        %v4411 = vunpack.c.h.b16 %v4377
        %v4412 = vunpack.c.l.b16 %v4378
        %v4413 = vunpack.c.h.b16 %v4378
        %v4414 = vunpack.c.l.b16 %v4379
        %v4415 = vunpack.c.h.b16 %v4379
        %v4416 = vpack.c.b16 %v4392, %v4392
        %v4417 = vpack.c.b16 %v4393, %v4393
        %v4418 = vpack.c.b16 %v4394, %v4394
        %v4419 = vpack.c.b16 %v4395, %v4395
        %v4420 = vpack.c.b16 %v4396, %v4396
        %v4421 = vpack.c.b16 %v4397, %v4397
        %v4422 = vpack.c.b16 %v4398, %v4398
        %v4423 = vpack.c.b16 %v4399, %v4399
        %v4424 = vpack.c.b16 %v4400, %v4400
        %v4425 = vpack.c.b16 %v4401, %v4401
        %v4426 = vpack.c.b16 %v4402, %v4402
        %v4427 = vpack.c.b16 %v4403, %v4403
        %v4428 = vpack.c.b16 %v4404, %v4404
        %v4429 = vpack.c.b16 %v4405, %v4405
        %v4430 = vpack.c.b16 %v4406, %v4406
        %v4431 = vpack.c.b16 %v4407, %v4407
        %v4432 = vpack.c.b16 %v4408, %v4408
        %v4433 = vpack.c.b16 %v4409, %v4409
        %v4434 = vpack.c.b16 %v4410, %v4410
        %v4435 = vpack.c.b16 %v4411, %v4411
        %v4436 = vpack.c.b16 %v4412, %v4412
        %v4437 = vpack.c.b16 %v4413, %v4413
        %v4438 = vpack.c.b16 %v4414, %v4414
        %v4439 = vpack.c.b16 %v4415, %v4415
        %s4464 = scalar_lea.vmem %s204, 288 [#allocation7]
        %4465 = vst [vmem:[%s4464] sm:$0xf] %v4416
        %4466 = vst [vmem:[%s4464 + $0x4] sm:$0xf] %v4417
        %4467 = vst [vmem:[%s4464 + $0x8] sm:$0xf] %v4418
        %4468 = vst [vmem:[%s4464 + $0xc] sm:$0xf] %v4419
        %4469 = vst [vmem:[%s4464 + $0x10] sm:$0xf] %v4420
        %4470 = vst [vmem:[%s4464 + $0x14] sm:$0xf] %v4421
        %4471 = vst [vmem:[%s4464 + $0x18] sm:$0xf] %v4422
        %4472 = vst [vmem:[%s4464 + $0x1c] sm:$0xf] %v4423
        %4473 = vst [vmem:[%s4464 + $0x20] sm:$0xf] %v4424
        %4474 = vst [vmem:[%s4464 + $0x24] sm:$0xf] %v4425
        %4475 = vst [vmem:[%s4464 + $0x28] sm:$0xf] %v4426
        %4476 = vst [vmem:[%s4464 + $0x2c] sm:$0xf] %v4427
        %4477 = vst [vmem:[%s4464 + $0x30] sm:$0xf] %v4428
        %4478 = vst [vmem:[%s4464 + $0x34] sm:$0xf] %v4429
        %4479 = vst [vmem:[%s4464 + $0x38] sm:$0xf] %v4430
        %4480 = vst [vmem:[%s4464 + $0x3c] sm:$0xf] %v4431
        %4481 = vst [vmem:[%s4464 + $0x40] sm:$0xf] %v4432
        %4482 = vst [vmem:[%s4464 + $0x44] sm:$0xf] %v4433
        %4483 = vst [vmem:[%s4464 + $0x48] sm:$0xf] %v4434
        %4484 = vst [vmem:[%s4464 + $0x4c] sm:$0xf] %v4435
        %4485 = vst [vmem:[%s4464 + $0x50] sm:$0xf] %v4436
        %4486 = vst [vmem:[%s4464 + $0x54] sm:$0xf] %v4437
        %4487 = vst [vmem:[%s4464 + $0x58] sm:$0xf] %v4438
        %4488 = vst [vmem:[%s4464 + $0x5c] sm:$0xf] %v4439
        %s4489 = sand.u32 %s97, 1
        %s4490 = scalar_lea.sflag [#allocation4], %s4489
        %s4491 = sand.u32 %s97, 1
        %s4492 = smul.addr %s4491, 384
        %s4493 = scalar_lea.vmem [#allocation7], %s4492
        // Predicated region
        $region41: #{tpu_custom_call.1} parent=31 // pred_check
          %p4494 = pneg %p107
        $region42: #{tpu_custom_call.1} parent=31 // pred_check_branch
          %4496 = sbr.rel (%p4494) target = $region44
        $region43: #{tpu_custom_call.1} parent=31 // pred_region
          #allocation9 [shape = 'u32[6]{0}', space=smem, size = 0x18, scoped, tag = 'DMA stride descriptor']
          %s4497 = smul.u32 24, %s21
          %s4499 = ssub.s32 6144, 6144
          %4500 = vsyncadd %s4490, %s4499
          %s4501 = smul.addr %s4497, 64
          %s4502 = scalar_lea.hbm %s3, %s4501
          %s4504 = sshll.u32 1, 14
          %s4505 = sxor.u32 4294967295, %s4504
          %s4508 = sshll.u32 7, 18
          %s4509 = sxor.u32 4294967295, %s4508
          %s4510 = sand.u32 0, %s4509
          %s4512 = sor.u32 %s4510, 0
          %s4514 = sshll.u32 3, 24
          %s4515 = sxor.u32 4294967295, %s4514
          %s4516 = sand.u32 %s4512, %s4515
          %s4518 = sor.u32 %s4516, 0
          %s4519 = sshll.u32 %s4493, 4
          %s4520 = int_to_ptr.vmem [resolvable:$true] %s4519
          %4526 = sst [smem:[#allocation9]] 1536
          %s4527 = scalar_lea.smem [#allocation9], 1
          %4528 = sst [smem:[%s4527]] 3072
          %s4529 = scalar_lea.smem [#allocation9], 2
          %4530 = sst [smem:[%s4529]] 24
          %s4531 = scalar_lea.smem [#allocation9], 3
          %4532 = sst [smem:[%s4531]] 64
          %s4533 = scalar_lea.smem [#allocation9], 4
          %4534 = sst [smem:[%s4533]] 64
          %s4535 = scalar_lea.smem [#allocation9], 5
          %4536 = sst [smem:[%s4535]] 4
          %4538 = dma.general %s4520, 6144, %s4502, %s4490, [#allocation8], [#allocation9], %s4518, 0
        $region44: #{tpu_custom_call.1} parent=31 // pred_fallthru
          _
      $region32: #{tpu_custom_call.1} parent=5 // pred_fallthru
        _
      %p4539 = scmp.le.s32.totalorder 2, %s16
      // Predicated region
      $region45: #{tpu_custom_call.1} parent=5 // pred_check
        %p4540 = pneg %p4539
      $region46: #{tpu_custom_call.1} parent=5 // pred_check_branch
        %4542 = sbr.rel (%p4540) target = $region48
      $region47: #{tpu_custom_call.1} parent=5 // pred_region
        %s4543 = ssub.s32 %s16, 2
        // Predicated region
        $region49: #{tpu_custom_call.1} parent=47 // pred_check
          %p4544 = pneg %p113
        $region50: #{tpu_custom_call.1} parent=47 // pred_check_branch
          %4546 = sbr.rel (%p4544) target = $region52
        $region51: #{tpu_custom_call.1} parent=47 // pred_region
          %s4547 = sand.u32 %s98, 1
          %s4548 = scalar_lea.sflag [#allocation4], %s4547
          %s4549 = sand.u32 %s98, 1
          %s4550 = smul.addr %s4549, 384
          %s4551 = scalar_lea.vmem [#allocation7], %s4550
          %4552 = dma.done %s4548, 6144
        $region52: #{tpu_custom_call.1} parent=47 // pred_fallthru
          _
      $region48: #{tpu_custom_call.1} parent=5 // pred_fallthru
        _
    $region6: #{tpu_custom_call.1} parent=1 // loop_footer
      %s20 = sadd.s32 1, %s16
    $region7: #{tpu_custom_call.1} parent=1 // loop_footer_branch
      %15 = sbr.rel target = $region3
    $region8: #{tpu_custom_call.1} parent=1 // loop_exit
      _
    %4553 = vsyncpa [#allocation3], 1
    %s4554 = scalar_lea.sflag [#allocation3], 1
    %4555 = vsyncpa %s4554, 1
    %4556 = vsyncpa [#allocation6], 1
    %4557 = vsyncpa [#allocation4], 1
    %s4558 = scalar_lea.sflag [#allocation4], 1
    %4559 = vsyncpa %s4558, 1

// kernel: tpu_custom_call.1
$region0: #{tpu_custom_call.1}
  #allocation0 [shape = 'u32[]', space=smem, size = 0x4, offset = 0x4, fixed_abs, tag = 'smem constant byte address 0x4 - core index']
  #allocation1 [shape = 'u32[144,128]{1,0:T(1,128)}', space=vmem, size = 0x12000, scoped, tag = 'internal scratch']
  #allocation8 [shape = 's32[]', space=sflag, size = 0x4, offset = 0, fixed_abs, tag = 'sflag constant byte address 0x0 - dummy sync flag']
  %s0 = inlined_call_operand.hbm [shape: bf16[384,1152], index: 0, kind: input, shape index: {}]
  %s1 = inlined_call_operand.hbm [shape: bf16[4,2,256,128], index: 1, kind: input, shape index: {}]
  %s2 = inlined_call_operand.vmem [shape: f32[1,128], index: 2, kind: input, shape index: {}]
  %s3 = inlined_call_operand.hbm [shape: bf16[4,384,128], index: 3, kind: output, shape index: {}]
  %s4 = sld [smem:[#allocation0]]
  $region53: #{tpu_custom_call.1} parent=0
    _
  %s6 = ssub.s32 1, %s4
  %s7 = scalar_select 0, %s6, %s4
  $region1: #{tpu_custom_call.1} parent=0
    #allocation2 [shape = 'u8[884736]{0}', space=vmem, size = 0xd8000, scoped, tag = 'input window, operand 0']
    #allocation3 [shape = 's32[2]{0}', space=sflag, size = 0x8, scoped, tag = 'scoped memory for tpu_custom_call.1']
    #allocation4 [shape = 's32[2]{0}', space=sflag, size = 0x8, scoped, tag = 'scoped memory for tpu_custom_call.1']
    #allocation5 [shape = 'u8[524288]{0}', space=vmem, size = 0x80000, scoped, tag = 'input window, operand 1, single buffered']
    #allocation6 [shape = 's32[1]{0}', space=sflag, size = 0x4, scoped, tag = 'scoped memory for tpu_custom_call.1']
    #allocation7 [shape = 'u8[393216]{0}', space=vmem, size = 0x60000, scoped, tag = 'output window, operand 0']
    %8 = vsyncpa [#allocation3], 0
    %s9 = scalar_lea.sflag [#allocation3], 1
    %10 = vsyncpa %s9, 0
    %11 = vsyncpa [#allocation6], 0
    %12 = vsyncpa [#allocation4], 0
    %s13 = scalar_lea.sflag [#allocation4], 1
    %14 = vsyncpa %s13, 0
    loop: start=0, step=1, limit=4
    $region2: #{tpu_custom_call.1} parent=1 // loop_pre_header
      _
    $region3: #{tpu_custom_call.1} parent=1 // loop_header
      %s16 = sphi 0, %s20
      %p17 = scmp.ge.s32.totalorder %s16, 4
      %s26 = sphi 0, %s28
      %s29 = sphi 0, %s26
      %s30 = sphi 0, %s29
      %s46 = sphi 0, %s30
      %s50 = sphi 0, %s50
      %s52 = sphi 0, %s50
      %s53 = sphi 0, %s52
      %s67 = sphi 0, %s53
      %s71 = sphi 0, %s71
      %s73 = sphi 0, %s71
      %s74 = sphi 0, %s73
      %s88 = sphi 0, %s74
      %s94 = sphi 0, %s96
      %s97 = sphi 0, %s94
      %s98 = sphi 0, %s97
      %s114 = sphi 0, %s98
    $region4: #{tpu_custom_call.1} parent=1 // loop_header_branch
      %19 = sbr.rel (%p17) target = $region8
    $region5: #{tpu_custom_call.1} parent=1 // loop_body
      %s21 = ssub.s32 %s16, 1
      %s22 = ssub.s32 %s16, 2
      %s23 = sadd.s32 %s16, 1
      %s24 = ssub.s32 %s16, %s23
      %p25 = scmp.eq.s32.totalorder %s24, 0
      %s27 = sadd.s32 %s26, 1
      %s28 = scalar_select %p25, %s26, %s27
      %p31 = pneg %p25
      %p32 = scmp.eq.s32.totalorder %s16, 1
      %p33 = por %p31, %p32
      %p34 = scmp.ne.s32.totalorder %s26, %s29
      %p35 = scmp.eq.s32.totalorder %s16, 0
      %p36 = por %p34, %p35
      %p37 = scmp.ne.s32.totalorder %s26, %s29
      %p38 = scmp.eq.s32.totalorder %s21, 1
      %p39 = por %p37, %p38
      %p40 = scmp.ne.s32.totalorder %s29, %s30
      %p41 = scmp.eq.s32.totalorder %s21, 0
      %p42 = por %p40, %p41
      %p43 = scmp.ne.s32.totalorder %s29, %s30
      %p44 = scmp.eq.s32.totalorder %s22, 1
      %p45 = por %p43, %p44
      %p47 = scmp.ne.s32.totalorder %s30, %s46
      %p48 = scmp.eq.s32.totalorder %s22, 0
      %p49 = por %p47, %p48
      %s51 = sadd.s32 %s50, 1
      %p54 = scmp.eq.s32.totalorder %s16, 1
      %p55 = scmp.ne.s32.totalorder %s50, %s52
      %p56 = scmp.eq.s32.totalorder %s16, 0
      %p57 = por %p55, %p56
      %p58 = scmp.ne.s32.totalorder %s50, %s52
      %p59 = scmp.eq.s32.totalorder %s21, 1
      %p60 = por %p58, %p59
      %p61 = scmp.ne.s32.totalorder %s52, %s53
      %p62 = scmp.eq.s32.totalorder %s21, 0
      %p63 = por %p61, %p62
      %p64 = scmp.ne.s32.totalorder %s52, %s53
      %p65 = scmp.eq.s32.totalorder %s22, 1
      %p66 = por %p64, %p65
      %p68 = scmp.ne.s32.totalorder %s53, %s67
      %p69 = scmp.eq.s32.totalorder %s22, 0
      %p70 = por %p68, %p69
      %s72 = sadd.s32 %s71, 1
      %p75 = scmp.eq.s32.totalorder %s16, 1
      %p76 = scmp.ne.s32.totalorder %s71, %s73
      %p77 = scmp.eq.s32.totalorder %s16, 0
      %p78 = por %p76, %p77
      %p79 = scmp.ne.s32.totalorder %s71, %s73
      %p80 = scmp.eq.s32.totalorder %s21, 1
      %p81 = por %p79, %p80
      %p82 = scmp.ne.s32.totalorder %s73, %s74
      %p83 = scmp.eq.s32.totalorder %s21, 0
      %p84 = por %p82, %p83
      %p85 = scmp.ne.s32.totalorder %s73, %s74
      %p86 = scmp.eq.s32.totalorder %s22, 1
      %p87 = por %p85, %p86
      %p89 = scmp.ne.s32.totalorder %s74, %s88
      %p90 = scmp.eq.s32.totalorder %s22, 0
      %p91 = por %p89, %p90
      %s92 = ssub.s32 %s16, %s23
      %p93 = scmp.eq.s32.totalorder %s92, 0
      %s95 = sadd.s32 %s94, 1
      %s96 = scalar_select %p93, %s94, %s95
      %p99 = pneg %p93
      %p100 = scmp.eq.s32.totalorder %s16, 1
      %p101 = por %p99, %p100
      %p102 = scmp.ne.s32.totalorder %s94, %s97
      %p103 = scmp.eq.s32.totalorder %s16, 0
      %p104 = por %p102, %p103
      %p105 = scmp.ne.s32.totalorder %s94, %s97
      %p106 = scmp.eq.s32.totalorder %s21, 1
      %p107 = por %p105, %p106
      %p108 = scmp.ne.s32.totalorder %s97, %s98
      %p109 = scmp.eq.s32.totalorder %s21, 0
      %p110 = por %p108, %p109
      %p111 = scmp.ne.s32.totalorder %s97, %s98
      %p112 = scmp.eq.s32.totalorder %s22, 1
      %p113 = por %p111, %p112
      %p115 = scmp.ne.s32.totalorder %s98, %s114
      %p116 = scmp.eq.s32.totalorder %s22, 0
      %p117 = por %p115, %p116
      %p118 = scmp.le.s32.totalorder 1, %s16
      %p119 = scmp.lt.s32.totalorder %s16, 3
      %p120 = pnand %p118, %p119
      %p121 = pneg %p120
      // Predicated region
      $region9: #{tpu_custom_call.1} parent=5 // pred_check
        _
      $region10: #{tpu_custom_call.1} parent=5 // pred_check_branch
        %123 = sbr.rel (%p120) target = $region12
      $region11: #{tpu_custom_call.1} parent=5 // pred_region
        %s124 = ssub.s32 %s16, 1
        // Predicated region
        $region13: #{tpu_custom_call.1} parent=11 // pred_check
          %p125 = pneg %p63
        $region14: #{tpu_custom_call.1} parent=11 // pred_check_branch
          %127 = sbr.rel (%p125) target = $region16
        $region15: #{tpu_custom_call.1} parent=11 // pred_region
          %s129 = ssub.s32 16384, 16384
          %130 = vsyncadd [#allocation6], %s129
          %s131 = sshll.u32 [#allocation5], 4
          %s132 = int_to_ptr.vmem [resolvable:$true] %s131
          %137 = dma.hbm_to_vmem [thread:$0]  %s1, 16384, %s132, [#allocation6], 64, 64, 4
        $region16: #{tpu_custom_call.1} parent=11 // pred_fallthru
          _
        // Predicated region
        $region17: #{tpu_custom_call.1} parent=11 // pred_check
          %p138 = pneg %p84
        $region18: #{tpu_custom_call.1} parent=11 // pred_check_branch
          %140 = sbr.rel (%p138) target = $region20
        $region19: #{tpu_custom_call.1} parent=11 // pred_region
          _
        $region20: #{tpu_custom_call.1} parent=11 // pred_fallthru
          _
      $region12: #{tpu_custom_call.1} parent=5 // pred_fallthru
        _
      %p141 = scmp.lt.s32.totalorder %s16, 2
      // Predicated region
      $region21: #{tpu_custom_call.1} parent=5 // pred_check
        %p142 = pneg %p141
      $region22: #{tpu_custom_call.1} parent=5 // pred_check_branch
        %144 = sbr.rel (%p142) target = $region24
      $region23: #{tpu_custom_call.1} parent=5 // pred_region
        // Predicated region
        $region25: #{tpu_custom_call.1} parent=23 // pred_check
          %p145 = pneg %p36
        $region26: #{tpu_custom_call.1} parent=23 // pred_check_branch
          %147 = sbr.rel (%p145) target = $region28
        $region27: #{tpu_custom_call.1} parent=23 // pred_region
          %s148 = sand.u32 %s26, 1
          %s149 = scalar_lea.sflag [#allocation3], %s148
          %s150 = sand.u32 %s26, 1
          %s151 = smul.addr %s150, 864
          %s152 = scalar_lea.vmem [#allocation2], %s151
          %s153 = smul.u32 24, %s16
          %s155 = ssub.s32 13824, 13824
          %156 = vsyncadd %s149, %s155
          %s157 = smul.addr %s153, 9
          %s158 = smul.addr %s157, 64
          %s159 = scalar_lea.hbm %s0, %s158
          %s160 = sshll.u32 %s152, 4
          %s161 = int_to_ptr.vmem [resolvable:$true] %s160
          %166 = dma.hbm_to_vmem [thread:$0]  %s159, 13824, %s161, %s149, 576, 576, 36
        $region28: #{tpu_custom_call.1} parent=23 // pred_fallthru
          _
      $region24: #{tpu_custom_call.1} parent=5 // pred_fallthru
        _
      %p167 = scmp.le.s32.totalorder 1, %s16
      %p168 = scmp.lt.s32.totalorder %s16, 3
      %p169 = pnand %p167, %p168
      %p170 = pneg %p169
      // Predicated region
      $region29: #{tpu_custom_call.1} parent=5 // pred_check
        _
      $region30: #{tpu_custom_call.1} parent=5 // pred_check_branch
        %172 = sbr.rel (%p169) target = $region32
      $region31: #{tpu_custom_call.1} parent=5 // pred_region
        %s173 = ssub.s32 %s16, 1
        %s174 = sand.u32 %s29, 1
        %s175 = scalar_lea.sflag [#allocation3], %s174
        %s176 = sand.u32 %s29, 1
        %s177 = smul.addr %s176, 864
        %s178 = scalar_lea.vmem [#allocation2], %s177
        // Predicated region
        $region33: #{tpu_custom_call.1} parent=31 // pred_check
          %p179 = pneg %p42
        $region34: #{tpu_custom_call.1} parent=31 // pred_check_branch
          %181 = sbr.rel (%p179) target = $region36
        $region35: #{tpu_custom_call.1} parent=31 // pred_region
          %182 = dma.done %s175, 13824
        $region36: #{tpu_custom_call.1} parent=31 // pred_fallthru
          _
        // Predicated region
        $region37: #{tpu_custom_call.1} parent=31 // pred_check
          %p183 = pneg %p63
        $region38: #{tpu_custom_call.1} parent=31 // pred_check_branch
          %185 = sbr.rel (%p183) target = $region40
        $region39: #{tpu_custom_call.1} parent=31 // pred_region
          %186 = dma.done [#allocation6], 16384
        $region40: #{tpu_custom_call.1} parent=31 // pred_fallthru
          _
        %s187 = sand.u32 %s29, 1
        %s188 = scalar_lea.sflag [#allocation3], %s187
        %s189 = sand.u32 %s29, 1
        %s190 = smul.addr %s189, 864
        %s191 = scalar_lea.vmem [#allocation2], %s190
        %p192 = pneg %p42
        %p193 = pneg %p39
        %p194 = pneg %p63
        %p195 = pneg %p60
        %p196 = pneg %p84
        %p197 = pneg %p81
        %p198 = pneg %p110
        %p199 = pneg %p107
        %s200 = sand.u32 %s97, 1
        %s201 = scalar_lea.sflag [#allocation4], %s200
        %s202 = sand.u32 %s97, 1
        %s203 = smul.addr %s202, 384
        %s204 = scalar_lea.vmem [#allocation7], %s203
        %s205 = smul.u32 24, %s21
        %s206 = smul.u32 24, %s21
        %v208 = vld [vmem:[%s2] sm:$0x1]
        %v210 = vlaneseq
        %v211 = vshrl.u32 %v210, 7
        %v212 = vsub.s32 0, %v211
        %v213 = vrot.slane %v208, %v212
        %v215 = vld [vmem:[%s178] sm:$0xff]
        %v216 = vld [vmem:[%s178 + $0x24] sm:$0xff]
        %v217 = vld [vmem:[%s178 + $0x48] sm:$0xff]
        %v218 = vld [vmem:[%s178 + $0x6c] sm:$0xff]
        %v219 = vld [vmem:[%s178 + $0x90] sm:$0xff]
        %v220 = vld [vmem:[%s178 + $0xb4] sm:$0xff]
        %v221 = vld [vmem:[%s178 + $0xd8] sm:$0xff]
        %v222 = vld [vmem:[%s178 + $0xfc] sm:$0xff]
        %v223 = vld [vmem:[%s178 + $0x120] sm:$0xff]
        %v224 = vld [vmem:[%s178 + $0x144] sm:$0xff]
        %v225 = vld [vmem:[%s178 + $0x168] sm:$0xff]
        %v226 = vld [vmem:[%s178 + $0x18c] sm:$0xff]
        %v227 = vld [vmem:[%s178 + $0x1b0] sm:$0xff]
        %v228 = vld [vmem:[%s178 + $0x1d4] sm:$0xff]
        %v229 = vld [vmem:[%s178 + $0x1f8] sm:$0xff]
        %v230 = vld [vmem:[%s178 + $0x21c] sm:$0xff]
        %v231 = vld [vmem:[%s178 + $0x240] sm:$0xff]
        %v232 = vld [vmem:[%s178 + $0x264] sm:$0xff]
        %v233 = vld [vmem:[%s178 + $0x288] sm:$0xff]
        %v234 = vld [vmem:[%s178 + $0x2ac] sm:$0xff]
        %v235 = vld [vmem:[%s178 + $0x2d0] sm:$0xff]
        %v236 = vld [vmem:[%s178 + $0x2f4] sm:$0xff]
        %v237 = vld [vmem:[%s178 + $0x318] sm:$0xff]
        %v238 = vld [vmem:[%s178 + $0x33c] sm:$0xff]
        %v239 = vld [vmem:[#allocation5] sm:$0xf]
        %v240 = vld [vmem:[#allocation5 + $0x4] sm:$0xf]
        %v241 = vld [vmem:[#allocation5 + $0x8] sm:$0xf]
        %v242 = vld [vmem:[#allocation5 + $0xc] sm:$0xf]
        %v243 = vld [vmem:[#allocation5 + $0x10] sm:$0xf]
        %v244 = vld [vmem:[#allocation5 + $0x14] sm:$0xf]
        %v245 = vld [vmem:[#allocation5 + $0x18] sm:$0xf]
        %v246 = vld [vmem:[#allocation5 + $0x1c] sm:$0xf]
        %v247 = vld [vmem:[#allocation5 + $0x20] sm:$0xf]
        %v248 = vld [vmem:[#allocation5 + $0x24] sm:$0xf]
        %v249 = vld [vmem:[#allocation5 + $0x28] sm:$0xf]
        %v250 = vld [vmem:[#allocation5 + $0x2c] sm:$0xf]
        %v251 = vld [vmem:[#allocation5 + $0x30] sm:$0xf]
        %v252 = vld [vmem:[#allocation5 + $0x34] sm:$0xf]
        %v253 = vld [vmem:[#allocation5 + $0x38] sm:$0xf]
        %v254 = vld [vmem:[#allocation5 + $0x3c] sm:$0xf]
        %v255 = vld [vmem:[#allocation5 + $0x40] sm:$0xf]
        %v256 = vld [vmem:[#allocation5 + $0x44] sm:$0xf]
        %v257 = vld [vmem:[#allocation5 + $0x48] sm:$0xf]
        %v258 = vld [vmem:[#allocation5 + $0x4c] sm:$0xf]
        %v259 = vld [vmem:[#allocation5 + $0x50] sm:$0xf]
        %v260 = vld [vmem:[#allocation5 + $0x54] sm:$0xf]
        %v261 = vld [vmem:[#allocation5 + $0x58] sm:$0xf]
        %v262 = vld [vmem:[#allocation5 + $0x5c] sm:$0xf]
        %v263 = vld [vmem:[#allocation5 + $0x60] sm:$0xf]
        %v264 = vld [vmem:[#allocation5 + $0x64] sm:$0xf]
        %v265 = vld [vmem:[#allocation5 + $0x68] sm:$0xf]
        %v266 = vld [vmem:[#allocation5 + $0x6c] sm:$0xf]
        %v267 = vld [vmem:[#allocation5 + $0x70] sm:$0xf]
        %v268 = vld [vmem:[#allocation5 + $0x74] sm:$0xf]
        %v269 = vld [vmem:[#allocation5 + $0x78] sm:$0xf]
        %v270 = vld [vmem:[#allocation5 + $0x7c] sm:$0xf]
        %v271 = vld [vmem:[%s178 + $0xc] sm:$0xff]
        %v272 = vld [vmem:[%s178 + $0x30] sm:$0xff]
        %v273 = vld [vmem:[%s178 + $0x54] sm:$0xff]
        %v274 = vld [vmem:[%s178 + $0x78] sm:$0xff]
        %v275 = vld [vmem:[%s178 + $0x9c] sm:$0xff]
        %v276 = vld [vmem:[%s178 + $0xc0] sm:$0xff]
        %v277 = vld [vmem:[%s178 + $0xe4] sm:$0xff]
        %v278 = vld [vmem:[%s178 + $0x108] sm:$0xff]
        %v279 = vld [vmem:[%s178 + $0x12c] sm:$0xff]
        %v280 = vld [vmem:[%s178 + $0x150] sm:$0xff]
        %v281 = vld [vmem:[%s178 + $0x174] sm:$0xff]
        %v282 = vld [vmem:[%s178 + $0x198] sm:$0xff]
        %v283 = vld [vmem:[%s178 + $0x1bc] sm:$0xff]
        %v284 = vld [vmem:[%s178 + $0x1e0] sm:$0xff]
        %v285 = vld [vmem:[%s178 + $0x204] sm:$0xff]
        %v286 = vld [vmem:[%s178 + $0x228] sm:$0xff]
        %v287 = vld [vmem:[%s178 + $0x24c] sm:$0xff]
        %v288 = vld [vmem:[%s178 + $0x270] sm:$0xff]
        %v289 = vld [vmem:[%s178 + $0x294] sm:$0xff]
        %v290 = vld [vmem:[%s178 + $0x2b8] sm:$0xff]
        %v291 = vld [vmem:[%s178 + $0x2dc] sm:$0xff]
        %v292 = vld [vmem:[%s178 + $0x300] sm:$0xff]
        %v293 = vld [vmem:[%s178 + $0x324] sm:$0xff]
        %v294 = vld [vmem:[%s178 + $0x348] sm:$0xff]
        %s295 = scalar_lea.vmem [#allocation5], 128
        %v296 = vld [vmem:[%s295] sm:$0xf]
        %v297 = vld [vmem:[%s295 + $0x4] sm:$0xf]
        %v298 = vld [vmem:[%s295 + $0x8] sm:$0xf]
        %v299 = vld [vmem:[%s295 + $0xc] sm:$0xf]
        %v300 = vld [vmem:[%s295 + $0x10] sm:$0xf]
        %v301 = vld [vmem:[%s295 + $0x14] sm:$0xf]
        %v302 = vld [vmem:[%s295 + $0x18] sm:$0xf]
        %v303 = vld [vmem:[%s295 + $0x1c] sm:$0xf]
        %v304 = vld [vmem:[%s295 + $0x20] sm:$0xf]
        %v305 = vld [vmem:[%s295 + $0x24] sm:$0xf]
        %v306 = vld [vmem:[%s295 + $0x28] sm:$0xf]
        %v307 = vld [vmem:[%s295 + $0x2c] sm:$0xf]
        %v308 = vld [vmem:[%s295 + $0x30] sm:$0xf]
        %v309 = vld [vmem:[%s295 + $0x34] sm:$0xf]
        %v310 = vld [vmem:[%s295 + $0x38] sm:$0xf]
        %v311 = vld [vmem:[%s295 + $0x3c] sm:$0xf]
        %v312 = vld [vmem:[%s295 + $0x40] sm:$0xf]
        %v313 = vld [vmem:[%s295 + $0x44] sm:$0xf]
        %v314 = vld [vmem:[%s295 + $0x48] sm:$0xf]
        %v315 = vld [vmem:[%s295 + $0x4c] sm:$0xf]
        %v316 = vld [vmem:[%s295 + $0x50] sm:$0xf]
        %v317 = vld [vmem:[%s295 + $0x54] sm:$0xf]
        %v318 = vld [vmem:[%s295 + $0x58] sm:$0xf]
        %v319 = vld [vmem:[%s295 + $0x5c] sm:$0xf]
        %v320 = vld [vmem:[%s295 + $0x60] sm:$0xf]
        %v321 = vld [vmem:[%s295 + $0x64] sm:$0xf]
        %v322 = vld [vmem:[%s295 + $0x68] sm:$0xf]
        %v323 = vld [vmem:[%s295 + $0x6c] sm:$0xf]
        %v324 = vld [vmem:[%s295 + $0x70] sm:$0xf]
        %v325 = vld [vmem:[%s295 + $0x74] sm:$0xf]
        %v326 = vld [vmem:[%s295 + $0x78] sm:$0xf]
        %v327 = vld [vmem:[%s295 + $0x7c] sm:$0xf]
        %v352 = vunpack.c.l.b16 %v271
        %v353 = vunpack.c.h.b16 %v271
        %v354 = vunpack.c.l.b16 %v272
        %v355 = vunpack.c.h.b16 %v272
        %v356 = vunpack.c.l.b16 %v273
        %v357 = vunpack.c.h.b16 %v273
        %v358 = vunpack.c.l.b16 %v274
        %v359 = vunpack.c.h.b16 %v274
        %v360 = vunpack.c.l.b16 %v275
        %v361 = vunpack.c.h.b16 %v275
        %v362 = vunpack.c.l.b16 %v276
        %v363 = vunpack.c.h.b16 %v276
        %v364 = vunpack.c.l.b16 %v277
        %v365 = vunpack.c.h.b16 %v277
        %v366 = vunpack.c.l.b16 %v278
        %v367 = vunpack.c.h.b16 %v278
        %v368 = vunpack.c.l.b16 %v279
        %v369 = vunpack.c.h.b16 %v279
        %v370 = vunpack.c.l.b16 %v280
        %v371 = vunpack.c.h.b16 %v280
        %v372 = vunpack.c.l.b16 %v281
        %v373 = vunpack.c.h.b16 %v281
        %v374 = vunpack.c.l.b16 %v282
        %v375 = vunpack.c.h.b16 %v282
        %v376 = vunpack.c.l.b16 %v283
        %v377 = vunpack.c.h.b16 %v283
        %v378 = vunpack.c.l.b16 %v284
        %v379 = vunpack.c.h.b16 %v284
        %v380 = vunpack.c.l.b16 %v285
        %v381 = vunpack.c.h.b16 %v285
        %v382 = vunpack.c.l.b16 %v286
        %v383 = vunpack.c.h.b16 %v286
        %v384 = vunpack.c.l.b16 %v287
        %v385 = vunpack.c.h.b16 %v287
        %v386 = vunpack.c.l.b16 %v288
        %v387 = vunpack.c.h.b16 %v288
        %v388 = vunpack.c.l.b16 %v289
        %v389 = vunpack.c.h.b16 %v289
        %v390 = vunpack.c.l.b16 %v290
        %v391 = vunpack.c.h.b16 %v290
        %v392 = vunpack.c.l.b16 %v291
        %v393 = vunpack.c.h.b16 %v291
        %v394 = vunpack.c.l.b16 %v292
        %v395 = vunpack.c.h.b16 %v292
        %v396 = vunpack.c.l.b16 %v293
        %v397 = vunpack.c.h.b16 %v293
        %v398 = vunpack.c.l.b16 %v294
        %v399 = vunpack.c.h.b16 %v294
        %v400 = vpack.c.b16 %v354, %v352
        %v401 = vpack.c.b16 %v355, %v353
        %v402 = vpack.c.b16 %v358, %v356
        %v403 = vpack.c.b16 %v359, %v357
        %v404 = vpack.c.b16 %v362, %v360
        %v405 = vpack.c.b16 %v363, %v361
        %v406 = vpack.c.b16 %v366, %v364
        %v407 = vpack.c.b16 %v367, %v365
        %v408 = vpack.c.b16 %v370, %v368
        %v409 = vpack.c.b16 %v371, %v369
        %v410 = vpack.c.b16 %v374, %v372
        %v411 = vpack.c.b16 %v375, %v373
        %v412 = vpack.c.b16 %v378, %v376
        %v413 = vpack.c.b16 %v379, %v377
        %v414 = vpack.c.b16 %v382, %v380
        %v415 = vpack.c.b16 %v383, %v381
        %v416 = vpack.c.b16 %v386, %v384
        %v417 = vpack.c.b16 %v387, %v385
        %v418 = vpack.c.b16 %v390, %v388
        %v419 = vpack.c.b16 %v391, %v389
        %v420 = vpack.c.b16 %v394, %v392
        %v421 = vpack.c.b16 %v395, %v393
        %v422 = vpack.c.b16 %v398, %v396
        %v423 = vpack.c.b16 %v399, %v397
        %v480 = vunpack.c.l.b16 %v296
        %v481 = vunpack.c.l.b16 %v297
        %v482 = vunpack.c.l.b16 %v298
        %v483 = vunpack.c.l.b16 %v299
        %v484 = vunpack.c.l.b16 %v300
        %v485 = vunpack.c.l.b16 %v301
        %v486 = vunpack.c.l.b16 %v302
        %v487 = vunpack.c.l.b16 %v303
        %v488 = vunpack.c.l.b16 %v304
        %v489 = vunpack.c.l.b16 %v305
        %v490 = vunpack.c.l.b16 %v306
        %v491 = vunpack.c.l.b16 %v307
        %v492 = vunpack.c.l.b16 %v308
        %v493 = vunpack.c.l.b16 %v309
        %v494 = vunpack.c.l.b16 %v310
        %v495 = vunpack.c.l.b16 %v311
        %v496 = vunpack.c.l.b16 %v312
        %v497 = vunpack.c.l.b16 %v313
        %v498 = vunpack.c.l.b16 %v314
        %v499 = vunpack.c.l.b16 %v315
        %v500 = vunpack.c.l.b16 %v316
        %v501 = vunpack.c.l.b16 %v317
        %v502 = vunpack.c.l.b16 %v318
        %v503 = vunpack.c.l.b16 %v319
        %v504 = vunpack.c.l.b16 %v320
        %v505 = vunpack.c.l.b16 %v321
        %v506 = vunpack.c.l.b16 %v322
        %v507 = vunpack.c.l.b16 %v323
        %v508 = vunpack.c.l.b16 %v324
        %v509 = vunpack.c.l.b16 %v325
        %v510 = vunpack.c.l.b16 %v326
        %v511 = vunpack.c.l.b16 %v327
        %v512 = vpack.c.b16 %v481, %v480
        %v513 = vpack.c.b16 %v483, %v482
        %v514 = vpack.c.b16 %v485, %v484
        %v515 = vpack.c.b16 %v487, %v486
        %v516 = vpack.c.b16 %v489, %v488
        %v517 = vpack.c.b16 %v491, %v490
        %v518 = vpack.c.b16 %v493, %v492
        %v519 = vpack.c.b16 %v495, %v494
        %v520 = vpack.c.b16 %v497, %v496
        %v521 = vpack.c.b16 %v499, %v498
        %v522 = vpack.c.b16 %v501, %v500
        %v523 = vpack.c.b16 %v503, %v502
        %v524 = vpack.c.b16 %v505, %v504
        %v525 = vpack.c.b16 %v507, %v506
        %v526 = vpack.c.b16 %v509, %v508
        %v527 = vpack.c.b16 %v511, %v510
        %544 = vmatprep.subr.bf16.mxu0 0
        %545 = vmatpush1.bf16.msra.mxu0 %v512
        %546 = vmatprep.subr.bf16.mxu0 0
        %547 = vmatpush1.bf16.msra.mxu0 %v513
        %548 = vmatprep.subr.bf16.mxu0 0
        %549 = vmatpush1.bf16.msra.mxu0 %v514
        %550 = vmatprep.subr.bf16.mxu0 0
        %551 = vmatpush1.bf16.msra.mxu0 %v515
        %552 = vmatprep.subr.bf16.mxu0 0
        %553 = vmatpush1.bf16.msra.mxu0 %v516
        %554 = vmatprep.subr.bf16.mxu0 0
        %555 = vmatpush1.bf16.msra.mxu0 %v517
        %556 = vmatprep.subr.bf16.mxu0 0
        %557 = vmatpush1.bf16.msra.mxu0 %v518
        %558 = vmatprep.subr.bf16.mxu0 0
        %559 = vmatpush1.bf16.msra.mxu0 %v519
        %560 = vmatprep.subr.bf16.mxu0 0
        %561 = vmatpush1.bf16.msra.mxu0 %v520
        %562 = vmatprep.subr.bf16.mxu0 0
        %563 = vmatpush1.bf16.msra.mxu0 %v521
        %564 = vmatprep.subr.bf16.mxu0 0
        %565 = vmatpush1.bf16.msra.mxu0 %v522
        %566 = vmatprep.subr.bf16.mxu0 0
        %567 = vmatpush1.bf16.msra.mxu0 %v523
        %568 = vmatprep.subr.bf16.mxu0 0
        %569 = vmatpush1.bf16.msra.mxu0 %v524
        %570 = vmatprep.subr.bf16.mxu0 0
        %571 = vmatpush1.bf16.msra.mxu0 %v525
        %572 = vmatprep.subr.bf16.mxu0 0
        %573 = vmatpush1.bf16.msra.mxu0 %v526
        %574 = vmatprep.subr.bf16.mxu0 0
        %575 = vmatpush1.bf16.msra.mxu0 %v527
        %576 = vmatprep.mubr.bf16.mxu0 %v401
        %577 = vmatmul.mubr.bf16.gmra.mrb[0].mxu0 %v400
        %v578 = vpop.f32.mrb[0].mxu0
        %v579 = vadd.f32 0.0, %v578
        %v580 = vpop.f32.mrb[0].mxu0
        %v581 = vpop.f32.mrb[0].mxu0
        %v582 = vadd.f32 0.0, %v581
        %v583 = vpop.f32.mrb[0].mxu0
        %584 = vmatprep.mubr.bf16.mxu0 %v403
        %585 = vmatmul.mubr.bf16.gmra.mrb[0].mxu0 %v402
        %v586 = vpop.f32.mrb[0].mxu0
        %v587 = vadd.f32 0.0, %v586
        %v588 = vpop.f32.mrb[0].mxu0
        %v589 = vpop.f32.mrb[0].mxu0
        %v590 = vadd.f32 0.0, %v589
        %v591 = vpop.f32.mrb[0].mxu0
        %592 = vmatprep.mubr.bf16.mxu0 %v405
        %593 = vmatmul.mubr.bf16.gmra.mrb[0].mxu0 %v404
        %v594 = vpop.f32.mrb[0].mxu0
        %v595 = vadd.f32 0.0, %v594
        %v596 = vpop.f32.mrb[0].mxu0
        %v597 = vpop.f32.mrb[0].mxu0
        %v598 = vadd.f32 0.0, %v597
        %v599 = vpop.f32.mrb[0].mxu0
        %600 = vmatprep.mubr.bf16.mxu0 %v407
        %601 = vmatmul.mubr.bf16.gmra.mrb[0].mxu0 %v406
        %v602 = vpop.f32.mrb[0].mxu0
        %v603 = vadd.f32 0.0, %v602
        %v604 = vpop.f32.mrb[0].mxu0
        %v605 = vpop.f32.mrb[0].mxu0
        %v606 = vadd.f32 0.0, %v605
        %v607 = vpop.f32.mrb[0].mxu0
        %608 = vmatprep.mubr.bf16.mxu0 %v409
        %609 = vmatmul.mubr.bf16.gmra.mrb[0].mxu0 %v408
        %v610 = vpop.f32.mrb[0].mxu0
        %v611 = vadd.f32 0.0, %v610
        %v612 = vpop.f32.mrb[0].mxu0
        %v613 = vpop.f32.mrb[0].mxu0
        %v614 = vadd.f32 0.0, %v613
        %v615 = vpop.f32.mrb[0].mxu0
        %616 = vmatprep.mubr.bf16.mxu0 %v411
        %617 = vmatmul.mubr.bf16.gmra.mrb[0].mxu0 %v410
        %v618 = vpop.f32.mrb[0].mxu0
        %v619 = vadd.f32 0.0, %v618
        %v620 = vpop.f32.mrb[0].mxu0
        %v621 = vpop.f32.mrb[0].mxu0
        %v622 = vadd.f32 0.0, %v621
        %v623 = vpop.f32.mrb[0].mxu0
        %624 = vmatprep.mubr.bf16.mxu0 %v413
        %625 = vmatmul.mubr.bf16.gmra.mrb[0].mxu0 %v412
        %v626 = vpop.f32.mrb[0].mxu0
        %v627 = vadd.f32 0.0, %v626
        %v628 = vpop.f32.mrb[0].mxu0
        %v629 = vpop.f32.mrb[0].mxu0
        %v630 = vadd.f32 0.0, %v629
        %v631 = vpop.f32.mrb[0].mxu0
        %632 = vmatprep.mubr.bf16.mxu0 %v415
        %633 = vmatmul.mubr.bf16.gmra.mrb[0].mxu0 %v414
        %v634 = vpop.f32.mrb[0].mxu0
        %v635 = vadd.f32 0.0, %v634
        %v636 = vpop.f32.mrb[0].mxu0
        %v637 = vpop.f32.mrb[0].mxu0
        %v638 = vadd.f32 0.0, %v637
        %v639 = vpop.f32.mrb[0].mxu0
        %640 = vmatprep.mubr.bf16.mxu0 %v417
        %641 = vmatmul.mubr.bf16.gmra.mrb[0].mxu0 %v416
        %v642 = vpop.f32.mrb[0].mxu0
        %v643 = vadd.f32 0.0, %v642
        %v644 = vpop.f32.mrb[0].mxu0
        %v645 = vpop.f32.mrb[0].mxu0
        %v646 = vadd.f32 0.0, %v645
        %v647 = vpop.f32.mrb[0].mxu0
        %648 = vmatprep.mubr.bf16.mxu0 %v419
        %649 = vmatmul.mubr.bf16.gmra.mrb[0].mxu0 %v418
        %v650 = vpop.f32.mrb[0].mxu0
        %v651 = vadd.f32 0.0, %v650
        %v652 = vpop.f32.mrb[0].mxu0
        %v653 = vpop.f32.mrb[0].mxu0
        %v654 = vadd.f32 0.0, %v653
        %v655 = vpop.f32.mrb[0].mxu0
        %656 = vmatprep.mubr.bf16.mxu0 %v421
        %657 = vmatmul.mubr.bf16.gmra.mrb[0].mxu0 %v420
        %v658 = vpop.f32.mrb[0].mxu0
        %v659 = vadd.f32 0.0, %v658
        %v660 = vpop.f32.mrb[0].mxu0
        %v661 = vpop.f32.mrb[0].mxu0
        %v662 = vadd.f32 0.0, %v661
        %v663 = vpop.f32.mrb[0].mxu0
        %664 = vmatprep.mubr.bf16.mxu0 %v423
        %665 = vmatmul.mubr.bf16.gmra.mrb[0].mxu0 %v422
        %v666 = vpop.f32.mrb[0].mxu0
        %v667 = vadd.f32 0.0, %v666
        %v668 = vpop.f32.mrb[0].mxu0
        %v669 = vpop.f32.mrb[0].mxu0
        %v670 = vadd.f32 0.0, %v669
        %v671 = vpop.f32.mrb[0].mxu0
        %672 = vdwg.mxu0
        %v697 = vunpack.c.l.b16 %v215
        %v698 = vunpack.c.h.b16 %v215
        %v699 = vunpack.c.l.b16 %v216
        %v700 = vunpack.c.h.b16 %v216
        %v701 = vunpack.c.l.b16 %v217
        %v702 = vunpack.c.h.b16 %v217
        %v703 = vunpack.c.l.b16 %v218
        %v704 = vunpack.c.h.b16 %v218
        %v705 = vunpack.c.l.b16 %v219
        %v706 = vunpack.c.h.b16 %v219
        %v707 = vunpack.c.l.b16 %v220
        %v708 = vunpack.c.h.b16 %v220
        %v709 = vunpack.c.l.b16 %v221
        %v710 = vunpack.c.h.b16 %v221
        %v711 = vunpack.c.l.b16 %v222
        %v712 = vunpack.c.h.b16 %v222
        %v713 = vunpack.c.l.b16 %v223
        %v714 = vunpack.c.h.b16 %v223
        %v715 = vunpack.c.l.b16 %v224
        %v716 = vunpack.c.h.b16 %v224
        %v717 = vunpack.c.l.b16 %v225
        %v718 = vunpack.c.h.b16 %v225
        %v719 = vunpack.c.l.b16 %v226
        %v720 = vunpack.c.h.b16 %v226
        %v721 = vunpack.c.l.b16 %v227
        %v722 = vunpack.c.h.b16 %v227
        %v723 = vunpack.c.l.b16 %v228
        %v724 = vunpack.c.h.b16 %v228
        %v725 = vunpack.c.l.b16 %v229
        %v726 = vunpack.c.h.b16 %v229
        %v727 = vunpack.c.l.b16 %v230
        %v728 = vunpack.c.h.b16 %v230
        %v729 = vunpack.c.l.b16 %v231
        %v730 = vunpack.c.h.b16 %v231
        %v731 = vunpack.c.l.b16 %v232
        %v732 = vunpack.c.h.b16 %v232
        %v733 = vunpack.c.l.b16 %v233
        %v734 = vunpack.c.h.b16 %v233
        %v735 = vunpack.c.l.b16 %v234
        %v736 = vunpack.c.h.b16 %v234
        %v737 = vunpack.c.l.b16 %v235
        %v738 = vunpack.c.h.b16 %v235
        %v739 = vunpack.c.l.b16 %v236
        %v740 = vunpack.c.h.b16 %v236
        %v741 = vunpack.c.l.b16 %v237
        %v742 = vunpack.c.h.b16 %v237
        %v743 = vunpack.c.l.b16 %v238
        %v744 = vunpack.c.h.b16 %v238
        %v745 = vpack.c.b16 %v699, %v697
        %v746 = vpack.c.b16 %v700, %v698
        %v747 = vpack.c.b16 %v703, %v701
        %v748 = vpack.c.b16 %v704, %v702
        %v749 = vpack.c.b16 %v707, %v705
        %v750 = vpack.c.b16 %v708, %v706
        %v751 = vpack.c.b16 %v711, %v709
        %v752 = vpack.c.b16 %v712, %v710
        %v753 = vpack.c.b16 %v715, %v713
        %v754 = vpack.c.b16 %v716, %v714
        %v755 = vpack.c.b16 %v719, %v717
        %v756 = vpack.c.b16 %v720, %v718
        %v757 = vpack.c.b16 %v723, %v721
        %v758 = vpack.c.b16 %v724, %v722
        %v759 = vpack.c.b16 %v727, %v725
        %v760 = vpack.c.b16 %v728, %v726
        %v761 = vpack.c.b16 %v731, %v729
        %v762 = vpack.c.b16 %v732, %v730
        %v763 = vpack.c.b16 %v735, %v733
        %v764 = vpack.c.b16 %v736, %v734
        %v765 = vpack.c.b16 %v739, %v737
        %v766 = vpack.c.b16 %v740, %v738
        %v767 = vpack.c.b16 %v743, %v741
        %v768 = vpack.c.b16 %v744, %v742
        %v825 = vunpack.c.l.b16 %v239
        %v826 = vunpack.c.l.b16 %v240
        %v827 = vunpack.c.l.b16 %v241
        %v828 = vunpack.c.l.b16 %v242
        %v829 = vunpack.c.l.b16 %v243
        %v830 = vunpack.c.l.b16 %v244
        %v831 = vunpack.c.l.b16 %v245
        %v832 = vunpack.c.l.b16 %v246
        %v833 = vunpack.c.l.b16 %v247
        %v834 = vunpack.c.l.b16 %v248
        %v835 = vunpack.c.l.b16 %v249
        %v836 = vunpack.c.l.b16 %v250
        %v837 = vunpack.c.l.b16 %v251
        %v838 = vunpack.c.l.b16 %v252
        %v839 = vunpack.c.l.b16 %v253
        %v840 = vunpack.c.l.b16 %v254
        %v841 = vunpack.c.l.b16 %v255
        %v842 = vunpack.c.l.b16 %v256
        %v843 = vunpack.c.l.b16 %v257
        %v844 = vunpack.c.l.b16 %v258
        %v845 = vunpack.c.l.b16 %v259
        %v846 = vunpack.c.l.b16 %v260
        %v847 = vunpack.c.l.b16 %v261
        %v848 = vunpack.c.l.b16 %v262
        %v849 = vunpack.c.l.b16 %v263
        %v850 = vunpack.c.l.b16 %v264
        %v851 = vunpack.c.l.b16 %v265
        %v852 = vunpack.c.l.b16 %v266
        %v853 = vunpack.c.l.b16 %v267
        %v854 = vunpack.c.l.b16 %v268
        %v855 = vunpack.c.l.b16 %v269
        %v856 = vunpack.c.l.b16 %v270
        %v857 = vpack.c.b16 %v826, %v825
        %v858 = vpack.c.b16 %v828, %v827
        %v859 = vpack.c.b16 %v830, %v829
        %v860 = vpack.c.b16 %v832, %v831
        %v861 = vpack.c.b16 %v834, %v833
        %v862 = vpack.c.b16 %v836, %v835
        %v863 = vpack.c.b16 %v838, %v837
        %v864 = vpack.c.b16 %v840, %v839
        %v865 = vpack.c.b16 %v842, %v841
        %v866 = vpack.c.b16 %v844, %v843
        %v867 = vpack.c.b16 %v846, %v845
        %v868 = vpack.c.b16 %v848, %v847
        %v869 = vpack.c.b16 %v850, %v849
        %v870 = vpack.c.b16 %v852, %v851
        %v871 = vpack.c.b16 %v854, %v853
        %v872 = vpack.c.b16 %v856, %v855
        %889 = vmatprep.subr.bf16.mxu0 0
        %890 = vmatpush1.bf16.msra.mxu0 %v857
        %891 = vmatprep.subr.bf16.mxu0 0
        %892 = vmatpush1.bf16.msra.mxu0 %v858
        %893 = vmatprep.subr.bf16.mxu0 0
        %894 = vmatpush1.bf16.msra.mxu0 %v859
        %895 = vmatprep.subr.bf16.mxu0 0
        %896 = vmatpush1.bf16.msra.mxu0 %v860
        %897 = vmatprep.subr.bf16.mxu0 0
        %898 = vmatpush1.bf16.msra.mxu0 %v861
        %899 = vmatprep.subr.bf16.mxu0 0
        %900 = vmatpush1.bf16.msra.mxu0 %v862
        %901 = vmatprep.subr.bf16.mxu0 0
        %902 = vmatpush1.bf16.msra.mxu0 %v863
        %903 = vmatprep.subr.bf16.mxu0 0
        %904 = vmatpush1.bf16.msra.mxu0 %v864
        %905 = vmatprep.subr.bf16.mxu0 0
        %906 = vmatpush1.bf16.msra.mxu0 %v865
        %907 = vmatprep.subr.bf16.mxu0 0
        %908 = vmatpush1.bf16.msra.mxu0 %v866
        %909 = vmatprep.subr.bf16.mxu0 0
        %910 = vmatpush1.bf16.msra.mxu0 %v867
        %911 = vmatprep.subr.bf16.mxu0 0
        %912 = vmatpush1.bf16.msra.mxu0 %v868
        %913 = vmatprep.subr.bf16.mxu0 0
        %914 = vmatpush1.bf16.msra.mxu0 %v869
        %915 = vmatprep.subr.bf16.mxu0 0
        %916 = vmatpush1.bf16.msra.mxu0 %v870
        %917 = vmatprep.subr.bf16.mxu0 0
        %918 = vmatpush1.bf16.msra.mxu0 %v871
        %919 = vmatprep.subr.bf16.mxu0 0
        %920 = vmatpush1.bf16.msra.mxu0 %v872
        %921 = vmatprep.mubr.bf16.mxu0 %v746
        %922 = vmatmul.mubr.bf16.gmra.mrb[0].mxu0 %v745
        %v923 = vpop.f32.mrb[0].mxu0
        %v924 = vadd.f32 %v579, %v923
        %v925 = vpop.f32.mrb[0].mxu0
        %v926 = vpop.f32.mrb[0].mxu0
        %v927 = vadd.f32 %v582, %v926
        %v928 = vpop.f32.mrb[0].mxu0
        %929 = vmatprep.mubr.bf16.mxu0 %v748
        %930 = vmatmul.mubr.bf16.gmra.mrb[0].mxu0 %v747
        %v931 = vpop.f32.mrb[0].mxu0
        %v932 = vadd.f32 %v587, %v931
        %v933 = vpop.f32.mrb[0].mxu0
        %v934 = vpop.f32.mrb[0].mxu0
        %v935 = vadd.f32 %v590, %v934
        %v936 = vpop.f32.mrb[0].mxu0
        %937 = vmatprep.mubr.bf16.mxu0 %v750
        %938 = vmatmul.mubr.bf16.gmra.mrb[0].mxu0 %v749
        %v939 = vpop.f32.mrb[0].mxu0
        %v940 = vadd.f32 %v595, %v939
        %v941 = vpop.f32.mrb[0].mxu0
        %v942 = vpop.f32.mrb[0].mxu0
        %v943 = vadd.f32 %v598, %v942
        %v944 = vpop.f32.mrb[0].mxu0
        %945 = vmatprep.mubr.bf16.mxu0 %v752
        %946 = vmatmul.mubr.bf16.gmra.mrb[0].mxu0 %v751
        %v947 = vpop.f32.mrb[0].mxu0
        %v948 = vadd.f32 %v603, %v947
        %v949 = vpop.f32.mrb[0].mxu0
        %v950 = vpop.f32.mrb[0].mxu0
        %v951 = vadd.f32 %v606, %v950
        %v952 = vpop.f32.mrb[0].mxu0
        %953 = vmatprep.mubr.bf16.mxu0 %v754
        %954 = vmatmul.mubr.bf16.gmra.mrb[0].mxu0 %v753
        %v955 = vpop.f32.mrb[0].mxu0
        %v956 = vadd.f32 %v611, %v955
        %v957 = vpop.f32.mrb[0].mxu0
        %v958 = vpop.f32.mrb[0].mxu0
        %v959 = vadd.f32 %v614, %v958
        %v960 = vpop.f32.mrb[0].mxu0
        %961 = vmatprep.mubr.bf16.mxu0 %v756
        %962 = vmatmul.mubr.bf16.gmra.mrb[0].mxu0 %v755
        %v963 = vpop.f32.mrb[0].mxu0
        %v964 = vadd.f32 %v619, %v963
        %v965 = vpop.f32.mrb[0].mxu0
        %v966 = vpop.f32.mrb[0].mxu0
        %v967 = vadd.f32 %v622, %v966
        %v968 = vpop.f32.mrb[0].mxu0
        %969 = vmatprep.mubr.bf16.mxu0 %v758
        %970 = vmatmul.mubr.bf16.gmra.mrb[0].mxu0 %v757
        %v971 = vpop.f32.mrb[0].mxu0
        %v972 = vadd.f32 %v627, %v971
        %v973 = vpop.f32.mrb[0].mxu0
        %v974 = vpop.f32.mrb[0].mxu0
        %v975 = vadd.f32 %v630, %v974
        %v976 = vpop.f32.mrb[0].mxu0
        %977 = vmatprep.mubr.bf16.mxu0 %v760
        %978 = vmatmul.mubr.bf16.gmra.mrb[0].mxu0 %v759
        %v979 = vpop.f32.mrb[0].mxu0
        %v980 = vadd.f32 %v635, %v979
        %v981 = vpop.f32.mrb[0].mxu0
        %v982 = vpop.f32.mrb[0].mxu0
        %v983 = vadd.f32 %v638, %v982
        %v984 = vpop.f32.mrb[0].mxu0
        %985 = vmatprep.mubr.bf16.mxu0 %v762
        %986 = vmatmul.mubr.bf16.gmra.mrb[0].mxu0 %v761
        %v987 = vpop.f32.mrb[0].mxu0
        %v988 = vadd.f32 %v643, %v987
        %v989 = vpop.f32.mrb[0].mxu0
        %v990 = vpop.f32.mrb[0].mxu0
        %v991 = vadd.f32 %v646, %v990
        %v992 = vpop.f32.mrb[0].mxu0
        %993 = vmatprep.mubr.bf16.mxu0 %v764
        %994 = vmatmul.mubr.bf16.gmra.mrb[0].mxu0 %v763
        %v995 = vpop.f32.mrb[0].mxu0
        %v996 = vadd.f32 %v651, %v995
        %v997 = vpop.f32.mrb[0].mxu0
        %v998 = vpop.f32.mrb[0].mxu0
        %v999 = vadd.f32 %v654, %v998
        %v1000 = vpop.f32.mrb[0].mxu0
        %1001 = vmatprep.mubr.bf16.mxu0 %v766
        %1002 = vmatmul.mubr.bf16.gmra.mrb[0].mxu0 %v765
        %v1003 = vpop.f32.mrb[0].mxu0
        %v1004 = vadd.f32 %v659, %v1003
        %v1005 = vpop.f32.mrb[0].mxu0
        %v1006 = vpop.f32.mrb[0].mxu0
        %v1007 = vadd.f32 %v662, %v1006
        %v1008 = vpop.f32.mrb[0].mxu0
        %1009 = vmatprep.mubr.bf16.mxu0 %v768
        %1010 = vmatmul.mubr.bf16.gmra.mrb[0].mxu0 %v767
        %v1011 = vpop.f32.mrb[0].mxu0
        %v1012 = vadd.f32 %v667, %v1011
        %v1013 = vpop.f32.mrb[0].mxu0
        %v1014 = vpop.f32.mrb[0].mxu0
        %v1015 = vadd.f32 %v670, %v1014
        %v1016 = vpop.f32.mrb[0].mxu0
        %1017 = vdwg.mxu0
        %v1018 = vadd.f32 %v924, %v213
        %v1019 = vadd.f32 %v927, %v213
        %v1020 = vadd.f32 %v932, %v213
        %v1021 = vadd.f32 %v935, %v213
        %v1022 = vadd.f32 %v940, %v213
        %v1023 = vadd.f32 %v943, %v213
        %v1024 = vadd.f32 %v948, %v213
        %v1025 = vadd.f32 %v951, %v213
        %v1026 = vadd.f32 %v956, %v213
        %v1027 = vadd.f32 %v959, %v213
        %v1028 = vadd.f32 %v964, %v213
        %v1029 = vadd.f32 %v967, %v213
        %v1030 = vadd.f32 %v972, %v213
        %v1031 = vadd.f32 %v975, %v213
        %v1032 = vadd.f32 %v980, %v213
        %v1033 = vadd.f32 %v983, %v213
        %v1034 = vadd.f32 %v988, %v213
        %v1035 = vadd.f32 %v991, %v213
        %v1036 = vadd.f32 %v996, %v213
        %v1037 = vadd.f32 %v999, %v213
        %v1038 = vadd.f32 %v1004, %v213
        %v1039 = vadd.f32 %v1007, %v213
        %v1040 = vadd.f32 %v1012, %v213
        %v1041 = vadd.f32 %v1015, %v213
        %v1042 = vmul.f32 %v1018, 0.5
        %v1043 = vmul.f32 %v1019, 0.5
        %v1044 = vmul.f32 %v1020, 0.5
        %v1045 = vmul.f32 %v1021, 0.5
        %v1046 = vmul.f32 %v1022, 0.5
        %v1047 = vmul.f32 %v1023, 0.5
        %v1048 = vmul.f32 %v1024, 0.5
        %v1049 = vmul.f32 %v1025, 0.5
        %v1050 = vmul.f32 %v1026, 0.5
        %v1051 = vmul.f32 %v1027, 0.5
        %v1052 = vmul.f32 %v1028, 0.5
        %v1053 = vmul.f32 %v1029, 0.5
        %v1054 = vmul.f32 %v1030, 0.5
        %v1055 = vmul.f32 %v1031, 0.5
        %v1056 = vmul.f32 %v1032, 0.5
        %v1057 = vmul.f32 %v1033, 0.5
        %v1058 = vmul.f32 %v1034, 0.5
        %v1059 = vmul.f32 %v1035, 0.5
        %v1060 = vmul.f32 %v1036, 0.5
        %v1061 = vmul.f32 %v1037, 0.5
        %v1062 = vmul.f32 %v1038, 0.5
        %v1063 = vmul.f32 %v1039, 0.5
        %v1064 = vmul.f32 %v1040, 0.5
        %v1065 = vmul.f32 %v1041, 0.5
        %v1066 = vtanh.pop %v1042
        %v1067 = vtanh.pop %v1043
        %v1068 = vtanh.pop %v1044
        %v1069 = vtanh.pop %v1045
        %v1070 = vtanh.pop %v1046
        %v1071 = vtanh.pop %v1047
        %v1072 = vtanh.pop %v1048
        %v1073 = vtanh.pop %v1049
        %v1074 = vtanh.pop %v1050
        %v1075 = vtanh.pop %v1051
        %v1076 = vtanh.pop %v1052
        %v1077 = vtanh.pop %v1053
        %v1078 = vtanh.pop %v1054
        %v1079 = vtanh.pop %v1055
        %v1080 = vtanh.pop %v1056
        %v1081 = vtanh.pop %v1057
        %v1082 = vtanh.pop %v1058
        %v1083 = vtanh.pop %v1059
        %v1084 = vtanh.pop %v1060
        %v1085 = vtanh.pop %v1061
        %v1086 = vtanh.pop %v1062
        %v1087 = vtanh.pop %v1063
        %v1088 = vtanh.pop %v1064
        %v1089 = vtanh.pop %v1065
        %v1090 = vmul.f32 %v1066, 0.5
        %v1091 = vmul.f32 %v1067, 0.5
        %v1092 = vmul.f32 %v1068, 0.5
        %v1093 = vmul.f32 %v1069, 0.5
        %v1094 = vmul.f32 %v1070, 0.5
        %v1095 = vmul.f32 %v1071, 0.5
        %v1096 = vmul.f32 %v1072, 0.5
        %v1097 = vmul.f32 %v1073, 0.5
        %v1098 = vmul.f32 %v1074, 0.5
        %v1099 = vmul.f32 %v1075, 0.5
        %v1100 = vmul.f32 %v1076, 0.5
        %v1101 = vmul.f32 %v1077, 0.5
        %v1102 = vmul.f32 %v1078, 0.5
        %v1103 = vmul.f32 %v1079, 0.5
        %v1104 = vmul.f32 %v1080, 0.5
        %v1105 = vmul.f32 %v1081, 0.5
        %v1106 = vmul.f32 %v1082, 0.5
        %v1107 = vmul.f32 %v1083, 0.5
        %v1108 = vmul.f32 %v1084, 0.5
        %v1109 = vmul.f32 %v1085, 0.5
        %v1110 = vmul.f32 %v1086, 0.5
        %v1111 = vmul.f32 %v1087, 0.5
        %v1112 = vmul.f32 %v1088, 0.5
        %v1113 = vmul.f32 %v1089, 0.5
        %v1114 = vadd.f32 %v1090, 0.5
        %v1115 = vadd.f32 %v1091, 0.5
        %v1116 = vadd.f32 %v1092, 0.5
        %v1117 = vadd.f32 %v1093, 0.5
        %v1118 = vadd.f32 %v1094, 0.5
        %v1119 = vadd.f32 %v1095, 0.5
        %v1120 = vadd.f32 %v1096, 0.5
        %v1121 = vadd.f32 %v1097, 0.5
        %v1122 = vadd.f32 %v1098, 0.5
        %v1123 = vadd.f32 %v1099, 0.5
        %v1124 = vadd.f32 %v1100, 0.5
        %v1125 = vadd.f32 %v1101, 0.5
        %v1126 = vadd.f32 %v1102, 0.5
        %v1127 = vadd.f32 %v1103, 0.5
        %v1128 = vadd.f32 %v1104, 0.5
        %v1129 = vadd.f32 %v1105, 0.5
        %v1130 = vadd.f32 %v1106, 0.5
        %v1131 = vadd.f32 %v1107, 0.5
        %v1132 = vadd.f32 %v1108, 0.5
        %v1133 = vadd.f32 %v1109, 0.5
        %v1134 = vadd.f32 %v1110, 0.5
        %v1135 = vadd.f32 %v1111, 0.5
        %v1136 = vadd.f32 %v1112, 0.5
        %v1137 = vadd.f32 %v1113, 0.5
        %v1138 = vmul.f32 %v1018, %v1114
        %v1139 = vmul.f32 %v1019, %v1115
        %v1140 = vmul.f32 %v1020, %v1116
        %v1141 = vmul.f32 %v1021, %v1117
        %v1142 = vmul.f32 %v1022, %v1118
        %v1143 = vmul.f32 %v1023, %v1119
        %v1144 = vmul.f32 %v1024, %v1120
        %v1145 = vmul.f32 %v1025, %v1121
        %v1146 = vmul.f32 %v1026, %v1122
        %v1147 = vmul.f32 %v1027, %v1123
        %v1148 = vmul.f32 %v1028, %v1124
        %v1149 = vmul.f32 %v1029, %v1125
        %v1150 = vmul.f32 %v1030, %v1126
        %v1151 = vmul.f32 %v1031, %v1127
        %v1152 = vmul.f32 %v1032, %v1128
        %v1153 = vmul.f32 %v1033, %v1129
        %v1154 = vmul.f32 %v1034, %v1130
        %v1155 = vmul.f32 %v1035, %v1131
        %v1156 = vmul.f32 %v1036, %v1132
        %v1157 = vmul.f32 %v1037, %v1133
        %v1158 = vmul.f32 %v1038, %v1134
        %v1159 = vmul.f32 %v1039, %v1135
        %v1160 = vmul.f32 %v1040, %v1136
        %v1161 = vmul.f32 %v1041, %v1137
        %v1162 = vpack.c.bf16 %v1139, %v1138
        %v1163 = vpack.c.bf16 %v1141, %v1140
        %v1164 = vpack.c.bf16 %v1143, %v1142
        %v1165 = vpack.c.bf16 %v1145, %v1144
        %v1166 = vpack.c.bf16 %v1147, %v1146
        %v1167 = vpack.c.bf16 %v1149, %v1148
        %v1168 = vpack.c.bf16 %v1151, %v1150
        %v1169 = vpack.c.bf16 %v1153, %v1152
        %v1170 = vpack.c.bf16 %v1155, %v1154
        %v1171 = vpack.c.bf16 %v1157, %v1156
        %v1172 = vpack.c.bf16 %v1159, %v1158
        %v1173 = vpack.c.bf16 %v1161, %v1160
        %v1186 = vunpack.c.l.b16 %v1162
        %v1187 = vunpack.c.h.b16 %v1162
        %v1188 = vunpack.c.l.b16 %v1163
        %v1189 = vunpack.c.h.b16 %v1163
        %v1190 = vunpack.c.l.b16 %v1164
        %v1191 = vunpack.c.h.b16 %v1164
        %v1192 = vunpack.c.l.b16 %v1165
        %v1193 = vunpack.c.h.b16 %v1165
        %v1194 = vunpack.c.l.b16 %v1166
        %v1195 = vunpack.c.h.b16 %v1166
        %v1196 = vunpack.c.l.b16 %v1167
        %v1197 = vunpack.c.h.b16 %v1167
        %v1198 = vunpack.c.l.b16 %v1168
        %v1199 = vunpack.c.h.b16 %v1168
        %v1200 = vunpack.c.l.b16 %v1169
        %v1201 = vunpack.c.h.b16 %v1169
        %v1202 = vunpack.c.l.b16 %v1170
        %v1203 = vunpack.c.h.b16 %v1170
        %v1204 = vunpack.c.l.b16 %v1171
        %v1205 = vunpack.c.h.b16 %v1171
        %v1206 = vunpack.c.l.b16 %v1172
        %v1207 = vunpack.c.h.b16 %v1172
        %v1208 = vunpack.c.l.b16 %v1173
        %v1209 = vunpack.c.h.b16 %v1173
        %v1210 = vpack.c.b16 %v1186, %v1186
        %v1211 = vpack.c.b16 %v1187, %v1187
        %v1212 = vpack.c.b16 %v1188, %v1188
        %v1213 = vpack.c.b16 %v1189, %v1189
        %v1214 = vpack.c.b16 %v1190, %v1190
        %v1215 = vpack.c.b16 %v1191, %v1191
        %v1216 = vpack.c.b16 %v1192, %v1192
        %v1217 = vpack.c.b16 %v1193, %v1193
        %v1218 = vpack.c.b16 %v1194, %v1194
        %v1219 = vpack.c.b16 %v1195, %v1195
        %v1220 = vpack.c.b16 %v1196, %v1196
        %v1221 = vpack.c.b16 %v1197, %v1197
        %v1222 = vpack.c.b16 %v1198, %v1198
        %v1223 = vpack.c.b16 %v1199, %v1199
        %v1224 = vpack.c.b16 %v1200, %v1200
        %v1225 = vpack.c.b16 %v1201, %v1201
        %v1226 = vpack.c.b16 %v1202, %v1202
        %v1227 = vpack.c.b16 %v1203, %v1203
        %v1228 = vpack.c.b16 %v1204, %v1204
        %v1229 = vpack.c.b16 %v1205, %v1205
        %v1230 = vpack.c.b16 %v1206, %v1206
        %v1231 = vpack.c.b16 %v1207, %v1207
        %v1232 = vpack.c.b16 %v1208, %v1208
        %v1233 = vpack.c.b16 %v1209, %v1209
        %1258 = vst [vmem:[%s204] sm:$0xf] %v1210
        %1259 = vst [vmem:[%s204 + $0x4] sm:$0xf] %v1211
        %1260 = vst [vmem:[%s204 + $0x8] sm:$0xf] %v1212
        %1261 = vst [vmem:[%s204 + $0xc] sm:$0xf] %v1213
        %1262 = vst [vmem:[%s204 + $0x10] sm:$0xf] %v1214
        %1263 = vst [vmem:[%s204 + $0x14] sm:$0xf] %v1215
        %1264 = vst [vmem:[%s204 + $0x18] sm:$0xf] %v1216
        %1265 = vst [vmem:[%s204 + $0x1c] sm:$0xf] %v1217
        %1266 = vst [vmem:[%s204 + $0x20] sm:$0xf] %v1218
        %1267 = vst [vmem:[%s204 + $0x24] sm:$0xf] %v1219
        %1268 = vst [vmem:[%s204 + $0x28] sm:$0xf] %v1220
        %1269 = vst [vmem:[%s204 + $0x2c] sm:$0xf] %v1221
        %1270 = vst [vmem:[%s204 + $0x30] sm:$0xf] %v1222
        %1271 = vst [vmem:[%s204 + $0x34] sm:$0xf] %v1223
        %1272 = vst [vmem:[%s204 + $0x38] sm:$0xf] %v1224
        %1273 = vst [vmem:[%s204 + $0x3c] sm:$0xf] %v1225
        %1274 = vst [vmem:[%s204 + $0x40] sm:$0xf] %v1226
        %1275 = vst [vmem:[%s204 + $0x44] sm:$0xf] %v1227
        %1276 = vst [vmem:[%s204 + $0x48] sm:$0xf] %v1228
        %1277 = vst [vmem:[%s204 + $0x4c] sm:$0xf] %v1229
        %1278 = vst [vmem:[%s204 + $0x50] sm:$0xf] %v1230
        %1279 = vst [vmem:[%s204 + $0x54] sm:$0xf] %v1231
        %1280 = vst [vmem:[%s204 + $0x58] sm:$0xf] %v1232
        %1281 = vst [vmem:[%s204 + $0x5c] sm:$0xf] %v1233
        %v1282 = vld [vmem:[%s178 + $0x4] sm:$0xff]
        %v1283 = vld [vmem:[%s178 + $0x28] sm:$0xff]
        %v1284 = vld [vmem:[%s178 + $0x4c] sm:$0xff]
        %v1285 = vld [vmem:[%s178 + $0x70] sm:$0xff]
        %v1286 = vld [vmem:[%s178 + $0x94] sm:$0xff]
        %v1287 = vld [vmem:[%s178 + $0xb8] sm:$0xff]
        %v1288 = vld [vmem:[%s178 + $0xdc] sm:$0xff]
        %v1289 = vld [vmem:[%s178 + $0x100] sm:$0xff]
        %v1290 = vld [vmem:[%s178 + $0x124] sm:$0xff]
        %v1291 = vld [vmem:[%s178 + $0x148] sm:$0xff]
        %v1292 = vld [vmem:[%s178 + $0x16c] sm:$0xff]
        %v1293 = vld [vmem:[%s178 + $0x190] sm:$0xff]
        %v1294 = vld [vmem:[%s178 + $0x1b4] sm:$0xff]
        %v1295 = vld [vmem:[%s178 + $0x1d8] sm:$0xff]
        %v1296 = vld [vmem:[%s178 + $0x1fc] sm:$0xff]
        %v1297 = vld [vmem:[%s178 + $0x220] sm:$0xff]
        %v1298 = vld [vmem:[%s178 + $0x244] sm:$0xff]
        %v1299 = vld [vmem:[%s178 + $0x268] sm:$0xff]
        %v1300 = vld [vmem:[%s178 + $0x28c] sm:$0xff]
        %v1301 = vld [vmem:[%s178 + $0x2b0] sm:$0xff]
        %v1302 = vld [vmem:[%s178 + $0x2d4] sm:$0xff]
        %v1303 = vld [vmem:[%s178 + $0x2f8] sm:$0xff]
        %v1304 = vld [vmem:[%s178 + $0x31c] sm:$0xff]
        %v1305 = vld [vmem:[%s178 + $0x340] sm:$0xff]
        %s1306 = scalar_lea.vmem [#allocation5], 256
        %v1307 = vld [vmem:[%s1306] sm:$0xf]
        %v1308 = vld [vmem:[%s1306 + $0x4] sm:$0xf]
        %v1309 = vld [vmem:[%s1306 + $0x8] sm:$0xf]
        %v1310 = vld [vmem:[%s1306 + $0xc] sm:$0xf]
        %v1311 = vld [vmem:[%s1306 + $0x10] sm:$0xf]
        %v1312 = vld [vmem:[%s1306 + $0x14] sm:$0xf]
        %v1313 = vld [vmem:[%s1306 + $0x18] sm:$0xf]
        %v1314 = vld [vmem:[%s1306 + $0x1c] sm:$0xf]
        %v1315 = vld [vmem:[%s1306 + $0x20] sm:$0xf]
        %v1316 = vld [vmem:[%s1306 + $0x24] sm:$0xf]
        %v1317 = vld [vmem:[%s1306 + $0x28] sm:$0xf]
        %v1318 = vld [vmem:[%s1306 + $0x2c] sm:$0xf]
        %v1319 = vld [vmem:[%s1306 + $0x30] sm:$0xf]
        %v1320 = vld [vmem:[%s1306 + $0x34] sm:$0xf]
        %v1321 = vld [vmem:[%s1306 + $0x38] sm:$0xf]
        %v1322 = vld [vmem:[%s1306 + $0x3c] sm:$0xf]
        %v1323 = vld [vmem:[%s1306 + $0x40] sm:$0xf]
        %v1324 = vld [vmem:[%s1306 + $0x44] sm:$0xf]
        %v1325 = vld [vmem:[%s1306 + $0x48] sm:$0xf]
        %v1326 = vld [vmem:[%s1306 + $0x4c] sm:$0xf]
        %v1327 = vld [vmem:[%s1306 + $0x50] sm:$0xf]
        %v1328 = vld [vmem:[%s1306 + $0x54] sm:$0xf]
        %v1329 = vld [vmem:[%s1306 + $0x58] sm:$0xf]
        %v1330 = vld [vmem:[%s1306 + $0x5c] sm:$0xf]
        %v1331 = vld [vmem:[%s1306 + $0x60] sm:$0xf]
        %v1332 = vld [vmem:[%s1306 + $0x64] sm:$0xf]
        %v1333 = vld [vmem:[%s1306 + $0x68] sm:$0xf]
        %v1334 = vld [vmem:[%s1306 + $0x6c] sm:$0xf]
        %v1335 = vld [vmem:[%s1306 + $0x70] sm:$0xf]
        %v1336 = vld [vmem:[%s1306 + $0x74] sm:$0xf]
        %v1337 = vld [vmem:[%s1306 + $0x78] sm:$0xf]
        %v1338 = vld [vmem:[%s1306 + $0x7c] sm:$0xf]
        %v1339 = vld [vmem:[%s178 + $0x10] sm:$0xff]
        %v1340 = vld [vmem:[%s178 + $0x34] sm:$0xff]
        %v1341 = vld [vmem:[%s178 + $0x58] sm:$0xff]
        %v1342 = vld [vmem:[%s178 + $0x7c] sm:$0xff]
        %v1343 = vld [vmem:[%s178 + $0xa0] sm:$0xff]
        %v1344 = vld [vmem:[%s178 + $0xc4] sm:$0xff]
        %v1345 = vld [vmem:[%s178 + $0xe8] sm:$0xff]
        %v1346 = vld [vmem:[%s178 + $0x10c] sm:$0xff]
        %v1347 = vld [vmem:[%s178 + $0x130] sm:$0xff]
        %v1348 = vld [vmem:[%s178 + $0x154] sm:$0xff]
        %v1349 = vld [vmem:[%s178 + $0x178] sm:$0xff]
        %v1350 = vld [vmem:[%s178 + $0x19c] sm:$0xff]
        %v1351 = vld [vmem:[%s178 + $0x1c0] sm:$0xff]
        %v1352 = vld [vmem:[%s178 + $0x1e4] sm:$0xff]
        %v1353 = vld [vmem:[%s178 + $0x208] sm:$0xff]
        %v1354 = vld [vmem:[%s178 + $0x22c] sm:$0xff]
        %v1355 = vld [vmem:[%s178 + $0x250] sm:$0xff]
        %v1356 = vld [vmem:[%s178 + $0x274] sm:$0xff]
        %v1357 = vld [vmem:[%s178 + $0x298] sm:$0xff]
        %v1358 = vld [vmem:[%s178 + $0x2bc] sm:$0xff]
        %v1359 = vld [vmem:[%s178 + $0x2e0] sm:$0xff]
        %v1360 = vld [vmem:[%s178 + $0x304] sm:$0xff]
        %v1361 = vld [vmem:[%s178 + $0x328] sm:$0xff]
        %v1362 = vld [vmem:[%s178 + $0x34c] sm:$0xff]
        %s1363 = scalar_lea.vmem [#allocation5], 384
        %v1364 = vld [vmem:[%s1363] sm:$0xf]
        %v1365 = vld [vmem:[%s1363 + $0x4] sm:$0xf]
        %v1366 = vld [vmem:[%s1363 + $0x8] sm:$0xf]
        %v1367 = vld [vmem:[%s1363 + $0xc] sm:$0xf]
        %v1368 = vld [vmem:[%s1363 + $0x10] sm:$0xf]
        %v1369 = vld [vmem:[%s1363 + $0x14] sm:$0xf]
        %v1370 = vld [vmem:[%s1363 + $0x18] sm:$0xf]
        %v1371 = vld [vmem:[%s1363 + $0x1c] sm:$0xf]
        %v1372 = vld [vmem:[%s1363 + $0x20] sm:$0xf]
        %v1373 = vld [vmem:[%s1363 + $0x24] sm:$0xf]
        %v1374 = vld [vmem:[%s1363 + $0x28] sm:$0xf]
        %v1375 = vld [vmem:[%s1363 + $0x2c] sm:$0xf]
        %v1376 = vld [vmem:[%s1363 + $0x30] sm:$0xf]
        %v1377 = vld [vmem:[%s1363 + $0x34] sm:$0xf]
        %v1378 = vld [vmem:[%s1363 + $0x38] sm:$0xf]
        %v1379 = vld [vmem:[%s1363 + $0x3c] sm:$0xf]
        %v1380 = vld [vmem:[%s1363 + $0x40] sm:$0xf]
        %v1381 = vld [vmem:[%s1363 + $0x44] sm:$0xf]
        %v1382 = vld [vmem:[%s1363 + $0x48] sm:$0xf]
        %v1383 = vld [vmem:[%s1363 + $0x4c] sm:$0xf]
        %v1384 = vld [vmem:[%s1363 + $0x50] sm:$0xf]
        %v1385 = vld [vmem:[%s1363 + $0x54] sm:$0xf]
        %v1386 = vld [vmem:[%s1363 + $0x58] sm:$0xf]
        %v1387 = vld [vmem:[%s1363 + $0x5c] sm:$0xf]
        %v1388 = vld [vmem:[%s1363 + $0x60] sm:$0xf]
        %v1389 = vld [vmem:[%s1363 + $0x64] sm:$0xf]
        %v1390 = vld [vmem:[%s1363 + $0x68] sm:$0xf]
        %v1391 = vld [vmem:[%s1363 + $0x6c] sm:$0xf]
        %v1392 = vld [vmem:[%s1363 + $0x70] sm:$0xf]
        %v1393 = vld [vmem:[%s1363 + $0x74] sm:$0xf]
        %v1394 = vld [vmem:[%s1363 + $0x78] sm:$0xf]
        %v1395 = vld [vmem:[%s1363 + $0x7c] sm:$0xf]
        %v1420 = vunpack.c.l.b16 %v1339
        %v1421 = vunpack.c.h.b16 %v1339
        %v1422 = vunpack.c.l.b16 %v1340
        %v1423 = vunpack.c.h.b16 %v1340
        %v1424 = vunpack.c.l.b16 %v1341
        %v1425 = vunpack.c.h.b16 %v1341
        %v1426 = vunpack.c.l.b16 %v1342
        %v1427 = vunpack.c.h.b16 %v1342
        %v1428 = vunpack.c.l.b16 %v1343
        %v1429 = vunpack.c.h.b16 %v1343
        %v1430 = vunpack.c.l.b16 %v1344
        %v1431 = vunpack.c.h.b16 %v1344
        %v1432 = vunpack.c.l.b16 %v1345
        %v1433 = vunpack.c.h.b16 %v1345
        %v1434 = vunpack.c.l.b16 %v1346
        %v1435 = vunpack.c.h.b16 %v1346
        %v1436 = vunpack.c.l.b16 %v1347
        %v1437 = vunpack.c.h.b16 %v1347
        %v1438 = vunpack.c.l.b16 %v1348
        %v1439 = vunpack.c.h.b16 %v1348
        %v1440 = vunpack.c.l.b16 %v1349
        %v1441 = vunpack.c.h.b16 %v1349
        %v1442 = vunpack.c.l.b16 %v1350
        %v1443 = vunpack.c.h.b16 %v1350
        %v1444 = vunpack.c.l.b16 %v1351
        %v1445 = vunpack.c.h.b16 %v1351
        %v1446 = vunpack.c.l.b16 %v1352
        %v1447 = vunpack.c.h.b16 %v1352
        %v1448 = vunpack.c.l.b16 %v1353
        %v1449 = vunpack.c.h.b16 %v1353
        %v1450 = vunpack.c.l.b16 %v1354
        %v1451 = vunpack.c.h.b16 %v1354
        %v1452 = vunpack.c.l.b16 %v1355
        %v1453 = vunpack.c.h.b16 %v1355
        %v1454 = vunpack.c.l.b16 %v1356
        %v1455 = vunpack.c.h.b16 %v1356
        %v1456 = vunpack.c.l.b16 %v1357
        %v1457 = vunpack.c.h.b16 %v1357
        %v1458 = vunpack.c.l.b16 %v1358
        %v1459 = vunpack.c.h.b16 %v1358
        %v1460 = vunpack.c.l.b16 %v1359
        %v1461 = vunpack.c.h.b16 %v1359
        %v1462 = vunpack.c.l.b16 %v1360
        %v1463 = vunpack.c.h.b16 %v1360
        %v1464 = vunpack.c.l.b16 %v1361
        %v1465 = vunpack.c.h.b16 %v1361
        %v1466 = vunpack.c.l.b16 %v1362
        %v1467 = vunpack.c.h.b16 %v1362
        %v1468 = vpack.c.b16 %v1422, %v1420
        %v1469 = vpack.c.b16 %v1423, %v1421
        %v1470 = vpack.c.b16 %v1426, %v1424
        %v1471 = vpack.c.b16 %v1427, %v1425
        %v1472 = vpack.c.b16 %v1430, %v1428
        %v1473 = vpack.c.b16 %v1431, %v1429
        %v1474 = vpack.c.b16 %v1434, %v1432
        %v1475 = vpack.c.b16 %v1435, %v1433
        %v1476 = vpack.c.b16 %v1438, %v1436
        %v1477 = vpack.c.b16 %v1439, %v1437
        %v1478 = vpack.c.b16 %v1442, %v1440
        %v1479 = vpack.c.b16 %v1443, %v1441
        %v1480 = vpack.c.b16 %v1446, %v1444
        %v1481 = vpack.c.b16 %v1447, %v1445
        %v1482 = vpack.c.b16 %v1450, %v1448
        %v1483 = vpack.c.b16 %v1451, %v1449
        %v1484 = vpack.c.b16 %v1454, %v1452
        %v1485 = vpack.c.b16 %v1455, %v1453
        %v1486 = vpack.c.b16 %v1458, %v1456
        %v1487 = vpack.c.b16 %v1459, %v1457
        %v1488 = vpack.c.b16 %v1462, %v1460
        %v1489 = vpack.c.b16 %v1463, %v1461
        %v1490 = vpack.c.b16 %v1466, %v1464
        %v1491 = vpack.c.b16 %v1467, %v1465
        %v1548 = vunpack.c.l.b16 %v1364
        %v1549 = vunpack.c.l.b16 %v1365
        %v1550 = vunpack.c.l.b16 %v1366
        %v1551 = vunpack.c.l.b16 %v1367
        %v1552 = vunpack.c.l.b16 %v1368
        %v1553 = vunpack.c.l.b16 %v1369
        %v1554 = vunpack.c.l.b16 %v1370
        %v1555 = vunpack.c.l.b16 %v1371
        %v1556 = vunpack.c.l.b16 %v1372
        %v1557 = vunpack.c.l.b16 %v1373
        %v1558 = vunpack.c.l.b16 %v1374
        %v1559 = vunpack.c.l.b16 %v1375
        %v1560 = vunpack.c.l.b16 %v1376
        %v1561 = vunpack.c.l.b16 %v1377
        %v1562 = vunpack.c.l.b16 %v1378
        %v1563 = vunpack.c.l.b16 %v1379
        %v1564 = vunpack.c.l.b16 %v1380
        %v1565 = vunpack.c.l.b16 %v1381
        %v1566 = vunpack.c.l.b16 %v1382
        %v1567 = vunpack.c.l.b16 %v1383
        %v1568 = vunpack.c.l.b16 %v1384
        %v1569 = vunpack.c.l.b16 %v1385
        %v1570 = vunpack.c.l.b16 %v1386
        %v1571 = vunpack.c.l.b16 %v1387
        %v1572 = vunpack.c.l.b16 %v1388
        %v1573 = vunpack.c.l.b16 %v1389
        %v1574 = vunpack.c.l.b16 %v1390
        %v1575 = vunpack.c.l.b16 %v1391
        %v1576 = vunpack.c.l.b16 %v1392
        %v1577 = vunpack.c.l.b16 %v1393
        %v1578 = vunpack.c.l.b16 %v1394
        %v1579 = vunpack.c.l.b16 %v1395
        %v1580 = vpack.c.b16 %v1549, %v1548
        %v1581 = vpack.c.b16 %v1551, %v1550
        %v1582 = vpack.c.b16 %v1553, %v1552
        %v1583 = vpack.c.b16 %v1555, %v1554
        %v1584 = vpack.c.b16 %v1557, %v1556
        %v1585 = vpack.c.b16 %v1559, %v1558
        %v1586 = vpack.c.b16 %v1561, %v1560
        %v1587 = vpack.c.b16 %v1563, %v1562
        %v1588 = vpack.c.b16 %v1565, %v1564
        %v1589 = vpack.c.b16 %v1567, %v1566
        %v1590 = vpack.c.b16 %v1569, %v1568
        %v1591 = vpack.c.b16 %v1571, %v1570
        %v1592 = vpack.c.b16 %v1573, %v1572
        %v1593 = vpack.c.b16 %v1575, %v1574
        %v1594 = vpack.c.b16 %v1577, %v1576
        %v1595 = vpack.c.b16 %v1579, %v1578
        %1612 = vmatprep.subr.bf16.mxu0 0
        %1613 = vmatpush1.bf16.msra.mxu0 %v1580
        %1614 = vmatprep.subr.bf16.mxu0 0
        %1615 = vmatpush1.bf16.msra.mxu0 %v1581
        %1616 = vmatprep.subr.bf16.mxu0 0
        %1617 = vmatpush1.bf16.msra.mxu0 %v1582
        %1618 = vmatprep.subr.bf16.mxu0 0
        %1619 = vmatpush1.bf16.msra.mxu0 %v1583
        %1620 = vmatprep.subr.bf16.mxu0 0
        %1621 = vmatpush1.bf16.msra.mxu0 %v1584
        %1622 = vmatprep.subr.bf16.mxu0 0
        %1623 = vmatpush1.bf16.msra.mxu0 %v1585
        %1624 = vmatprep.subr.bf16.mxu0 0
        %1625 = vmatpush1.bf16.msra.mxu0 %v1586
        %1626 = vmatprep.subr.bf16.mxu0 0
        %1627 = vmatpush1.bf16.msra.mxu0 %v1587
        %1628 = vmatprep.subr.bf16.mxu0 0
        %1629 = vmatpush1.bf16.msra.mxu0 %v1588
        %1630 = vmatprep.subr.bf16.mxu0 0
        %1631 = vmatpush1.bf16.msra.mxu0 %v1589
        %1632 = vmatprep.subr.bf16.mxu0 0
        %1633 = vmatpush1.bf16.msra.mxu0 %v1590
        %1634 = vmatprep.subr.bf16.mxu0 0
        %1635 = vmatpush1.bf16.msra.mxu0 %v1591
        %1636 = vmatprep.subr.bf16.mxu0 0
        %1637 = vmatpush1.bf16.msra.mxu0 %v1592
        %1638 = vmatprep.subr.bf16.mxu0 0
        %1639 = vmatpush1.bf16.msra.mxu0 %v1593
        %1640 = vmatprep.subr.bf16.mxu0 0
        %1641 = vmatpush1.bf16.msra.mxu0 %v1594
        %1642 = vmatprep.subr.bf16.mxu0 0
        %1643 = vmatpush1.bf16.msra.mxu0 %v1595
        %1644 = vmatprep.mubr.bf16.mxu0 %v1469
        %1645 = vmatmul.mubr.bf16.gmra.mrb[0].mxu0 %v1468
        %v1646 = vpop.f32.mrb[0].mxu0
        %v1647 = vadd.f32 0.0, %v1646
        %v1648 = vpop.f32.mrb[0].mxu0
        %v1649 = vpop.f32.mrb[0].mxu0
        %v1650 = vadd.f32 0.0, %v1649
        %v1651 = vpop.f32.mrb[0].mxu0
        %1652 = vmatprep.mubr.bf16.mxu0 %v1471
        %1653 = vmatmul.mubr.bf16.gmra.mrb[0].mxu0 %v1470
        %v1654 = vpop.f32.mrb[0].mxu0
        %v1655 = vadd.f32 0.0, %v1654
        %v1656 = vpop.f32.mrb[0].mxu0
        %v1657 = vpop.f32.mrb[0].mxu0
        %v1658 = vadd.f32 0.0, %v1657
        %v1659 = vpop.f32.mrb[0].mxu0
        %1660 = vmatprep.mubr.bf16.mxu0 %v1473
        %1661 = vmatmul.mubr.bf16.gmra.mrb[0].mxu0 %v1472
        %v1662 = vpop.f32.mrb[0].mxu0
        %v1663 = vadd.f32 0.0, %v1662
        %v1664 = vpop.f32.mrb[0].mxu0
        %v1665 = vpop.f32.mrb[0].mxu0
        %v1666 = vadd.f32 0.0, %v1665
        %v1667 = vpop.f32.mrb[0].mxu0
        %1668 = vmatprep.mubr.bf16.mxu0 %v1475
        %1669 = vmatmul.mubr.bf16.gmra.mrb[0].mxu0 %v1474
        %v1670 = vpop.f32.mrb[0].mxu0
        %v1671 = vadd.f32 0.0, %v1670
        %v1672 = vpop.f32.mrb[0].mxu0
        %v1673 = vpop.f32.mrb[0].mxu0
        %v1674 = vadd.f32 0.0, %v1673
        %v1675 = vpop.f32.mrb[0].mxu0
        %1676 = vmatprep.mubr.bf16.mxu0 %v1477
        %1677 = vmatmul.mubr.bf16.gmra.mrb[0].mxu0 %v1476
        %v1678 = vpop.f32.mrb[0].mxu0
        %v1679 = vadd.f32 0.0, %v1678
        %v1680 = vpop.f32.mrb[0].mxu0
        %v1681 = vpop.f32.mrb[0].mxu0
        %v1682 = vadd.f32 0.0, %v1681
        %v1683 = vpop.f32.mrb[0].mxu0
        %1684 = vmatprep.mubr.bf16.mxu0 %v1479
        %1685 = vmatmul.mubr.bf16.gmra.mrb[0].mxu0 %v1478
        %v1686 = vpop.f32.mrb[0].mxu0
        %v1687 = vadd.f32 0.0, %v1686
        %v1688 = vpop.f32.mrb[0].mxu0
        %v1689 = vpop.f32.mrb[0].mxu0
        %v1690 = vadd.f32 0.0, %v1689
        %v1691 = vpop.f32.mrb[0].mxu0
        %1692 = vmatprep.mubr.bf16.mxu0 %v1481
        %1693 = vmatmul.mubr.bf16.gmra.mrb[0].mxu0 %v1480
        %v1694 = vpop.f32.mrb[0].mxu0
        %v1695 = vadd.f32 0.0, %v1694
        %v1696 = vpop.f32.mrb[0].mxu0
        %v1697 = vpop.f32.mrb[0].mxu0
        %v1698 = vadd.f32 0.0, %v1697
        %v1699 = vpop.f32.mrb[0].mxu0
        %1700 = vmatprep.mubr.bf16.mxu0 %v1483
        %1701 = vmatmul.mubr.bf16.gmra.mrb[0].mxu0 %v1482
        %v1702 = vpop.f32.mrb[0].mxu0
        %v1703 = vadd.f32 0.0, %v1702
        %v1704 = vpop.f32.mrb[0].mxu0
        %v1705 = vpop.f32.mrb[0].mxu0
        %v1706 = vadd.f32 0.0, %v1705
        %v1707 = vpop.f32.mrb[0].mxu0
        %1708 = vmatprep.mubr.bf16.mxu0 %v1485
        %1709 = vmatmul.mubr.bf16.gmra.mrb[0].mxu0 %v1484
        %v1710 = vpop.f32.mrb[0].mxu0
        %v1711 = vadd.f32 0.0, %v1710
        %v1712 = vpop.f32.mrb[0].mxu0
        %v1713 = vpop.f32.mrb[0].mxu0
        %v1714 = vadd.f32 0.0, %v1713
        %v1715 = vpop.f32.mrb[0].mxu0
        %1716 = vmatprep.mubr.bf16.mxu0 %v1487
        %1717 = vmatmul.mubr.bf16.gmra.mrb[0].mxu0 %v1486
        %v1718 = vpop.f32.mrb[0].mxu0
        %v1719 = vadd.f32 0.0, %v1718
        %v1720 = vpop.f32.mrb[0].mxu0
        %v1721 = vpop.f32.mrb[0].mxu0
        %v1722 = vadd.f32 0.0, %v1721
        %v1723 = vpop.f32.mrb[0].mxu0
        %1724 = vmatprep.mubr.bf16.mxu0 %v1489
        %1725 = vmatmul.mubr.bf16.gmra.mrb[0].mxu0 %v1488
        %v1726 = vpop.f32.mrb[0].mxu0
        %v1727 = vadd.f32 0.0, %v1726
        %v1728 = vpop.f32.mrb[0].mxu0
        %v1729 = vpop.f32.mrb[0].mxu0
        %v1730 = vadd.f32 0.0, %v1729
        %v1731 = vpop.f32.mrb[0].mxu0
        %1732 = vmatprep.mubr.bf16.mxu0 %v1491
        %1733 = vmatmul.mubr.bf16.gmra.mrb[0].mxu0 %v1490
        %v1734 = vpop.f32.mrb[0].mxu0
        %v1735 = vadd.f32 0.0, %v1734
        %v1736 = vpop.f32.mrb[0].mxu0
        %v1737 = vpop.f32.mrb[0].mxu0
        %v1738 = vadd.f32 0.0, %v1737
        %v1739 = vpop.f32.mrb[0].mxu0
        %1740 = vdwg.mxu0
        %v1765 = vunpack.c.l.b16 %v1282
        %v1766 = vunpack.c.h.b16 %v1282
        %v1767 = vunpack.c.l.b16 %v1283
        %v1768 = vunpack.c.h.b16 %v1283
        %v1769 = vunpack.c.l.b16 %v1284
        %v1770 = vunpack.c.h.b16 %v1284
        %v1771 = vunpack.c.l.b16 %v1285
        %v1772 = vunpack.c.h.b16 %v1285
        %v1773 = vunpack.c.l.b16 %v1286
        %v1774 = vunpack.c.h.b16 %v1286
        %v1775 = vunpack.c.l.b16 %v1287
        %v1776 = vunpack.c.h.b16 %v1287
        %v1777 = vunpack.c.l.b16 %v1288
        %v1778 = vunpack.c.h.b16 %v1288
        %v1779 = vunpack.c.l.b16 %v1289
        %v1780 = vunpack.c.h.b16 %v1289
        %v1781 = vunpack.c.l.b16 %v1290
        %v1782 = vunpack.c.h.b16 %v1290
        %v1783 = vunpack.c.l.b16 %v1291
        %v1784 = vunpack.c.h.b16 %v1291
        %v1785 = vunpack.c.l.b16 %v1292
        %v1786 = vunpack.c.h.b16 %v1292
        %v1787 = vunpack.c.l.b16 %v1293
        %v1788 = vunpack.c.h.b16 %v1293
        %v1789 = vunpack.c.l.b16 %v1294
        %v1790 = vunpack.c.h.b16 %v1294
        %v1791 = vunpack.c.l.b16 %v1295
        %v1792 = vunpack.c.h.b16 %v1295
        %v1793 = vunpack.c.l.b16 %v1296
        %v1794 = vunpack.c.h.b16 %v1296
        %v1795 = vunpack.c.l.b16 %v1297
        %v1796 = vunpack.c.h.b16 %v1297
        %v1797 = vunpack.c.l.b16 %v1298
        %v1798 = vunpack.c.h.b16 %v1298
        %v1799 = vunpack.c.l.b16 %v1299
        %v1800 = vunpack.c.h.b16 %v1299
        %v1801 = vunpack.c.l.b16 %v1300
        %v1802 = vunpack.c.h.b16 %v1300
        %v1803 = vunpack.c.l.b16 %v1301
        %v1804 = vunpack.c.h.b16 %v1301
        %v1805 = vunpack.c.l.b16 %v1302
        %v1806 = vunpack.c.h.b16 %v1302
        %v1807 = vunpack.c.l.b16 %v1303
        %v1808 = vunpack.c.h.b16 %v1303
        %v1809 = vunpack.c.l.b16 %v1304
        %v1810 = vunpack.c.h.b16 %v1304
        %v1811 = vunpack.c.l.b16 %v1305
        %v1812 = vunpack.c.h.b16 %v1305
        %v1813 = vpack.c.b16 %v1767, %v1765
        %v1814 = vpack.c.b16 %v1768, %v1766
        %v1815 = vpack.c.b16 %v1771, %v1769
        %v1816 = vpack.c.b16 %v1772, %v1770
        %v1817 = vpack.c.b16 %v1775, %v1773
        %v1818 = vpack.c.b16 %v1776, %v1774
        %v1819 = vpack.c.b16 %v1779, %v1777
        %v1820 = vpack.c.b16 %v1780, %v1778
        %v1821 = vpack.c.b16 %v1783, %v1781
        %v1822 = vpack.c.b16 %v1784, %v1782
        %v1823 = vpack.c.b16 %v1787, %v1785
        %v1824 = vpack.c.b16 %v1788, %v1786
        %v1825 = vpack.c.b16 %v1791, %v1789
        %v1826 = vpack.c.b16 %v1792, %v1790
        %v1827 = vpack.c.b16 %v1795, %v1793
        %v1828 = vpack.c.b16 %v1796, %v1794
        %v1829 = vpack.c.b16 %v1799, %v1797
        %v1830 = vpack.c.b16 %v1800, %v1798
        %v1831 = vpack.c.b16 %v1803, %v1801
        %v1832 = vpack.c.b16 %v1804, %v1802
        %v1833 = vpack.c.b16 %v1807, %v1805
        %v1834 = vpack.c.b16 %v1808, %v1806
        %v1835 = vpack.c.b16 %v1811, %v1809
        %v1836 = vpack.c.b16 %v1812, %v1810
        %v1893 = vunpack.c.l.b16 %v1307
        %v1894 = vunpack.c.l.b16 %v1308
        %v1895 = vunpack.c.l.b16 %v1309
        %v1896 = vunpack.c.l.b16 %v1310
        %v1897 = vunpack.c.l.b16 %v1311
        %v1898 = vunpack.c.l.b16 %v1312
        %v1899 = vunpack.c.l.b16 %v1313
        %v1900 = vunpack.c.l.b16 %v1314
        %v1901 = vunpack.c.l.b16 %v1315
        %v1902 = vunpack.c.l.b16 %v1316
        %v1903 = vunpack.c.l.b16 %v1317
        %v1904 = vunpack.c.l.b16 %v1318
        %v1905 = vunpack.c.l.b16 %v1319
        %v1906 = vunpack.c.l.b16 %v1320
        %v1907 = vunpack.c.l.b16 %v1321
        %v1908 = vunpack.c.l.b16 %v1322
        %v1909 = vunpack.c.l.b16 %v1323
        %v1910 = vunpack.c.l.b16 %v1324
        %v1911 = vunpack.c.l.b16 %v1325
        %v1912 = vunpack.c.l.b16 %v1326
        %v1913 = vunpack.c.l.b16 %v1327
        %v1914 = vunpack.c.l.b16 %v1328
        %v1915 = vunpack.c.l.b16 %v1329
        %v1916 = vunpack.c.l.b16 %v1330
        %v1917 = vunpack.c.l.b16 %v1331
        %v1918 = vunpack.c.l.b16 %v1332
        %v1919 = vunpack.c.l.b16 %v1333
        %v1920 = vunpack.c.l.b16 %v1334
        %v1921 = vunpack.c.l.b16 %v1335
        %v1922 = vunpack.c.l.b16 %v1336
        %v1923 = vunpack.c.l.b16 %v1337
        %v1924 = vunpack.c.l.b16 %v1338
        %v1925 = vpack.c.b16 %v1894, %v1893
        %v1926 = vpack.c.b16 %v1896, %v1895
        %v1927 = vpack.c.b16 %v1898, %v1897
        %v1928 = vpack.c.b16 %v1900, %v1899
        %v1929 = vpack.c.b16 %v1902, %v1901
        %v1930 = vpack.c.b16 %v1904, %v1903
        %v1931 = vpack.c.b16 %v1906, %v1905
        %v1932 = vpack.c.b16 %v1908, %v1907
        %v1933 = vpack.c.b16 %v1910, %v1909
        %v1934 = vpack.c.b16 %v1912, %v1911
        %v1935 = vpack.c.b16 %v1914, %v1913
        %v1936 = vpack.c.b16 %v1916, %v1915
        %v1937 = vpack.c.b16 %v1918, %v1917
        %v1938 = vpack.c.b16 %v1920, %v1919
        %v1939 = vpack.c.b16 %v1922, %v1921
        %v1940 = vpack.c.b16 %v1924, %v1923
        %1957 = vmatprep.subr.bf16.mxu0 0
        %1958 = vmatpush1.bf16.msra.mxu0 %v1925
        %1959 = vmatprep.subr.bf16.mxu0 0
        %1960 = vmatpush1.bf16.msra.mxu0 %v1926
        %1961 = vmatprep.subr.bf16.mxu0 0
        %1962 = vmatpush1.bf16.msra.mxu0 %v1927
        %1963 = vmatprep.subr.bf16.mxu0 0
        %1964 = vmatpush1.bf16.msra.mxu0 %v1928
        %1965 = vmatprep.subr.bf16.mxu0 0
        %1966 = vmatpush1.bf16.msra.mxu0 %v1929
        %1967 = vmatprep.subr.bf16.mxu0 0
        %1968 = vmatpush1.bf16.msra.mxu0 %v1930
        %1969 = vmatprep.subr.bf16.mxu0 0
        %1970 = vmatpush1.bf16.msra.mxu0 %v1931
        %1971 = vmatprep.subr.bf16.mxu0 0
        %1972 = vmatpush1.bf16.msra.mxu0 %v1932
        %1973 = vmatprep.subr.bf16.mxu0 0
        %1974 = vmatpush1.bf16.msra.mxu0 %v1933
        %1975 = vmatprep.subr.bf16.mxu0 0
        %1976 = vmatpush1.bf16.msra.mxu0 %v1934
        %1977 = vmatprep.subr.bf16.mxu0 0
        %1978 = vmatpush1.bf16.msra.mxu0 %v1935
        %1979 = vmatprep.subr.bf16.mxu0 0
        %1980 = vmatpush1.bf16.msra.mxu0 %v1936
        %1981 = vmatprep.subr.bf16.mxu0 0
        %1982 = vmatpush1.bf16.msra.mxu0 %v1937
        %1983 = vmatprep.subr.bf16.mxu0 0
        %1984 = vmatpush1.bf16.msra.mxu0 %v1938
        %1985 = vmatprep.subr.bf16.mxu0 0
        %1986 = vmatpush1.bf16.msra.mxu0 %v1939
        %1987 = vmatprep.subr.bf16.mxu0 0
        %1988 = vmatpush1.bf16.msra.mxu0 %v1940
        %1989 = vmatprep.mubr.bf16.mxu0 %v1814
        %1990 = vmatmul.mubr.bf16.gmra.mrb[0].mxu0 %v1813
        %v1991 = vpop.f32.mrb[0].mxu0
        %v1992 = vadd.f32 %v1647, %v1991
        %v1993 = vpop.f32.mrb[0].mxu0
        %v1994 = vpop.f32.mrb[0].mxu0
        %v1995 = vadd.f32 %v1650, %v1994
        %v1996 = vpop.f32.mrb[0].mxu0
        %1997 = vmatprep.mubr.bf16.mxu0 %v1816
        %1998 = vmatmul.mubr.bf16.gmra.mrb[0].mxu0 %v1815
        %v1999 = vpop.f32.mrb[0].mxu0
        %v2000 = vadd.f32 %v1655, %v1999
        %v2001 = vpop.f32.mrb[0].mxu0
        %v2002 = vpop.f32.mrb[0].mxu0
        %v2003 = vadd.f32 %v1658, %v2002
        %v2004 = vpop.f32.mrb[0].mxu0
        %2005 = vmatprep.mubr.bf16.mxu0 %v1818
        %2006 = vmatmul.mubr.bf16.gmra.mrb[0].mxu0 %v1817
        %v2007 = vpop.f32.mrb[0].mxu0
        %v2008 = vadd.f32 %v1663, %v2007
        %v2009 = vpop.f32.mrb[0].mxu0
        %v2010 = vpop.f32.mrb[0].mxu0
        %v2011 = vadd.f32 %v1666, %v2010
        %v2012 = vpop.f32.mrb[0].mxu0
        %2013 = vmatprep.mubr.bf16.mxu0 %v1820
        %2014 = vmatmul.mubr.bf16.gmra.mrb[0].mxu0 %v1819
        %v2015 = vpop.f32.mrb[0].mxu0
        %v2016 = vadd.f32 %v1671, %v2015
        %v2017 = vpop.f32.mrb[0].mxu0
        %v2018 = vpop.f32.mrb[0].mxu0
        %v2019 = vadd.f32 %v1674, %v2018
        %v2020 = vpop.f32.mrb[0].mxu0
        %2021 = vmatprep.mubr.bf16.mxu0 %v1822
        %2022 = vmatmul.mubr.bf16.gmra.mrb[0].mxu0 %v1821
        %v2023 = vpop.f32.mrb[0].mxu0
        %v2024 = vadd.f32 %v1679, %v2023
        %v2025 = vpop.f32.mrb[0].mxu0
        %v2026 = vpop.f32.mrb[0].mxu0
        %v2027 = vadd.f32 %v1682, %v2026
        %v2028 = vpop.f32.mrb[0].mxu0
        %2029 = vmatprep.mubr.bf16.mxu0 %v1824
        %2030 = vmatmul.mubr.bf16.gmra.mrb[0].mxu0 %v1823
        %v2031 = vpop.f32.mrb[0].mxu0
        %v2032 = vadd.f32 %v1687, %v2031
        %v2033 = vpop.f32.mrb[0].mxu0
        %v2034 = vpop.f32.mrb[0].mxu0
        %v2035 = vadd.f32 %v1690, %v2034
        %v2036 = vpop.f32.mrb[0].mxu0
        %2037 = vmatprep.mubr.bf16.mxu0 %v1826
        %2038 = vmatmul.mubr.bf16.gmra.mrb[0].mxu0 %v1825
        %v2039 = vpop.f32.mrb[0].mxu0
        %v2040 = vadd.f32 %v1695, %v2039
        %v2041 = vpop.f32.mrb[0].mxu0
        %v2042 = vpop.f32.mrb[0].mxu0
        %v2043 = vadd.f32 %v1698, %v2042
        %v2044 = vpop.f32.mrb[0].mxu0
        %2045 = vmatprep.mubr.bf16.mxu0 %v1828
        %2046 = vmatmul.mubr.bf16.gmra.mrb[0].mxu0 %v1827
        %v2047 = vpop.f32.mrb[0].mxu0
        %v2048 = vadd.f32 %v1703, %v2047
        %v2049 = vpop.f32.mrb[0].mxu0
        %v2050 = vpop.f32.mrb[0].mxu0
        %v2051 = vadd.f32 %v1706, %v2050
        %v2052 = vpop.f32.mrb[0].mxu0
        %2053 = vmatprep.mubr.bf16.mxu0 %v1830
        %2054 = vmatmul.mubr.bf16.gmra.mrb[0].mxu0 %v1829
        %v2055 = vpop.f32.mrb[0].mxu0
        %v2056 = vadd.f32 %v1711, %v2055
        %v2057 = vpop.f32.mrb[0].mxu0
        %v2058 = vpop.f32.mrb[0].mxu0
        %v2059 = vadd.f32 %v1714, %v2058
        %v2060 = vpop.f32.mrb[0].mxu0
        %2061 = vmatprep.mubr.bf16.mxu0 %v1832
        %2062 = vmatmul.mubr.bf16.gmra.mrb[0].mxu0 %v1831
        %v2063 = vpop.f32.mrb[0].mxu0
        %v2064 = vadd.f32 %v1719, %v2063
        %v2065 = vpop.f32.mrb[0].mxu0
        %v2066 = vpop.f32.mrb[0].mxu0
        %v2067 = vadd.f32 %v1722, %v2066
        %v2068 = vpop.f32.mrb[0].mxu0
        %2069 = vmatprep.mubr.bf16.mxu0 %v1834
        %2070 = vmatmul.mubr.bf16.gmra.mrb[0].mxu0 %v1833
        %v2071 = vpop.f32.mrb[0].mxu0
        %v2072 = vadd.f32 %v1727, %v2071
        %v2073 = vpop.f32.mrb[0].mxu0
        %v2074 = vpop.f32.mrb[0].mxu0
        %v2075 = vadd.f32 %v1730, %v2074
        %v2076 = vpop.f32.mrb[0].mxu0
        %2077 = vmatprep.mubr.bf16.mxu0 %v1836
        %2078 = vmatmul.mubr.bf16.gmra.mrb[0].mxu0 %v1835
        %v2079 = vpop.f32.mrb[0].mxu0
        %v2080 = vadd.f32 %v1735, %v2079
        %v2081 = vpop.f32.mrb[0].mxu0
        %v2082 = vpop.f32.mrb[0].mxu0
        %v2083 = vadd.f32 %v1738, %v2082
        %v2084 = vpop.f32.mrb[0].mxu0
        %2085 = vdwg.mxu0
        %v2086 = vadd.f32 %v1992, %v213
        %v2087 = vadd.f32 %v1995, %v213
        %v2088 = vadd.f32 %v2000, %v213
        %v2089 = vadd.f32 %v2003, %v213
        %v2090 = vadd.f32 %v2008, %v213
        %v2091 = vadd.f32 %v2011, %v213
        %v2092 = vadd.f32 %v2016, %v213
        %v2093 = vadd.f32 %v2019, %v213
        %v2094 = vadd.f32 %v2024, %v213
        %v2095 = vadd.f32 %v2027, %v213
        %v2096 = vadd.f32 %v2032, %v213
        %v2097 = vadd.f32 %v2035, %v213
        %v2098 = vadd.f32 %v2040, %v213
        %v2099 = vadd.f32 %v2043, %v213
        %v2100 = vadd.f32 %v2048, %v213
        %v2101 = vadd.f32 %v2051, %v213
        %v2102 = vadd.f32 %v2056, %v213
        %v2103 = vadd.f32 %v2059, %v213
        %v2104 = vadd.f32 %v2064, %v213
        %v2105 = vadd.f32 %v2067, %v213
        %v2106 = vadd.f32 %v2072, %v213
        %v2107 = vadd.f32 %v2075, %v213
        %v2108 = vadd.f32 %v2080, %v213
        %v2109 = vadd.f32 %v2083, %v213
        %v2110 = vmul.f32 %v2086, 0.5
        %v2111 = vmul.f32 %v2087, 0.5
        %v2112 = vmul.f32 %v2088, 0.5
        %v2113 = vmul.f32 %v2089, 0.5
        %v2114 = vmul.f32 %v2090, 0.5
        %v2115 = vmul.f32 %v2091, 0.5
        %v2116 = vmul.f32 %v2092, 0.5
        %v2117 = vmul.f32 %v2093, 0.5
        %v2118 = vmul.f32 %v2094, 0.5
        %v2119 = vmul.f32 %v2095, 0.5
        %v2120 = vmul.f32 %v2096, 0.5
        %v2121 = vmul.f32 %v2097, 0.5
        %v2122 = vmul.f32 %v2098, 0.5
        %v2123 = vmul.f32 %v2099, 0.5
        %v2124 = vmul.f32 %v2100, 0.5
        %v2125 = vmul.f32 %v2101, 0.5
        %v2126 = vmul.f32 %v2102, 0.5
        %v2127 = vmul.f32 %v2103, 0.5
        %v2128 = vmul.f32 %v2104, 0.5
        %v2129 = vmul.f32 %v2105, 0.5
        %v2130 = vmul.f32 %v2106, 0.5
        %v2131 = vmul.f32 %v2107, 0.5
        %v2132 = vmul.f32 %v2108, 0.5
        %v2133 = vmul.f32 %v2109, 0.5
        %v2134 = vtanh.pop %v2110
        %v2135 = vtanh.pop %v2111
        %v2136 = vtanh.pop %v2112
        %v2137 = vtanh.pop %v2113
        %v2138 = vtanh.pop %v2114
        %v2139 = vtanh.pop %v2115
        %v2140 = vtanh.pop %v2116
        %v2141 = vtanh.pop %v2117
        %v2142 = vtanh.pop %v2118
        %v2143 = vtanh.pop %v2119
        %v2144 = vtanh.pop %v2120
        %v2145 = vtanh.pop %v2121
        %v2146 = vtanh.pop %v2122
        %v2147 = vtanh.pop %v2123
        %v2148 = vtanh.pop %v2124
        %v2149 = vtanh.pop %v2125
        %v2150 = vtanh.pop %v2126
        %v2151 = vtanh.pop %v2127
        %v2152 = vtanh.pop %v2128
        %v2153 = vtanh.pop %v2129
        %v2154 = vtanh.pop %v2130
        %v2155 = vtanh.pop %v2131
        %v2156 = vtanh.pop %v2132
        %v2157 = vtanh.pop %v2133
        %v2158 = vmul.f32 %v2134, 0.5
        %v2159 = vmul.f32 %v2135, 0.5
        %v2160 = vmul.f32 %v2136, 0.5
        %v2161 = vmul.f32 %v2137, 0.5
        %v2162 = vmul.f32 %v2138, 0.5
        %v2163 = vmul.f32 %v2139, 0.5
        %v2164 = vmul.f32 %v2140, 0.5
        %v2165 = vmul.f32 %v2141, 0.5
        %v2166 = vmul.f32 %v2142, 0.5
        %v2167 = vmul.f32 %v2143, 0.5
        %v2168 = vmul.f32 %v2144, 0.5
        %v2169 = vmul.f32 %v2145, 0.5
        %v2170 = vmul.f32 %v2146, 0.5
        %v2171 = vmul.f32 %v2147, 0.5
        %v2172 = vmul.f32 %v2148, 0.5
        %v2173 = vmul.f32 %v2149, 0.5
        %v2174 = vmul.f32 %v2150, 0.5
        %v2175 = vmul.f32 %v2151, 0.5
        %v2176 = vmul.f32 %v2152, 0.5
        %v2177 = vmul.f32 %v2153, 0.5
        %v2178 = vmul.f32 %v2154, 0.5
        %v2179 = vmul.f32 %v2155, 0.5
        %v2180 = vmul.f32 %v2156, 0.5
        %v2181 = vmul.f32 %v2157, 0.5
        %v2182 = vadd.f32 %v2158, 0.5
        %v2183 = vadd.f32 %v2159, 0.5
        %v2184 = vadd.f32 %v2160, 0.5
        %v2185 = vadd.f32 %v2161, 0.5
        %v2186 = vadd.f32 %v2162, 0.5
        %v2187 = vadd.f32 %v2163, 0.5
        %v2188 = vadd.f32 %v2164, 0.5
        %v2189 = vadd.f32 %v2165, 0.5
        %v2190 = vadd.f32 %v2166, 0.5
        %v2191 = vadd.f32 %v2167, 0.5
        %v2192 = vadd.f32 %v2168, 0.5
        %v2193 = vadd.f32 %v2169, 0.5
        %v2194 = vadd.f32 %v2170, 0.5
        %v2195 = vadd.f32 %v2171, 0.5
        %v2196 = vadd.f32 %v2172, 0.5
        %v2197 = vadd.f32 %v2173, 0.5
        %v2198 = vadd.f32 %v2174, 0.5
        %v2199 = vadd.f32 %v2175, 0.5
        %v2200 = vadd.f32 %v2176, 0.5
        %v2201 = vadd.f32 %v2177, 0.5
        %v2202 = vadd.f32 %v2178, 0.5
        %v2203 = vadd.f32 %v2179, 0.5
        %v2204 = vadd.f32 %v2180, 0.5
        %v2205 = vadd.f32 %v2181, 0.5
        %v2206 = vmul.f32 %v2086, %v2182
        %v2207 = vmul.f32 %v2087, %v2183
        %v2208 = vmul.f32 %v2088, %v2184
        %v2209 = vmul.f32 %v2089, %v2185
        %v2210 = vmul.f32 %v2090, %v2186
        %v2211 = vmul.f32 %v2091, %v2187
        %v2212 = vmul.f32 %v2092, %v2188
        %v2213 = vmul.f32 %v2093, %v2189
        %v2214 = vmul.f32 %v2094, %v2190
        %v2215 = vmul.f32 %v2095, %v2191
        %v2216 = vmul.f32 %v2096, %v2192
        %v2217 = vmul.f32 %v2097, %v2193
        %v2218 = vmul.f32 %v2098, %v2194
        %v2219 = vmul.f32 %v2099, %v2195
        %v2220 = vmul.f32 %v2100, %v2196
        %v2221 = vmul.f32 %v2101, %v2197
        %v2222 = vmul.f32 %v2102, %v2198
        %v2223 = vmul.f32 %v2103, %v2199
        %v2224 = vmul.f32 %v2104, %v2200
        %v2225 = vmul.f32 %v2105, %v2201
        %v2226 = vmul.f32 %v2106, %v2202
        %v2227 = vmul.f32 %v2107, %v2203
        %v2228 = vmul.f32 %v2108, %v2204
        %v2229 = vmul.f32 %v2109, %v2205
        %v2230 = vpack.c.bf16 %v2207, %v2206
        %v2231 = vpack.c.bf16 %v2209, %v2208
        %v2232 = vpack.c.bf16 %v2211, %v2210
        %v2233 = vpack.c.bf16 %v2213, %v2212
        %v2234 = vpack.c.bf16 %v2215, %v2214
        %v2235 = vpack.c.bf16 %v2217, %v2216
        %v2236 = vpack.c.bf16 %v2219, %v2218
        %v2237 = vpack.c.bf16 %v2221, %v2220
        %v2238 = vpack.c.bf16 %v2223, %v2222
        %v2239 = vpack.c.bf16 %v2225, %v2224
        %v2240 = vpack.c.bf16 %v2227, %v2226
        %v2241 = vpack.c.bf16 %v2229, %v2228
        %v2254 = vunpack.c.l.b16 %v2230
        %v2255 = vunpack.c.h.b16 %v2230
        %v2256 = vunpack.c.l.b16 %v2231
        %v2257 = vunpack.c.h.b16 %v2231
        %v2258 = vunpack.c.l.b16 %v2232
        %v2259 = vunpack.c.h.b16 %v2232
        %v2260 = vunpack.c.l.b16 %v2233
        %v2261 = vunpack.c.h.b16 %v2233
        %v2262 = vunpack.c.l.b16 %v2234
        %v2263 = vunpack.c.h.b16 %v2234
        %v2264 = vunpack.c.l.b16 %v2235
        %v2265 = vunpack.c.h.b16 %v2235
        %v2266 = vunpack.c.l.b16 %v2236
        %v2267 = vunpack.c.h.b16 %v2236
        %v2268 = vunpack.c.l.b16 %v2237
        %v2269 = vunpack.c.h.b16 %v2237
        %v2270 = vunpack.c.l.b16 %v2238
        %v2271 = vunpack.c.h.b16 %v2238
        %v2272 = vunpack.c.l.b16 %v2239
        %v2273 = vunpack.c.h.b16 %v2239
        %v2274 = vunpack.c.l.b16 %v2240
        %v2275 = vunpack.c.h.b16 %v2240
        %v2276 = vunpack.c.l.b16 %v2241
        %v2277 = vunpack.c.h.b16 %v2241
        %v2278 = vpack.c.b16 %v2254, %v2254
        %v2279 = vpack.c.b16 %v2255, %v2255
        %v2280 = vpack.c.b16 %v2256, %v2256
        %v2281 = vpack.c.b16 %v2257, %v2257
        %v2282 = vpack.c.b16 %v2258, %v2258
        %v2283 = vpack.c.b16 %v2259, %v2259
        %v2284 = vpack.c.b16 %v2260, %v2260
        %v2285 = vpack.c.b16 %v2261, %v2261
        %v2286 = vpack.c.b16 %v2262, %v2262
        %v2287 = vpack.c.b16 %v2263, %v2263
        %v2288 = vpack.c.b16 %v2264, %v2264
        %v2289 = vpack.c.b16 %v2265, %v2265
        %v2290 = vpack.c.b16 %v2266, %v2266
        %v2291 = vpack.c.b16 %v2267, %v2267
        %v2292 = vpack.c.b16 %v2268, %v2268
        %v2293 = vpack.c.b16 %v2269, %v2269
        %v2294 = vpack.c.b16 %v2270, %v2270
        %v2295 = vpack.c.b16 %v2271, %v2271
        %v2296 = vpack.c.b16 %v2272, %v2272
        %v2297 = vpack.c.b16 %v2273, %v2273
        %v2298 = vpack.c.b16 %v2274, %v2274
        %v2299 = vpack.c.b16 %v2275, %v2275
        %v2300 = vpack.c.b16 %v2276, %v2276
        %v2301 = vpack.c.b16 %v2277, %v2277
        %s2326 = scalar_lea.vmem %s204, 96 [#allocation7]
        %2327 = vst [vmem:[%s2326] sm:$0xf] %v2278
        %2328 = vst [vmem:[%s2326 + $0x4] sm:$0xf] %v2279
        %2329 = vst [vmem:[%s2326 + $0x8] sm:$0xf] %v2280
        %2330 = vst [vmem:[%s2326 + $0xc] sm:$0xf] %v2281
        %2331 = vst [vmem:[%s2326 + $0x10] sm:$0xf] %v2282
        %2332 = vst [vmem:[%s2326 + $0x14] sm:$0xf] %v2283
        %2333 = vst [vmem:[%s2326 + $0x18] sm:$0xf] %v2284
        %2334 = vst [vmem:[%s2326 + $0x1c] sm:$0xf] %v2285
        %2335 = vst [vmem:[%s2326 + $0x20] sm:$0xf] %v2286
        %2336 = vst [vmem:[%s2326 + $0x24] sm:$0xf] %v2287
        %2337 = vst [vmem:[%s2326 + $0x28] sm:$0xf] %v2288
        %2338 = vst [vmem:[%s2326 + $0x2c] sm:$0xf] %v2289
        %2339 = vst [vmem:[%s2326 + $0x30] sm:$0xf] %v2290
        %2340 = vst [vmem:[%s2326 + $0x34] sm:$0xf] %v2291
        %2341 = vst [vmem:[%s2326 + $0x38] sm:$0xf] %v2292
        %2342 = vst [vmem:[%s2326 + $0x3c] sm:$0xf] %v2293
        %2343 = vst [vmem:[%s2326 + $0x40] sm:$0xf] %v2294
        %2344 = vst [vmem:[%s2326 + $0x44] sm:$0xf] %v2295
        %2345 = vst [vmem:[%s2326 + $0x48] sm:$0xf] %v2296
        %2346 = vst [vmem:[%s2326 + $0x4c] sm:$0xf] %v2297
        %2347 = vst [vmem:[%s2326 + $0x50] sm:$0xf] %v2298
        %2348 = vst [vmem:[%s2326 + $0x54] sm:$0xf] %v2299
        %2349 = vst [vmem:[%s2326 + $0x58] sm:$0xf] %v2300
        %2350 = vst [vmem:[%s2326 + $0x5c] sm:$0xf] %v2301
        %v2351 = vld [vmem:[%s178 + $0xc] sm:$0xff]
        %v2352 = vld [vmem:[%s178 + $0x30] sm:$0xff]
        %v2353 = vld [vmem:[%s178 + $0x54] sm:$0xff]
        %v2354 = vld [vmem:[%s178 + $0x78] sm:$0xff]
        %v2355 = vld [vmem:[%s178 + $0x9c] sm:$0xff]
        %v2356 = vld [vmem:[%s178 + $0xc0] sm:$0xff]
        %v2357 = vld [vmem:[%s178 + $0xe4] sm:$0xff]
        %v2358 = vld [vmem:[%s178 + $0x108] sm:$0xff]
        %v2359 = vld [vmem:[%s178 + $0x12c] sm:$0xff]
        %v2360 = vld [vmem:[%s178 + $0x150] sm:$0xff]
        %v2361 = vld [vmem:[%s178 + $0x174] sm:$0xff]
        %v2362 = vld [vmem:[%s178 + $0x198] sm:$0xff]
        %v2363 = vld [vmem:[%s178 + $0x1bc] sm:$0xff]
        %v2364 = vld [vmem:[%s178 + $0x1e0] sm:$0xff]
        %v2365 = vld [vmem:[%s178 + $0x204] sm:$0xff]
        %v2366 = vld [vmem:[%s178 + $0x228] sm:$0xff]
        %v2367 = vld [vmem:[%s178 + $0x24c] sm:$0xff]
        %v2368 = vld [vmem:[%s178 + $0x270] sm:$0xff]
        %v2369 = vld [vmem:[%s178 + $0x294] sm:$0xff]
        %v2370 = vld [vmem:[%s178 + $0x2b8] sm:$0xff]
        %v2371 = vld [vmem:[%s178 + $0x2dc] sm:$0xff]
        %v2372 = vld [vmem:[%s178 + $0x300] sm:$0xff]
        %v2373 = vld [vmem:[%s178 + $0x324] sm:$0xff]
        %v2374 = vld [vmem:[%s178 + $0x348] sm:$0xff]
        %s2375 = scalar_lea.vmem [#allocation5], 512
        %v2376 = vld [vmem:[%s2375] sm:$0xf]
        %v2377 = vld [vmem:[%s2375 + $0x4] sm:$0xf]
        %v2378 = vld [vmem:[%s2375 + $0x8] sm:$0xf]
        %v2379 = vld [vmem:[%s2375 + $0xc] sm:$0xf]
        %v2380 = vld [vmem:[%s2375 + $0x10] sm:$0xf]
        %v2381 = vld [vmem:[%s2375 + $0x14] sm:$0xf]
        %v2382 = vld [vmem:[%s2375 + $0x18] sm:$0xf]
        %v2383 = vld [vmem:[%s2375 + $0x1c] sm:$0xf]
        %v2384 = vld [vmem:[%s2375 + $0x20] sm:$0xf]
        %v2385 = vld [vmem:[%s2375 + $0x24] sm:$0xf]
        %v2386 = vld [vmem:[%s2375 + $0x28] sm:$0xf]
        %v2387 = vld [vmem:[%s2375 + $0x2c] sm:$0xf]
        %v2388 = vld [vmem:[%s2375 + $0x30] sm:$0xf]
        %v2389 = vld [vmem:[%s2375 + $0x34] sm:$0xf]
        %v2390 = vld [vmem:[%s2375 + $0x38] sm:$0xf]
        %v2391 = vld [vmem:[%s2375 + $0x3c] sm:$0xf]
        %v2392 = vld [vmem:[%s2375 + $0x40] sm:$0xf]
        %v2393 = vld [vmem:[%s2375 + $0x44] sm:$0xf]
        %v2394 = vld [vmem:[%s2375 + $0x48] sm:$0xf]
        %v2395 = vld [vmem:[%s2375 + $0x4c] sm:$0xf]
        %v2396 = vld [vmem:[%s2375 + $0x50] sm:$0xf]
        %v2397 = vld [vmem:[%s2375 + $0x54] sm:$0xf]
        %v2398 = vld [vmem:[%s2375 + $0x58] sm:$0xf]
        %v2399 = vld [vmem:[%s2375 + $0x5c] sm:$0xf]
        %v2400 = vld [vmem:[%s2375 + $0x60] sm:$0xf]
        %v2401 = vld [vmem:[%s2375 + $0x64] sm:$0xf]
        %v2402 = vld [vmem:[%s2375 + $0x68] sm:$0xf]
        %v2403 = vld [vmem:[%s2375 + $0x6c] sm:$0xf]
        %v2404 = vld [vmem:[%s2375 + $0x70] sm:$0xf]
        %v2405 = vld [vmem:[%s2375 + $0x74] sm:$0xf]
        %v2406 = vld [vmem:[%s2375 + $0x78] sm:$0xf]
        %v2407 = vld [vmem:[%s2375 + $0x7c] sm:$0xf]
        %v2408 = vld [vmem:[%s178 + $0x18] sm:$0xff]
        %v2409 = vld [vmem:[%s178 + $0x3c] sm:$0xff]
        %v2410 = vld [vmem:[%s178 + $0x60] sm:$0xff]
        %v2411 = vld [vmem:[%s178 + $0x84] sm:$0xff]
        %v2412 = vld [vmem:[%s178 + $0xa8] sm:$0xff]
        %v2413 = vld [vmem:[%s178 + $0xcc] sm:$0xff]
        %v2414 = vld [vmem:[%s178 + $0xf0] sm:$0xff]
        %v2415 = vld [vmem:[%s178 + $0x114] sm:$0xff]
        %v2416 = vld [vmem:[%s178 + $0x138] sm:$0xff]
        %v2417 = vld [vmem:[%s178 + $0x15c] sm:$0xff]
        %v2418 = vld [vmem:[%s178 + $0x180] sm:$0xff]
        %v2419 = vld [vmem:[%s178 + $0x1a4] sm:$0xff]
        %v2420 = vld [vmem:[%s178 + $0x1c8] sm:$0xff]
        %v2421 = vld [vmem:[%s178 + $0x1ec] sm:$0xff]
        %v2422 = vld [vmem:[%s178 + $0x210] sm:$0xff]
        %v2423 = vld [vmem:[%s178 + $0x234] sm:$0xff]
        %v2424 = vld [vmem:[%s178 + $0x258] sm:$0xff]
        %v2425 = vld [vmem:[%s178 + $0x27c] sm:$0xff]
        %v2426 = vld [vmem:[%s178 + $0x2a0] sm:$0xff]
        %v2427 = vld [vmem:[%s178 + $0x2c4] sm:$0xff]
        %v2428 = vld [vmem:[%s178 + $0x2e8] sm:$0xff]
        %v2429 = vld [vmem:[%s178 + $0x30c] sm:$0xff]
        %v2430 = vld [vmem:[%s178 + $0x330] sm:$0xff]
        %v2431 = vld [vmem:[%s178 + $0x354] sm:$0xff]
        %s2432 = scalar_lea.vmem [#allocation5], 640
        %v2433 = vld [vmem:[%s2432] sm:$0xf]
        %v2434 = vld [vmem:[%s2432 + $0x4] sm:$0xf]
        %v2435 = vld [vmem:[%s2432 + $0x8] sm:$0xf]
        %v2436 = vld [vmem:[%s2432 + $0xc] sm:$0xf]
        %v2437 = vld [vmem:[%s2432 + $0x10] sm:$0xf]
        %v2438 = vld [vmem:[%s2432 + $0x14] sm:$0xf]
        %v2439 = vld [vmem:[%s2432 + $0x18] sm:$0xf]
        %v2440 = vld [vmem:[%s2432 + $0x1c] sm:$0xf]
        %v2441 = vld [vmem:[%s2432 + $0x20] sm:$0xf]
        %v2442 = vld [vmem:[%s2432 + $0x24] sm:$0xf]
        %v2443 = vld [vmem:[%s2432 + $0x28] sm:$0xf]
        %v2444 = vld [vmem:[%s2432 + $0x2c] sm:$0xf]
        %v2445 = vld [vmem:[%s2432 + $0x30] sm:$0xf]
        %v2446 = vld [vmem:[%s2432 + $0x34] sm:$0xf]
        %v2447 = vld [vmem:[%s2432 + $0x38] sm:$0xf]
        %v2448 = vld [vmem:[%s2432 + $0x3c] sm:$0xf]
        %v2449 = vld [vmem:[%s2432 + $0x40] sm:$0xf]
        %v2450 = vld [vmem:[%s2432 + $0x44] sm:$0xf]
        %v2451 = vld [vmem:[%s2432 + $0x48] sm:$0xf]
        %v2452 = vld [vmem:[%s2432 + $0x4c] sm:$0xf]
        %v2453 = vld [vmem:[%s2432 + $0x50] sm:$0xf]
        %v2454 = vld [vmem:[%s2432 + $0x54] sm:$0xf]
        %v2455 = vld [vmem:[%s2432 + $0x58] sm:$0xf]
        %v2456 = vld [vmem:[%s2432 + $0x5c] sm:$0xf]
        %v2457 = vld [vmem:[%s2432 + $0x60] sm:$0xf]
        %v2458 = vld [vmem:[%s2432 + $0x64] sm:$0xf]
        %v2459 = vld [vmem:[%s2432 + $0x68] sm:$0xf]
        %v2460 = vld [vmem:[%s2432 + $0x6c] sm:$0xf]
        %v2461 = vld [vmem:[%s2432 + $0x70] sm:$0xf]
        %v2462 = vld [vmem:[%s2432 + $0x74] sm:$0xf]
        %v2463 = vld [vmem:[%s2432 + $0x78] sm:$0xf]
        %v2464 = vld [vmem:[%s2432 + $0x7c] sm:$0xf]
        %v2489 = vunpack.c.l.b16 %v2408
        %v2490 = vunpack.c.h.b16 %v2408
        %v2491 = vunpack.c.l.b16 %v2409
        %v2492 = vunpack.c.h.b16 %v2409
        %v2493 = vunpack.c.l.b16 %v2410
        %v2494 = vunpack.c.h.b16 %v2410
        %v2495 = vunpack.c.l.b16 %v2411
        %v2496 = vunpack.c.h.b16 %v2411
        %v2497 = vunpack.c.l.b16 %v2412
        %v2498 = vunpack.c.h.b16 %v2412
        %v2499 = vunpack.c.l.b16 %v2413
        %v2500 = vunpack.c.h.b16 %v2413
        %v2501 = vunpack.c.l.b16 %v2414
        %v2502 = vunpack.c.h.b16 %v2414
        %v2503 = vunpack.c.l.b16 %v2415
        %v2504 = vunpack.c.h.b16 %v2415
        %v2505 = vunpack.c.l.b16 %v2416
        %v2506 = vunpack.c.h.b16 %v2416
        %v2507 = vunpack.c.l.b16 %v2417
        %v2508 = vunpack.c.h.b16 %v2417
        %v2509 = vunpack.c.l.b16 %v2418
        %v2510 = vunpack.c.h.b16 %v2418
        %v2511 = vunpack.c.l.b16 %v2419
        %v2512 = vunpack.c.h.b16 %v2419
        %v2513 = vunpack.c.l.b16 %v2420
        %v2514 = vunpack.c.h.b16 %v2420
        %v2515 = vunpack.c.l.b16 %v2421
        %v2516 = vunpack.c.h.b16 %v2421
        %v2517 = vunpack.c.l.b16 %v2422
        %v2518 = vunpack.c.h.b16 %v2422
        %v2519 = vunpack.c.l.b16 %v2423
        %v2520 = vunpack.c.h.b16 %v2423
        %v2521 = vunpack.c.l.b16 %v2424
        %v2522 = vunpack.c.h.b16 %v2424
        %v2523 = vunpack.c.l.b16 %v2425
        %v2524 = vunpack.c.h.b16 %v2425
        %v2525 = vunpack.c.l.b16 %v2426
        %v2526 = vunpack.c.h.b16 %v2426
        %v2527 = vunpack.c.l.b16 %v2427
        %v2528 = vunpack.c.h.b16 %v2427
        %v2529 = vunpack.c.l.b16 %v2428
        %v2530 = vunpack.c.h.b16 %v2428
        %v2531 = vunpack.c.l.b16 %v2429
        %v2532 = vunpack.c.h.b16 %v2429
        %v2533 = vunpack.c.l.b16 %v2430
        %v2534 = vunpack.c.h.b16 %v2430
        %v2535 = vunpack.c.l.b16 %v2431
        %v2536 = vunpack.c.h.b16 %v2431
        %v2537 = vpack.c.b16 %v2491, %v2489
        %v2538 = vpack.c.b16 %v2492, %v2490
        %v2539 = vpack.c.b16 %v2495, %v2493
        %v2540 = vpack.c.b16 %v2496, %v2494
        %v2541 = vpack.c.b16 %v2499, %v2497
        %v2542 = vpack.c.b16 %v2500, %v2498
        %v2543 = vpack.c.b16 %v2503, %v2501
        %v2544 = vpack.c.b16 %v2504, %v2502
        %v2545 = vpack.c.b16 %v2507, %v2505
        %v2546 = vpack.c.b16 %v2508, %v2506
        %v2547 = vpack.c.b16 %v2511, %v2509
        %v2548 = vpack.c.b16 %v2512, %v2510
        %v2549 = vpack.c.b16 %v2515, %v2513
        %v2550 = vpack.c.b16 %v2516, %v2514
        %v2551 = vpack.c.b16 %v2519, %v2517
        %v2552 = vpack.c.b16 %v2520, %v2518
        %v2553 = vpack.c.b16 %v2523, %v2521
        %v2554 = vpack.c.b16 %v2524, %v2522
        %v2555 = vpack.c.b16 %v2527, %v2525
        %v2556 = vpack.c.b16 %v2528, %v2526
        %v2557 = vpack.c.b16 %v2531, %v2529
        %v2558 = vpack.c.b16 %v2532, %v2530
        %v2559 = vpack.c.b16 %v2535, %v2533
        %v2560 = vpack.c.b16 %v2536, %v2534
        %v2617 = vunpack.c.l.b16 %v2433
        %v2618 = vunpack.c.l.b16 %v2434
        %v2619 = vunpack.c.l.b16 %v2435
        %v2620 = vunpack.c.l.b16 %v2436
        %v2621 = vunpack.c.l.b16 %v2437
        %v2622 = vunpack.c.l.b16 %v2438
        %v2623 = vunpack.c.l.b16 %v2439
        %v2624 = vunpack.c.l.b16 %v2440
        %v2625 = vunpack.c.l.b16 %v2441
        %v2626 = vunpack.c.l.b16 %v2442
        %v2627 = vunpack.c.l.b16 %v2443
        %v2628 = vunpack.c.l.b16 %v2444
        %v2629 = vunpack.c.l.b16 %v2445
        %v2630 = vunpack.c.l.b16 %v2446
        %v2631 = vunpack.c.l.b16 %v2447
        %v2632 = vunpack.c.l.b16 %v2448
        %v2633 = vunpack.c.l.b16 %v2449
        %v2634 = vunpack.c.l.b16 %v2450
        %v2635 = vunpack.c.l.b16 %v2451
        %v2636 = vunpack.c.l.b16 %v2452
        %v2637 = vunpack.c.l.b16 %v2453
        %v2638 = vunpack.c.l.b16 %v2454
        %v2639 = vunpack.c.l.b16 %v2455
        %v2640 = vunpack.c.l.b16 %v2456
        %v2641 = vunpack.c.l.b16 %v2457
        %v2642 = vunpack.c.l.b16 %v2458
        %v2643 = vunpack.c.l.b16 %v2459
        %v2644 = vunpack.c.l.b16 %v2460
        %v2645 = vunpack.c.l.b16 %v2461
        %v2646 = vunpack.c.l.b16 %v2462
        %v2647 = vunpack.c.l.b16 %v2463
        %v2648 = vunpack.c.l.b16 %v2464
        %v2649 = vpack.c.b16 %v2618, %v2617
        %v2650 = vpack.c.b16 %v2620, %v2619
        %v2651 = vpack.c.b16 %v2622, %v2621
        %v2652 = vpack.c.b16 %v2624, %v2623
        %v2653 = vpack.c.b16 %v2626, %v2625
        %v2654 = vpack.c.b16 %v2628, %v2627
        %v2655 = vpack.c.b16 %v2630, %v2629
        %v2656 = vpack.c.b16 %v2632, %v2631
        %v2657 = vpack.c.b16 %v2634, %v2633
        %v2658 = vpack.c.b16 %v2636, %v2635
        %v2659 = vpack.c.b16 %v2638, %v2637
        %v2660 = vpack.c.b16 %v2640, %v2639
        %v2661 = vpack.c.b16 %v2642, %v2641
        %v2662 = vpack.c.b16 %v2644, %v2643
        %v2663 = vpack.c.b16 %v2646, %v2645
        %v2664 = vpack.c.b16 %v2648, %v2647
        %2681 = vmatprep.subr.bf16.mxu0 0
        %2682 = vmatpush1.bf16.msra.mxu0 %v2649
        %2683 = vmatprep.subr.bf16.mxu0 0
        %2684 = vmatpush1.bf16.msra.mxu0 %v2650
        %2685 = vmatprep.subr.bf16.mxu0 0
        %2686 = vmatpush1.bf16.msra.mxu0 %v2651
        %2687 = vmatprep.subr.bf16.mxu0 0
        %2688 = vmatpush1.bf16.msra.mxu0 %v2652
        %2689 = vmatprep.subr.bf16.mxu0 0
        %2690 = vmatpush1.bf16.msra.mxu0 %v2653
        %2691 = vmatprep.subr.bf16.mxu0 0
        %2692 = vmatpush1.bf16.msra.mxu0 %v2654
        %2693 = vmatprep.subr.bf16.mxu0 0
        %2694 = vmatpush1.bf16.msra.mxu0 %v2655
        %2695 = vmatprep.subr.bf16.mxu0 0
        %2696 = vmatpush1.bf16.msra.mxu0 %v2656
        %2697 = vmatprep.subr.bf16.mxu0 0
        %2698 = vmatpush1.bf16.msra.mxu0 %v2657
        %2699 = vmatprep.subr.bf16.mxu0 0
        %2700 = vmatpush1.bf16.msra.mxu0 %v2658
        %2701 = vmatprep.subr.bf16.mxu0 0
        %2702 = vmatpush1.bf16.msra.mxu0 %v2659
        %2703 = vmatprep.subr.bf16.mxu0 0
        %2704 = vmatpush1.bf16.msra.mxu0 %v2660
        %2705 = vmatprep.subr.bf16.mxu0 0
        %2706 = vmatpush1.bf16.msra.mxu0 %v2661
        %2707 = vmatprep.subr.bf16.mxu0 0
        %2708 = vmatpush1.bf16.msra.mxu0 %v2662
        %2709 = vmatprep.subr.bf16.mxu0 0
        %2710 = vmatpush1.bf16.msra.mxu0 %v2663
        %2711 = vmatprep.subr.bf16.mxu0 0
        %2712 = vmatpush1.bf16.msra.mxu0 %v2664
        %2713 = vmatprep.mubr.bf16.mxu0 %v2538
        %2714 = vmatmul.mubr.bf16.gmra.mrb[0].mxu0 %v2537
        %v2715 = vpop.f32.mrb[0].mxu0
        %v2716 = vadd.f32 0.0, %v2715
        %v2717 = vpop.f32.mrb[0].mxu0
        %v2718 = vpop.f32.mrb[0].mxu0
        %v2719 = vadd.f32 0.0, %v2718
        %v2720 = vpop.f32.mrb[0].mxu0
        %2721 = vmatprep.mubr.bf16.mxu0 %v2540
        %2722 = vmatmul.mubr.bf16.gmra.mrb[0].mxu0 %v2539
        %v2723 = vpop.f32.mrb[0].mxu0
        %v2724 = vadd.f32 0.0, %v2723
        %v2725 = vpop.f32.mrb[0].mxu0
        %v2726 = vpop.f32.mrb[0].mxu0
        %v2727 = vadd.f32 0.0, %v2726
        %v2728 = vpop.f32.mrb[0].mxu0
        %2729 = vmatprep.mubr.bf16.mxu0 %v2542
        %2730 = vmatmul.mubr.bf16.gmra.mrb[0].mxu0 %v2541
        %v2731 = vpop.f32.mrb[0].mxu0
        %v2732 = vadd.f32 0.0, %v2731
        %v2733 = vpop.f32.mrb[0].mxu0
        %v2734 = vpop.f32.mrb[0].mxu0
        %v2735 = vadd.f32 0.0, %v2734
        %v2736 = vpop.f32.mrb[0].mxu0
        %2737 = vmatprep.mubr.bf16.mxu0 %v2544
        %2738 = vmatmul.mubr.bf16.gmra.mrb[0].mxu0 %v2543
        %v2739 = vpop.f32.mrb[0].mxu0
        %v2740 = vadd.f32 0.0, %v2739
        %v2741 = vpop.f32.mrb[0].mxu0
        %v2742 = vpop.f32.mrb[0].mxu0
        %v2743 = vadd.f32 0.0, %v2742
        %v2744 = vpop.f32.mrb[0].mxu0
        %2745 = vmatprep.mubr.bf16.mxu0 %v2546
        %2746 = vmatmul.mubr.bf16.gmra.mrb[0].mxu0 %v2545
        %v2747 = vpop.f32.mrb[0].mxu0
        %v2748 = vadd.f32 0.0, %v2747
        %v2749 = vpop.f32.mrb[0].mxu0
        %v2750 = vpop.f32.mrb[0].mxu0
        %v2751 = vadd.f32 0.0, %v2750
        %v2752 = vpop.f32.mrb[0].mxu0
        %2753 = vmatprep.mubr.bf16.mxu0 %v2548
        %2754 = vmatmul.mubr.bf16.gmra.mrb[0].mxu0 %v2547
        %v2755 = vpop.f32.mrb[0].mxu0
        %v2756 = vadd.f32 0.0, %v2755
        %v2757 = vpop.f32.mrb[0].mxu0
        %v2758 = vpop.f32.mrb[0].mxu0
        %v2759 = vadd.f32 0.0, %v2758
        %v2760 = vpop.f32.mrb[0].mxu0
        %2761 = vmatprep.mubr.bf16.mxu0 %v2550
        %2762 = vmatmul.mubr.bf16.gmra.mrb[0].mxu0 %v2549
        %v2763 = vpop.f32.mrb[0].mxu0
        %v2764 = vadd.f32 0.0, %v2763
        %v2765 = vpop.f32.mrb[0].mxu0
        %v2766 = vpop.f32.mrb[0].mxu0
        %v2767 = vadd.f32 0.0, %v2766
        %v2768 = vpop.f32.mrb[0].mxu0
        %2769 = vmatprep.mubr.bf16.mxu0 %v2552
        %2770 = vmatmul.mubr.bf16.gmra.mrb[0].mxu0 %v2551
        %v2771 = vpop.f32.mrb[0].mxu0
        %v2772 = vadd.f32 0.0, %v2771
        %v2773 = vpop.f32.mrb[0].mxu0
        %v2774 = vpop.f32.mrb[0].mxu0
        %v2775 = vadd.f32 0.0, %v2774
        %v2776 = vpop.f32.mrb[0].mxu0
        %2777 = vmatprep.mubr.bf16.mxu0 %v2554
        %2778 = vmatmul.mubr.bf16.gmra.mrb[0].mxu0 %v2553
        %v2779 = vpop.f32.mrb[0].mxu0
        %v2780 = vadd.f32 0.0, %v2779
        %v2781 = vpop.f32.mrb[0].mxu0
        %v2782 = vpop.f32.mrb[0].mxu0
        %v2783 = vadd.f32 0.0, %v2782
        %v2784 = vpop.f32.mrb[0].mxu0
        %2785 = vmatprep.mubr.bf16.mxu0 %v2556
        %2786 = vmatmul.mubr.bf16.gmra.mrb[0].mxu0 %v2555
        %v2787 = vpop.f32.mrb[0].mxu0
        %v2788 = vadd.f32 0.0, %v2787
        %v2789 = vpop.f32.mrb[0].mxu0
        %v2790 = vpop.f32.mrb[0].mxu0
        %v2791 = vadd.f32 0.0, %v2790
        %v2792 = vpop.f32.mrb[0].mxu0
        %2793 = vmatprep.mubr.bf16.mxu0 %v2558
        %2794 = vmatmul.mubr.bf16.gmra.mrb[0].mxu0 %v2557
        %v2795 = vpop.f32.mrb[0].mxu0
        %v2796 = vadd.f32 0.0, %v2795
        %v2797 = vpop.f32.mrb[0].mxu0
        %v2798 = vpop.f32.mrb[0].mxu0
        %v2799 = vadd.f32 0.0, %v2798
        %v2800 = vpop.f32.mrb[0].mxu0
        %2801 = vmatprep.mubr.bf16.mxu0 %v2560
        %2802 = vmatmul.mubr.bf16.gmra.mrb[0].mxu0 %v2559
        %v2803 = vpop.f32.mrb[0].mxu0
        %v2804 = vadd.f32 0.0, %v2803
        %v2805 = vpop.f32.mrb[0].mxu0
        %v2806 = vpop.f32.mrb[0].mxu0
        %v2807 = vadd.f32 0.0, %v2806
        %v2808 = vpop.f32.mrb[0].mxu0
        %2809 = vdwg.mxu0
        %v2834 = vunpack.c.l.b16 %v2351
        %v2835 = vunpack.c.h.b16 %v2351
        %v2836 = vunpack.c.l.b16 %v2352
        %v2837 = vunpack.c.h.b16 %v2352
        %v2838 = vunpack.c.l.b16 %v2353
        %v2839 = vunpack.c.h.b16 %v2353
        %v2840 = vunpack.c.l.b16 %v2354
        %v2841 = vunpack.c.h.b16 %v2354
        %v2842 = vunpack.c.l.b16 %v2355
        %v2843 = vunpack.c.h.b16 %v2355
        %v2844 = vunpack.c.l.b16 %v2356
        %v2845 = vunpack.c.h.b16 %v2356
        %v2846 = vunpack.c.l.b16 %v2357
        %v2847 = vunpack.c.h.b16 %v2357
        %v2848 = vunpack.c.l.b16 %v2358
        %v2849 = vunpack.c.h.b16 %v2358
        %v2850 = vunpack.c.l.b16 %v2359
        %v2851 = vunpack.c.h.b16 %v2359
        %v2852 = vunpack.c.l.b16 %v2360
        %v2853 = vunpack.c.h.b16 %v2360
        %v2854 = vunpack.c.l.b16 %v2361
        %v2855 = vunpack.c.h.b16 %v2361
        %v2856 = vunpack.c.l.b16 %v2362
        %v2857 = vunpack.c.h.b16 %v2362
        %v2858 = vunpack.c.l.b16 %v2363
        %v2859 = vunpack.c.h.b16 %v2363
        %v2860 = vunpack.c.l.b16 %v2364
        %v2861 = vunpack.c.h.b16 %v2364
        %v2862 = vunpack.c.l.b16 %v2365
        %v2863 = vunpack.c.h.b16 %v2365
        %v2864 = vunpack.c.l.b16 %v2366
        %v2865 = vunpack.c.h.b16 %v2366
        %v2866 = vunpack.c.l.b16 %v2367
        %v2867 = vunpack.c.h.b16 %v2367
        %v2868 = vunpack.c.l.b16 %v2368
        %v2869 = vunpack.c.h.b16 %v2368
        %v2870 = vunpack.c.l.b16 %v2369
        %v2871 = vunpack.c.h.b16 %v2369
        %v2872 = vunpack.c.l.b16 %v2370
        %v2873 = vunpack.c.h.b16 %v2370
        %v2874 = vunpack.c.l.b16 %v2371
        %v2875 = vunpack.c.h.b16 %v2371
        %v2876 = vunpack.c.l.b16 %v2372
        %v2877 = vunpack.c.h.b16 %v2372
        %v2878 = vunpack.c.l.b16 %v2373
        %v2879 = vunpack.c.h.b16 %v2373
        %v2880 = vunpack.c.l.b16 %v2374
        %v2881 = vunpack.c.h.b16 %v2374
        %v2882 = vpack.c.b16 %v2836, %v2834
        %v2883 = vpack.c.b16 %v2837, %v2835
        %v2884 = vpack.c.b16 %v2840, %v2838
        %v2885 = vpack.c.b16 %v2841, %v2839
        %v2886 = vpack.c.b16 %v2844, %v2842
        %v2887 = vpack.c.b16 %v2845, %v2843
        %v2888 = vpack.c.b16 %v2848, %v2846
        %v2889 = vpack.c.b16 %v2849, %v2847
        %v2890 = vpack.c.b16 %v2852, %v2850
        %v2891 = vpack.c.b16 %v2853, %v2851
        %v2892 = vpack.c.b16 %v2856, %v2854
        %v2893 = vpack.c.b16 %v2857, %v2855
        %v2894 = vpack.c.b16 %v2860, %v2858
        %v2895 = vpack.c.b16 %v2861, %v2859
        %v2896 = vpack.c.b16 %v2864, %v2862
        %v2897 = vpack.c.b16 %v2865, %v2863
        %v2898 = vpack.c.b16 %v2868, %v2866
        %v2899 = vpack.c.b16 %v2869, %v2867
        %v2900 = vpack.c.b16 %v2872, %v2870
        %v2901 = vpack.c.b16 %v2873, %v2871
        %v2902 = vpack.c.b16 %v2876, %v2874
        %v2903 = vpack.c.b16 %v2877, %v2875
        %v2904 = vpack.c.b16 %v2880, %v2878
        %v2905 = vpack.c.b16 %v2881, %v2879
        %v2962 = vunpack.c.l.b16 %v2376
        %v2963 = vunpack.c.l.b16 %v2377
        %v2964 = vunpack.c.l.b16 %v2378
        %v2965 = vunpack.c.l.b16 %v2379
        %v2966 = vunpack.c.l.b16 %v2380
        %v2967 = vunpack.c.l.b16 %v2381
        %v2968 = vunpack.c.l.b16 %v2382
        %v2969 = vunpack.c.l.b16 %v2383
        %v2970 = vunpack.c.l.b16 %v2384
        %v2971 = vunpack.c.l.b16 %v2385
        %v2972 = vunpack.c.l.b16 %v2386
        %v2973 = vunpack.c.l.b16 %v2387
        %v2974 = vunpack.c.l.b16 %v2388
        %v2975 = vunpack.c.l.b16 %v2389
        %v2976 = vunpack.c.l.b16 %v2390
        %v2977 = vunpack.c.l.b16 %v2391
        %v2978 = vunpack.c.l.b16 %v2392
        %v2979 = vunpack.c.l.b16 %v2393
        %v2980 = vunpack.c.l.b16 %v2394
        %v2981 = vunpack.c.l.b16 %v2395
        %v2982 = vunpack.c.l.b16 %v2396
        %v2983 = vunpack.c.l.b16 %v2397
        %v2984 = vunpack.c.l.b16 %v2398
        %v2985 = vunpack.c.l.b16 %v2399
        %v2986 = vunpack.c.l.b16 %v2400
        %v2987 = vunpack.c.l.b16 %v2401
        %v2988 = vunpack.c.l.b16 %v2402
        %v2989 = vunpack.c.l.b16 %v2403
        %v2990 = vunpack.c.l.b16 %v2404
        %v2991 = vunpack.c.l.b16 %v2405
        %v2992 = vunpack.c.l.b16 %v2406
        %v2993 = vunpack.c.l.b16 %v2407
        %v2994 = vpack.c.b16 %v2963, %v2962
        %v2995 = vpack.c.b16 %v2965, %v2964
        %v2996 = vpack.c.b16 %v2967, %v2966
        %v2997 = vpack.c.b16 %v2969, %v2968
        %v2998 = vpack.c.b16 %v2971, %v2970
        %v2999 = vpack.c.b16 %v2973, %v2972
        %v3000 = vpack.c.b16 %v2975, %v2974
        %v3001 = vpack.c.b16 %v2977, %v2976
        %v3002 = vpack.c.b16 %v2979, %v2978
        %v3003 = vpack.c.b16 %v2981, %v2980
        %v3004 = vpack.c.b16 %v2983, %v2982
        %v3005 = vpack.c.b16 %v2985, %v2984
        %v3006 = vpack.c.b16 %v2987, %v2986
        %v3007 = vpack.c.b16 %v2989, %v2988
        %v3008 = vpack.c.b16 %v2991, %v2990
        %v3009 = vpack.c.b16 %v2993, %v2992
        %3026 = vmatprep.subr.bf16.mxu0 0
        %3027 = vmatpush1.bf16.msra.mxu0 %v2994
        %3028 = vmatprep.subr.bf16.mxu0 0
        %3029 = vmatpush1.bf16.msra.mxu0 %v2995
        %3030 = vmatprep.subr.bf16.mxu0 0
        %3031 = vmatpush1.bf16.msra.mxu0 %v2996
        %3032 = vmatprep.subr.bf16.mxu0 0
        %3033 = vmatpush1.bf16.msra.mxu0 %v2997
        %3034 = vmatprep.subr.bf16.mxu0 0
        %3035 = vmatpush1.bf16.msra.mxu0 %v2998
        %3036 = vmatprep.subr.bf16.mxu0 0
        %3037 = vmatpush1.bf16.msra.mxu0 %v2999
        %3038 = vmatprep.subr.bf16.mxu0 0
        %3039 = vmatpush1.bf16.msra.mxu0 %v3000
        %3040 = vmatprep.subr.bf16.mxu0 0
        %3041 = vmatpush1.bf16.msra.mxu0 %v3001
        %3042 = vmatprep.subr.bf16.mxu0 0
        %3043 = vmatpush1.bf16.msra.mxu0 %v3002
        %3044 = vmatprep.subr.bf16.mxu0 0
        %3045 = vmatpush1.bf16.msra.mxu0 %v3003
        %3046 = vmatprep.subr.bf16.mxu0 0
        %3047 = vmatpush1.bf16.msra.mxu0 %v3004
        %3048 = vmatprep.subr.bf16.mxu0 0
        %3049 = vmatpush1.bf16.msra.mxu0 %v3005
        %3050 = vmatprep.subr.bf16.mxu0 0
        %3051 = vmatpush1.bf16.msra.mxu0 %v3006
        %3052 = vmatprep.subr.bf16.mxu0 0
        %3053 = vmatpush1.bf16.msra.mxu0 %v3007
        %3054 = vmatprep.subr.bf16.mxu0 0
        %3055 = vmatpush1.bf16.msra.mxu0 %v3008
        %3056 = vmatprep.subr.bf16.mxu0 0
        %3057 = vmatpush1.bf16.msra.mxu0 %v3009
        %3058 = vmatprep.mubr.bf16.mxu0 %v2883
        %3059 = vmatmul.mubr.bf16.gmra.mrb[0].mxu0 %v2882
        %v3060 = vpop.f32.mrb[0].mxu0
        %v3061 = vadd.f32 %v2716, %v3060
        %v3062 = vpop.f32.mrb[0].mxu0
        %v3063 = vpop.f32.mrb[0].mxu0
        %v3064 = vadd.f32 %v2719, %v3063
        %v3065 = vpop.f32.mrb[0].mxu0
        %3066 = vmatprep.mubr.bf16.mxu0 %v2885
        %3067 = vmatmul.mubr.bf16.gmra.mrb[0].mxu0 %v2884
        %v3068 = vpop.f32.mrb[0].mxu0
        %v3069 = vadd.f32 %v2724, %v3068
        %v3070 = vpop.f32.mrb[0].mxu0
        %v3071 = vpop.f32.mrb[0].mxu0
        %v3072 = vadd.f32 %v2727, %v3071
        %v3073 = vpop.f32.mrb[0].mxu0
        %3074 = vmatprep.mubr.bf16.mxu0 %v2887
        %3075 = vmatmul.mubr.bf16.gmra.mrb[0].mxu0 %v2886
        %v3076 = vpop.f32.mrb[0].mxu0
        %v3077 = vadd.f32 %v2732, %v3076
        %v3078 = vpop.f32.mrb[0].mxu0
        %v3079 = vpop.f32.mrb[0].mxu0
        %v3080 = vadd.f32 %v2735, %v3079
        %v3081 = vpop.f32.mrb[0].mxu0
        %3082 = vmatprep.mubr.bf16.mxu0 %v2889
        %3083 = vmatmul.mubr.bf16.gmra.mrb[0].mxu0 %v2888
        %v3084 = vpop.f32.mrb[0].mxu0
        %v3085 = vadd.f32 %v2740, %v3084
        %v3086 = vpop.f32.mrb[0].mxu0
        %v3087 = vpop.f32.mrb[0].mxu0
        %v3088 = vadd.f32 %v2743, %v3087
        %v3089 = vpop.f32.mrb[0].mxu0
        %3090 = vmatprep.mubr.bf16.mxu0 %v2891
        %3091 = vmatmul.mubr.bf16.gmra.mrb[0].mxu0 %v2890
        %v3092 = vpop.f32.mrb[0].mxu0
        %v3093 = vadd.f32 %v2748, %v3092
        %v3094 = vpop.f32.mrb[0].mxu0
        %v3095 = vpop.f32.mrb[0].mxu0
        %v3096 = vadd.f32 %v2751, %v3095
        %v3097 = vpop.f32.mrb[0].mxu0
        %3098 = vmatprep.mubr.bf16.mxu0 %v2893
        %3099 = vmatmul.mubr.bf16.gmra.mrb[0].mxu0 %v2892
        %v3100 = vpop.f32.mrb[0].mxu0
        %v3101 = vadd.f32 %v2756, %v3100
        %v3102 = vpop.f32.mrb[0].mxu0
        %v3103 = vpop.f32.mrb[0].mxu0
        %v3104 = vadd.f32 %v2759, %v3103
        %v3105 = vpop.f32.mrb[0].mxu0
        %3106 = vmatprep.mubr.bf16.mxu0 %v2895
        %3107 = vmatmul.mubr.bf16.gmra.mrb[0].mxu0 %v2894
        %v3108 = vpop.f32.mrb[0].mxu0
        %v3109 = vadd.f32 %v2764, %v3108
        %v3110 = vpop.f32.mrb[0].mxu0
        %v3111 = vpop.f32.mrb[0].mxu0
        %v3112 = vadd.f32 %v2767, %v3111
        %v3113 = vpop.f32.mrb[0].mxu0
        %3114 = vmatprep.mubr.bf16.mxu0 %v2897
        %3115 = vmatmul.mubr.bf16.gmra.mrb[0].mxu0 %v2896
        %v3116 = vpop.f32.mrb[0].mxu0
        %v3117 = vadd.f32 %v2772, %v3116
        %v3118 = vpop.f32.mrb[0].mxu0
        %v3119 = vpop.f32.mrb[0].mxu0
        %v3120 = vadd.f32 %v2775, %v3119
        %v3121 = vpop.f32.mrb[0].mxu0
        %3122 = vmatprep.mubr.bf16.mxu0 %v2899
        %3123 = vmatmul.mubr.bf16.gmra.mrb[0].mxu0 %v2898
        %v3124 = vpop.f32.mrb[0].mxu0
        %v3125 = vadd.f32 %v2780, %v3124
        %v3126 = vpop.f32.mrb[0].mxu0
        %v3127 = vpop.f32.mrb[0].mxu0
        %v3128 = vadd.f32 %v2783, %v3127
        %v3129 = vpop.f32.mrb[0].mxu0
        %3130 = vmatprep.mubr.bf16.mxu0 %v2901
        %3131 = vmatmul.mubr.bf16.gmra.mrb[0].mxu0 %v2900
        %v3132 = vpop.f32.mrb[0].mxu0
        %v3133 = vadd.f32 %v2788, %v3132
        %v3134 = vpop.f32.mrb[0].mxu0
        %v3135 = vpop.f32.mrb[0].mxu0
        %v3136 = vadd.f32 %v2791, %v3135
        %v3137 = vpop.f32.mrb[0].mxu0
        %3138 = vmatprep.mubr.bf16.mxu0 %v2903
        %3139 = vmatmul.mubr.bf16.gmra.mrb[0].mxu0 %v2902
        %v3140 = vpop.f32.mrb[0].mxu0
        %v3141 = vadd.f32 %v2796, %v3140
        %v3142 = vpop.f32.mrb[0].mxu0
        %v3143 = vpop.f32.mrb[0].mxu0
        %v3144 = vadd.f32 %v2799, %v3143
        %v3145 = vpop.f32.mrb[0].mxu0
        %3146 = vmatprep.mubr.bf16.mxu0 %v2905
        %3147 = vmatmul.mubr.bf16.gmra.mrb[0].mxu0 %v2904
        %v3148 = vpop.f32.mrb[0].mxu0
        %v3149 = vadd.f32 %v2804, %v3148
        %v3150 = vpop.f32.mrb[0].mxu0
        %v3151 = vpop.f32.mrb[0].mxu0
        %v3152 = vadd.f32 %v2807, %v3151
        %v3153 = vpop.f32.mrb[0].mxu0
        %3154 = vdwg.mxu0
        %v3155 = vadd.f32 %v3061, %v213
        %v3156 = vadd.f32 %v3064, %v213
        %v3157 = vadd.f32 %v3069, %v213
        %v3158 = vadd.f32 %v3072, %v213
        %v3159 = vadd.f32 %v3077, %v213
        %v3160 = vadd.f32 %v3080, %v213
        %v3161 = vadd.f32 %v3085, %v213
        %v3162 = vadd.f32 %v3088, %v213
        %v3163 = vadd.f32 %v3093, %v213
        %v3164 = vadd.f32 %v3096, %v213
        %v3165 = vadd.f32 %v3101, %v213
        %v3166 = vadd.f32 %v3104, %v213
        %v3167 = vadd.f32 %v3109, %v213
        %v3168 = vadd.f32 %v3112, %v213
        %v3169 = vadd.f32 %v3117, %v213
        %v3170 = vadd.f32 %v3120, %v213
        %v3171 = vadd.f32 %v3125, %v213
        %v3172 = vadd.f32 %v3128, %v213
        %v3173 = vadd.f32 %v3133, %v213
        %v3174 = vadd.f32 %v3136, %v213
        %v3175 = vadd.f32 %v3141, %v213
        %v3176 = vadd.f32 %v3144, %v213
        %v3177 = vadd.f32 %v3149, %v213
        %v3178 = vadd.f32 %v3152, %v213
        %v3179 = vmul.f32 %v3155, 0.5
        %v3180 = vmul.f32 %v3156, 0.5
        %v3181 = vmul.f32 %v3157, 0.5
        %v3182 = vmul.f32 %v3158, 0.5
        %v3183 = vmul.f32 %v3159, 0.5
        %v3184 = vmul.f32 %v3160, 0.5
        %v3185 = vmul.f32 %v3161, 0.5
        %v3186 = vmul.f32 %v3162, 0.5
        %v3187 = vmul.f32 %v3163, 0.5
        %v3188 = vmul.f32 %v3164, 0.5
        %v3189 = vmul.f32 %v3165, 0.5
        %v3190 = vmul.f32 %v3166, 0.5
        %v3191 = vmul.f32 %v3167, 0.5
        %v3192 = vmul.f32 %v3168, 0.5
        %v3193 = vmul.f32 %v3169, 0.5
        %v3194 = vmul.f32 %v3170, 0.5
        %v3195 = vmul.f32 %v3171, 0.5
        %v3196 = vmul.f32 %v3172, 0.5
        %v3197 = vmul.f32 %v3173, 0.5
        %v3198 = vmul.f32 %v3174, 0.5
        %v3199 = vmul.f32 %v3175, 0.5
        %v3200 = vmul.f32 %v3176, 0.5
        %v3201 = vmul.f32 %v3177, 0.5
        %v3202 = vmul.f32 %v3178, 0.5
        %v3203 = vtanh.pop %v3179
        %v3204 = vtanh.pop %v3180
        %v3205 = vtanh.pop %v3181
        %v3206 = vtanh.pop %v3182
        %v3207 = vtanh.pop %v3183
        %v3208 = vtanh.pop %v3184
        %v3209 = vtanh.pop %v3185
        %v3210 = vtanh.pop %v3186
        %v3211 = vtanh.pop %v3187
        %v3212 = vtanh.pop %v3188
        %v3213 = vtanh.pop %v3189
        %v3214 = vtanh.pop %v3190
        %v3215 = vtanh.pop %v3191
        %v3216 = vtanh.pop %v3192
        %v3217 = vtanh.pop %v3193
        %v3218 = vtanh.pop %v3194
        %v3219 = vtanh.pop %v3195
        %v3220 = vtanh.pop %v3196
        %v3221 = vtanh.pop %v3197
        %v3222 = vtanh.pop %v3198
        %v3223 = vtanh.pop %v3199
        %v3224 = vtanh.pop %v3200
        %v3225 = vtanh.pop %v3201
        %v3226 = vtanh.pop %v3202
        %v3227 = vmul.f32 %v3203, 0.5
        %v3228 = vmul.f32 %v3204, 0.5
        %v3229 = vmul.f32 %v3205, 0.5
        %v3230 = vmul.f32 %v3206, 0.5
        %v3231 = vmul.f32 %v3207, 0.5
        %v3232 = vmul.f32 %v3208, 0.5
        %v3233 = vmul.f32 %v3209, 0.5
        %v3234 = vmul.f32 %v3210, 0.5
        %v3235 = vmul.f32 %v3211, 0.5
        %v3236 = vmul.f32 %v3212, 0.5
        %v3237 = vmul.f32 %v3213, 0.5
        %v3238 = vmul.f32 %v3214, 0.5
        %v3239 = vmul.f32 %v3215, 0.5
        %v3240 = vmul.f32 %v3216, 0.5
        %v3241 = vmul.f32 %v3217, 0.5
        %v3242 = vmul.f32 %v3218, 0.5
        %v3243 = vmul.f32 %v3219, 0.5
        %v3244 = vmul.f32 %v3220, 0.5
        %v3245 = vmul.f32 %v3221, 0.5
        %v3246 = vmul.f32 %v3222, 0.5
        %v3247 = vmul.f32 %v3223, 0.5
        %v3248 = vmul.f32 %v3224, 0.5
        %v3249 = vmul.f32 %v3225, 0.5
        %v3250 = vmul.f32 %v3226, 0.5
        %v3251 = vadd.f32 %v3227, 0.5
        %v3252 = vadd.f32 %v3228, 0.5
        %v3253 = vadd.f32 %v3229, 0.5
        %v3254 = vadd.f32 %v3230, 0.5
        %v3255 = vadd.f32 %v3231, 0.5
        %v3256 = vadd.f32 %v3232, 0.5
        %v3257 = vadd.f32 %v3233, 0.5
        %v3258 = vadd.f32 %v3234, 0.5
        %v3259 = vadd.f32 %v3235, 0.5
        %v3260 = vadd.f32 %v3236, 0.5
        %v3261 = vadd.f32 %v3237, 0.5
        %v3262 = vadd.f32 %v3238, 0.5
        %v3263 = vadd.f32 %v3239, 0.5
        %v3264 = vadd.f32 %v3240, 0.5
        %v3265 = vadd.f32 %v3241, 0.5
        %v3266 = vadd.f32 %v3242, 0.5
        %v3267 = vadd.f32 %v3243, 0.5
        %v3268 = vadd.f32 %v3244, 0.5
        %v3269 = vadd.f32 %v3245, 0.5
        %v3270 = vadd.f32 %v3246, 0.5
        %v3271 = vadd.f32 %v3247, 0.5
        %v3272 = vadd.f32 %v3248, 0.5
        %v3273 = vadd.f32 %v3249, 0.5
        %v3274 = vadd.f32 %v3250, 0.5
        %v3275 = vmul.f32 %v3155, %v3251
        %v3276 = vmul.f32 %v3156, %v3252
        %v3277 = vmul.f32 %v3157, %v3253
        %v3278 = vmul.f32 %v3158, %v3254
        %v3279 = vmul.f32 %v3159, %v3255
        %v3280 = vmul.f32 %v3160, %v3256
        %v3281 = vmul.f32 %v3161, %v3257
        %v3282 = vmul.f32 %v3162, %v3258
        %v3283 = vmul.f32 %v3163, %v3259
        %v3284 = vmul.f32 %v3164, %v3260
        %v3285 = vmul.f32 %v3165, %v3261
        %v3286 = vmul.f32 %v3166, %v3262
        %v3287 = vmul.f32 %v3167, %v3263
        %v3288 = vmul.f32 %v3168, %v3264
        %v3289 = vmul.f32 %v3169, %v3265
        %v3290 = vmul.f32 %v3170, %v3266
        %v3291 = vmul.f32 %v3171, %v3267
        %v3292 = vmul.f32 %v3172, %v3268
        %v3293 = vmul.f32 %v3173, %v3269
        %v3294 = vmul.f32 %v3174, %v3270
        %v3295 = vmul.f32 %v3175, %v3271
        %v3296 = vmul.f32 %v3176, %v3272
        %v3297 = vmul.f32 %v3177, %v3273
        %v3298 = vmul.f32 %v3178, %v3274
        %v3299 = vpack.c.bf16 %v3276, %v3275
        %v3300 = vpack.c.bf16 %v3278, %v3277
        %v3301 = vpack.c.bf16 %v3280, %v3279
        %v3302 = vpack.c.bf16 %v3282, %v3281
        %v3303 = vpack.c.bf16 %v3284, %v3283
        %v3304 = vpack.c.bf16 %v3286, %v3285
        %v3305 = vpack.c.bf16 %v3288, %v3287
        %v3306 = vpack.c.bf16 %v3290, %v3289
        %v3307 = vpack.c.bf16 %v3292, %v3291
        %v3308 = vpack.c.bf16 %v3294, %v3293
        %v3309 = vpack.c.bf16 %v3296, %v3295
        %v3310 = vpack.c.bf16 %v3298, %v3297
        %v3323 = vunpack.c.l.b16 %v3299
        %v3324 = vunpack.c.h.b16 %v3299
        %v3325 = vunpack.c.l.b16 %v3300
        %v3326 = vunpack.c.h.b16 %v3300
        %v3327 = vunpack.c.l.b16 %v3301
        %v3328 = vunpack.c.h.b16 %v3301
        %v3329 = vunpack.c.l.b16 %v3302
        %v3330 = vunpack.c.h.b16 %v3302
        %v3331 = vunpack.c.l.b16 %v3303
        %v3332 = vunpack.c.h.b16 %v3303
        %v3333 = vunpack.c.l.b16 %v3304
        %v3334 = vunpack.c.h.b16 %v3304
        %v3335 = vunpack.c.l.b16 %v3305
        %v3336 = vunpack.c.h.b16 %v3305
        %v3337 = vunpack.c.l.b16 %v3306
        %v3338 = vunpack.c.h.b16 %v3306
        %v3339 = vunpack.c.l.b16 %v3307
        %v3340 = vunpack.c.h.b16 %v3307
        %v3341 = vunpack.c.l.b16 %v3308
        %v3342 = vunpack.c.h.b16 %v3308
        %v3343 = vunpack.c.l.b16 %v3309
        %v3344 = vunpack.c.h.b16 %v3309
        %v3345 = vunpack.c.l.b16 %v3310
        %v3346 = vunpack.c.h.b16 %v3310
        %v3347 = vpack.c.b16 %v3323, %v3323
        %v3348 = vpack.c.b16 %v3324, %v3324
        %v3349 = vpack.c.b16 %v3325, %v3325
        %v3350 = vpack.c.b16 %v3326, %v3326
        %v3351 = vpack.c.b16 %v3327, %v3327
        %v3352 = vpack.c.b16 %v3328, %v3328
        %v3353 = vpack.c.b16 %v3329, %v3329
        %v3354 = vpack.c.b16 %v3330, %v3330
        %v3355 = vpack.c.b16 %v3331, %v3331
        %v3356 = vpack.c.b16 %v3332, %v3332
        %v3357 = vpack.c.b16 %v3333, %v3333
        %v3358 = vpack.c.b16 %v3334, %v3334
        %v3359 = vpack.c.b16 %v3335, %v3335
        %v3360 = vpack.c.b16 %v3336, %v3336
        %v3361 = vpack.c.b16 %v3337, %v3337
        %v3362 = vpack.c.b16 %v3338, %v3338
        %v3363 = vpack.c.b16 %v3339, %v3339
        %v3364 = vpack.c.b16 %v3340, %v3340
        %v3365 = vpack.c.b16 %v3341, %v3341
        %v3366 = vpack.c.b16 %v3342, %v3342
        %v3367 = vpack.c.b16 %v3343, %v3343
        %v3368 = vpack.c.b16 %v3344, %v3344
        %v3369 = vpack.c.b16 %v3345, %v3345
        %v3370 = vpack.c.b16 %v3346, %v3346
        %s3395 = scalar_lea.vmem %s204, 192 [#allocation7]
        %3396 = vst [vmem:[%s3395] sm:$0xf] %v3347
        %3397 = vst [vmem:[%s3395 + $0x4] sm:$0xf] %v3348
        %3398 = vst [vmem:[%s3395 + $0x8] sm:$0xf] %v3349
        %3399 = vst [vmem:[%s3395 + $0xc] sm:$0xf] %v3350
        %3400 = vst [vmem:[%s3395 + $0x10] sm:$0xf] %v3351
        %3401 = vst [vmem:[%s3395 + $0x14] sm:$0xf] %v3352
        %3402 = vst [vmem:[%s3395 + $0x18] sm:$0xf] %v3353
        %3403 = vst [vmem:[%s3395 + $0x1c] sm:$0xf] %v3354
        %3404 = vst [vmem:[%s3395 + $0x20] sm:$0xf] %v3355
        %3405 = vst [vmem:[%s3395 + $0x24] sm:$0xf] %v3356
        %3406 = vst [vmem:[%s3395 + $0x28] sm:$0xf] %v3357
        %3407 = vst [vmem:[%s3395 + $0x2c] sm:$0xf] %v3358
        %3408 = vst [vmem:[%s3395 + $0x30] sm:$0xf] %v3359
        %3409 = vst [vmem:[%s3395 + $0x34] sm:$0xf] %v3360
        %3410 = vst [vmem:[%s3395 + $0x38] sm:$0xf] %v3361
        %3411 = vst [vmem:[%s3395 + $0x3c] sm:$0xf] %v3362
        %3412 = vst [vmem:[%s3395 + $0x40] sm:$0xf] %v3363
        %3413 = vst [vmem:[%s3395 + $0x44] sm:$0xf] %v3364
        %3414 = vst [vmem:[%s3395 + $0x48] sm:$0xf] %v3365
        %3415 = vst [vmem:[%s3395 + $0x4c] sm:$0xf] %v3366
        %3416 = vst [vmem:[%s3395 + $0x50] sm:$0xf] %v3367
        %3417 = vst [vmem:[%s3395 + $0x54] sm:$0xf] %v3368
        %3418 = vst [vmem:[%s3395 + $0x58] sm:$0xf] %v3369
        %3419 = vst [vmem:[%s3395 + $0x5c] sm:$0xf] %v3370
        %v3420 = vld [vmem:[%s178 + $0x10] sm:$0xff]
        %v3421 = vld [vmem:[%s178 + $0x34] sm:$0xff]
        %v3422 = vld [vmem:[%s178 + $0x58] sm:$0xff]
        %v3423 = vld [vmem:[%s178 + $0x7c] sm:$0xff]
        %v3424 = vld [vmem:[%s178 + $0xa0] sm:$0xff]
        %v3425 = vld [vmem:[%s178 + $0xc4] sm:$0xff]
        %v3426 = vld [vmem:[%s178 + $0xe8] sm:$0xff]
        %v3427 = vld [vmem:[%s178 + $0x10c] sm:$0xff]
        %v3428 = vld [vmem:[%s178 + $0x130] sm:$0xff]
        %v3429 = vld [vmem:[%s178 + $0x154] sm:$0xff]
        %v3430 = vld [vmem:[%s178 + $0x178] sm:$0xff]
        %v3431 = vld [vmem:[%s178 + $0x19c] sm:$0xff]
        %v3432 = vld [vmem:[%s178 + $0x1c0] sm:$0xff]
        %v3433 = vld [vmem:[%s178 + $0x1e4] sm:$0xff]
        %v3434 = vld [vmem:[%s178 + $0x208] sm:$0xff]
        %v3435 = vld [vmem:[%s178 + $0x22c] sm:$0xff]
        %v3436 = vld [vmem:[%s178 + $0x250] sm:$0xff]
        %v3437 = vld [vmem:[%s178 + $0x274] sm:$0xff]
        %v3438 = vld [vmem:[%s178 + $0x298] sm:$0xff]
        %v3439 = vld [vmem:[%s178 + $0x2bc] sm:$0xff]
        %v3440 = vld [vmem:[%s178 + $0x2e0] sm:$0xff]
        %v3441 = vld [vmem:[%s178 + $0x304] sm:$0xff]
        %v3442 = vld [vmem:[%s178 + $0x328] sm:$0xff]
        %v3443 = vld [vmem:[%s178 + $0x34c] sm:$0xff]
        %s3444 = scalar_lea.vmem [#allocation5], 768
        %v3445 = vld [vmem:[%s3444] sm:$0xf]
        %v3446 = vld [vmem:[%s3444 + $0x4] sm:$0xf]
        %v3447 = vld [vmem:[%s3444 + $0x8] sm:$0xf]
        %v3448 = vld [vmem:[%s3444 + $0xc] sm:$0xf]
        %v3449 = vld [vmem:[%s3444 + $0x10] sm:$0xf]
        %v3450 = vld [vmem:[%s3444 + $0x14] sm:$0xf]
        %v3451 = vld [vmem:[%s3444 + $0x18] sm:$0xf]
        %v3452 = vld [vmem:[%s3444 + $0x1c] sm:$0xf]
        %v3453 = vld [vmem:[%s3444 + $0x20] sm:$0xf]
        %v3454 = vld [vmem:[%s3444 + $0x24] sm:$0xf]
        %v3455 = vld [vmem:[%s3444 + $0x28] sm:$0xf]
        %v3456 = vld [vmem:[%s3444 + $0x2c] sm:$0xf]
        %v3457 = vld [vmem:[%s3444 + $0x30] sm:$0xf]
        %v3458 = vld [vmem:[%s3444 + $0x34] sm:$0xf]
        %v3459 = vld [vmem:[%s3444 + $0x38] sm:$0xf]
        %v3460 = vld [vmem:[%s3444 + $0x3c] sm:$0xf]
        %v3461 = vld [vmem:[%s3444 + $0x40] sm:$0xf]
        %v3462 = vld [vmem:[%s3444 + $0x44] sm:$0xf]
        %v3463 = vld [vmem:[%s3444 + $0x48] sm:$0xf]
        %v3464 = vld [vmem:[%s3444 + $0x4c] sm:$0xf]
        %v3465 = vld [vmem:[%s3444 + $0x50] sm:$0xf]
        %v3466 = vld [vmem:[%s3444 + $0x54] sm:$0xf]
        %v3467 = vld [vmem:[%s3444 + $0x58] sm:$0xf]
        %v3468 = vld [vmem:[%s3444 + $0x5c] sm:$0xf]
        %v3469 = vld [vmem:[%s3444 + $0x60] sm:$0xf]
        %v3470 = vld [vmem:[%s3444 + $0x64] sm:$0xf]
        %v3471 = vld [vmem:[%s3444 + $0x68] sm:$0xf]
        %v3472 = vld [vmem:[%s3444 + $0x6c] sm:$0xf]
        %v3473 = vld [vmem:[%s3444 + $0x70] sm:$0xf]
        %v3474 = vld [vmem:[%s3444 + $0x74] sm:$0xf]
        %v3475 = vld [vmem:[%s3444 + $0x78] sm:$0xf]
        %v3476 = vld [vmem:[%s3444 + $0x7c] sm:$0xf]
        %v3477 = vld [vmem:[%s178 + $0x1c] sm:$0xff]
        %v3478 = vld [vmem:[%s178 + $0x40] sm:$0xff]
        %v3479 = vld [vmem:[%s178 + $0x64] sm:$0xff]
        %v3480 = vld [vmem:[%s178 + $0x88] sm:$0xff]
        %v3481 = vld [vmem:[%s178 + $0xac] sm:$0xff]
        %v3482 = vld [vmem:[%s178 + $0xd0] sm:$0xff]
        %v3483 = vld [vmem:[%s178 + $0xf4] sm:$0xff]
        %v3484 = vld [vmem:[%s178 + $0x118] sm:$0xff]
        %v3485 = vld [vmem:[%s178 + $0x13c] sm:$0xff]
        %v3486 = vld [vmem:[%s178 + $0x160] sm:$0xff]
        %v3487 = vld [vmem:[%s178 + $0x184] sm:$0xff]
        %v3488 = vld [vmem:[%s178 + $0x1a8] sm:$0xff]
        %v3489 = vld [vmem:[%s178 + $0x1cc] sm:$0xff]
        %v3490 = vld [vmem:[%s178 + $0x1f0] sm:$0xff]
        %v3491 = vld [vmem:[%s178 + $0x214] sm:$0xff]
        %v3492 = vld [vmem:[%s178 + $0x238] sm:$0xff]
        %v3493 = vld [vmem:[%s178 + $0x25c] sm:$0xff]
        %v3494 = vld [vmem:[%s178 + $0x280] sm:$0xff]
        %v3495 = vld [vmem:[%s178 + $0x2a4] sm:$0xff]
        %v3496 = vld [vmem:[%s178 + $0x2c8] sm:$0xff]
        %v3497 = vld [vmem:[%s178 + $0x2ec] sm:$0xff]
        %v3498 = vld [vmem:[%s178 + $0x310] sm:$0xff]
        %v3499 = vld [vmem:[%s178 + $0x334] sm:$0xff]
        %v3500 = vld [vmem:[%s178 + $0x358] sm:$0xff]
        %s3501 = scalar_lea.vmem [#allocation5], 896
        %v3502 = vld [vmem:[%s3501] sm:$0xf]
        %v3503 = vld [vmem:[%s3501 + $0x4] sm:$0xf]
        %v3504 = vld [vmem:[%s3501 + $0x8] sm:$0xf]
        %v3505 = vld [vmem:[%s3501 + $0xc] sm:$0xf]
        %v3506 = vld [vmem:[%s3501 + $0x10] sm:$0xf]
        %v3507 = vld [vmem:[%s3501 + $0x14] sm:$0xf]
        %v3508 = vld [vmem:[%s3501 + $0x18] sm:$0xf]
        %v3509 = vld [vmem:[%s3501 + $0x1c] sm:$0xf]
        %v3510 = vld [vmem:[%s3501 + $0x20] sm:$0xf]
        %v3511 = vld [vmem:[%s3501 + $0x24] sm:$0xf]
        %v3512 = vld [vmem:[%s3501 + $0x28] sm:$0xf]
        %v3513 = vld [vmem:[%s3501 + $0x2c] sm:$0xf]
        %v3514 = vld [vmem:[%s3501 + $0x30] sm:$0xf]
        %v3515 = vld [vmem:[%s3501 + $0x34] sm:$0xf]
        %v3516 = vld [vmem:[%s3501 + $0x38] sm:$0xf]
        %v3517 = vld [vmem:[%s3501 + $0x3c] sm:$0xf]
        %v3518 = vld [vmem:[%s3501 + $0x40] sm:$0xf]
        %v3519 = vld [vmem:[%s3501 + $0x44] sm:$0xf]
        %v3520 = vld [vmem:[%s3501 + $0x48] sm:$0xf]
        %v3521 = vld [vmem:[%s3501 + $0x4c] sm:$0xf]
        %v3522 = vld [vmem:[%s3501 + $0x50] sm:$0xf]
        %v3523 = vld [vmem:[%s3501 + $0x54] sm:$0xf]
        %v3524 = vld [vmem:[%s3501 + $0x58] sm:$0xf]
        %v3525 = vld [vmem:[%s3501 + $0x5c] sm:$0xf]
        %v3526 = vld [vmem:[%s3501 + $0x60] sm:$0xf]
        %v3527 = vld [vmem:[%s3501 + $0x64] sm:$0xf]
        %v3528 = vld [vmem:[%s3501 + $0x68] sm:$0xf]
        %v3529 = vld [vmem:[%s3501 + $0x6c] sm:$0xf]
        %v3530 = vld [vmem:[%s3501 + $0x70] sm:$0xf]
        %v3531 = vld [vmem:[%s3501 + $0x74] sm:$0xf]
        %v3532 = vld [vmem:[%s3501 + $0x78] sm:$0xf]
        %v3533 = vld [vmem:[%s3501 + $0x7c] sm:$0xf]
        %v3558 = vunpack.c.l.b16 %v3477
        %v3559 = vunpack.c.h.b16 %v3477
        %v3560 = vunpack.c.l.b16 %v3478
        %v3561 = vunpack.c.h.b16 %v3478
        %v3562 = vunpack.c.l.b16 %v3479
        %v3563 = vunpack.c.h.b16 %v3479
        %v3564 = vunpack.c.l.b16 %v3480
        %v3565 = vunpack.c.h.b16 %v3480
        %v3566 = vunpack.c.l.b16 %v3481
        %v3567 = vunpack.c.h.b16 %v3481
        %v3568 = vunpack.c.l.b16 %v3482
        %v3569 = vunpack.c.h.b16 %v3482
        %v3570 = vunpack.c.l.b16 %v3483
        %v3571 = vunpack.c.h.b16 %v3483
        %v3572 = vunpack.c.l.b16 %v3484
        %v3573 = vunpack.c.h.b16 %v3484
        %v3574 = vunpack.c.l.b16 %v3485
        %v3575 = vunpack.c.h.b16 %v3485
        %v3576 = vunpack.c.l.b16 %v3486
        %v3577 = vunpack.c.h.b16 %v3486
        %v3578 = vunpack.c.l.b16 %v3487
        %v3579 = vunpack.c.h.b16 %v3487
        %v3580 = vunpack.c.l.b16 %v3488
        %v3581 = vunpack.c.h.b16 %v3488
        %v3582 = vunpack.c.l.b16 %v3489
        %v3583 = vunpack.c.h.b16 %v3489
        %v3584 = vunpack.c.l.b16 %v3490
        %v3585 = vunpack.c.h.b16 %v3490
        %v3586 = vunpack.c.l.b16 %v3491
        %v3587 = vunpack.c.h.b16 %v3491
        %v3588 = vunpack.c.l.b16 %v3492
        %v3589 = vunpack.c.h.b16 %v3492
        %v3590 = vunpack.c.l.b16 %v3493
        %v3591 = vunpack.c.h.b16 %v3493
        %v3592 = vunpack.c.l.b16 %v3494
        %v3593 = vunpack.c.h.b16 %v3494
        %v3594 = vunpack.c.l.b16 %v3495
        %v3595 = vunpack.c.h.b16 %v3495
        %v3596 = vunpack.c.l.b16 %v3496
        %v3597 = vunpack.c.h.b16 %v3496
        %v3598 = vunpack.c.l.b16 %v3497
        %v3599 = vunpack.c.h.b16 %v3497
        %v3600 = vunpack.c.l.b16 %v3498
        %v3601 = vunpack.c.h.b16 %v3498
        %v3602 = vunpack.c.l.b16 %v3499
        %v3603 = vunpack.c.h.b16 %v3499
        %v3604 = vunpack.c.l.b16 %v3500
        %v3605 = vunpack.c.h.b16 %v3500
        %v3606 = vpack.c.b16 %v3560, %v3558
        %v3607 = vpack.c.b16 %v3561, %v3559
        %v3608 = vpack.c.b16 %v3564, %v3562
        %v3609 = vpack.c.b16 %v3565, %v3563
        %v3610 = vpack.c.b16 %v3568, %v3566
        %v3611 = vpack.c.b16 %v3569, %v3567
        %v3612 = vpack.c.b16 %v3572, %v3570
        %v3613 = vpack.c.b16 %v3573, %v3571
        %v3614 = vpack.c.b16 %v3576, %v3574
        %v3615 = vpack.c.b16 %v3577, %v3575
        %v3616 = vpack.c.b16 %v3580, %v3578
        %v3617 = vpack.c.b16 %v3581, %v3579
        %v3618 = vpack.c.b16 %v3584, %v3582
        %v3619 = vpack.c.b16 %v3585, %v3583
        %v3620 = vpack.c.b16 %v3588, %v3586
        %v3621 = vpack.c.b16 %v3589, %v3587
        %v3622 = vpack.c.b16 %v3592, %v3590
        %v3623 = vpack.c.b16 %v3593, %v3591
        %v3624 = vpack.c.b16 %v3596, %v3594
        %v3625 = vpack.c.b16 %v3597, %v3595
        %v3626 = vpack.c.b16 %v3600, %v3598
        %v3627 = vpack.c.b16 %v3601, %v3599
        %v3628 = vpack.c.b16 %v3604, %v3602
        %v3629 = vpack.c.b16 %v3605, %v3603
        %v3686 = vunpack.c.l.b16 %v3502
        %v3687 = vunpack.c.l.b16 %v3503
        %v3688 = vunpack.c.l.b16 %v3504
        %v3689 = vunpack.c.l.b16 %v3505
        %v3690 = vunpack.c.l.b16 %v3506
        %v3691 = vunpack.c.l.b16 %v3507
        %v3692 = vunpack.c.l.b16 %v3508
        %v3693 = vunpack.c.l.b16 %v3509
        %v3694 = vunpack.c.l.b16 %v3510
        %v3695 = vunpack.c.l.b16 %v3511
        %v3696 = vunpack.c.l.b16 %v3512
        %v3697 = vunpack.c.l.b16 %v3513
        %v3698 = vunpack.c.l.b16 %v3514
        %v3699 = vunpack.c.l.b16 %v3515
        %v3700 = vunpack.c.l.b16 %v3516
        %v3701 = vunpack.c.l.b16 %v3517
        %v3702 = vunpack.c.l.b16 %v3518
        %v3703 = vunpack.c.l.b16 %v3519
        %v3704 = vunpack.c.l.b16 %v3520
        %v3705 = vunpack.c.l.b16 %v3521
        %v3706 = vunpack.c.l.b16 %v3522
        %v3707 = vunpack.c.l.b16 %v3523
        %v3708 = vunpack.c.l.b16 %v3524
        %v3709 = vunpack.c.l.b16 %v3525
        %v3710 = vunpack.c.l.b16 %v3526
        %v3711 = vunpack.c.l.b16 %v3527
        %v3712 = vunpack.c.l.b16 %v3528
        %v3713 = vunpack.c.l.b16 %v3529
        %v3714 = vunpack.c.l.b16 %v3530
        %v3715 = vunpack.c.l.b16 %v3531
        %v3716 = vunpack.c.l.b16 %v3532
        %v3717 = vunpack.c.l.b16 %v3533
        %v3718 = vpack.c.b16 %v3687, %v3686
        %v3719 = vpack.c.b16 %v3689, %v3688
        %v3720 = vpack.c.b16 %v3691, %v3690
        %v3721 = vpack.c.b16 %v3693, %v3692
        %v3722 = vpack.c.b16 %v3695, %v3694
        %v3723 = vpack.c.b16 %v3697, %v3696
        %v3724 = vpack.c.b16 %v3699, %v3698
        %v3725 = vpack.c.b16 %v3701, %v3700
        %v3726 = vpack.c.b16 %v3703, %v3702
        %v3727 = vpack.c.b16 %v3705, %v3704
        %v3728 = vpack.c.b16 %v3707, %v3706
        %v3729 = vpack.c.b16 %v3709, %v3708
        %v3730 = vpack.c.b16 %v3711, %v3710
        %v3731 = vpack.c.b16 %v3713, %v3712
        %v3732 = vpack.c.b16 %v3715, %v3714
        %v3733 = vpack.c.b16 %v3717, %v3716
        %3750 = vmatprep.subr.bf16.mxu0 0
        %3751 = vmatpush1.bf16.msra.mxu0 %v3718
        %3752 = vmatprep.subr.bf16.mxu0 0
        %3753 = vmatpush1.bf16.msra.mxu0 %v3719
        %3754 = vmatprep.subr.bf16.mxu0 0
        %3755 = vmatpush1.bf16.msra.mxu0 %v3720
        %3756 = vmatprep.subr.bf16.mxu0 0
        %3757 = vmatpush1.bf16.msra.mxu0 %v3721
        %3758 = vmatprep.subr.bf16.mxu0 0
        %3759 = vmatpush1.bf16.msra.mxu0 %v3722
        %3760 = vmatprep.subr.bf16.mxu0 0
        %3761 = vmatpush1.bf16.msra.mxu0 %v3723
        %3762 = vmatprep.subr.bf16.mxu0 0
        %3763 = vmatpush1.bf16.msra.mxu0 %v3724
        %3764 = vmatprep.subr.bf16.mxu0 0
        %3765 = vmatpush1.bf16.msra.mxu0 %v3725
        %3766 = vmatprep.subr.bf16.mxu0 0
        %3767 = vmatpush1.bf16.msra.mxu0 %v3726
        %3768 = vmatprep.subr.bf16.mxu0 0
        %3769 = vmatpush1.bf16.msra.mxu0 %v3727
        %3770 = vmatprep.subr.bf16.mxu0 0
        %3771 = vmatpush1.bf16.msra.mxu0 %v3728
        %3772 = vmatprep.subr.bf16.mxu0 0
        %3773 = vmatpush1.bf16.msra.mxu0 %v3729
        %3774 = vmatprep.subr.bf16.mxu0 0
        %3775 = vmatpush1.bf16.msra.mxu0 %v3730
        %3776 = vmatprep.subr.bf16.mxu0 0
        %3777 = vmatpush1.bf16.msra.mxu0 %v3731
        %3778 = vmatprep.subr.bf16.mxu0 0
        %3779 = vmatpush1.bf16.msra.mxu0 %v3732
        %3780 = vmatprep.subr.bf16.mxu0 0
        %3781 = vmatpush1.bf16.msra.mxu0 %v3733
        %3782 = vmatprep.mubr.bf16.mxu0 %v3607
        %3783 = vmatmul.mubr.bf16.gmra.mrb[0].mxu0 %v3606
        %v3784 = vpop.f32.mrb[0].mxu0
        %v3785 = vadd.f32 0.0, %v3784
        %v3786 = vpop.f32.mrb[0].mxu0
        %v3787 = vpop.f32.mrb[0].mxu0
        %v3788 = vadd.f32 0.0, %v3787
        %v3789 = vpop.f32.mrb[0].mxu0
        %3790 = vmatprep.mubr.bf16.mxu0 %v3609
        %3791 = vmatmul.mubr.bf16.gmra.mrb[0].mxu0 %v3608
        %v3792 = vpop.f32.mrb[0].mxu0
        %v3793 = vadd.f32 0.0, %v3792
        %v3794 = vpop.f32.mrb[0].mxu0
        %v3795 = vpop.f32.mrb[0].mxu0
        %v3796 = vadd.f32 0.0, %v3795
        %v3797 = vpop.f32.mrb[0].mxu0
        %3798 = vmatprep.mubr.bf16.mxu0 %v3611
        %3799 = vmatmul.mubr.bf16.gmra.mrb[0].mxu0 %v3610
        %v3800 = vpop.f32.mrb[0].mxu0
        %v3801 = vadd.f32 0.0, %v3800
        %v3802 = vpop.f32.mrb[0].mxu0
        %v3803 = vpop.f32.mrb[0].mxu0
        %v3804 = vadd.f32 0.0, %v3803
        %v3805 = vpop.f32.mrb[0].mxu0
        %3806 = vmatprep.mubr.bf16.mxu0 %v3613
        %3807 = vmatmul.mubr.bf16.gmra.mrb[0].mxu0 %v3612
        %v3808 = vpop.f32.mrb[0].mxu0
        %v3809 = vadd.f32 0.0, %v3808
        %v3810 = vpop.f32.mrb[0].mxu0
        %v3811 = vpop.f32.mrb[0].mxu0
        %v3812 = vadd.f32 0.0, %v3811
        %v3813 = vpop.f32.mrb[0].mxu0
        %3814 = vmatprep.mubr.bf16.mxu0 %v3615
        %3815 = vmatmul.mubr.bf16.gmra.mrb[0].mxu0 %v3614
        %v3816 = vpop.f32.mrb[0].mxu0
        %v3817 = vadd.f32 0.0, %v3816
        %v3818 = vpop.f32.mrb[0].mxu0
        %v3819 = vpop.f32.mrb[0].mxu0
        %v3820 = vadd.f32 0.0, %v3819
        %v3821 = vpop.f32.mrb[0].mxu0
        %3822 = vmatprep.mubr.bf16.mxu0 %v3617
        %3823 = vmatmul.mubr.bf16.gmra.mrb[0].mxu0 %v3616
        %v3824 = vpop.f32.mrb[0].mxu0
        %v3825 = vadd.f32 0.0, %v3824
        %v3826 = vpop.f32.mrb[0].mxu0
        %v3827 = vpop.f32.mrb[0].mxu0
        %v3828 = vadd.f32 0.0, %v3827
        %v3829 = vpop.f32.mrb[0].mxu0
        %3830 = vmatprep.mubr.bf16.mxu0 %v3619
        %3831 = vmatmul.mubr.bf16.gmra.mrb[0].mxu0 %v3618
        %v3832 = vpop.f32.mrb[0].mxu0
        %v3833 = vadd.f32 0.0, %v3832
        %v3834 = vpop.f32.mrb[0].mxu0
        %v3835 = vpop.f32.mrb[0].mxu0
        %v3836 = vadd.f32 0.0, %v3835
        %v3837 = vpop.f32.mrb[0].mxu0
        %3838 = vmatprep.mubr.bf16.mxu0 %v3621
        %3839 = vmatmul.mubr.bf16.gmra.mrb[0].mxu0 %v3620
        %v3840 = vpop.f32.mrb[0].mxu0
        %v3841 = vadd.f32 0.0, %v3840
        %v3842 = vpop.f32.mrb[0].mxu0
        %v3843 = vpop.f32.mrb[0].mxu0
        %v3844 = vadd.f32 0.0, %v3843
        %v3845 = vpop.f32.mrb[0].mxu0
        %3846 = vmatprep.mubr.bf16.mxu0 %v3623
        %3847 = vmatmul.mubr.bf16.gmra.mrb[0].mxu0 %v3622
        %v3848 = vpop.f32.mrb[0].mxu0
        %v3849 = vadd.f32 0.0, %v3848
        %v3850 = vpop.f32.mrb[0].mxu0
        %v3851 = vpop.f32.mrb[0].mxu0
        %v3852 = vadd.f32 0.0, %v3851
        %v3853 = vpop.f32.mrb[0].mxu0
        %3854 = vmatprep.mubr.bf16.mxu0 %v3625
        %3855 = vmatmul.mubr.bf16.gmra.mrb[0].mxu0 %v3624
        %v3856 = vpop.f32.mrb[0].mxu0
        %v3857 = vadd.f32 0.0, %v3856
        %v3858 = vpop.f32.mrb[0].mxu0
        %v3859 = vpop.f32.mrb[0].mxu0
        %v3860 = vadd.f32 0.0, %v3859
        %v3861 = vpop.f32.mrb[0].mxu0
        %3862 = vmatprep.mubr.bf16.mxu0 %v3627
        %3863 = vmatmul.mubr.bf16.gmra.mrb[0].mxu0 %v3626
        %v3864 = vpop.f32.mrb[0].mxu0
        %v3865 = vadd.f32 0.0, %v3864
        %v3866 = vpop.f32.mrb[0].mxu0
        %v3867 = vpop.f32.mrb[0].mxu0
        %v3868 = vadd.f32 0.0, %v3867
        %v3869 = vpop.f32.mrb[0].mxu0
        %3870 = vmatprep.mubr.bf16.mxu0 %v3629
        %3871 = vmatmul.mubr.bf16.gmra.mrb[0].mxu0 %v3628
        %v3872 = vpop.f32.mrb[0].mxu0
        %v3873 = vadd.f32 0.0, %v3872
        %v3874 = vpop.f32.mrb[0].mxu0
        %v3875 = vpop.f32.mrb[0].mxu0
        %v3876 = vadd.f32 0.0, %v3875
        %v3877 = vpop.f32.mrb[0].mxu0
        %3878 = vdwg.mxu0
        %v3903 = vunpack.c.l.b16 %v3420
        %v3904 = vunpack.c.h.b16 %v3420
        %v3905 = vunpack.c.l.b16 %v3421
        %v3906 = vunpack.c.h.b16 %v3421
        %v3907 = vunpack.c.l.b16 %v3422
        %v3908 = vunpack.c.h.b16 %v3422
        %v3909 = vunpack.c.l.b16 %v3423
        %v3910 = vunpack.c.h.b16 %v3423
        %v3911 = vunpack.c.l.b16 %v3424
        %v3912 = vunpack.c.h.b16 %v3424
        %v3913 = vunpack.c.l.b16 %v3425
        %v3914 = vunpack.c.h.b16 %v3425
        %v3915 = vunpack.c.l.b16 %v3426
        %v3916 = vunpack.c.h.b16 %v3426
        %v3917 = vunpack.c.l.b16 %v3427
        %v3918 = vunpack.c.h.b16 %v3427
        %v3919 = vunpack.c.l.b16 %v3428
        %v3920 = vunpack.c.h.b16 %v3428
        %v3921 = vunpack.c.l.b16 %v3429
        %v3922 = vunpack.c.h.b16 %v3429
        %v3923 = vunpack.c.l.b16 %v3430
        %v3924 = vunpack.c.h.b16 %v3430
        %v3925 = vunpack.c.l.b16 %v3431
        %v3926 = vunpack.c.h.b16 %v3431
        %v3927 = vunpack.c.l.b16 %v3432
        %v3928 = vunpack.c.h.b16 %v3432
        %v3929 = vunpack.c.l.b16 %v3433
        %v3930 = vunpack.c.h.b16 %v3433
        %v3931 = vunpack.c.l.b16 %v3434
        %v3932 = vunpack.c.h.b16 %v3434
        %v3933 = vunpack.c.l.b16 %v3435
        %v3934 = vunpack.c.h.b16 %v3435
        %v3935 = vunpack.c.l.b16 %v3436
        %v3936 = vunpack.c.h.b16 %v3436
        %v3937 = vunpack.c.l.b16 %v3437
        %v3938 = vunpack.c.h.b16 %v3437
        %v3939 = vunpack.c.l.b16 %v3438
        %v3940 = vunpack.c.h.b16 %v3438
        %v3941 = vunpack.c.l.b16 %v3439
        %v3942 = vunpack.c.h.b16 %v3439
        %v3943 = vunpack.c.l.b16 %v3440
        %v3944 = vunpack.c.h.b16 %v3440
        %v3945 = vunpack.c.l.b16 %v3441
        %v3946 = vunpack.c.h.b16 %v3441
        %v3947 = vunpack.c.l.b16 %v3442
        %v3948 = vunpack.c.h.b16 %v3442
        %v3949 = vunpack.c.l.b16 %v3443
        %v3950 = vunpack.c.h.b16 %v3443
        %v3951 = vpack.c.b16 %v3905, %v3903
        %v3952 = vpack.c.b16 %v3906, %v3904
        %v3953 = vpack.c.b16 %v3909, %v3907
        %v3954 = vpack.c.b16 %v3910, %v3908
        %v3955 = vpack.c.b16 %v3913, %v3911
        %v3956 = vpack.c.b16 %v3914, %v3912
        %v3957 = vpack.c.b16 %v3917, %v3915
        %v3958 = vpack.c.b16 %v3918, %v3916
        %v3959 = vpack.c.b16 %v3921, %v3919
        %v3960 = vpack.c.b16 %v3922, %v3920
        %v3961 = vpack.c.b16 %v3925, %v3923
        %v3962 = vpack.c.b16 %v3926, %v3924
        %v3963 = vpack.c.b16 %v3929, %v3927
        %v3964 = vpack.c.b16 %v3930, %v3928
        %v3965 = vpack.c.b16 %v3933, %v3931
        %v3966 = vpack.c.b16 %v3934, %v3932
        %v3967 = vpack.c.b16 %v3937, %v3935
        %v3968 = vpack.c.b16 %v3938, %v3936
        %v3969 = vpack.c.b16 %v3941, %v3939
        %v3970 = vpack.c.b16 %v3942, %v3940
        %v3971 = vpack.c.b16 %v3945, %v3943
        %v3972 = vpack.c.b16 %v3946, %v3944
        %v3973 = vpack.c.b16 %v3949, %v3947
        %v3974 = vpack.c.b16 %v3950, %v3948
        %v4031 = vunpack.c.l.b16 %v3445
        %v4032 = vunpack.c.l.b16 %v3446
        %v4033 = vunpack.c.l.b16 %v3447
        %v4034 = vunpack.c.l.b16 %v3448
        %v4035 = vunpack.c.l.b16 %v3449
        %v4036 = vunpack.c.l.b16 %v3450
        %v4037 = vunpack.c.l.b16 %v3451
        %v4038 = vunpack.c.l.b16 %v3452
        %v4039 = vunpack.c.l.b16 %v3453
        %v4040 = vunpack.c.l.b16 %v3454
        %v4041 = vunpack.c.l.b16 %v3455
        %v4042 = vunpack.c.l.b16 %v3456
        %v4043 = vunpack.c.l.b16 %v3457
        %v4044 = vunpack.c.l.b16 %v3458
        %v4045 = vunpack.c.l.b16 %v3459
        %v4046 = vunpack.c.l.b16 %v3460
        %v4047 = vunpack.c.l.b16 %v3461
        %v4048 = vunpack.c.l.b16 %v3462
        %v4049 = vunpack.c.l.b16 %v3463
        %v4050 = vunpack.c.l.b16 %v3464
        %v4051 = vunpack.c.l.b16 %v3465
        %v4052 = vunpack.c.l.b16 %v3466
        %v4053 = vunpack.c.l.b16 %v3467
        %v4054 = vunpack.c.l.b16 %v3468
        %v4055 = vunpack.c.l.b16 %v3469
        %v4056 = vunpack.c.l.b16 %v3470
        %v4057 = vunpack.c.l.b16 %v3471
        %v4058 = vunpack.c.l.b16 %v3472
        %v4059 = vunpack.c.l.b16 %v3473
        %v4060 = vunpack.c.l.b16 %v3474
        %v4061 = vunpack.c.l.b16 %v3475
        %v4062 = vunpack.c.l.b16 %v3476
        %v4063 = vpack.c.b16 %v4032, %v4031
        %v4064 = vpack.c.b16 %v4034, %v4033
        %v4065 = vpack.c.b16 %v4036, %v4035
        %v4066 = vpack.c.b16 %v4038, %v4037
        %v4067 = vpack.c.b16 %v4040, %v4039
        %v4068 = vpack.c.b16 %v4042, %v4041
        %v4069 = vpack.c.b16 %v4044, %v4043
        %v4070 = vpack.c.b16 %v4046, %v4045
        %v4071 = vpack.c.b16 %v4048, %v4047
        %v4072 = vpack.c.b16 %v4050, %v4049
        %v4073 = vpack.c.b16 %v4052, %v4051
        %v4074 = vpack.c.b16 %v4054, %v4053
        %v4075 = vpack.c.b16 %v4056, %v4055
        %v4076 = vpack.c.b16 %v4058, %v4057
        %v4077 = vpack.c.b16 %v4060, %v4059
        %v4078 = vpack.c.b16 %v4062, %v4061
        %4095 = vmatprep.subr.bf16.mxu0 0
        %4096 = vmatpush1.bf16.msra.mxu0 %v4063
        %4097 = vmatprep.subr.bf16.mxu0 0
        %4098 = vmatpush1.bf16.msra.mxu0 %v4064
        %4099 = vmatprep.subr.bf16.mxu0 0
        %4100 = vmatpush1.bf16.msra.mxu0 %v4065
        %4101 = vmatprep.subr.bf16.mxu0 0
        %4102 = vmatpush1.bf16.msra.mxu0 %v4066
        %4103 = vmatprep.subr.bf16.mxu0 0
        %4104 = vmatpush1.bf16.msra.mxu0 %v4067
        %4105 = vmatprep.subr.bf16.mxu0 0
        %4106 = vmatpush1.bf16.msra.mxu0 %v4068
        %4107 = vmatprep.subr.bf16.mxu0 0
        %4108 = vmatpush1.bf16.msra.mxu0 %v4069
        %4109 = vmatprep.subr.bf16.mxu0 0
        %4110 = vmatpush1.bf16.msra.mxu0 %v4070
        %4111 = vmatprep.subr.bf16.mxu0 0
        %4112 = vmatpush1.bf16.msra.mxu0 %v4071
        %4113 = vmatprep.subr.bf16.mxu0 0
        %4114 = vmatpush1.bf16.msra.mxu0 %v4072
        %4115 = vmatprep.subr.bf16.mxu0 0
        %4116 = vmatpush1.bf16.msra.mxu0 %v4073
        %4117 = vmatprep.subr.bf16.mxu0 0
        %4118 = vmatpush1.bf16.msra.mxu0 %v4074
        %4119 = vmatprep.subr.bf16.mxu0 0
        %4120 = vmatpush1.bf16.msra.mxu0 %v4075
        %4121 = vmatprep.subr.bf16.mxu0 0
        %4122 = vmatpush1.bf16.msra.mxu0 %v4076
        %4123 = vmatprep.subr.bf16.mxu0 0
        %4124 = vmatpush1.bf16.msra.mxu0 %v4077
        %4125 = vmatprep.subr.bf16.mxu0 0
        %4126 = vmatpush1.bf16.msra.mxu0 %v4078
        %4127 = vmatprep.mubr.bf16.mxu0 %v3952
        %4128 = vmatmul.mubr.bf16.gmra.mrb[0].mxu0 %v3951
        %v4129 = vpop.f32.mrb[0].mxu0
        %v4130 = vadd.f32 %v3785, %v4129
        %v4131 = vpop.f32.mrb[0].mxu0
        %v4132 = vpop.f32.mrb[0].mxu0
        %v4133 = vadd.f32 %v3788, %v4132
        %v4134 = vpop.f32.mrb[0].mxu0
        %4135 = vmatprep.mubr.bf16.mxu0 %v3954
        %4136 = vmatmul.mubr.bf16.gmra.mrb[0].mxu0 %v3953
        %v4137 = vpop.f32.mrb[0].mxu0
        %v4138 = vadd.f32 %v3793, %v4137
        %v4139 = vpop.f32.mrb[0].mxu0
        %v4140 = vpop.f32.mrb[0].mxu0
        %v4141 = vadd.f32 %v3796, %v4140
        %v4142 = vpop.f32.mrb[0].mxu0
        %4143 = vmatprep.mubr.bf16.mxu0 %v3956
        %4144 = vmatmul.mubr.bf16.gmra.mrb[0].mxu0 %v3955
        %v4145 = vpop.f32.mrb[0].mxu0
        %v4146 = vadd.f32 %v3801, %v4145
        %v4147 = vpop.f32.mrb[0].mxu0
        %v4148 = vpop.f32.mrb[0].mxu0
        %v4149 = vadd.f32 %v3804, %v4148
        %v4150 = vpop.f32.mrb[0].mxu0
        %4151 = vmatprep.mubr.bf16.mxu0 %v3958
        %4152 = vmatmul.mubr.bf16.gmra.mrb[0].mxu0 %v3957
        %v4153 = vpop.f32.mrb[0].mxu0
        %v4154 = vadd.f32 %v3809, %v4153
        %v4155 = vpop.f32.mrb[0].mxu0
        %v4156 = vpop.f32.mrb[0].mxu0
        %v4157 = vadd.f32 %v3812, %v4156
        %v4158 = vpop.f32.mrb[0].mxu0
        %4159 = vmatprep.mubr.bf16.mxu0 %v3960
        %4160 = vmatmul.mubr.bf16.gmra.mrb[0].mxu0 %v3959
        %v4161 = vpop.f32.mrb[0].mxu0
        %v4162 = vadd.f32 %v3817, %v4161
        %v4163 = vpop.f32.mrb[0].mxu0
        %v4164 = vpop.f32.mrb[0].mxu0
        %v4165 = vadd.f32 %v3820, %v4164
        %v4166 = vpop.f32.mrb[0].mxu0
        %4167 = vmatprep.mubr.bf16.mxu0 %v3962
        %4168 = vmatmul.mubr.bf16.gmra.mrb[0].mxu0 %v3961
        %v4169 = vpop.f32.mrb[0].mxu0
        %v4170 = vadd.f32 %v3825, %v4169
        %v4171 = vpop.f32.mrb[0].mxu0
        %v4172 = vpop.f32.mrb[0].mxu0
        %v4173 = vadd.f32 %v3828, %v4172
        %v4174 = vpop.f32.mrb[0].mxu0
        %4175 = vmatprep.mubr.bf16.mxu0 %v3964
        %4176 = vmatmul.mubr.bf16.gmra.mrb[0].mxu0 %v3963
        %v4177 = vpop.f32.mrb[0].mxu0
        %v4178 = vadd.f32 %v3833, %v4177
        %v4179 = vpop.f32.mrb[0].mxu0
        %v4180 = vpop.f32.mrb[0].mxu0
        %v4181 = vadd.f32 %v3836, %v4180
        %v4182 = vpop.f32.mrb[0].mxu0
        %4183 = vmatprep.mubr.bf16.mxu0 %v3966
        %4184 = vmatmul.mubr.bf16.gmra.mrb[0].mxu0 %v3965
        %v4185 = vpop.f32.mrb[0].mxu0
        %v4186 = vadd.f32 %v3841, %v4185
        %v4187 = vpop.f32.mrb[0].mxu0
        %v4188 = vpop.f32.mrb[0].mxu0
        %v4189 = vadd.f32 %v3844, %v4188
        %v4190 = vpop.f32.mrb[0].mxu0
        %4191 = vmatprep.mubr.bf16.mxu0 %v3968
        %4192 = vmatmul.mubr.bf16.gmra.mrb[0].mxu0 %v3967
        %v4193 = vpop.f32.mrb[0].mxu0
        %v4194 = vadd.f32 %v3849, %v4193
        %v4195 = vpop.f32.mrb[0].mxu0
        %v4196 = vpop.f32.mrb[0].mxu0
        %v4197 = vadd.f32 %v3852, %v4196
        %v4198 = vpop.f32.mrb[0].mxu0
        %4199 = vmatprep.mubr.bf16.mxu0 %v3970
        %4200 = vmatmul.mubr.bf16.gmra.mrb[0].mxu0 %v3969
        %v4201 = vpop.f32.mrb[0].mxu0
        %v4202 = vadd.f32 %v3857, %v4201
        %v4203 = vpop.f32.mrb[0].mxu0
        %v4204 = vpop.f32.mrb[0].mxu0
        %v4205 = vadd.f32 %v3860, %v4204
        %v4206 = vpop.f32.mrb[0].mxu0
        %4207 = vmatprep.mubr.bf16.mxu0 %v3972
        %4208 = vmatmul.mubr.bf16.gmra.mrb[0].mxu0 %v3971
        %v4209 = vpop.f32.mrb[0].mxu0
        %v4210 = vadd.f32 %v3865, %v4209
        %v4211 = vpop.f32.mrb[0].mxu0
        %v4212 = vpop.f32.mrb[0].mxu0
        %v4213 = vadd.f32 %v3868, %v4212
        %v4214 = vpop.f32.mrb[0].mxu0
        %4215 = vmatprep.mubr.bf16.mxu0 %v3974
        %4216 = vmatmul.mubr.bf16.gmra.mrb[0].mxu0 %v3973
        %v4217 = vpop.f32.mrb[0].mxu0
        %v4218 = vadd.f32 %v3873, %v4217
        %v4219 = vpop.f32.mrb[0].mxu0
        %v4220 = vpop.f32.mrb[0].mxu0
        %v4221 = vadd.f32 %v3876, %v4220
        %v4222 = vpop.f32.mrb[0].mxu0
        %4223 = vdwg.mxu0
        %v4224 = vadd.f32 %v4130, %v213
        %v4225 = vadd.f32 %v4133, %v213
        %v4226 = vadd.f32 %v4138, %v213
        %v4227 = vadd.f32 %v4141, %v213
        %v4228 = vadd.f32 %v4146, %v213
        %v4229 = vadd.f32 %v4149, %v213
        %v4230 = vadd.f32 %v4154, %v213
        %v4231 = vadd.f32 %v4157, %v213
        %v4232 = vadd.f32 %v4162, %v213
        %v4233 = vadd.f32 %v4165, %v213
        %v4234 = vadd.f32 %v4170, %v213
        %v4235 = vadd.f32 %v4173, %v213
        %v4236 = vadd.f32 %v4178, %v213
        %v4237 = vadd.f32 %v4181, %v213
        %v4238 = vadd.f32 %v4186, %v213
        %v4239 = vadd.f32 %v4189, %v213
        %v4240 = vadd.f32 %v4194, %v213
        %v4241 = vadd.f32 %v4197, %v213
        %v4242 = vadd.f32 %v4202, %v213
        %v4243 = vadd.f32 %v4205, %v213
        %v4244 = vadd.f32 %v4210, %v213
        %v4245 = vadd.f32 %v4213, %v213
        %v4246 = vadd.f32 %v4218, %v213
        %v4247 = vadd.f32 %v4221, %v213
        %v4248 = vmul.f32 %v4224, 0.5
        %v4249 = vmul.f32 %v4225, 0.5
        %v4250 = vmul.f32 %v4226, 0.5
        %v4251 = vmul.f32 %v4227, 0.5
        %v4252 = vmul.f32 %v4228, 0.5
        %v4253 = vmul.f32 %v4229, 0.5
        %v4254 = vmul.f32 %v4230, 0.5
        %v4255 = vmul.f32 %v4231, 0.5
        %v4256 = vmul.f32 %v4232, 0.5
        %v4257 = vmul.f32 %v4233, 0.5
        %v4258 = vmul.f32 %v4234, 0.5
        %v4259 = vmul.f32 %v4235, 0.5
        %v4260 = vmul.f32 %v4236, 0.5
        %v4261 = vmul.f32 %v4237, 0.5
        %v4262 = vmul.f32 %v4238, 0.5
        %v4263 = vmul.f32 %v4239, 0.5
        %v4264 = vmul.f32 %v4240, 0.5
        %v4265 = vmul.f32 %v4241, 0.5
        %v4266 = vmul.f32 %v4242, 0.5
        %v4267 = vmul.f32 %v4243, 0.5
        %v4268 = vmul.f32 %v4244, 0.5
        %v4269 = vmul.f32 %v4245, 0.5
        %v4270 = vmul.f32 %v4246, 0.5
        %v4271 = vmul.f32 %v4247, 0.5
        %v4272 = vtanh.pop %v4248
        %v4273 = vtanh.pop %v4249
        %v4274 = vtanh.pop %v4250
        %v4275 = vtanh.pop %v4251
        %v4276 = vtanh.pop %v4252
        %v4277 = vtanh.pop %v4253
        %v4278 = vtanh.pop %v4254
        %v4279 = vtanh.pop %v4255
        %v4280 = vtanh.pop %v4256
        %v4281 = vtanh.pop %v4257
        %v4282 = vtanh.pop %v4258
        %v4283 = vtanh.pop %v4259
        %v4284 = vtanh.pop %v4260
        %v4285 = vtanh.pop %v4261
        %v4286 = vtanh.pop %v4262
        %v4287 = vtanh.pop %v4263
        %v4288 = vtanh.pop %v4264
        %v4289 = vtanh.pop %v4265
        %v4290 = vtanh.pop %v4266
        %v4291 = vtanh.pop %v4267
        %v4292 = vtanh.pop %v4268
        %v4293 = vtanh.pop %v4269
        %v4294 = vtanh.pop %v4270
        %v4295 = vtanh.pop %v4271
        %v4296 = vmul.f32 %v4272, 0.5
        %v4297 = vmul.f32 %v4273, 0.5
        %v4298 = vmul.f32 %v4274, 0.5
        %v4299 = vmul.f32 %v4275, 0.5
        %v4300 = vmul.f32 %v4276, 0.5
        %v4301 = vmul.f32 %v4277, 0.5
        %v4302 = vmul.f32 %v4278, 0.5
        %v4303 = vmul.f32 %v4279, 0.5
        %v4304 = vmul.f32 %v4280, 0.5
        %v4305 = vmul.f32 %v4281, 0.5
        %v4306 = vmul.f32 %v4282, 0.5
        %v4307 = vmul.f32 %v4283, 0.5
        %v4308 = vmul.f32 %v4284, 0.5
        %v4309 = vmul.f32 %v4285, 0.5
        %v4310 = vmul.f32 %v4286, 0.5
        %v4311 = vmul.f32 %v4287, 0.5
        %v4312 = vmul.f32 %v4288, 0.5
        %v4313 = vmul.f32 %v4289, 0.5
        %v4314 = vmul.f32 %v4290, 0.5
        %v4315 = vmul.f32 %v4291, 0.5
        %v4316 = vmul.f32 %v4292, 0.5
        %v4317 = vmul.f32 %v4293, 0.5
        %v4318 = vmul.f32 %v4294, 0.5
        %v4319 = vmul.f32 %v4295, 0.5
        %v4320 = vadd.f32 %v4296, 0.5
        %v4321 = vadd.f32 %v4297, 0.5
        %v4322 = vadd.f32 %v4298, 0.5
        %v4323 = vadd.f32 %v4299, 0.5
        %v4324 = vadd.f32 %v4300, 0.5
        %v4325 = vadd.f32 %v4301, 0.5
        %v4326 = vadd.f32 %v4302, 0.5
        %v4327 = vadd.f32 %v4303, 0.5
        %v4328 = vadd.f32 %v4304, 0.5
        %v4329 = vadd.f32 %v4305, 0.5
        %v4330 = vadd.f32 %v4306, 0.5
        %v4331 = vadd.f32 %v4307, 0.5
        %v4332 = vadd.f32 %v4308, 0.5
        %v4333 = vadd.f32 %v4309, 0.5
        %v4334 = vadd.f32 %v4310, 0.5
        %v4335 = vadd.f32 %v4311, 0.5
        %v4336 = vadd.f32 %v4312, 0.5
        %v4337 = vadd.f32 %v4313, 0.5
        %v4338 = vadd.f32 %v4314, 0.5
        %v4339 = vadd.f32 %v4315, 0.5
        %v4340 = vadd.f32 %v4316, 0.5
        %v4341 = vadd.f32 %v4317, 0.5
        %v4342 = vadd.f32 %v4318, 0.5
        %v4343 = vadd.f32 %v4319, 0.5
        %v4344 = vmul.f32 %v4224, %v4320
        %v4345 = vmul.f32 %v4225, %v4321
        %v4346 = vmul.f32 %v4226, %v4322
        %v4347 = vmul.f32 %v4227, %v4323
        %v4348 = vmul.f32 %v4228, %v4324
        %v4349 = vmul.f32 %v4229, %v4325
        %v4350 = vmul.f32 %v4230, %v4326
        %v4351 = vmul.f32 %v4231, %v4327
        %v4352 = vmul.f32 %v4232, %v4328
        %v4353 = vmul.f32 %v4233, %v4329
        %v4354 = vmul.f32 %v4234, %v4330
        %v4355 = vmul.f32 %v4235, %v4331
        %v4356 = vmul.f32 %v4236, %v4332
        %v4357 = vmul.f32 %v4237, %v4333
        %v4358 = vmul.f32 %v4238, %v4334
        %v4359 = vmul.f32 %v4239, %v4335
        %v4360 = vmul.f32 %v4240, %v4336
        %v4361 = vmul.f32 %v4241, %v4337
        %v4362 = vmul.f32 %v4242, %v4338
        %v4363 = vmul.f32 %v4243, %v4339
        %v4364 = vmul.f32 %v4244, %v4340
        %v4365 = vmul.f32 %v4245, %v4341
        %v4366 = vmul.f32 %v4246, %v4342
        %v4367 = vmul.f32 %v4247, %v4343
        %v4368 = vpack.c.bf16 %v4345, %v4344
        %v4369 = vpack.c.bf16 %v4347, %v4346
        %v4370 = vpack.c.bf16 %v4349, %v4348
        %v4371 = vpack.c.bf16 %v4351, %v4350
        %v4372 = vpack.c.bf16 %v4353, %v4352
        %v4373 = vpack.c.bf16 %v4355, %v4354
        %v4374 = vpack.c.bf16 %v4357, %v4356
        %v4375 = vpack.c.bf16 %v4359, %v4358
        %v4376 = vpack.c.bf16 %v4361, %v4360
        %v4377 = vpack.c.bf16 %v4363, %v4362
        %v4378 = vpack.c.bf16 %v4365, %v4364
        %v4379 = vpack.c.bf16 %v4367, %v4366
        %v4392 = vunpack.c.l.b16 %v4368
        %v4393 = vunpack.c.h.b16 %v4368
        %v4394 = vunpack.c.l.b16 %v4369
        %v4395 = vunpack.c.h.b16 %v4369
        %v4396 = vunpack.c.l.b16 %v4370
        %v4397 = vunpack.c.h.b16 %v4370
        %v4398 = vunpack.c.l.b16 %v4371
        %v4399 = vunpack.c.h.b16 %v4371
        %v4400 = vunpack.c.l.b16 %v4372
        %v4401 = vunpack.c.h.b16 %v4372
        %v4402 = vunpack.c.l.b16 %v4373
        %v4403 = vunpack.c.h.b16 %v4373
        %v4404 = vunpack.c.l.b16 %v4374
        %v4405 = vunpack.c.h.b16 %v4374
        %v4406 = vunpack.c.l.b16 %v4375
        %v4407 = vunpack.c.h.b16 %v4375
        %v4408 = vunpack.c.l.b16 %v4376
        %v4409 = vunpack.c.h.b16 %v4376
        %v4410 = vunpack.c.l.b16 %v4377
        %v4411 = vunpack.c.h.b16 %v4377
        %v4412 = vunpack.c.l.b16 %v4378
        %v4413 = vunpack.c.h.b16 %v4378
        %v4414 = vunpack.c.l.b16 %v4379
        %v4415 = vunpack.c.h.b16 %v4379
        %v4416 = vpack.c.b16 %v4392, %v4392
        %v4417 = vpack.c.b16 %v4393, %v4393
        %v4418 = vpack.c.b16 %v4394, %v4394
        %v4419 = vpack.c.b16 %v4395, %v4395
        %v4420 = vpack.c.b16 %v4396, %v4396
        %v4421 = vpack.c.b16 %v4397, %v4397
        %v4422 = vpack.c.b16 %v4398, %v4398
        %v4423 = vpack.c.b16 %v4399, %v4399
        %v4424 = vpack.c.b16 %v4400, %v4400
        %v4425 = vpack.c.b16 %v4401, %v4401
        %v4426 = vpack.c.b16 %v4402, %v4402
        %v4427 = vpack.c.b16 %v4403, %v4403
        %v4428 = vpack.c.b16 %v4404, %v4404
        %v4429 = vpack.c.b16 %v4405, %v4405
        %v4430 = vpack.c.b16 %v4406, %v4406
        %v4431 = vpack.c.b16 %v4407, %v4407
        %v4432 = vpack.c.b16 %v4408, %v4408
        %v4433 = vpack.c.b16 %v4409, %v4409
        %v4434 = vpack.c.b16 %v4410, %v4410
        %v4435 = vpack.c.b16 %v4411, %v4411
        %v4436 = vpack.c.b16 %v4412, %v4412
        %v4437 = vpack.c.b16 %v4413, %v4413
        %v4438 = vpack.c.b16 %v4414, %v4414
        %v4439 = vpack.c.b16 %v4415, %v4415
        %s4464 = scalar_lea.vmem %s204, 288 [#allocation7]
        %4465 = vst [vmem:[%s4464] sm:$0xf] %v4416
        %4466 = vst [vmem:[%s4464 + $0x4] sm:$0xf] %v4417
        %4467 = vst [vmem:[%s4464 + $0x8] sm:$0xf] %v4418
        %4468 = vst [vmem:[%s4464 + $0xc] sm:$0xf] %v4419
        %4469 = vst [vmem:[%s4464 + $0x10] sm:$0xf] %v4420
        %4470 = vst [vmem:[%s4464 + $0x14] sm:$0xf] %v4421
        %4471 = vst [vmem:[%s4464 + $0x18] sm:$0xf] %v4422
        %4472 = vst [vmem:[%s4464 + $0x1c] sm:$0xf] %v4423
        %4473 = vst [vmem:[%s4464 + $0x20] sm:$0xf] %v4424
        %4474 = vst [vmem:[%s4464 + $0x24] sm:$0xf] %v4425
        %4475 = vst [vmem:[%s4464 + $0x28] sm:$0xf] %v4426
        %4476 = vst [vmem:[%s4464 + $0x2c] sm:$0xf] %v4427
        %4477 = vst [vmem:[%s4464 + $0x30] sm:$0xf] %v4428
        %4478 = vst [vmem:[%s4464 + $0x34] sm:$0xf] %v4429
        %4479 = vst [vmem:[%s4464 + $0x38] sm:$0xf] %v4430
        %4480 = vst [vmem:[%s4464 + $0x3c] sm:$0xf] %v4431
        %4481 = vst [vmem:[%s4464 + $0x40] sm:$0xf] %v4432
        %4482 = vst [vmem:[%s4464 + $0x44] sm:$0xf] %v4433
        %4483 = vst [vmem:[%s4464 + $0x48] sm:$0xf] %v4434
        %4484 = vst [vmem:[%s4464 + $0x4c] sm:$0xf] %v4435
        %4485 = vst [vmem:[%s4464 + $0x50] sm:$0xf] %v4436
        %4486 = vst [vmem:[%s4464 + $0x54] sm:$0xf] %v4437
        %4487 = vst [vmem:[%s4464 + $0x58] sm:$0xf] %v4438
        %4488 = vst [vmem:[%s4464 + $0x5c] sm:$0xf] %v4439
        %s4489 = sand.u32 %s97, 1
        %s4490 = scalar_lea.sflag [#allocation4], %s4489
        %s4491 = sand.u32 %s97, 1
        %s4492 = smul.addr %s4491, 384
        %s4493 = scalar_lea.vmem [#allocation7], %s4492
        // Predicated region
        $region41: #{tpu_custom_call.1} parent=31 // pred_check
          %p4494 = pneg %p107
        $region42: #{tpu_custom_call.1} parent=31 // pred_check_branch
          %4496 = sbr.rel (%p4494) target = $region44
        $region43: #{tpu_custom_call.1} parent=31 // pred_region
          #allocation9 [shape = 'u32[6]{0}', space=smem, size = 0x18, scoped, tag = 'DMA stride descriptor']
          %s4497 = smul.u32 24, %s21
          %s4499 = ssub.s32 6144, 6144
          %4500 = vsyncadd %s4490, %s4499
          %s4501 = smul.addr %s4497, 64
          %s4502 = scalar_lea.hbm %s3, %s4501
          %s4504 = sshll.u32 1, 14
          %s4505 = sxor.u32 4294967295, %s4504
          %s4508 = sshll.u32 7, 18
          %s4509 = sxor.u32 4294967295, %s4508
          %s4510 = sand.u32 0, %s4509
          %s4512 = sor.u32 %s4510, 0
          %s4514 = sshll.u32 3, 24
          %s4515 = sxor.u32 4294967295, %s4514
          %s4516 = sand.u32 %s4512, %s4515
          %s4518 = sor.u32 %s4516, 0
          %s4519 = sshll.u32 %s4493, 4
          %s4520 = int_to_ptr.vmem [resolvable:$true] %s4519
          %4526 = sst [smem:[#allocation9]] 1536
          %s4527 = scalar_lea.smem [#allocation9], 1
          %4528 = sst [smem:[%s4527]] 3072
          %s4529 = scalar_lea.smem [#allocation9], 2
          %4530 = sst [smem:[%s4529]] 24
          %s4531 = scalar_lea.smem [#allocation9], 3
          %4532 = sst [smem:[%s4531]] 64
          %s4533 = scalar_lea.smem [#allocation9], 4
          %4534 = sst [smem:[%s4533]] 64
          %s4535 = scalar_lea.smem [#allocation9], 5
          %4536 = sst [smem:[%s4535]] 4
          %4538 = dma.general %s4520, 6144, %s4502, %s4490, [#allocation8], [#allocation9], %s4518, 0
        $region44: #{tpu_custom_call.1} parent=31 // pred_fallthru
          _
      $region32: #{tpu_custom_call.1} parent=5 // pred_fallthru
        _
      %p4539 = scmp.le.s32.totalorder 2, %s16
      // Predicated region
      $region45: #{tpu_custom_call.1} parent=5 // pred_check
        %p4540 = pneg %p4539
      $region46: #{tpu_custom_call.1} parent=5 // pred_check_branch
        %4542 = sbr.rel (%p4540) target = $region48
      $region47: #{tpu_custom_call.1} parent=5 // pred_region
        %s4543 = ssub.s32 %s16, 2
        // Predicated region
        $region49: #{tpu_custom_call.1} parent=47 // pred_check
          %p4544 = pneg %p113
        $region50: #{tpu_custom_call.1} parent=47 // pred_check_branch
          %4546 = sbr.rel (%p4544) target = $region52
        $region51: #{tpu_custom_call.1} parent=47 // pred_region
          %s4547 = sand.u32 %s98, 1
          %s4548 = scalar_lea.sflag [#allocation4], %s4547
          %s4549 = sand.u32 %s98, 1
          %s4550 = smul.addr %s4549, 384
          %s4551 = scalar_lea.vmem [#allocation7], %s4550
          %4552 = dma.done %s4548, 6144
        $region52: #{tpu_custom_call.1} parent=47 // pred_fallthru
          _
      $region48: #{tpu_custom_call.1} parent=5 // pred_fallthru
        _
    $region6: #{tpu_custom_call.1} parent=1 // loop_footer
      %s20 = sadd.s32 1, %s16
    $region7: #{tpu_custom_call.1} parent=1 // loop_footer_branch
      %15 = sbr.rel target = $region3
    $region8: #{tpu_custom_call.1} parent=1 // loop_exit
      _
    %4553 = vsyncpa [#allocation3], 1
    %s4554 = scalar_lea.sflag [#allocation3], 1
    %4555 = vsyncpa %s4554, 1
    %4556 = vsyncpa [#allocation6], 1
    %4557 = vsyncpa [#allocation4], 1
    %s4558 = scalar_lea.sflag [#allocation4], 1
    %4559 = vsyncpa %s4558, 1

</llo_original>
